<compile_context>
chip_gen: v7x
topology: tpu7x:2x2x1
jax: 0.10.0
libtpu: 0.0.40
codegen_flags: <defaults>
</compile_context>

<pallas_src>
import numpy as np
import jax
import jax.numpy as jnp
from jax.experimental import pallas as pl
from jax.experimental.pallas import tpu as pltpu


# ----------------------------------------------------------------------------
# Static network geometry
# ----------------------------------------------------------------------------
_H1, _W1 = 28, 28            # conv1 spatial
_HP1, _WP1 = 32, 32          # conv1 zero-padded spatial (pad=2)
_R1 = (_H1 - 1) * _WP1 + _W1          # 892 rows of the shifted-flat conv1 output
_M1 = _R1 - (_WP1 + 1)                # 859 rows of its 2x2 pair-max
_H2, _W2 = 14, 14            # conv2 spatial (after pool1)
_HP2, _WP2 = 18, 18          # conv2 zero-padded spatial
_R2 = (_H2 - 1) * _WP2 + _W2          # 248
_M2 = _R2 - (_WP2 + 1)                # 229
_HO, _WO = 7, 7              # spatial after pool2
_C1, _C2 = 16, 32
_KK = 25
_NCLS = 10


def _pool_select_T(m_rows, src_wp, h_out, w_out, dst_wp, dst_pad):
    """One-hot (m_rows, dst_rows) matrix: picks pair-max row 2*ho*src_wp + 2*wo and
    scatters it to padded row (ho+dst_pad)*dst_wp + (wo+dst_pad). Zero columns
    implement the next stage's zero padding for free."""
    dst_rows = (h_out + 2 * dst_pad) * dst_wp
    s = np.zeros((m_rows, dst_rows), np.float32)
    for ho in range(h_out):
        for wo in range(w_out):
            s[2 * ho * src_wp + 2 * wo, (ho + dst_pad) * dst_wp + (wo + dst_pad)] = 1.0
    return s


_S1T = _pool_select_T(_M1, _WP1, _H2, _W2, _WP2, 2)   # (859, 324): pool1 + conv2 padding
_S2T = _pool_select_T(_M2, _WP2, _HO, _WO, _WO, 0)    # (229, 49):  pool2


# ----------------------------------------------------------------------------
# Pallas kernels
# ----------------------------------------------------------------------------
def _fused_conv_stages_kernel(x_ref, w1_ref, b1_ref, w2_ref, b2_ref,
                              s1_ref, s2_ref, o_ref,
                              xp_ref, p1_ref, y1_ref, x2_ref, p2_ref, y2_ref):
    B = x_ref.shape[0]
    f32 = jnp.float32

    # --- zero-pad the 28x28 input into a flattened 32x32 image: (B, 1, 1024) ---
    xp_ref[...] = jnp.zeros_like(xp_ref)
    for h in range(_H1):
        col = (h + 2) * _WP1 + 2
        xp_ref[:, :, col:col + _W1] = x_ref[:, h:h + 1, :]

    # --- conv1 im2col in VMEM: p1[b, kh*5+kw, r] = xpad[b, r + kh*32 + kw] ---
    for kk in range(_KK):
        off = (kk // 5) * _WP1 + (kk % 5)
        p1_ref[:, kk:kk + 1, :] = xp_ref[:, :, off:off + _R1]

    # --- conv1: transposed product (channels on sublanes, flat space on lanes) ---
    for b in range(B):
        acc = jnp.dot(w1_ref[...], p1_ref[b], preferred_element_type=f32)   # (16, 892)
        y1_ref[b] = jnp.maximum(acc + b1_ref[...], 0.0)

    # --- maxpool1: pair-max of 4 shifted views, then one-hot matmul that selects the
    #     stride-2 positions and simultaneously inserts conv2's zero padding ---
    for b in range(B):
        m = jnp.maximum(
            jnp.maximum(y1_ref[b, :, 0:_M1], y1_ref[b, :, 1:1 + _M1]),
            jnp.maximum(y1_ref[b, :, _WP1:_WP1 + _M1],
                        y1_ref[b, :, _WP1 + 1:_WP1 + 1 + _M1]))             # (16, 859)
        x2_ref[b] = jnp.dot(m, s1_ref[...], preferred_element_type=f32)     # (16, 324)

    # --- conv2 im2col in VMEM: p2[b, kk*16+ci, r] = x2pad[b, ci, r + kh*18 + kw] ---
    for kk in range(_KK):
        off = (kk // 5) * _WP2 + (kk % 5)
        p2_ref[:, kk * _C1:(kk + 1) * _C1, :] = x2_ref[:, :, off:off + _R2]

    # --- conv2 + bias + ReLU ---
    for b in range(B):
        acc = jnp.dot(w2_ref[...], p2_ref[b], preferred_element_type=f32)   # (32, 248)
        y2_ref[b] = jnp.maximum(acc + b2_ref[...], 0.0)

    # --- maxpool2 -> (32, 49) per batch element == torch NCHW flatten order ---
    for b in range(B):
        m = jnp.maximum(
            jnp.maximum(y2_ref[b, :, 0:_M2], y2_ref[b, :, 1:1 + _M2]),
            jnp.maximum(y2_ref[b, :, _WP2:_WP2 + _M2],
                        y2_ref[b, :, _WP2 + 1:_WP2 + 1 + _M2]))             # (32, 229)
        o_ref[b] = jnp.dot(m, s2_ref[...], preferred_element_type=f32)      # (32, 49)


def _linear_kernel(x_ref, w_ref, b_ref, o_ref):
    acc = jnp.dot(x_ref[...], w_ref[...], preferred_element_type=jnp.float32)
    o_ref[...] = (acc + b_ref[...]).astype(o_ref.dtype)


# ----------------------------------------------------------------------------
# pallas_call wrappers
# ----------------------------------------------------------------------------
def _fused_conv_stages(x2d, w1, b1, w2, b2, s1, s2):
    B = x2d.shape[0]
    return pl.pallas_call(
        _fused_conv_stages_kernel,
        out_shape=jax.ShapeDtypeStruct((B, _C2, _HO * _WO), jnp.float32),
        grid=(1,),
        in_specs=[
            pl.BlockSpec((B, _H1, _W1), lambda i: (0, 0, 0)),
            pl.BlockSpec((_C1, _KK), lambda i: (0, 0)),
            pl.BlockSpec((_C1, 1), lambda i: (0, 0)),
            pl.BlockSpec((_C2, _KK * _C1), lambda i: (0, 0)),
            pl.BlockSpec((_C2, 1), lambda i: (0, 0)),
            pl.BlockSpec((_M1, _HP2 * _WP2), lambda i: (0, 0)),
            pl.BlockSpec((_M2, _HO * _WO), lambda i: (0, 0)),
        ],
        out_specs=pl.BlockSpec((B, _C2, _HO * _WO), lambda i: (0, 0, 0)),
        scratch_shapes=[
            pltpu.VMEM((B, 1, _HP1 * _WP1), jnp.float32),    # padded conv1 input
            pltpu.VMEM((B, _KK, _R1), jnp.float32),          # conv1 patches
            pltpu.VMEM((B, _C1, _R1), jnp.float32),          # conv1 activations
            pltpu.VMEM((B, _C1, _HP2 * _WP2), jnp.float32),  # padded conv2 input
            pltpu.VMEM((B, _KK * _C1, _R2), jnp.float32),    # conv2 patches
            pltpu.VMEM((B, _C2, _R2), jnp.float32),          # conv2 activations
        ],
        compiler_params=pltpu.CompilerParams(
            dimension_semantics=("arbitrary",),
            vmem_limit_bytes=32 * 1024 * 1024,
        ),
    )(x2d, w1, b1, w2, b2, s1, s2)


def _linear(x, w, b):
    M, K = x.shape
    N = w.shape[1]
    return pl.pallas_call(
        _linear_kernel,
        out_shape=jax.ShapeDtypeStruct((M, N), jnp.float32),
        grid=(1,),
        in_specs=[pl.BlockSpec((M, K), lambda i: (0, 0)),
                  pl.BlockSpec((K, N), lambda i: (0, 0)),
                  pl.BlockSpec((1, N), lambda i: (0, 0))],
        out_specs=pl.BlockSpec((M, N), lambda i: (0, 0)),
        compiler_params=pltpu.CompilerParams(dimension_semantics=("arbitrary",)),
    )(x, w, b)


# ----------------------------------------------------------------------------
# One-time parameter preparation + forward (mirrors CNN.forward)
# ----------------------------------------------------------------------------
def prepare_params(params):
    """One-time conversion of PyTorch-shaped parameters into kernel layouts."""
    w1, b1, w2, b2, w3, b3 = params
    return dict(
        w1=w1.reshape(_C1, _KK),                                      # (co, kh*5+kw)
        b1=b1.reshape(_C1, 1),
        w2=jnp.transpose(w2, (0, 2, 3, 1)).reshape(_C2, _KK * _C1),   # (co, (kh*5+kw)*16+ci)
        b2=b2.reshape(_C2, 1),
        w3=w3.T,                                                      # (1568, 10), NCHW order
        b3=b3.reshape(1, _NCLS),
        s1=jnp.asarray(_S1T),
        s2=jnp.asarray(_S2T),
    )


def cnn_forward(x_nchw, p):
    B = x_nchw.shape[0]
    x2d = x_nchw.reshape(B, _H1, _W1)                       # (B,1,28,28) -> (B,28,28), free
    feats = _fused_conv_stages(x2d, p["w1"], p["b1"], p["w2"], p["b2"], p["s1"], p["s2"])
    flat = feats.reshape(B, _C2 * _HO * _WO)                # already torch x.view order, free
    return _linear(flat, p["w3"], p["b3"])


# ----------------------------------------------------------------------------
# Pure-JAX reference for correctness checking
# ----------------------------------------------------------------------------
def reference_forward(x_nchw, params):
    w1, b1, w2, b2, w3, b3 = params
    x = jnp.transpose(x_nchw, (0, 2, 3, 1))

    def conv_relu_pool(x, w, b):
        w_hwio = jnp.transpose(w, (2, 3, 1, 0))
        y = jax.lax.conv_general_dilated(
            x, w_hwio, (1, 1), "SAME", dimension_numbers=("NHWC", "HWIO", "NHWC"))
        y = jax.nn.relu(y + b)
        return jax.lax.reduce_window(
            y, -jnp.inf, jax.lax.max, (1, 2, 2, 1), (1, 2, 2, 1), "VALID")

    y = conv_relu_pool(x, w1, b1)
    y = conv_relu_pool(y, w2, b2)
    flat = jnp.transpose(y, (0, 3, 1, 2)).reshape(y.shape[0], -1)
    return flat @ w3.T + b3


if __name__ == "__main__":
    key = jax.random.PRNGKey(0)
    kx, k1, k2, k3, k4, k5, k6 = jax.random.split(key, 7)

    # Input: Linear(32*7*7, 10) implies 1x28x28 inputs. Batch = 2.
    x = jax.random.normal(kx, (2, 1, 28, 28), dtype=jnp.float32)

    # Deterministic synthetic parameters (PyTorch shape conventions).
    w1 = jax.random.normal(k1, (16, 1, 5, 5), jnp.float32) * 0.2      # Conv2d(1, 16, 5)
    b1 = jax.random.normal(k2, (16,), jnp.float32) * 0.1
    w2 = jax.random.normal(k3, (32, 16, 5, 5), jnp.float32) * 0.05    # Conv2d(16, 32, 5)
    b2 = jax.random.normal(k4, (32,), jnp.float32) * 0.1
    w3 = jax.random.normal(k5, (10, 32 * 7 * 7), jnp.float32) * 0.025  # Linear(1568, 10)
    b3 = jax.random.normal(k6, (10,), jnp.float32) * 0.1
    params = (w1, b1, w2, b2, w3, b3)

    prepped = prepare_params(params)          # one-time weight/layout preparation
    fwd = jax.jit(cnn_forward)

    out = jax.block_until_ready(fwd(x, prepped))
    assert out.shape == (2, 10) and out.dtype == jnp.float32

    ref = reference_forward(x, params)
    err = float(jnp.max(jnp.abs(out - ref)))
    scale = float(jnp.max(jnp.abs(ref))) + 1.0
    assert err < 5e-2 * scale, f"mismatch: max abs err {err}"

    print("KERNEL_OK")
</pallas_src>

<mosaic_0001>
module attributes {stable_mosaic.version = 11 : i64} {
  func.func @_linear_kernel(%arg0: i32, %arg1: memref<2x1568xf32, #tpu.memory_space<vmem>>, %arg2: memref<1568x10xf32, #tpu.memory_space<vmem>>, %arg3: memref<1x10xf32, #tpu.memory_space<vmem>>, %arg4: memref<2x10xf32, #tpu.memory_space<vmem>>) attributes {dimension_semantics = [#tpu.dimension_semantics<arbitrary>], iteration_bounds = array<i64: 1>, scalar_prefetch = 0 : i64, scratch_operands = 0 : i64, tpu.core_type = #tpu.core_type<tc>, window_params = [{pipeline_mode = #tpu.pipeline_mode<synchronous>, transform_indices = @transform_0, window_bounds = array<i64: 2, 1568>}, {pipeline_mode = #tpu.pipeline_mode<synchronous>, transform_indices = @transform_1, window_bounds = array<i64: 1568, 10>}, {pipeline_mode = #tpu.pipeline_mode<synchronous>, transform_indices = @transform_2, window_bounds = array<i64: 1, 10>}, {pipeline_mode = #tpu.pipeline_mode<synchronous>, transform_indices = @transform_3, window_bounds = array<i64: 2, 10>}]} {
    %c0 = arith.constant 0 : index
    %c0_0 = arith.constant 0 : index
    %0 = vector.load %arg1[%c0, %c0_0] : memref<2x1568xf32, #tpu.memory_space<vmem>>, vector<2x1568xf32>
    %c0_1 = arith.constant 0 : index
    %c0_2 = arith.constant 0 : index
    %1 = vector.load %arg2[%c0_1, %c0_2] : memref<1568x10xf32, #tpu.memory_space<vmem>>, vector<1568x10xf32>
    %cst = arith.constant dense<0.000000e+00> : vector<2x10xf32>
    %2 = tpu.matmul %0, %1, %cst {dimension_numbers = #tpu.dot_dimension_numbers<[1], [0], [0], [1], [0, 0, 1, 1], [], []>} : vector<2x1568xf32>, vector<1568x10xf32>, vector<2x10xf32> -> vector<2x10xf32>
    %c0_3 = arith.constant 0 : index
    %c0_4 = arith.constant 0 : index
    %3 = vector.load %arg3[%c0_3, %c0_4] : memref<1x10xf32, #tpu.memory_space<vmem>>, vector<1x10xf32>
    %4 = vector.broadcast %3 : vector<1x10xf32> to vector<2x10xf32>
    %5 = arith.addf %2, %4 : vector<2x10xf32>
    %c0_5 = arith.constant 0 : index
    %c0_6 = arith.constant 0 : index
    %6 = vector.load %arg4[%c0_5, %c0_6] : memref<2x10xf32, #tpu.memory_space<vmem>>, vector<2x10xf32>
    tpu.vector_store %arg4[%c0_5, %c0_6], %5 {strides = array<i32>} : memref<2x10xf32, #tpu.memory_space<vmem>>, vector<2x10xf32>,
    return
  }
  func.func @transform_0(%arg0: i32) -> (i32, i32) {
    %c0_i32 = arith.constant 0 : i32
    %c0_i32_0 = arith.constant 0 : i32
    %c0_i32_1 = arith.constant 0 : i32
    return %c0_i32, %c0_i32_0 : i32, i32
  }
  func.func @transform_1(%arg0: i32) -> (i32, i32) {
    %c0_i32 = arith.constant 0 : i32
    %c0_i32_0 = arith.constant 0 : i32
    %c0_i32_1 = arith.constant 0 : i32
    return %c0_i32, %c0_i32_0 : i32, i32
  }
  func.func @transform_2(%arg0: i32) -> (i32, i32) {
    %c0_i32 = arith.constant 0 : i32
    %c0_i32_0 = arith.constant 0 : i32
    %c0_i32_1 = arith.constant 0 : i32
    return %c0_i32, %c0_i32_0 : i32, i32
  }
  func.func @transform_3(%arg0: i32) -> (i32, i32) {
    %c0_i32 = arith.constant 0 : i32
    %c0_i32_0 = arith.constant 0 : i32
    %c0_i32_1 = arith.constant 0 : i32
    return %c0_i32, %c0_i32_0 : i32, i32
  }
}

module attributes {stable_mosaic.version = 11 : i64} {
  func.func @_fused_conv_stages_kernel(%arg0: i32, %arg1: memref<2x28x28xf32, #tpu.memory_space<vmem>>, %arg2: memref<16x25xf32, #tpu.memory_space<vmem>>, %arg3: memref<16x1xf32, #tpu.memory_space<vmem>>, %arg4: memref<32x400xf32, #tpu.memory_space<vmem>>, %arg5: memref<32x1xf32, #tpu.memory_space<vmem>>, %arg6: memref<859x324xf32, #tpu.memory_space<vmem>>, %arg7: memref<229x49xf32, #tpu.memory_space<vmem>>, %arg8: memref<2x32x49xf32, #tpu.memory_space<vmem>>, %arg9: memref<2x1x1024xf32, #tpu.memory_space<vmem>>, %arg10: memref<2x25x892xf32, #tpu.memory_space<vmem>>, %arg11: memref<2x16x892xf32, #tpu.memory_space<vmem>>, %arg12: memref<2x16x324xf32, #tpu.memory_space<vmem>>, %arg13: memref<2x400x248xf32, #tpu.memory_space<vmem>>, %arg14: memref<2x32x248xf32, #tpu.memory_space<vmem>>) attributes {dimension_semantics = [#tpu.dimension_semantics<arbitrary>], iteration_bounds = array<i64: 1>, scalar_prefetch = 0 : i64, scratch_operands = 6 : i64, tpu.core_type = #tpu.core_type<tc>, window_params = [{pipeline_mode = #tpu.pipeline_mode<synchronous>, transform_indices = @transform_0, window_bounds = array<i64: 2, 28, 28>}, {pipeline_mode = #tpu.pipeline_mode<synchronous>, transform_indices = @transform_1, window_bounds = array<i64: 16, 25>}, {pipeline_mode = #tpu.pipeline_mode<synchronous>, transform_indices = @transform_2, window_bounds = array<i64: 16, 1>}, {pipeline_mode = #tpu.pipeline_mode<synchronous>, transform_indices = @transform_3, window_bounds = array<i64: 32, 400>}, {pipeline_mode = #tpu.pipeline_mode<synchronous>, transform_indices = @transform_4, window_bounds = array<i64: 32, 1>}, {pipeline_mode = #tpu.pipeline_mode<synchronous>, transform_indices = @transform_5, window_bounds = array<i64: 859, 324>}, {pipeline_mode = #tpu.pipeline_mode<synchronous>, transform_indices = @transform_6, window_bounds = array<i64: 229, 49>}, {pipeline_mode = #tpu.pipeline_mode<synchronous>, transform_indices = @transform_7, window_bounds = array<i64: 2, 32, 49>}]} {
    %cst = arith.constant 0.000000e+00 : f32
    %0 = vector.broadcast %cst : f32 to vector<2x1x1024xf32>
    %c0 = arith.constant 0 : index
    %c0_0 = arith.constant 0 : index
    %c0_1 = arith.constant 0 : index
    %1 = vector.load %arg9[%c0, %c0_0, %c0_1] : memref<2x1x1024xf32, #tpu.memory_space<vmem>>, vector<2x1x1024xf32>
    tpu.vector_store %arg9[%c0, %c0_0, %c0_1], %0 {strides = array<i32>} : memref<2x1x1024xf32, #tpu.memory_space<vmem>>, vector<2x1x1024xf32>,
    %c0_2 = arith.constant 0 : index
    %c0_3 = arith.constant 0 : index
    %c0_4 = arith.constant 0 : index
    %2 = vector.load %arg1[%c0_2, %c0_3, %c0_4] : memref<2x28x28xf32, #tpu.memory_space<vmem>>, vector<2x1x28xf32>
    %c0_5 = arith.constant 0 : index
    %c0_6 = arith.constant 0 : index
    %c66 = arith.constant 66 : index
    %3 = vector.load %arg9[%c0_5, %c0_6, %c66] : memref<2x1x1024xf32, #tpu.memory_space<vmem>>, vector<2x1x28xf32>
    tpu.vector_store %arg9[%c0_5, %c0_6, %c66], %2 {strides = array<i32>} : memref<2x1x1024xf32, #tpu.memory_space<vmem>>, vector<2x1x28xf32>,
    %c0_7 = arith.constant 0 : index
    %c1 = arith.constant 1 : index
    %c0_8 = arith.constant 0 : index
    %4 = vector.load %arg1[%c0_7, %c1, %c0_8] : memref<2x28x28xf32, #tpu.memory_space<vmem>>, vector<2x1x28xf32>
    %c0_9 = arith.constant 0 : index
    %c0_10 = arith.constant 0 : index
    %c98 = arith.constant 98 : index
    %5 = vector.load %arg9[%c0_9, %c0_10, %c98] : memref<2x1x1024xf32, #tpu.memory_space<vmem>>, vector<2x1x28xf32>
    tpu.vector_store %arg9[%c0_9, %c0_10, %c98], %4 {strides = array<i32>} : memref<2x1x1024xf32, #tpu.memory_space<vmem>>, vector<2x1x28xf32>,
    %c0_11 = arith.constant 0 : index
    %c2 = arith.constant 2 : index
    %c0_12 = arith.constant 0 : index
    %6 = vector.load %arg1[%c0_11, %c2, %c0_12] : memref<2x28x28xf32, #tpu.memory_space<vmem>>, vector<2x1x28xf32>
    %c0_13 = arith.constant 0 : index
    %c0_14 = arith.constant 0 : index
    %c130 = arith.constant 130 : index
    %7 = vector.load %arg9[%c0_13, %c0_14, %c130] : memref<2x1x1024xf32, #tpu.memory_space<vmem>>, vector<2x1x28xf32>
    tpu.vector_store %arg9[%c0_13, %c0_14, %c130], %6 {strides = array<i32>} : memref<2x1x1024xf32, #tpu.memory_space<vmem>>, vector<2x1x28xf32>,
    %c0_15 = arith.constant 0 : index
    %c3 = arith.constant 3 : index
    %c0_16 = arith.constant 0 : index
    %8 = vector.load %arg1[%c0_15, %c3, %c0_16] : memref<2x28x28xf32, #tpu.memory_space<vmem>>, vector<2x1x28xf32>
    %c0_17 = arith.constant 0 : index
    %c0_18 = arith.constant 0 : index
    %c162 = arith.constant 162 : index
    %9 = vector.load %arg9[%c0_17, %c0_18, %c162] : memref<2x1x1024xf32, #tpu.memory_space<vmem>>, vector<2x1x28xf32>
    tpu.vector_store %arg9[%c0_17, %c0_18, %c162], %8 {strides = array<i32>} : memref<2x1x1024xf32, #tpu.memory_space<vmem>>, vector<2x1x28xf32>,
    %c0_19 = arith.constant 0 : index
    %c4 = arith.constant 4 : index
    %c0_20 = arith.constant 0 : index
    %10 = vector.load %arg1[%c0_19, %c4, %c0_20] : memref<2x28x28xf32, #tpu.memory_space<vmem>>, vector<2x1x28xf32>
    %c0_21 = arith.constant 0 : index
    %c0_22 = arith.constant 0 : index
    %c194 = arith.constant 194 : index
    %11 = vector.load %arg9[%c0_21, %c0_22, %c194] : memref<2x1x1024xf32, #tpu.memory_space<vmem>>, vector<2x1x28xf32>
    tpu.vector_store %arg9[%c0_21, %c0_22, %c194], %10 {strides = array<i32>} : memref<2x1x1024xf32, #tpu.memory_space<vmem>>, vector<2x1x28xf32>,
    %c0_23 = arith.constant 0 : index
    %c5 = arith.constant 5 : index
    %c0_24 = arith.constant 0 : index
    %12 = vector.load %arg1[%c0_23, %c5, %c0_24] : memref<2x28x28xf32, #tpu.memory_space<vmem>>, vector<2x1x28xf32>
    %c0_25 = arith.constant 0 : index
    %c0_26 = arith.constant 0 : index
    %c226 = arith.constant 226 : index
    %13 = vector.load %arg9[%c0_25, %c0_26, %c226] : memref<2x1x1024xf32, #tpu.memory_space<vmem>>, vector<2x1x28xf32>
    tpu.vector_store %arg9[%c0_25, %c0_26, %c226], %12 {strides = array<i32>} : memref<2x1x1024xf32, #tpu.memory_space<vmem>>, vector<2x1x28xf32>,
    %c0_27 = arith.constant 0 : index
    %c6 = arith.constant 6 : index
    %c0_28 = arith.constant 0 : index
    %14 = vector.load %arg1[%c0_27, %c6, %c0_28] : memref<2x28x28xf32, #tpu.memory_space<vmem>>, vector<2x1x28xf32>
    %c0_29 = arith.constant 0 : index
    %c0_30 = arith.constant 0 : index
    %c258 = arith.constant 258 : index
    %15 = vector.load %arg9[%c0_29, %c0_30, %c258] : memref<2x1x1024xf32, #tpu.memory_space<vmem>>, vector<2x1x28xf32>
    tpu.vector_store %arg9[%c0_29, %c0_30, %c258], %14 {strides = array<i32>} : memref<2x1x1024xf32, #tpu.memory_space<vmem>>, vector<2x1x28xf32>,
    %c0_31 = arith.constant 0 : index
    %c7 = arith.constant 7 : index
    %c0_32 = arith.constant 0 : index
    %16 = vector.load %arg1[%c0_31, %c7, %c0_32] : memref<2x28x28xf32, #tpu.memory_space<vmem>>, vector<2x1x28xf32>
    %c0_33 = arith.constant 0 : index
    %c0_34 = arith.constant 0 : index
    %c290 = arith.constant 290 : index
    %17 = vector.load %arg9[%c0_33, %c0_34, %c290] : memref<2x1x1024xf32, #tpu.memory_space<vmem>>, vector<2x1x28xf32>
    tpu.vector_store %arg9[%c0_33, %c0_34, %c290], %16 {strides = array<i32>} : memref<2x1x1024xf32, #tpu.memory_space<vmem>>, vector<2x1x28xf32>,
    %c0_35 = arith.constant 0 : index
    %c8 = arith.constant 8 : index
    %c0_36 = arith.constant 0 : index
    %18 = vector.load %arg1[%c0_35, %c8, %c0_36] : memref<2x28x28xf32, #tpu.memory_space<vmem>>, vector<2x1x28xf32>
    %c0_37 = arith.constant 0 : index
    %c0_38 = arith.constant 0 : index
    %c322 = arith.constant 322 : index
    %19 = vector.load %arg9[%c0_37, %c0_38, %c322] : memref<2x1x1024xf32, #tpu.memory_space<vmem>>, vector<2x1x28xf32>
    tpu.vector_store %arg9[%c0_37, %c0_38, %c322], %18 {strides = array<i32>} : memref<2x1x1024xf32, #tpu.memory_space<vmem>>, vector<2x1x28xf32>,
    %c0_39 = arith.constant 0 : index
    %c9 = arith.constant 9 : index
    %c0_40 = arith.constant 0 : index
    %20 = vector.load %arg1[%c0_39, %c9, %c0_40] : memref<2x28x28xf32, #tpu.memory_space<vmem>>, vector<2x1x28xf32>
    %c0_41 = arith.constant 0 : index
    %c0_42 = arith.constant 0 : index
    %c354 = arith.constant 354 : index
    %21 = vector.load %arg9[%c0_41, %c0_42, %c354] : memref<2x1x1024xf32, #tpu.memory_space<vmem>>, vector<2x1x28xf32>
    tpu.vector_store %arg9[%c0_41, %c0_42, %c354], %20 {strides = array<i32>} : memref<2x1x1024xf32, #tpu.memory_space<vmem>>, vector<2x1x28xf32>,
    %c0_43 = arith.constant 0 : index
    %c10 = arith.constant 10 : index
    %c0_44 = arith.constant 0 : index
    %22 = vector.load %arg1[%c0_43, %c10, %c0_44] : memref<2x28x28xf32, #tpu.memory_space<vmem>>, vector<2x1x28xf32>
    %c0_45 = arith.constant 0 : index
    %c0_46 = arith.constant 0 : index
    %c386 = arith.constant 386 : index
    %23 = vector.load %arg9[%c0_45, %c0_46, %c386] : memref<2x1x1024xf32, #tpu.memory_space<vmem>>, vector<2x1x28xf32>
    tpu.vector_store %arg9[%c0_45, %c0_46, %c386], %22 {strides = array<i32>} : memref<2x1x1024xf32, #tpu.memory_space<vmem>>, vector<2x1x28xf32>,
    %c0_47 = arith.constant 0 : index
    %c11 = arith.constant 11 : index
    %c0_48 = arith.constant 0 : index
    %24 = vector.load %arg1[%c0_47, %c11, %c0_48] : memref<2x28x28xf32, #tpu.memory_space<vmem>>, vector<2x1x28xf32>
    %c0_49 = arith.constant 0 : index
    %c0_50 = arith.constant 0 : index
    %c418 = arith.constant 418 : index
    %25 = vector.load %arg9[%c0_49, %c0_50, %c418] : memref<2x1x1024xf32, #tpu.memory_space<vmem>>, vector<2x1x28xf32>
    tpu.vector_store %arg9[%c0_49, %c0_50, %c418], %24 {strides = array<i32>} : memref<2x1x1024xf32, #tpu.memory_space<vmem>>, vector<2x1x28xf32>,
    %c0_51 = arith.constant 0 : index
    %c12 = arith.constant 12 : index
    %c0_52 = arith.constant 0 : index
    %26 = vector.load %arg1[%c0_51, %c12, %c0_52] : memref<2x28x28xf32, #tpu.memory_space<vmem>>, vector<2x1x28xf32>
    %c0_53 = arith.constant 0 : index
    %c0_54 = arith.constant 0 : index
    %c450 = arith.constant 450 : index
    %27 = vector.load %arg9[%c0_53, %c0_54, %c450] : memref<2x1x1024xf32, #tpu.memory_space<vmem>>, vector<2x1x28xf32>
    tpu.vector_store %arg9[%c0_53, %c0_54, %c450], %26 {strides = array<i32>} : memref<2x1x1024xf32, #tpu.memory_space<vmem>>, vector<2x1x28xf32>,
    %c0_55 = arith.constant 0 : index
    %c13 = arith.constant 13 : index
    %c0_56 = arith.constant 0 : index
    %28 = vector.load %arg1[%c0_55, %c13, %c0_56] : memref<2x28x28xf32, #tpu.memory_space<vmem>>, vector<2x1x28xf32>
    %c0_57 = arith.constant 0 : index
    %c0_58 = arith.constant 0 : index
    %c482 = arith.constant 482 : index
    %29 = vector.load %arg9[%c0_57, %c0_58, %c482] : memref<2x1x1024xf32, #tpu.memory_space<vmem>>, vector<2x1x28xf32>
    tpu.vector_store %arg9[%c0_57, %c0_58, %c482], %28 {strides = array<i32>} : memref<2x1x1024xf32, #tpu.memory_space<vmem>>, vector<2x1x28xf32>,
    %c0_59 = arith.constant 0 : index
    %c14 = arith.constant 14 : index
    %c0_60 = arith.constant 0 : index
    %30 = vector.load %arg1[%c0_59, %c14, %c0_60] : memref<2x28x28xf32, #tpu.memory_space<vmem>>, vector<2x1x28xf32>
    %c0_61 = arith.constant 0 : index
    %c0_62 = arith.constant 0 : index
    %c514 = arith.constant 514 : index
    %31 = vector.load %arg9[%c0_61, %c0_62, %c514] : memref<2x1x1024xf32, #tpu.memory_space<vmem>>, vector<2x1x28xf32>
    tpu.vector_store %arg9[%c0_61, %c0_62, %c514], %30 {strides = array<i32>} : memref<2x1x1024xf32, #tpu.memory_space<vmem>>, vector<2x1x28xf32>,
    %c0_63 = arith.constant 0 : index
    %c15 = arith.constant 15 : index
    %c0_64 = arith.constant 0 : index
    %32 = vector.load %arg1[%c0_63, %c15, %c0_64] : memref<2x28x28xf32, #tpu.memory_space<vmem>>, vector<2x1x28xf32>
    %c0_65 = arith.constant 0 : index
    %c0_66 = arith.constant 0 : index
    %c546 = arith.constant 546 : index
    %33 = vector.load %arg9[%c0_65, %c0_66, %c546] : memref<2x1x1024xf32, #tpu.memory_space<vmem>>, vector<2x1x28xf32>
    tpu.vector_store %arg9[%c0_65, %c0_66, %c546], %32 {strides = array<i32>} : memref<2x1x1024xf32, #tpu.memory_space<vmem>>, vector<2x1x28xf32>,
    %c0_67 = arith.constant 0 : index
    %c16 = arith.constant 16 : index
    %c0_68 = arith.constant 0 : index
    %34 = vector.load %arg1[%c0_67, %c16, %c0_68] : memref<2x28x28xf32, #tpu.memory_space<vmem>>, vector<2x1x28xf32>
    %c0_69 = arith.constant 0 : index
    %c0_70 = arith.constant 0 : index
    %c578 = arith.constant 578 : index
    %35 = vector.load %arg9[%c0_69, %c0_70, %c578] : memref<2x1x1024xf32, #tpu.memory_space<vmem>>, vector<2x1x28xf32>
    tpu.vector_store %arg9[%c0_69, %c0_70, %c578], %34 {strides = array<i32>} : memref<2x1x1024xf32, #tpu.memory_space<vmem>>, vector<2x1x28xf32>,
    %c0_71 = arith.constant 0 : index
    %c17 = arith.constant 17 : index
    %c0_72 = arith.constant 0 : index
    %36 = vector.load %arg1[%c0_71, %c17, %c0_72] : memref<2x28x28xf32, #tpu.memory_space<vmem>>, vector<2x1x28xf32>
    %c0_73 = arith.constant 0 : index
    %c0_74 = arith.constant 0 : index
    %c610 = arith.constant 610 : index
    %37 = vector.load %arg9[%c0_73, %c0_74, %c610] : memref<2x1x1024xf32, #tpu.memory_space<vmem>>, vector<2x1x28xf32>
    tpu.vector_store %arg9[%c0_73, %c0_74, %c610], %36 {strides = array<i32>} : memref<2x1x1024xf32, #tpu.memory_space<vmem>>, vector<2x1x28xf32>,
    %c0_75 = arith.constant 0 : index
    %c18 = arith.constant 18 : index
    %c0_76 = arith.constant 0 : index
    %38 = vector.load %arg1[%c0_75, %c18, %c0_76] : memref<2x28x28xf32, #tpu.memory_space<vmem>>, vector<2x1x28xf32>
    %c0_77 = arith.constant 0 : index
    %c0_78 = arith.constant 0 : index
    %c642 = arith.constant 642 : index
    %39 = vector.load %arg9[%c0_77, %c0_78, %c642] : memref<2x1x1024xf32, #tpu.memory_space<vmem>>, vector<2x1x28xf32>
    tpu.vector_store %arg9[%c0_77, %c0_78, %c642], %38 {strides = array<i32>} : memref<2x1x1024xf32, #tpu.memory_space<vmem>>, vector<2x1x28xf32>,
    %c0_79 = arith.constant 0 : index
    %c19 = arith.constant 19 : index
    %c0_80 = arith.constant 0 : index
    %40 = vector.load %arg1[%c0_79, %c19, %c0_80] : memref<2x28x28xf32, #tpu.memory_space<vmem>>, vector<2x1x28xf32>
    %c0_81 = arith.constant 0 : index
    %c0_82 = arith.constant 0 : index
    %c674 = arith.constant 674 : index
    %41 = vector.load %arg9[%c0_81, %c0_82, %c674] : memref<2x1x1024xf32, #tpu.memory_space<vmem>>, vector<2x1x28xf32>
    tpu.vector_store %arg9[%c0_81, %c0_82, %c674], %40 {strides = array<i32>} : memref<2x1x1024xf32, #tpu.memory_space<vmem>>, vector<2x1x28xf32>,
    %c0_83 = arith.constant 0 : index
    %c20 = arith.constant 20 : index
    %c0_84 = arith.constant 0 : index
    %42 = vector.load %arg1[%c0_83, %c20, %c0_84] : memref<2x28x28xf32, #tpu.memory_space<vmem>>, vector<2x1x28xf32>
    %c0_85 = arith.constant 0 : index
    %c0_86 = arith.constant 0 : index
    %c706 = arith.constant 706 : index
    %43 = vector.load %arg9[%c0_85, %c0_86, %c706] : memref<2x1x1024xf32, #tpu.memory_space<vmem>>, vector<2x1x28xf32>
    tpu.vector_store %arg9[%c0_85, %c0_86, %c706], %42 {strides = array<i32>} : memref<2x1x1024xf32, #tpu.memory_space<vmem>>, vector<2x1x28xf32>,
    %c0_87 = arith.constant 0 : index
    %c21 = arith.constant 21 : index
    %c0_88 = arith.constant 0 : index
    %44 = vector.load %arg1[%c0_87, %c21, %c0_88] : memref<2x28x28xf32, #tpu.memory_space<vmem>>, vector<2x1x28xf32>
    %c0_89 = arith.constant 0 : index
    %c0_90 = arith.constant 0 : index
    %c738 = arith.constant 738 : index
    %45 = vector.load %arg9[%c0_89, %c0_90, %c738] : memref<2x1x1024xf32, #tpu.memory_space<vmem>>, vector<2x1x28xf32>
    tpu.vector_store %arg9[%c0_89, %c0_90, %c738], %44 {strides = array<i32>} : memref<2x1x1024xf32, #tpu.memory_space<vmem>>, vector<2x1x28xf32>,
    %c0_91 = arith.constant 0 : index
    %c22 = arith.constant 22 : index
    %c0_92 = arith.constant 0 : index
    %46 = vector.load %arg1[%c0_91, %c22, %c0_92] : memref<2x28x28xf32, #tpu.memory_space<vmem>>, vector<2x1x28xf32>
    %c0_93 = arith.constant 0 : index
    %c0_94 = arith.constant 0 : index
    %c770 = arith.constant 770 : index
    %47 = vector.load %arg9[%c0_93, %c0_94, %c770] : memref<2x1x1024xf32, #tpu.memory_space<vmem>>, vector<2x1x28xf32>
    tpu.vector_store %arg9[%c0_93, %c0_94, %c770], %46 {strides = array<i32>} : memref<2x1x1024xf32, #tpu.memory_space<vmem>>, vector<2x1x28xf32>,
    %c0_95 = arith.constant 0 : index
    %c23 = arith.constant 23 : index
    %c0_96 = arith.constant 0 : index
    %48 = vector.load %arg1[%c0_95, %c23, %c0_96] : memref<2x28x28xf32, #tpu.memory_space<vmem>>, vector<2x1x28xf32>
    %c0_97 = arith.constant 0 : index
    %c0_98 = arith.constant 0 : index
    %c802 = arith.constant 802 : index
    %49 = vector.load %arg9[%c0_97, %c0_98, %c802] : memref<2x1x1024xf32, #tpu.memory_space<vmem>>, vector<2x1x28xf32>
    tpu.vector_store %arg9[%c0_97, %c0_98, %c802], %48 {strides = array<i32>} : memref<2x1x1024xf32, #tpu.memory_space<vmem>>, vector<2x1x28xf32>,
    %c0_99 = arith.constant 0 : index
    %c24 = arith.constant 24 : index
    %c0_100 = arith.constant 0 : index
    %50 = vector.load %arg1[%c0_99, %c24, %c0_100] : memref<2x28x28xf32, #tpu.memory_space<vmem>>, vector<2x1x28xf32>
    %c0_101 = arith.constant 0 : index
    %c0_102 = arith.constant 0 : index
    %c834 = arith.constant 834 : index
    %51 = vector.load %arg9[%c0_101, %c0_102, %c834] : memref<2x1x1024xf32, #tpu.memory_space<vmem>>, vector<2x1x28xf32>
    tpu.vector_store %arg9[%c0_101, %c0_102, %c834], %50 {strides = array<i32>} : memref<2x1x1024xf32, #tpu.memory_space<vmem>>, vector<2x1x28xf32>,
    %c0_103 = arith.constant 0 : index
    %c25 = arith.constant 25 : index
    %c0_104 = arith.constant 0 : index
    %52 = vector.load %arg1[%c0_103, %c25, %c0_104] : memref<2x28x28xf32, #tpu.memory_space<vmem>>, vector<2x1x28xf32>
    %c0_105 = arith.constant 0 : index
    %c0_106 = arith.constant 0 : index
    %c866 = arith.constant 866 : index
    %53 = vector.load %arg9[%c0_105, %c0_106, %c866] : memref<2x1x1024xf32, #tpu.memory_space<vmem>>, vector<2x1x28xf32>
    tpu.vector_store %arg9[%c0_105, %c0_106, %c866], %52 {strides = array<i32>} : memref<2x1x1024xf32, #tpu.memory_space<vmem>>, vector<2x1x28xf32>,
    %c0_107 = arith.constant 0 : index
    %c26 = arith.constant 26 : index
    %c0_108 = arith.constant 0 : index
    %54 = vector.load %arg1[%c0_107, %c26, %c0_108] : memref<2x28x28xf32, #tpu.memory_space<vmem>>, vector<2x1x28xf32>
    %c0_109 = arith.constant 0 : index
    %c0_110 = arith.constant 0 : index
    %c898 = arith.constant 898 : index
    %55 = vector.load %arg9[%c0_109, %c0_110, %c898] : memref<2x1x1024xf32, #tpu.memory_space<vmem>>, vector<2x1x28xf32>
    tpu.vector_store %arg9[%c0_109, %c0_110, %c898], %54 {strides = array<i32>} : memref<2x1x1024xf32, #tpu.memory_space<vmem>>, vector<2x1x28xf32>,
    %c0_111 = arith.constant 0 : index
    %c27 = arith.constant 27 : index
    %c0_112 = arith.constant 0 : index
    %56 = vector.load %arg1[%c0_111, %c27, %c0_112] : memref<2x28x28xf32, #tpu.memory_space<vmem>>, vector<2x1x28xf32>
    %c0_113 = arith.constant 0 : index
    %c0_114 = arith.constant 0 : index
    %c930 = arith.constant 930 : index
    %57 = vector.load %arg9[%c0_113, %c0_114, %c930] : memref<2x1x1024xf32, #tpu.memory_space<vmem>>, vector<2x1x28xf32>
    tpu.vector_store %arg9[%c0_113, %c0_114, %c930], %56 {strides = array<i32>} : memref<2x1x1024xf32, #tpu.memory_space<vmem>>, vector<2x1x28xf32>,
    %c0_115 = arith.constant 0 : index
    %c0_116 = arith.constant 0 : index
    %c0_117 = arith.constant 0 : index
    %58 = vector.load %arg9[%c0_115, %c0_116, %c0_117] : memref<2x1x1024xf32, #tpu.memory_space<vmem>>, vector<2x1x892xf32>
    %c0_118 = arith.constant 0 : index
    %c0_119 = arith.constant 0 : index
    %c0_120 = arith.constant 0 : index
    %59 = vector.load %arg10[%c0_118, %c0_119, %c0_120] : memref<2x25x892xf32, #tpu.memory_space<vmem>>, vector<2x1x892xf32>
    tpu.vector_store %arg10[%c0_118, %c0_119, %c0_120], %58 {strides = array<i32>} : memref<2x25x892xf32, #tpu.memory_space<vmem>>, vector<2x1x892xf32>,
    %c0_121 = arith.constant 0 : index
    %c0_122 = arith.constant 0 : index
    %c1_123 = arith.constant 1 : index
    %60 = vector.load %arg9[%c0_121, %c0_122, %c1_123] : memref<2x1x1024xf32, #tpu.memory_space<vmem>>, vector<2x1x892xf32>
    %c0_124 = arith.constant 0 : index
    %c1_125 = arith.constant 1 : index
    %c0_126 = arith.constant 0 : index
    %61 = vector.load %arg10[%c0_124, %c1_125, %c0_126] : memref<2x25x892xf32, #tpu.memory_space<vmem>>, vector<2x1x892xf32>
    tpu.vector_store %arg10[%c0_124, %c1_125, %c0_126], %60 {strides = array<i32>} : memref<2x25x892xf32, #tpu.memory_space<vmem>>, vector<2x1x892xf32>,
    %c0_127 = arith.constant 0 : index
    %c0_128 = arith.constant 0 : index
    %c2_129 = arith.constant 2 : index
    %62 = vector.load %arg9[%c0_127, %c0_128, %c2_129] : memref<2x1x1024xf32, #tpu.memory_space<vmem>>, vector<2x1x892xf32>
    %c0_130 = arith.constant 0 : index
    %c2_131 = arith.constant 2 : index
    %c0_132 = arith.constant 0 : index
    %63 = vector.load %arg10[%c0_130, %c2_131, %c0_132] : memref<2x25x892xf32, #tpu.memory_space<vmem>>, vector<2x1x892xf32>
    tpu.vector_store %arg10[%c0_130, %c2_131, %c0_132], %62 {strides = array<i32>} : memref<2x25x892xf32, #tpu.memory_space<vmem>>, vector<2x1x892xf32>,
    %c0_133 = arith.constant 0 : index
    %c0_134 = arith.constant 0 : index
    %c3_135 = arith.constant 3 : index
    %64 = vector.load %arg9[%c0_133, %c0_134, %c3_135] : memref<2x1x1024xf32, #tpu.memory_space<vmem>>, vector<2x1x892xf32>
    %c0_136 = arith.constant 0 : index
    %c3_137 = arith.constant 3 : index
    %c0_138 = arith.constant 0 : index
    %65 = vector.load %arg10[%c0_136, %c3_137, %c0_138] : memref<2x25x892xf32, #tpu.memory_space<vmem>>, vector<2x1x892xf32>
    tpu.vector_store %arg10[%c0_136, %c3_137, %c0_138], %64 {strides = array<i32>} : memref<2x25x892xf32, #tpu.memory_space<vmem>>, vector<2x1x892xf32>,
    %c0_139 = arith.constant 0 : index
    %c0_140 = arith.constant 0 : index
    %c4_141 = arith.constant 4 : index
    %66 = vector.load %arg9[%c0_139, %c0_140, %c4_141] : memref<2x1x1024xf32, #tpu.memory_space<vmem>>, vector<2x1x892xf32>
    %c0_142 = arith.constant 0 : index
    %c4_143 = arith.constant 4 : index
    %c0_144 = arith.constant 0 : index
    %67 = vector.load %arg10[%c0_142, %c4_143, %c0_144] : memref<2x25x892xf32, #tpu.memory_space<vmem>>, vector<2x1x892xf32>
    tpu.vector_store %arg10[%c0_142, %c4_143, %c0_144], %66 {strides = array<i32>} : memref<2x25x892xf32, #tpu.memory_space<vmem>>, vector<2x1x892xf32>,
    %c0_145 = arith.constant 0 : index
    %c0_146 = arith.constant 0 : index
    %c32 = arith.constant 32 : index
    %68 = vector.load %arg9[%c0_145, %c0_146, %c32] : memref<2x1x1024xf32, #tpu.memory_space<vmem>>, vector<2x1x892xf32>
    %c0_147 = arith.constant 0 : index
    %c5_148 = arith.constant 5 : index
    %c0_149 = arith.constant 0 : index
    %69 = vector.load %arg10[%c0_147, %c5_148, %c0_149] : memref<2x25x892xf32, #tpu.memory_space<vmem>>, vector<2x1x892xf32>
    tpu.vector_store %arg10[%c0_147, %c5_148, %c0_149], %68 {strides = array<i32>} : memref<2x25x892xf32, #tpu.memory_space<vmem>>, vector<2x1x892xf32>,
    %c0_150 = arith.constant 0 : index
    %c0_151 = arith.constant 0 : index
    %c33 = arith.constant 33 : index
    %70 = vector.load %arg9[%c0_150, %c0_151, %c33] : memref<2x1x1024xf32, #tpu.memory_space<vmem>>, vector<2x1x892xf32>
    %c0_152 = arith.constant 0 : index
    %c6_153 = arith.constant 6 : index
    %c0_154 = arith.constant 0 : index
    %71 = vector.load %arg10[%c0_152, %c6_153, %c0_154] : memref<2x25x892xf32, #tpu.memory_space<vmem>>, vector<2x1x892xf32>
    tpu.vector_store %arg10[%c0_152, %c6_153, %c0_154], %70 {strides = array<i32>} : memref<2x25x892xf32, #tpu.memory_space<vmem>>, vector<2x1x892xf32>,
    %c0_155 = arith.constant 0 : index
    %c0_156 = arith.constant 0 : index
    %c34 = arith.constant 34 : index
    %72 = vector.load %arg9[%c0_155, %c0_156, %c34] : memref<2x1x1024xf32, #tpu.memory_space<vmem>>, vector<2x1x892xf32>
    %c0_157 = arith.constant 0 : index
    %c7_158 = arith.constant 7 : index
    %c0_159 = arith.constant 0 : index
    %73 = vector.load %arg10[%c0_157, %c7_158, %c0_159] : memref<2x25x892xf32, #tpu.memory_space<vmem>>, vector<2x1x892xf32>
    tpu.vector_store %arg10[%c0_157, %c7_158, %c0_159], %72 {strides = array<i32>} : memref<2x25x892xf32, #tpu.memory_space<vmem>>, vector<2x1x892xf32>,
    %c0_160 = arith.constant 0 : index
    %c0_161 = arith.constant 0 : index
    %c35 = arith.constant 35 : index
    %74 = vector.load %arg9[%c0_160, %c0_161, %c35] : memref<2x1x1024xf32, #tpu.memory_space<vmem>>, vector<2x1x892xf32>
    %c0_162 = arith.constant 0 : index
    %c8_163 = arith.constant 8 : index
    %c0_164 = arith.constant 0 : index
    %75 = vector.load %arg10[%c0_162, %c8_163, %c0_164] : memref<2x25x892xf32, #tpu.memory_space<vmem>>, vector<2x1x892xf32>
    tpu.vector_store %arg10[%c0_162, %c8_163, %c0_164], %74 {strides = array<i32>} : memref<2x25x892xf32, #tpu.memory_space<vmem>>, vector<2x1x892xf32>,
    %c0_165 = arith.constant 0 : index
    %c0_166 = arith.constant 0 : index
    %c36 = arith.constant 36 : index
    %76 = vector.load %arg9[%c0_165, %c0_166, %c36] : memref<2x1x1024xf32, #tpu.memory_space<vmem>>, vector<2x1x892xf32>
    %c0_167 = arith.constant 0 : index
    %c9_168 = arith.constant 9 : index
    %c0_169 = arith.constant 0 : index
    %77 = vector.load %arg10[%c0_167, %c9_168, %c0_169] : memref<2x25x892xf32, #tpu.memory_space<vmem>>, vector<2x1x892xf32>
    tpu.vector_store %arg10[%c0_167, %c9_168, %c0_169], %76 {strides = array<i32>} : memref<2x25x892xf32, #tpu.memory_space<vmem>>, vector<2x1x892xf32>,
    %c0_170 = arith.constant 0 : index
    %c0_171 = arith.constant 0 : index
    %c64 = arith.constant 64 : index
    %78 = vector.load %arg9[%c0_170, %c0_171, %c64] : memref<2x1x1024xf32, #tpu.memory_space<vmem>>, vector<2x1x892xf32>
    %c0_172 = arith.constant 0 : index
    %c10_173 = arith.constant 10 : index
    %c0_174 = arith.constant 0 : index
    %79 = vector.load %arg10[%c0_172, %c10_173, %c0_174] : memref<2x25x892xf32, #tpu.memory_space<vmem>>, vector<2x1x892xf32>
    tpu.vector_store %arg10[%c0_172, %c10_173, %c0_174], %78 {strides = array<i32>} : memref<2x25x892xf32, #tpu.memory_space<vmem>>, vector<2x1x892xf32>,
    %c0_175 = arith.constant 0 : index
    %c0_176 = arith.constant 0 : index
    %c65 = arith.constant 65 : index
    %80 = vector.load %arg9[%c0_175, %c0_176, %c65] : memref<2x1x1024xf32, #tpu.memory_space<vmem>>, vector<2x1x892xf32>
    %c0_177 = arith.constant 0 : index
    %c11_178 = arith.constant 11 : index
    %c0_179 = arith.constant 0 : index
    %81 = vector.load %arg10[%c0_177, %c11_178, %c0_179] : memref<2x25x892xf32, #tpu.memory_space<vmem>>, vector<2x1x892xf32>
    tpu.vector_store %arg10[%c0_177, %c11_178, %c0_179], %80 {strides = array<i32>} : memref<2x25x892xf32, #tpu.memory_space<vmem>>, vector<2x1x892xf32>,
    %c0_180 = arith.constant 0 : index
    %c0_181 = arith.constant 0 : index
    %c66_182 = arith.constant 66 : index
    %82 = vector.load %arg9[%c0_180, %c0_181, %c66_182] : memref<2x1x1024xf32, #tpu.memory_space<vmem>>, vector<2x1x892xf32>
    %c0_183 = arith.constant 0 : index
    %c12_184 = arith.constant 12 : index
    %c0_185 = arith.constant 0 : index
    %83 = vector.load %arg10[%c0_183, %c12_184, %c0_185] : memref<2x25x892xf32, #tpu.memory_space<vmem>>, vector<2x1x892xf32>
    tpu.vector_store %arg10[%c0_183, %c12_184, %c0_185], %82 {strides = array<i32>} : memref<2x25x892xf32, #tpu.memory_space<vmem>>, vector<2x1x892xf32>,
    %c0_186 = arith.constant 0 : index
    %c0_187 = arith.constant 0 : index
    %c67 = arith.constant 67 : index
    %84 = vector.load %arg9[%c0_186, %c0_187, %c67] : memref<2x1x1024xf32, #tpu.memory_space<vmem>>, vector<2x1x892xf32>
    %c0_188 = arith.constant 0 : index
    %c13_189 = arith.constant 13 : index
    %c0_190 = arith.constant 0 : index
    %85 = vector.load %arg10[%c0_188, %c13_189, %c0_190] : memref<2x25x892xf32, #tpu.memory_space<vmem>>, vector<2x1x892xf32>
    tpu.vector_store %arg10[%c0_188, %c13_189, %c0_190], %84 {strides = array<i32>} : memref<2x25x892xf32, #tpu.memory_space<vmem>>, vector<2x1x892xf32>,
    %c0_191 = arith.constant 0 : index
    %c0_192 = arith.constant 0 : index
    %c68 = arith.constant 68 : index
    %86 = vector.load %arg9[%c0_191, %c0_192, %c68] : memref<2x1x1024xf32, #tpu.memory_space<vmem>>, vector<2x1x892xf32>
    %c0_193 = arith.constant 0 : index
    %c14_194 = arith.constant 14 : index
    %c0_195 = arith.constant 0 : index
    %87 = vector.load %arg10[%c0_193, %c14_194, %c0_195] : memref<2x25x892xf32, #tpu.memory_space<vmem>>, vector<2x1x892xf32>
    tpu.vector_store %arg10[%c0_193, %c14_194, %c0_195], %86 {strides = array<i32>} : memref<2x25x892xf32, #tpu.memory_space<vmem>>, vector<2x1x892xf32>,
    %c0_196 = arith.constant 0 : index
    %c0_197 = arith.constant 0 : index
    %c96 = arith.constant 96 : index
    %88 = vector.load %arg9[%c0_196, %c0_197, %c96] : memref<2x1x1024xf32, #tpu.memory_space<vmem>>, vector<2x1x892xf32>
    %c0_198 = arith.constant 0 : index
    %c15_199 = arith.constant 15 : index
    %c0_200 = arith.constant 0 : index
    %89 = vector.load %arg10[%c0_198, %c15_199, %c0_200] : memref<2x25x892xf32, #tpu.memory_space<vmem>>, vector<2x1x892xf32>
    tpu.vector_store %arg10[%c0_198, %c15_199, %c0_200], %88 {strides = array<i32>} : memref<2x25x892xf32, #tpu.memory_space<vmem>>, vector<2x1x892xf32>,
    %c0_201 = arith.constant 0 : index
    %c0_202 = arith.constant 0 : index
    %c97 = arith.constant 97 : index
    %90 = vector.load %arg9[%c0_201, %c0_202, %c97] : memref<2x1x1024xf32, #tpu.memory_space<vmem>>, vector<2x1x892xf32>
    %c0_203 = arith.constant 0 : index
    %c16_204 = arith.constant 16 : index
    %c0_205 = arith.constant 0 : index
    %91 = vector.load %arg10[%c0_203, %c16_204, %c0_205] : memref<2x25x892xf32, #tpu.memory_space<vmem>>, vector<2x1x892xf32>
    tpu.vector_store %arg10[%c0_203, %c16_204, %c0_205], %90 {strides = array<i32>} : memref<2x25x892xf32, #tpu.memory_space<vmem>>, vector<2x1x892xf32>,
    %c0_206 = arith.constant 0 : index
    %c0_207 = arith.constant 0 : index
    %c98_208 = arith.constant 98 : index
    %92 = vector.load %arg9[%c0_206, %c0_207, %c98_208] : memref<2x1x1024xf32, #tpu.memory_space<vmem>>, vector<2x1x892xf32>
    %c0_209 = arith.constant 0 : index
    %c17_210 = arith.constant 17 : index
    %c0_211 = arith.constant 0 : index
    %93 = vector.load %arg10[%c0_209, %c17_210, %c0_211] : memref<2x25x892xf32, #tpu.memory_space<vmem>>, vector<2x1x892xf32>
    tpu.vector_store %arg10[%c0_209, %c17_210, %c0_211], %92 {strides = array<i32>} : memref<2x25x892xf32, #tpu.memory_space<vmem>>, vector<2x1x892xf32>,
    %c0_212 = arith.constant 0 : index
    %c0_213 = arith.constant 0 : index
    %c99 = arith.constant 99 : index
    %94 = vector.load %arg9[%c0_212, %c0_213, %c99] : memref<2x1x1024xf32, #tpu.memory_space<vmem>>, vector<2x1x892xf32>
    %c0_214 = arith.constant 0 : index
    %c18_215 = arith.constant 18 : index
    %c0_216 = arith.constant 0 : index
    %95 = vector.load %arg10[%c0_214, %c18_215, %c0_216] : memref<2x25x892xf32, #tpu.memory_space<vmem>>, vector<2x1x892xf32>
    tpu.vector_store %arg10[%c0_214, %c18_215, %c0_216], %94 {strides = array<i32>} : memref<2x25x892xf32, #tpu.memory_space<vmem>>, vector<2x1x892xf32>,
    %c0_217 = arith.constant 0 : index
    %c0_218 = arith.constant 0 : index
    %c100 = arith.constant 100 : index
    %96 = vector.load %arg9[%c0_217, %c0_218, %c100] : memref<2x1x1024xf32, #tpu.memory_space<vmem>>, vector<2x1x892xf32>
    %c0_219 = arith.constant 0 : index
    %c19_220 = arith.constant 19 : index
    %c0_221 = arith.constant 0 : index
    %97 = vector.load %arg10[%c0_219, %c19_220, %c0_221] : memref<2x25x892xf32, #tpu.memory_space<vmem>>, vector<2x1x892xf32>
    tpu.vector_store %arg10[%c0_219, %c19_220, %c0_221], %96 {strides = array<i32>} : memref<2x25x892xf32, #tpu.memory_space<vmem>>, vector<2x1x892xf32>,
    %c0_222 = arith.constant 0 : index
    %c0_223 = arith.constant 0 : index
    %c128 = arith.constant 128 : index
    %98 = vector.load %arg9[%c0_222, %c0_223, %c128] : memref<2x1x1024xf32, #tpu.memory_space<vmem>>, vector<2x1x892xf32>
    %c0_224 = arith.constant 0 : index
    %c20_225 = arith.constant 20 : index
    %c0_226 = arith.constant 0 : index
    %99 = vector.load %arg10[%c0_224, %c20_225, %c0_226] : memref<2x25x892xf32, #tpu.memory_space<vmem>>, vector<2x1x892xf32>
    tpu.vector_store %arg10[%c0_224, %c20_225, %c0_226], %98 {strides = array<i32>} : memref<2x25x892xf32, #tpu.memory_space<vmem>>, vector<2x1x892xf32>,
    %c0_227 = arith.constant 0 : index
    %c0_228 = arith.constant 0 : index
    %c129 = arith.constant 129 : index
    %100 = vector.load %arg9[%c0_227, %c0_228, %c129] : memref<2x1x1024xf32, #tpu.memory_space<vmem>>, vector<2x1x892xf32>
    %c0_229 = arith.constant 0 : index
    %c21_230 = arith.constant 21 : index
    %c0_231 = arith.constant 0 : index
    %101 = vector.load %arg10[%c0_229, %c21_230, %c0_231] : memref<2x25x892xf32, #tpu.memory_space<vmem>>, vector<2x1x892xf32>
    tpu.vector_store %arg10[%c0_229, %c21_230, %c0_231], %100 {strides = array<i32>} : memref<2x25x892xf32, #tpu.memory_space<vmem>>, vector<2x1x892xf32>,
    %c0_232 = arith.constant 0 : index
    %c0_233 = arith.constant 0 : index
    %c130_234 = arith.constant 130 : index
    %102 = vector.load %arg9[%c0_232, %c0_233, %c130_234] : memref<2x1x1024xf32, #tpu.memory_space<vmem>>, vector<2x1x892xf32>
    %c0_235 = arith.constant 0 : index
    %c22_236 = arith.constant 22 : index
    %c0_237 = arith.constant 0 : index
    %103 = vector.load %arg10[%c0_235, %c22_236, %c0_237] : memref<2x25x892xf32, #tpu.memory_space<vmem>>, vector<2x1x892xf32>
    tpu.vector_store %arg10[%c0_235, %c22_236, %c0_237], %102 {strides = array<i32>} : memref<2x25x892xf32, #tpu.memory_space<vmem>>, vector<2x1x892xf32>,
    %c0_238 = arith.constant 0 : index
    %c0_239 = arith.constant 0 : index
    %c131 = arith.constant 131 : index
    %104 = vector.load %arg9[%c0_238, %c0_239, %c131] : memref<2x1x1024xf32, #tpu.memory_space<vmem>>, vector<2x1x892xf32>
    %c0_240 = arith.constant 0 : index
    %c23_241 = arith.constant 23 : index
    %c0_242 = arith.constant 0 : index
    %105 = vector.load %arg10[%c0_240, %c23_241, %c0_242] : memref<2x25x892xf32, #tpu.memory_space<vmem>>, vector<2x1x892xf32>
    tpu.vector_store %arg10[%c0_240, %c23_241, %c0_242], %104 {strides = array<i32>} : memref<2x25x892xf32, #tpu.memory_space<vmem>>, vector<2x1x892xf32>,
    %c0_243 = arith.constant 0 : index
    %c0_244 = arith.constant 0 : index
    %c132 = arith.constant 132 : index
    %106 = vector.load %arg9[%c0_243, %c0_244, %c132] : memref<2x1x1024xf32, #tpu.memory_space<vmem>>, vector<2x1x892xf32>
    %c0_245 = arith.constant 0 : index
    %c24_246 = arith.constant 24 : index
    %c0_247 = arith.constant 0 : index
    %107 = vector.load %arg10[%c0_245, %c24_246, %c0_247] : memref<2x25x892xf32, #tpu.memory_space<vmem>>, vector<2x1x892xf32>
    tpu.vector_store %arg10[%c0_245, %c24_246, %c0_247], %106 {strides = array<i32>} : memref<2x25x892xf32, #tpu.memory_space<vmem>>, vector<2x1x892xf32>,
    %c0_248 = arith.constant 0 : index
    %c0_249 = arith.constant 0 : index
    %108 = vector.load %arg2[%c0_248, %c0_249] : memref<16x25xf32, #tpu.memory_space<vmem>>, vector<16x25xf32>
    %c0_250 = arith.constant 0 : index
    %c0_251 = arith.constant 0 : index
    %c0_252 = arith.constant 0 : index
    %109 = vector.load %arg10[%c0_250, %c0_251, %c0_252] : memref<2x25x892xf32, #tpu.memory_space<vmem>>, vector<1x25x892xf32>
    %110 = vector.shape_cast %109 : vector<1x25x892xf32> to vector<25x892xf32>
    %cst_253 = arith.constant dense<0.000000e+00> : vector<16x892xf32>
    %111 = tpu.matmul %108, %110, %cst_253 {dimension_numbers = #tpu.dot_dimension_numbers<[1], [0], [0], [1], [0, 0, 1, 1], [], []>} : vector<16x25xf32>, vector<25x892xf32>, vector<16x892xf32> -> vector<16x892xf32>
    %c0_254 = arith.constant 0 : index
    %c0_255 = arith.constant 0 : index
    %112 = vector.load %arg3[%c0_254, %c0_255] : memref<16x1xf32, #tpu.memory_space<vmem>>, vector<16x1xf32>
    %113 = vector.broadcast %112 : vector<16x1xf32> to vector<16x892xf32>
    %114 = arith.addf %111, %113 : vector<16x892xf32>
    %cst_256 = arith.constant 0.000000e+00 : f32
    %115 = vector.broadcast %cst_256 : f32 to vector<16x892xf32>
    %116 = arith.maximumf %114, %115 : vector<16x892xf32>
    %c0_257 = arith.constant 0 : index
    %c0_258 = arith.constant 0 : index
    %c0_259 = arith.constant 0 : index
    %117 = vector.load %arg11[%c0_257, %c0_258, %c0_259] : memref<2x16x892xf32, #tpu.memory_space<vmem>>, vector<1x16x892xf32>
    %118 = vector.shape_cast %117 : vector<1x16x892xf32> to vector<16x892xf32>
    %119 = vector.shape_cast %116 : vector<16x892xf32> to vector<1x16x892xf32>
    tpu.vector_store %arg11[%c0_257, %c0_258, %c0_259], %119 {strides = array<i32>} : memref<2x16x892xf32, #tpu.memory_space<vmem>>, vector<1x16x892xf32>,
    %c0_260 = arith.constant 0 : index
    %c0_261 = arith.constant 0 : index
    %120 = vector.load %arg2[%c0_260, %c0_261] : memref<16x25xf32, #tpu.memory_space<vmem>>, vector<16x25xf32>
    %c1_262 = arith.constant 1 : index
    %c0_263 = arith.constant 0 : index
    %c0_264 = arith.constant 0 : index
    %121 = vector.load %arg10[%c1_262, %c0_263, %c0_264] : memref<2x25x892xf32, #tpu.memory_space<vmem>>, vector<1x25x892xf32>
    %122 = vector.shape_cast %121 : vector<1x25x892xf32> to vector<25x892xf32>
    %cst_265 = arith.constant dense<0.000000e+00> : vector<16x892xf32>
    %123 = tpu.matmul %120, %122, %cst_265 {dimension_numbers = #tpu.dot_dimension_numbers<[1], [0], [0], [1], [0, 0, 1, 1], [], []>} : vector<16x25xf32>, vector<25x892xf32>, vector<16x892xf32> -> vector<16x892xf32>
    %c0_266 = arith.constant 0 : index
    %c0_267 = arith.constant 0 : index
    %124 = vector.load %arg3[%c0_266, %c0_267] : memref<16x1xf32, #tpu.memory_space<vmem>>, vector<16x1xf32>
    %125 = vector.broadcast %124 : vector<16x1xf32> to vector<16x892xf32>
    %126 = arith.addf %123, %125 : vector<16x892xf32>
    %cst_268 = arith.constant 0.000000e+00 : f32
    %127 = vector.broadcast %cst_268 : f32 to vector<16x892xf32>
    %128 = arith.maximumf %126, %127 : vector<16x892xf32>
    %c1_269 = arith.constant 1 : index
    %c0_270 = arith.constant 0 : index
    %c0_271 = arith.constant 0 : index
    %129 = vector.load %arg11[%c1_269, %c0_270, %c0_271] : memref<2x16x892xf32, #tpu.memory_space<vmem>>, vector<1x16x892xf32>
    %130 = vector.shape_cast %129 : vector<1x16x892xf32> to vector<16x892xf32>
    %131 = vector.shape_cast %128 : vector<16x892xf32> to vector<1x16x892xf32>
    tpu.vector_store %arg11[%c1_269, %c0_270, %c0_271], %131 {strides = array<i32>} : memref<2x16x892xf32, #tpu.memory_space<vmem>>, vector<1x16x892xf32>,
    %c0_272 = arith.constant 0 : index
    %c0_273 = arith.constant 0 : index
    %c0_274 = arith.constant 0 : index
    %132 = vector.load %arg11[%c0_272, %c0_273, %c0_274] : memref<2x16x892xf32, #tpu.memory_space<vmem>>, vector<1x16x859xf32>
    %133 = vector.shape_cast %132 : vector<1x16x859xf32> to vector<16x859xf32>
    %c0_275 = arith.constant 0 : index
    %c0_276 = arith.constant 0 : index
    %c1_277 = arith.constant 1 : index
    %134 = vector.load %arg11[%c0_275, %c0_276, %c1_277] : memref<2x16x892xf32, #tpu.memory_space<vmem>>, vector<1x16x859xf32>
    %135 = vector.shape_cast %134 : vector<1x16x859xf32> to vector<16x859xf32>
    %136 = arith.maximumf %133, %135 : vector<16x859xf32>
    %c0_278 = arith.constant 0 : index
    %c0_279 = arith.constant 0 : index
    %c32_280 = arith.constant 32 : index
    %137 = vector.load %arg11[%c0_278, %c0_279, %c32_280] : memref<2x16x892xf32, #tpu.memory_space<vmem>>, vector<1x16x859xf32>
    %138 = vector.shape_cast %137 : vector<1x16x859xf32> to vector<16x859xf32>
    %c0_281 = arith.constant 0 : index
    %c0_282 = arith.constant 0 : index
    %c33_283 = arith.constant 33 : index
    %139 = vector.load %arg11[%c0_281, %c0_282, %c33_283] : memref<2x16x892xf32, #tpu.memory_space<vmem>>, vector<1x16x859xf32>
    %140 = vector.shape_cast %139 : vector<1x16x859xf32> to vector<16x859xf32>
    %141 = arith.maximumf %138, %140 : vector<16x859xf32>
    %142 = arith.maximumf %136, %141 : vector<16x859xf32>
    %c0_284 = arith.constant 0 : index
    %c0_285 = arith.constant 0 : index
    %143 = vector.load %arg6[%c0_284, %c0_285] : memref<859x324xf32, #tpu.memory_space<vmem>>, vector<859x324xf32>
    %cst_286 = arith.constant dense<0.000000e+00> : vector<16x324xf32>
    %144 = tpu.matmul %142, %143, %cst_286 {dimension_numbers = #tpu.dot_dimension_numbers<[1], [0], [0], [1], [0, 0, 1, 1], [], []>} : vector<16x859xf32>, vector<859x324xf32>, vector<16x324xf32> -> vector<16x324xf32>
    %c0_287 = arith.constant 0 : index
    %c0_288 = arith.constant 0 : index
    %c0_289 = arith.constant 0 : index
    %145 = vector.load %arg12[%c0_287, %c0_288, %c0_289] : memref<2x16x324xf32, #tpu.memory_space<vmem>>, vector<1x16x324xf32>
    %146 = vector.shape_cast %145 : vector<1x16x324xf32> to vector<16x324xf32>
    %147 = vector.shape_cast %144 : vector<16x324xf32> to vector<1x16x324xf32>
    tpu.vector_store %arg12[%c0_287, %c0_288, %c0_289], %147 {strides = array<i32>} : memref<2x16x324xf32, #tpu.memory_space<vmem>>, vector<1x16x324xf32>,
    %c1_290 = arith.constant 1 : index
    %c0_291 = arith.constant 0 : index
    %c0_292 = arith.constant 0 : index
    %148 = vector.load %arg11[%c1_290, %c0_291, %c0_292] : memref<2x16x892xf32, #tpu.memory_space<vmem>>, vector<1x16x859xf32>
    %149 = vector.shape_cast %148 : vector<1x16x859xf32> to vector<16x859xf32>
    %c1_293 = arith.constant 1 : index
    %c0_294 = arith.constant 0 : index
    %c1_295 = arith.constant 1 : index
    %150 = vector.load %arg11[%c1_293, %c0_294, %c1_295] : memref<2x16x892xf32, #tpu.memory_space<vmem>>, vector<1x16x859xf32>
    %151 = vector.shape_cast %150 : vector<1x16x859xf32> to vector<16x859xf32>
    %152 = arith.maximumf %149, %151 : vector<16x859xf32>
    %c1_296 = arith.constant 1 : index
    %c0_297 = arith.constant 0 : index
    %c32_298 = arith.constant 32 : index
    %153 = vector.load %arg11[%c1_296, %c0_297, %c32_298] : memref<2x16x892xf32, #tpu.memory_space<vmem>>, vector<1x16x859xf32>
    %154 = vector.shape_cast %153 : vector<1x16x859xf32> to vector<16x859xf32>
    %c1_299 = arith.constant 1 : index
    %c0_300 = arith.constant 0 : index
    %c33_301 = arith.constant 33 : index
    %155 = vector.load %arg11[%c1_299, %c0_300, %c33_301] : memref<2x16x892xf32, #tpu.memory_space<vmem>>, vector<1x16x859xf32>
    %156 = vector.shape_cast %155 : vector<1x16x859xf32> to vector<16x859xf32>
    %157 = arith.maximumf %154, %156 : vector<16x859xf32>
    %158 = arith.maximumf %152, %157 : vector<16x859xf32>
    %c0_302 = arith.constant 0 : index
    %c0_303 = arith.constant 0 : index
    %159 = vector.load %arg6[%c0_302, %c0_303] : memref<859x324xf32, #tpu.memory_space<vmem>>, vector<859x324xf32>
    %cst_304 = arith.constant dense<0.000000e+00> : vector<16x324xf32>
    %160 = tpu.matmul %158, %159, %cst_304 {dimension_numbers = #tpu.dot_dimension_numbers<[1], [0], [0], [1], [0, 0, 1, 1], [], []>} : vector<16x859xf32>, vector<859x324xf32>, vector<16x324xf32> -> vector<16x324xf32>
    %c1_305 = arith.constant 1 : index
    %c0_306 = arith.constant 0 : index
    %c0_307 = arith.constant 0 : index
    %161 = vector.load %arg12[%c1_305, %c0_306, %c0_307] : memref<2x16x324xf32, #tpu.memory_space<vmem>>, vector<1x16x324xf32>
    %162 = vector.shape_cast %161 : vector<1x16x324xf32> to vector<16x324xf32>
    %163 = vector.shape_cast %160 : vector<16x324xf32> to vector<1x16x324xf32>
    tpu.vector_store %arg12[%c1_305, %c0_306, %c0_307], %163 {strides = array<i32>} : memref<2x16x324xf32, #tpu.memory_space<vmem>>, vector<1x16x324xf32>,
    %c0_308 = arith.constant 0 : index
    %c0_309 = arith.constant 0 : index
    %c0_310 = arith.constant 0 : index
    %164 = vector.load %arg12[%c0_308, %c0_309, %c0_310] : memref<2x16x324xf32, #tpu.memory_space<vmem>>, vector<2x16x248xf32>
    %c0_311 = arith.constant 0 : index
    %c0_312 = arith.constant 0 : index
    %c0_313 = arith.constant 0 : index
    %165 = vector.load %arg13[%c0_311, %c0_312, %c0_313] : memref<2x400x248xf32, #tpu.memory_space<vmem>>, vector<2x16x248xf32>
    tpu.vector_store %arg13[%c0_311, %c0_312, %c0_313], %164 {strides = array<i32>} : memref<2x400x248xf32, #tpu.memory_space<vmem>>, vector<2x16x248xf32>,
    %c0_314 = arith.constant 0 : index
    %c0_315 = arith.constant 0 : index
    %c1_316 = arith.constant 1 : index
    %166 = vector.load %arg12[%c0_314, %c0_315, %c1_316] : memref<2x16x324xf32, #tpu.memory_space<vmem>>, vector<2x16x248xf32>
    %c0_317 = arith.constant 0 : index
    %c16_318 = arith.constant 16 : index
    %c0_319 = arith.constant 0 : index
    %167 = vector.load %arg13[%c0_317, %c16_318, %c0_319] : memref<2x400x248xf32, #tpu.memory_space<vmem>>, vector<2x16x248xf32>
    tpu.vector_store %arg13[%c0_317, %c16_318, %c0_319], %166 {strides = array<i32>} : memref<2x400x248xf32, #tpu.memory_space<vmem>>, vector<2x16x248xf32>,
    %c0_320 = arith.constant 0 : index
    %c0_321 = arith.constant 0 : index
    %c2_322 = arith.constant 2 : index
    %168 = vector.load %arg12[%c0_320, %c0_321, %c2_322] : memref<2x16x324xf32, #tpu.memory_space<vmem>>, vector<2x16x248xf32>
    %c0_323 = arith.constant 0 : index
    %c32_324 = arith.constant 32 : index
    %c0_325 = arith.constant 0 : index
    %169 = vector.load %arg13[%c0_323, %c32_324, %c0_325] : memref<2x400x248xf32, #tpu.memory_space<vmem>>, vector<2x16x248xf32>
    tpu.vector_store %arg13[%c0_323, %c32_324, %c0_325], %168 {strides = array<i32>} : memref<2x400x248xf32, #tpu.memory_space<vmem>>, vector<2x16x248xf32>,
    %c0_326 = arith.constant 0 : index
    %c0_327 = arith.constant 0 : index
    %c3_328 = arith.constant 3 : index
    %170 = vector.load %arg12[%c0_326, %c0_327, %c3_328] : memref<2x16x324xf32, #tpu.memory_space<vmem>>, vector<2x16x248xf32>
    %c0_329 = arith.constant 0 : index
    %c48 = arith.constant 48 : index
    %c0_330 = arith.constant 0 : index
    %171 = vector.load %arg13[%c0_329, %c48, %c0_330] : memref<2x400x248xf32, #tpu.memory_space<vmem>>, vector<2x16x248xf32>
    tpu.vector_store %arg13[%c0_329, %c48, %c0_330], %170 {strides = array<i32>} : memref<2x400x248xf32, #tpu.memory_space<vmem>>, vector<2x16x248xf32>,
    %c0_331 = arith.constant 0 : index
    %c0_332 = arith.constant 0 : index
    %c4_333 = arith.constant 4 : index
    %172 = vector.load %arg12[%c0_331, %c0_332, %c4_333] : memref<2x16x324xf32, #tpu.memory_space<vmem>>, vector<2x16x248xf32>
    %c0_334 = arith.constant 0 : index
    %c64_335 = arith.constant 64 : index
    %c0_336 = arith.constant 0 : index
    %173 = vector.load %arg13[%c0_334, %c64_335, %c0_336] : memref<2x400x248xf32, #tpu.memory_space<vmem>>, vector<2x16x248xf32>
    tpu.vector_store %arg13[%c0_334, %c64_335, %c0_336], %172 {strides = array<i32>} : memref<2x400x248xf32, #tpu.memory_space<vmem>>, vector<2x16x248xf32>,
    %c0_337 = arith.constant 0 : index
    %c0_338 = arith.constant 0 : index
    %c18_339 = arith.constant 18 : index
    %174 = vector.load %arg12[%c0_337, %c0_338, %c18_339] : memref<2x16x324xf32, #tpu.memory_space<vmem>>, vector<2x16x248xf32>
    %c0_340 = arith.constant 0 : index
    %c80 = arith.constant 80 : index
    %c0_341 = arith.constant 0 : index
    %175 = vector.load %arg13[%c0_340, %c80, %c0_341] : memref<2x400x248xf32, #tpu.memory_space<vmem>>, vector<2x16x248xf32>
    tpu.vector_store %arg13[%c0_340, %c80, %c0_341], %174 {strides = array<i32>} : memref<2x400x248xf32, #tpu.memory_space<vmem>>, vector<2x16x248xf32>,
    %c0_342 = arith.constant 0 : index
    %c0_343 = arith.constant 0 : index
    %c19_344 = arith.constant 19 : index
    %176 = vector.load %arg12[%c0_342, %c0_343, %c19_344] : memref<2x16x324xf32, #tpu.memory_space<vmem>>, vector<2x16x248xf32>
    %c0_345 = arith.constant 0 : index
    %c96_346 = arith.constant 96 : index
    %c0_347 = arith.constant 0 : index
    %177 = vector.load %arg13[%c0_345, %c96_346, %c0_347] : memref<2x400x248xf32, #tpu.memory_space<vmem>>, vector<2x16x248xf32>
    tpu.vector_store %arg13[%c0_345, %c96_346, %c0_347], %176 {strides = array<i32>} : memref<2x400x248xf32, #tpu.memory_space<vmem>>, vector<2x16x248xf32>,
    %c0_348 = arith.constant 0 : index
    %c0_349 = arith.constant 0 : index
    %c20_350 = arith.constant 20 : index
    %178 = vector.load %arg12[%c0_348, %c0_349, %c20_350] : memref<2x16x324xf32, #tpu.memory_space<vmem>>, vector<2x16x248xf32>
    %c0_351 = arith.constant 0 : index
    %c112 = arith.constant 112 : index
    %c0_352 = arith.constant 0 : index
    %179 = vector.load %arg13[%c0_351, %c112, %c0_352] : memref<2x400x248xf32, #tpu.memory_space<vmem>>, vector<2x16x248xf32>
    tpu.vector_store %arg13[%c0_351, %c112, %c0_352], %178 {strides = array<i32>} : memref<2x400x248xf32, #tpu.memory_space<vmem>>, vector<2x16x248xf32>,
    %c0_353 = arith.constant 0 : index
    %c0_354 = arith.constant 0 : index
    %c21_355 = arith.constant 21 : index
    %180 = vector.load %arg12[%c0_353, %c0_354, %c21_355] : memref<2x16x324xf32, #tpu.memory_space<vmem>>, vector<2x16x248xf32>
    %c0_356 = arith.constant 0 : index
    %c128_357 = arith.constant 128 : index
    %c0_358 = arith.constant 0 : index
    %181 = vector.load %arg13[%c0_356, %c128_357, %c0_358] : memref<2x400x248xf32, #tpu.memory_space<vmem>>, vector<2x16x248xf32>
    tpu.vector_store %arg13[%c0_356, %c128_357, %c0_358], %180 {strides = array<i32>} : memref<2x400x248xf32, #tpu.memory_space<vmem>>, vector<2x16x248xf32>,
    %c0_359 = arith.constant 0 : index
    %c0_360 = arith.constant 0 : index
    %c22_361 = arith.constant 22 : index
    %182 = vector.load %arg12[%c0_359, %c0_360, %c22_361] : memref<2x16x324xf32, #tpu.memory_space<vmem>>, vector<2x16x248xf32>
    %c0_362 = arith.constant 0 : index
    %c144 = arith.constant 144 : index
    %c0_363 = arith.constant 0 : index
    %183 = vector.load %arg13[%c0_362, %c144, %c0_363] : memref<2x400x248xf32, #tpu.memory_space<vmem>>, vector<2x16x248xf32>
    tpu.vector_store %arg13[%c0_362, %c144, %c0_363], %182 {strides = array<i32>} : memref<2x400x248xf32, #tpu.memory_space<vmem>>, vector<2x16x248xf32>,
    %c0_364 = arith.constant 0 : index
    %c0_365 = arith.constant 0 : index
    %c36_366 = arith.constant 36 : index
    %184 = vector.load %arg12[%c0_364, %c0_365, %c36_366] : memref<2x16x324xf32, #tpu.memory_space<vmem>>, vector<2x16x248xf32>
    %c0_367 = arith.constant 0 : index
    %c160 = arith.constant 160 : index
    %c0_368 = arith.constant 0 : index
    %185 = vector.load %arg13[%c0_367, %c160, %c0_368] : memref<2x400x248xf32, #tpu.memory_space<vmem>>, vector<2x16x248xf32>
    tpu.vector_store %arg13[%c0_367, %c160, %c0_368], %184 {strides = array<i32>} : memref<2x400x248xf32, #tpu.memory_space<vmem>>, vector<2x16x248xf32>,
    %c0_369 = arith.constant 0 : index
    %c0_370 = arith.constant 0 : index
    %c37 = arith.constant 37 : index
    %186 = vector.load %arg12[%c0_369, %c0_370, %c37] : memref<2x16x324xf32, #tpu.memory_space<vmem>>, vector<2x16x248xf32>
    %c0_371 = arith.constant 0 : index
    %c176 = arith.constant 176 : index
    %c0_372 = arith.constant 0 : index
    %187 = vector.load %arg13[%c0_371, %c176, %c0_372] : memref<2x400x248xf32, #tpu.memory_space<vmem>>, vector<2x16x248xf32>
    tpu.vector_store %arg13[%c0_371, %c176, %c0_372], %186 {strides = array<i32>} : memref<2x400x248xf32, #tpu.memory_space<vmem>>, vector<2x16x248xf32>,
    %c0_373 = arith.constant 0 : index
    %c0_374 = arith.constant 0 : index
    %c38 = arith.constant 38 : index
    %188 = vector.load %arg12[%c0_373, %c0_374, %c38] : memref<2x16x324xf32, #tpu.memory_space<vmem>>, vector<2x16x248xf32>
    %c0_375 = arith.constant 0 : index
    %c192 = arith.constant 192 : index
    %c0_376 = arith.constant 0 : index
    %189 = vector.load %arg13[%c0_375, %c192, %c0_376] : memref<2x400x248xf32, #tpu.memory_space<vmem>>, vector<2x16x248xf32>
    tpu.vector_store %arg13[%c0_375, %c192, %c0_376], %188 {strides = array<i32>} : memref<2x400x248xf32, #tpu.memory_space<vmem>>, vector<2x16x248xf32>,
    %c0_377 = arith.constant 0 : index
    %c0_378 = arith.constant 0 : index
    %c39 = arith.constant 39 : index
    %190 = vector.load %arg12[%c0_377, %c0_378, %c39] : memref<2x16x324xf32, #tpu.memory_space<vmem>>, vector<2x16x248xf32>
    %c0_379 = arith.constant 0 : index
    %c208 = arith.constant 208 : index
    %c0_380 = arith.constant 0 : index
    %191 = vector.load %arg13[%c0_379, %c208, %c0_380] : memref<2x400x248xf32, #tpu.memory_space<vmem>>, vector<2x16x248xf32>
    tpu.vector_store %arg13[%c0_379, %c208, %c0_380], %190 {strides = array<i32>} : memref<2x400x248xf32, #tpu.memory_space<vmem>>, vector<2x16x248xf32>,
    %c0_381 = arith.constant 0 : index
    %c0_382 = arith.constant 0 : index
    %c40 = arith.constant 40 : index
    %192 = vector.load %arg12[%c0_381, %c0_382, %c40] : memref<2x16x324xf32, #tpu.memory_space<vmem>>, vector<2x16x248xf32>
    %c0_383 = arith.constant 0 : index
    %c224 = arith.constant 224 : index
    %c0_384 = arith.constant 0 : index
    %193 = vector.load %arg13[%c0_383, %c224, %c0_384] : memref<2x400x248xf32, #tpu.memory_space<vmem>>, vector<2x16x248xf32>
    tpu.vector_store %arg13[%c0_383, %c224, %c0_384], %192 {strides = array<i32>} : memref<2x400x248xf32, #tpu.memory_space<vmem>>, vector<2x16x248xf32>,
    %c0_385 = arith.constant 0 : index
    %c0_386 = arith.constant 0 : index
    %c54 = arith.constant 54 : index
    %194 = vector.load %arg12[%c0_385, %c0_386, %c54] : memref<2x16x324xf32, #tpu.memory_space<vmem>>, vector<2x16x248xf32>
    %c0_387 = arith.constant 0 : index
    %c240 = arith.constant 240 : index
    %c0_388 = arith.constant 0 : index
    %195 = vector.load %arg13[%c0_387, %c240, %c0_388] : memref<2x400x248xf32, #tpu.memory_space<vmem>>, vector<2x16x248xf32>
    tpu.vector_store %arg13[%c0_387, %c240, %c0_388], %194 {strides = array<i32>} : memref<2x400x248xf32, #tpu.memory_space<vmem>>, vector<2x16x248xf32>,
    %c0_389 = arith.constant 0 : index
    %c0_390 = arith.constant 0 : index
    %c55 = arith.constant 55 : index
    %196 = vector.load %arg12[%c0_389, %c0_390, %c55] : memref<2x16x324xf32, #tpu.memory_space<vmem>>, vector<2x16x248xf32>
    %c0_391 = arith.constant 0 : index
    %c256 = arith.constant 256 : index
    %c0_392 = arith.constant 0 : index
    %197 = vector.load %arg13[%c0_391, %c256, %c0_392] : memref<2x400x248xf32, #tpu.memory_space<vmem>>, vector<2x16x248xf32>
    tpu.vector_store %arg13[%c0_391, %c256, %c0_392], %196 {strides = array<i32>} : memref<2x400x248xf32, #tpu.memory_space<vmem>>, vector<2x16x248xf32>,
    %c0_393 = arith.constant 0 : index
    %c0_394 = arith.constant 0 : index
    %c56 = arith.constant 56 : index
    %198 = vector.load %arg12[%c0_393, %c0_394, %c56] : memref<2x16x324xf32, #tpu.memory_space<vmem>>, vector<2x16x248xf32>
    %c0_395 = arith.constant 0 : index
    %c272 = arith.constant 272 : index
    %c0_396 = arith.constant 0 : index
    %199 = vector.load %arg13[%c0_395, %c272, %c0_396] : memref<2x400x248xf32, #tpu.memory_space<vmem>>, vector<2x16x248xf32>
    tpu.vector_store %arg13[%c0_395, %c272, %c0_396], %198 {strides = array<i32>} : memref<2x400x248xf32, #tpu.memory_space<vmem>>, vector<2x16x248xf32>,
    %c0_397 = arith.constant 0 : index
    %c0_398 = arith.constant 0 : index
    %c57 = arith.constant 57 : index
    %200 = vector.load %arg12[%c0_397, %c0_398, %c57] : memref<2x16x324xf32, #tpu.memory_space<vmem>>, vector<2x16x248xf32>
    %c0_399 = arith.constant 0 : index
    %c288 = arith.constant 288 : index
    %c0_400 = arith.constant 0 : index
    %201 = vector.load %arg13[%c0_399, %c288, %c0_400] : memref<2x400x248xf32, #tpu.memory_space<vmem>>, vector<2x16x248xf32>
    tpu.vector_store %arg13[%c0_399, %c288, %c0_400], %200 {strides = array<i32>} : memref<2x400x248xf32, #tpu.memory_space<vmem>>, vector<2x16x248xf32>,
    %c0_401 = arith.constant 0 : index
    %c0_402 = arith.constant 0 : index
    %c58 = arith.constant 58 : index
    %202 = vector.load %arg12[%c0_401, %c0_402, %c58] : memref<2x16x324xf32, #tpu.memory_space<vmem>>, vector<2x16x248xf32>
    %c0_403 = arith.constant 0 : index
    %c304 = arith.constant 304 : index
    %c0_404 = arith.constant 0 : index
    %203 = vector.load %arg13[%c0_403, %c304, %c0_404] : memref<2x400x248xf32, #tpu.memory_space<vmem>>, vector<2x16x248xf32>
    tpu.vector_store %arg13[%c0_403, %c304, %c0_404], %202 {strides = array<i32>} : memref<2x400x248xf32, #tpu.memory_space<vmem>>, vector<2x16x248xf32>,
    %c0_405 = arith.constant 0 : index
    %c0_406 = arith.constant 0 : index
    %c72 = arith.constant 72 : index
    %204 = vector.load %arg12[%c0_405, %c0_406, %c72] : memref<2x16x324xf32, #tpu.memory_space<vmem>>, vector<2x16x248xf32>
    %c0_407 = arith.constant 0 : index
    %c320 = arith.constant 320 : index
    %c0_408 = arith.constant 0 : index
    %205 = vector.load %arg13[%c0_407, %c320, %c0_408] : memref<2x400x248xf32, #tpu.memory_space<vmem>>, vector<2x16x248xf32>
    tpu.vector_store %arg13[%c0_407, %c320, %c0_408], %204 {strides = array<i32>} : memref<2x400x248xf32, #tpu.memory_space<vmem>>, vector<2x16x248xf32>,
    %c0_409 = arith.constant 0 : index
    %c0_410 = arith.constant 0 : index
    %c73 = arith.constant 73 : index
    %206 = vector.load %arg12[%c0_409, %c0_410, %c73] : memref<2x16x324xf32, #tpu.memory_space<vmem>>, vector<2x16x248xf32>
    %c0_411 = arith.constant 0 : index
    %c336 = arith.constant 336 : index
    %c0_412 = arith.constant 0 : index
    %207 = vector.load %arg13[%c0_411, %c336, %c0_412] : memref<2x400x248xf32, #tpu.memory_space<vmem>>, vector<2x16x248xf32>
    tpu.vector_store %arg13[%c0_411, %c336, %c0_412], %206 {strides = array<i32>} : memref<2x400x248xf32, #tpu.memory_space<vmem>>, vector<2x16x248xf32>,
    %c0_413 = arith.constant 0 : index
    %c0_414 = arith.constant 0 : index
    %c74 = arith.constant 74 : index
    %208 = vector.load %arg12[%c0_413, %c0_414, %c74] : memref<2x16x324xf32, #tpu.memory_space<vmem>>, vector<2x16x248xf32>
    %c0_415 = arith.constant 0 : index
    %c352 = arith.constant 352 : index
    %c0_416 = arith.constant 0 : index
    %209 = vector.load %arg13[%c0_415, %c352, %c0_416] : memref<2x400x248xf32, #tpu.memory_space<vmem>>, vector<2x16x248xf32>
    tpu.vector_store %arg13[%c0_415, %c352, %c0_416], %208 {strides = array<i32>} : memref<2x400x248xf32, #tpu.memory_space<vmem>>, vector<2x16x248xf32>,
    %c0_417 = arith.constant 0 : index
    %c0_418 = arith.constant 0 : index
    %c75 = arith.constant 75 : index
    %210 = vector.load %arg12[%c0_417, %c0_418, %c75] : memref<2x16x324xf32, #tpu.memory_space<vmem>>, vector<2x16x248xf32>
    %c0_419 = arith.constant 0 : index
    %c368 = arith.constant 368 : index
    %c0_420 = arith.constant 0 : index
    %211 = vector.load %arg13[%c0_419, %c368, %c0_420] : memref<2x400x248xf32, #tpu.memory_space<vmem>>, vector<2x16x248xf32>
    tpu.vector_store %arg13[%c0_419, %c368, %c0_420], %210 {strides = array<i32>} : memref<2x400x248xf32, #tpu.memory_space<vmem>>, vector<2x16x248xf32>,
    %c0_421 = arith.constant 0 : index
    %c0_422 = arith.constant 0 : index
    %c76 = arith.constant 76 : index
    %212 = vector.load %arg12[%c0_421, %c0_422, %c76] : memref<2x16x324xf32, #tpu.memory_space<vmem>>, vector<2x16x248xf32>
    %c0_423 = arith.constant 0 : index
    %c384 = arith.constant 384 : index
    %c0_424 = arith.constant 0 : index
    %213 = vector.load %arg13[%c0_423, %c384, %c0_424] : memref<2x400x248xf32, #tpu.memory_space<vmem>>, vector<2x16x248xf32>
    tpu.vector_store %arg13[%c0_423, %c384, %c0_424], %212 {strides = array<i32>} : memref<2x400x248xf32, #tpu.memory_space<vmem>>, vector<2x16x248xf32>,
    %c0_425 = arith.constant 0 : index
    %c0_426 = arith.constant 0 : index
    %214 = vector.load %arg4[%c0_425, %c0_426] : memref<32x400xf32, #tpu.memory_space<vmem>>, vector<32x400xf32>
    %c0_427 = arith.constant 0 : index
    %c0_428 = arith.constant 0 : index
    %c0_429 = arith.constant 0 : index
    %215 = vector.load %arg13[%c0_427, %c0_428, %c0_429] : memref<2x400x248xf32, #tpu.memory_space<vmem>>, vector<1x400x248xf32>
    %216 = vector.shape_cast %215 : vector<1x400x248xf32> to vector<400x248xf32>
    %cst_430 = arith.constant dense<0.000000e+00> : vector<32x248xf32>
    %217 = tpu.matmul %214, %216, %cst_430 {dimension_numbers = #tpu.dot_dimension_numbers<[1], [0], [0], [1], [0, 0, 1, 1], [], []>} : vector<32x400xf32>, vector<400x248xf32>, vector<32x248xf32> -> vector<32x248xf32>
    %c0_431 = arith.constant 0 : index
    %c0_432 = arith.constant 0 : index
    %218 = vector.load %arg5[%c0_431, %c0_432] : memref<32x1xf32, #tpu.memory_space<vmem>>, vector<32x1xf32>
    %219 = vector.broadcast %218 : vector<32x1xf32> to vector<32x248xf32>
    %220 = arith.addf %217, %219 : vector<32x248xf32>
    %cst_433 = arith.constant 0.000000e+00 : f32
    %221 = vector.broadcast %cst_433 : f32 to vector<32x248xf32>
    %222 = arith.maximumf %220, %221 : vector<32x248xf32>
    %c0_434 = arith.constant 0 : index
    %c0_435 = arith.constant 0 : index
    %c0_436 = arith.constant 0 : index
    %223 = vector.load %arg14[%c0_434, %c0_435, %c0_436] : memref<2x32x248xf32, #tpu.memory_space<vmem>>, vector<1x32x248xf32>
    %224 = vector.shape_cast %223 : vector<1x32x248xf32> to vector<32x248xf32>
    %225 = vector.shape_cast %222 : vector<32x248xf32> to vector<1x32x248xf32>
    tpu.vector_store %arg14[%c0_434, %c0_435, %c0_436], %225 {strides = array<i32>} : memref<2x32x248xf32, #tpu.memory_space<vmem>>, vector<1x32x248xf32>,
    %c0_437 = arith.constant 0 : index
    %c0_438 = arith.constant 0 : index
    %226 = vector.load %arg4[%c0_437, %c0_438] : memref<32x400xf32, #tpu.memory_space<vmem>>, vector<32x400xf32>
    %c1_439 = arith.constant 1 : index
    %c0_440 = arith.constant 0 : index
    %c0_441 = arith.constant 0 : index
    %227 = vector.load %arg13[%c1_439, %c0_440, %c0_441] : memref<2x400x248xf32, #tpu.memory_space<vmem>>, vector<1x400x248xf32>
    %228 = vector.shape_cast %227 : vector<1x400x248xf32> to vector<400x248xf32>
    %cst_442 = arith.constant dense<0.000000e+00> : vector<32x248xf32>
    %229 = tpu.matmul %226, %228, %cst_442 {dimension_numbers = #tpu.dot_dimension_numbers<[1], [0], [0], [1], [0, 0, 1, 1], [], []>} : vector<32x400xf32>, vector<400x248xf32>, vector<32x248xf32> -> vector<32x248xf32>
    %c0_443 = arith.constant 0 : index
    %c0_444 = arith.constant 0 : index
    %230 = vector.load %arg5[%c0_443, %c0_444] : memref<32x1xf32, #tpu.memory_space<vmem>>, vector<32x1xf32>
    %231 = vector.broadcast %230 : vector<32x1xf32> to vector<32x248xf32>
    %232 = arith.addf %229, %231 : vector<32x248xf32>
    %cst_445 = arith.constant 0.000000e+00 : f32
    %233 = vector.broadcast %cst_445 : f32 to vector<32x248xf32>
    %234 = arith.maximumf %232, %233 : vector<32x248xf32>
    %c1_446 = arith.constant 1 : index
    %c0_447 = arith.constant 0 : index
    %c0_448 = arith.constant 0 : index
    %235 = vector.load %arg14[%c1_446, %c0_447, %c0_448] : memref<2x32x248xf32, #tpu.memory_space<vmem>>, vector<1x32x248xf32>
    %236 = vector.shape_cast %235 : vector<1x32x248xf32> to vector<32x248xf32>
    %237 = vector.shape_cast %234 : vector<32x248xf32> to vector<1x32x248xf32>
    tpu.vector_store %arg14[%c1_446, %c0_447, %c0_448], %237 {strides = array<i32>} : memref<2x32x248xf32, #tpu.memory_space<vmem>>, vector<1x32x248xf32>,
    %c0_449 = arith.constant 0 : index
    %c0_450 = arith.constant 0 : index
    %c0_451 = arith.constant 0 : index
    %238 = vector.load %arg14[%c0_449, %c0_450, %c0_451] : memref<2x32x248xf32, #tpu.memory_space<vmem>>, vector<1x32x229xf32>
    %239 = vector.shape_cast %238 : vector<1x32x229xf32> to vector<32x229xf32>
    %c0_452 = arith.constant 0 : index
    %c0_453 = arith.constant 0 : index
    %c1_454 = arith.constant 1 : index
    %240 = vector.load %arg14[%c0_452, %c0_453, %c1_454] : memref<2x32x248xf32, #tpu.memory_space<vmem>>, vector<1x32x229xf32>
    %241 = vector.shape_cast %240 : vector<1x32x229xf32> to vector<32x229xf32>
    %242 = arith.maximumf %239, %241 : vector<32x229xf32>
    %c0_455 = arith.constant 0 : index
    %c0_456 = arith.constant 0 : index
    %c18_457 = arith.constant 18 : index
    %243 = vector.load %arg14[%c0_455, %c0_456, %c18_457] : memref<2x32x248xf32, #tpu.memory_space<vmem>>, vector<1x32x229xf32>
    %244 = vector.shape_cast %243 : vector<1x32x229xf32> to vector<32x229xf32>
    %c0_458 = arith.constant 0 : index
    %c0_459 = arith.constant 0 : index
    %c19_460 = arith.constant 19 : index
    %245 = vector.load %arg14[%c0_458, %c0_459, %c19_460] : memref<2x32x248xf32, #tpu.memory_space<vmem>>, vector<1x32x229xf32>
    %246 = vector.shape_cast %245 : vector<1x32x229xf32> to vector<32x229xf32>
    %247 = arith.maximumf %244, %246 : vector<32x229xf32>
    %248 = arith.maximumf %242, %247 : vector<32x229xf32>
    %c0_461 = arith.constant 0 : index
    %c0_462 = arith.constant 0 : index
    %249 = vector.load %arg7[%c0_461, %c0_462] : memref<229x49xf32, #tpu.memory_space<vmem>>, vector<229x49xf32>
    %cst_463 = arith.constant dense<0.000000e+00> : vector<32x49xf32>
    %250 = tpu.matmul %248, %249, %cst_463 {dimension_numbers = #tpu.dot_dimension_numbers<[1], [0], [0], [1], [0, 0, 1, 1], [], []>} : vector<32x229xf32>, vector<229x49xf32>, vector<32x49xf32> -> vector<32x49xf32>
    %c0_464 = arith.constant 0 : index
    %c0_465 = arith.constant 0 : index
    %c0_466 = arith.constant 0 : index
    %251 = vector.load %arg8[%c0_464, %c0_465, %c0_466] : memref<2x32x49xf32, #tpu.memory_space<vmem>>, vector<1x32x49xf32>
    %252 = vector.shape_cast %251 : vector<1x32x49xf32> to vector<32x49xf32>
    %253 = vector.shape_cast %250 : vector<32x49xf32> to vector<1x32x49xf32>
    tpu.vector_store %arg8[%c0_464, %c0_465, %c0_466], %253 {strides = array<i32>} : memref<2x32x49xf32, #tpu.memory_space<vmem>>, vector<1x32x49xf32>,
    %c1_467 = arith.constant 1 : index
    %c0_468 = arith.constant 0 : index
    %c0_469 = arith.constant 0 : index
    %254 = vector.load %arg14[%c1_467, %c0_468, %c0_469] : memref<2x32x248xf32, #tpu.memory_space<vmem>>, vector<1x32x229xf32>
    %255 = vector.shape_cast %254 : vector<1x32x229xf32> to vector<32x229xf32>
    %c1_470 = arith.constant 1 : index
    %c0_471 = arith.constant 0 : index
    %c1_472 = arith.constant 1 : index
    %256 = vector.load %arg14[%c1_470, %c0_471, %c1_472] : memref<2x32x248xf32, #tpu.memory_space<vmem>>, vector<1x32x229xf32>
    %257 = vector.shape_cast %256 : vector<1x32x229xf32> to vector<32x229xf32>
    %258 = arith.maximumf %255, %257 : vector<32x229xf32>
    %c1_473 = arith.constant 1 : index
    %c0_474 = arith.constant 0 : index
    %c18_475 = arith.constant 18 : index
    %259 = vector.load %arg14[%c1_473, %c0_474, %c18_475] : memref<2x32x248xf32, #tpu.memory_space<vmem>>, vector<1x32x229xf32>
    %260 = vector.shape_cast %259 : vector<1x32x229xf32> to vector<32x229xf32>
    %c1_476 = arith.constant 1 : index
    %c0_477 = arith.constant 0 : index
    %c19_478 = arith.constant 19 : index
    %261 = vector.load %arg14[%c1_476, %c0_477, %c19_478] : memref<2x32x248xf32, #tpu.memory_space<vmem>>, vector<1x32x229xf32>
    %262 = vector.shape_cast %261 : vector<1x32x229xf32> to vector<32x229xf32>
    %263 = arith.maximumf %260, %262 : vector<32x229xf32>
    %264 = arith.maximumf %258, %263 : vector<32x229xf32>
    %c0_479 = arith.constant 0 : index
    %c0_480 = arith.constant 0 : index
    %265 = vector.load %arg7[%c0_479, %c0_480] : memref<229x49xf32, #tpu.memory_space<vmem>>, vector<229x49xf32>
    %cst_481 = arith.constant dense<0.000000e+00> : vector<32x49xf32>
    %266 = tpu.matmul %264, %265, %cst_481 {dimension_numbers = #tpu.dot_dimension_numbers<[1], [0], [0], [1], [0, 0, 1, 1], [], []>} : vector<32x229xf32>, vector<229x49xf32>, vector<32x49xf32> -> vector<32x49xf32>
    %c1_482 = arith.constant 1 : index
    %c0_483 = arith.constant 0 : index
    %c0_484 = arith.constant 0 : index
    %267 = vector.load %arg8[%c1_482, %c0_483, %c0_484] : memref<2x32x49xf32, #tpu.memory_space<vmem>>, vector<1x32x49xf32>
    %268 = vector.shape_cast %267 : vector<1x32x49xf32> to vector<32x49xf32>
    %269 = vector.shape_cast %266 : vector<32x49xf32> to vector<1x32x49xf32>
    tpu.vector_store %arg8[%c1_482, %c0_483, %c0_484], %269 {strides = array<i32>} : memref<2x32x49xf32, #tpu.memory_space<vmem>>, vector<1x32x49xf32>,
    return
  }
  func.func @transform_0(%arg0: i32) -> (i32, i32, i32) {
    %c0_i32 = arith.constant 0 : i32
    %c0_i32_0 = arith.constant 0 : i32
    %c0_i32_1 = arith.constant 0 : i32
    %c0_i32_2 = arith.constant 0 : i32
    return %c0_i32, %c0_i32_0, %c0_i32_1 : i32, i32, i32
  }
  func.func @transform_1(%arg0: i32) -> (i32, i32) {
    %c0_i32 = arith.constant 0 : i32
    %c0_i32_0 = arith.constant 0 : i32
    %c0_i32_1 = arith.constant 0 : i32
    return %c0_i32, %c0_i32_0 : i32, i32
  }
  func.func @transform_2(%arg0: i32) -> (i32, i32) {
    %c0_i32 = arith.constant 0 : i32
    %c0_i32_0 = arith.constant 0 : i32
    %c0_i32_1 = arith.constant 0 : i32
    return %c0_i32, %c0_i32_0 : i32, i32
  }
  func.func @transform_3(%arg0: i32) -> (i32, i32) {
    %c0_i32 = arith.constant 0 : i32
    %c0_i32_0 = arith.constant 0 : i32
    %c0_i32_1 = arith.constant 0 : i32
    return %c0_i32, %c0_i32_0 : i32, i32
  }
  func.func @transform_4(%arg0: i32) -> (i32, i32) {
    %c0_i32 = arith.constant 0 : i32
    %c0_i32_0 = arith.constant 0 : i32
    %c0_i32_1 = arith.constant 0 : i32
    return %c0_i32, %c0_i32_0 : i32, i32
  }
  func.func @transform_5(%arg0: i32) -> (i32, i32) {
    %c0_i32 = arith.constant 0 : i32
    %c0_i32_0 = arith.constant 0 : i32
    %c0_i32_1 = arith.constant 0 : i32
    return %c0_i32, %c0_i32_0 : i32, i32
  }
  func.func @transform_6(%arg0: i32) -> (i32, i32) {
    %c0_i32 = arith.constant 0 : i32
    %c0_i32_0 = arith.constant 0 : i32
    %c0_i32_1 = arith.constant 0 : i32
    return %c0_i32, %c0_i32_0 : i32, i32
  }
  func.func @transform_7(%arg0: i32) -> (i32, i32, i32) {
    %c0_i32 = arith.constant 0 : i32
    %c0_i32_0 = arith.constant 0 : i32
    %c0_i32_1 = arith.constant 0 : i32
    %c0_i32_2 = arith.constant 0 : i32
    return %c0_i32, %c0_i32_0, %c0_i32_1 : i32, i32, i32
  }
}

</mosaic_0001>

<llo_original>
// kernel: cnn_forward.3
$region0: #{cnn_forward.3}
  #allocation0 [shape = 'u32[]', space=smem, size = 0x4, offset = 0x4, fixed_abs, tag = 'smem constant byte address 0x4 - core index']
  #allocation1 [shape = 'u32[144,128]{1,0:T(1,128)}', space=vmem, size = 0x12000, scoped, tag = 'internal scratch']
  %s0 = inlined_call_operand.vmem [shape: f32[2,1568], index: 0, kind: input, shape index: {}]
  %s1 = inlined_call_operand.vmem [shape: f32[1568,10], index: 1, kind: input, shape index: {}]
  %s2 = inlined_call_operand.vmem [shape: f32[1,10], index: 2, kind: input, shape index: {}]
  %s3 = inlined_call_operand.hbm [shape: f32[2,10], index: 3, kind: output, shape index: {}]
  %s4 = sld [smem:[#allocation0]]
  $region22: #{cnn_forward.3} parent=0
    _
  %s6 = ssub.s32 1, %s4
  %s7 = scalar_select 0, %s6, %s4
  $region1: #{cnn_forward.3} parent=0
    #allocation2 [shape = 'u8[1024]{0}', space=vmem, size = 0x400, scoped, tag = 'output window, operand 0, single buffered']
    #allocation3 [shape = 's32[1]{0}', space=sflag, size = 0x4, scoped, tag = 'scoped memory for cnn_forward.3']
    %8 = vsyncpa [#allocation3], 0
    // Predicated region
    $region2: #{cnn_forward.3} parent=1 // pred_check
      _
    $region3: #{cnn_forward.3} parent=1 // pred_check_branch
      %10 = sbr.rel (0) target = $region5
    $region4: #{cnn_forward.3} parent=1 // pred_region
      _
    $region5: #{cnn_forward.3} parent=1 // pred_fallthru
      _
    // Predicated region
    $region6: #{cnn_forward.3} parent=1 // pred_check
      _
    $region7: #{cnn_forward.3} parent=1 // pred_check_branch
      %12 = sbr.rel (0) target = $region9
    $region8: #{cnn_forward.3} parent=1 // pred_region
      _
    $region9: #{cnn_forward.3} parent=1 // pred_fallthru
      _
    // Predicated region
    $region10: #{cnn_forward.3} parent=1 // pred_check
      _
    $region11: #{cnn_forward.3} parent=1 // pred_check_branch
      %14 = sbr.rel (0) target = $region13
    $region12: #{cnn_forward.3} parent=1 // pred_region
      _
    $region13: #{cnn_forward.3} parent=1 // pred_fallthru
      _
    %v15 = vld [vmem:[%s0] sm:$0xff]
    %v16 = vld [vmem:[%s0 + $0x8] sm:$0xff]
    %v17 = vld [vmem:[%s0 + $0x10] sm:$0xff]
    %v18 = vld [vmem:[%s0 + $0x18] sm:$0x3]
    %v19 = vld [vmem:[%s1] sm:$0xff]
    %v20 = vld [vmem:[%s1 + $0x8] sm:$0xff]
    %v21 = vld [vmem:[%s1 + $0x10] sm:$0xff]
    %v22 = vld [vmem:[%s1 + $0x18] sm:$0xff]
    %v23 = vld [vmem:[%s1 + $0x20] sm:$0xff]
    %v24 = vld [vmem:[%s1 + $0x28] sm:$0xff]
    %v25 = vld [vmem:[%s1 + $0x30] sm:$0xff]
    %v26 = vld [vmem:[%s1 + $0x38] sm:$0xff]
    %v27 = vld [vmem:[%s1 + $0x40] sm:$0xff]
    %v28 = vld [vmem:[%s1 + $0x48] sm:$0xff]
    %v29 = vld [vmem:[%s1 + $0x50] sm:$0xff]
    %v30 = vld [vmem:[%s1 + $0x58] sm:$0xff]
    %v31 = vld [vmem:[%s1 + $0x60] sm:$0xff]
    %v32 = vld [vmem:[%s1 + $0x68] sm:$0xff]
    %v33 = vld [vmem:[%s1 + $0x70] sm:$0xff]
    %v34 = vld [vmem:[%s1 + $0x78] sm:$0xff]
    %v35 = vld [vmem:[%s1 + $0x80] sm:$0xff]
    %v36 = vld [vmem:[%s1 + $0x88] sm:$0xff]
    %v37 = vld [vmem:[%s1 + $0x90] sm:$0xff]
    %v38 = vld [vmem:[%s1 + $0x98] sm:$0xff]
    %v39 = vld [vmem:[%s1 + $0xa0] sm:$0xff]
    %v40 = vld [vmem:[%s1 + $0xa8] sm:$0xff]
    %v41 = vld [vmem:[%s1 + $0xb0] sm:$0xff]
    %v42 = vld [vmem:[%s1 + $0xb8] sm:$0xff]
    %v43 = vld [vmem:[%s1 + $0xc0] sm:$0xff]
    %v44 = vld [vmem:[%s1 + $0xc8] sm:$0xff]
    %v45 = vld [vmem:[%s1 + $0xd0] sm:$0xff]
    %v46 = vld [vmem:[%s1 + $0xd8] sm:$0xff]
    %v47 = vld [vmem:[%s1 + $0xe0] sm:$0xff]
    %v48 = vld [vmem:[%s1 + $0xe8] sm:$0xff]
    %v49 = vld [vmem:[%s1 + $0xf0] sm:$0xff]
    %v50 = vld [vmem:[%s1 + $0xf8] sm:$0xff]
    %v51 = vld [vmem:[%s1 + $0x100] sm:$0xff]
    %v52 = vld [vmem:[%s1 + $0x108] sm:$0xff]
    %v53 = vld [vmem:[%s1 + $0x110] sm:$0xff]
    %v54 = vld [vmem:[%s1 + $0x118] sm:$0xff]
    %v55 = vld [vmem:[%s1 + $0x120] sm:$0xff]
    %v56 = vld [vmem:[%s1 + $0x128] sm:$0xff]
    %v57 = vld [vmem:[%s1 + $0x130] sm:$0xff]
    %v58 = vld [vmem:[%s1 + $0x138] sm:$0xff]
    %v59 = vld [vmem:[%s1 + $0x140] sm:$0xff]
    %v60 = vld [vmem:[%s1 + $0x148] sm:$0xff]
    %v61 = vld [vmem:[%s1 + $0x150] sm:$0xff]
    %v62 = vld [vmem:[%s1 + $0x158] sm:$0xff]
    %v63 = vld [vmem:[%s1 + $0x160] sm:$0xff]
    %v64 = vld [vmem:[%s1 + $0x168] sm:$0xff]
    %v65 = vld [vmem:[%s1 + $0x170] sm:$0xff]
    %v66 = vld [vmem:[%s1 + $0x178] sm:$0xff]
    %v67 = vld [vmem:[%s1 + $0x180] sm:$0xff]
    %v68 = vld [vmem:[%s1 + $0x188] sm:$0xff]
    %v69 = vld [vmem:[%s1 + $0x190] sm:$0xff]
    %v70 = vld [vmem:[%s1 + $0x198] sm:$0xff]
    %v71 = vld [vmem:[%s1 + $0x1a0] sm:$0xff]
    %v72 = vld [vmem:[%s1 + $0x1a8] sm:$0xff]
    %v73 = vld [vmem:[%s1 + $0x1b0] sm:$0xff]
    %v74 = vld [vmem:[%s1 + $0x1b8] sm:$0xff]
    %v75 = vld [vmem:[%s1 + $0x1c0] sm:$0xff]
    %v76 = vld [vmem:[%s1 + $0x1c8] sm:$0xff]
    %v77 = vld [vmem:[%s1 + $0x1d0] sm:$0xff]
    %v78 = vld [vmem:[%s1 + $0x1d8] sm:$0xff]
    %v79 = vld [vmem:[%s1 + $0x1e0] sm:$0xff]
    %v80 = vld [vmem:[%s1 + $0x1e8] sm:$0xff]
    %v81 = vld [vmem:[%s1 + $0x1f0] sm:$0xff]
    %v82 = vld [vmem:[%s1 + $0x1f8] sm:$0xff]
    %v83 = vld [vmem:[%s1 + $0x200] sm:$0xff]
    %v84 = vld [vmem:[%s1 + $0x208] sm:$0xff]
    %v85 = vld [vmem:[%s1 + $0x210] sm:$0xff]
    %v86 = vld [vmem:[%s1 + $0x218] sm:$0xff]
    %v87 = vld [vmem:[%s1 + $0x220] sm:$0xff]
    %v88 = vld [vmem:[%s1 + $0x228] sm:$0xff]
    %v89 = vld [vmem:[%s1 + $0x230] sm:$0xff]
    %v90 = vld [vmem:[%s1 + $0x238] sm:$0xff]
    %v91 = vld [vmem:[%s1 + $0x240] sm:$0xff]
    %v92 = vld [vmem:[%s1 + $0x248] sm:$0xff]
    %v93 = vld [vmem:[%s1 + $0x250] sm:$0xff]
    %v94 = vld [vmem:[%s1 + $0x258] sm:$0xff]
    %v95 = vld [vmem:[%s1 + $0x260] sm:$0xff]
    %v96 = vld [vmem:[%s1 + $0x268] sm:$0xff]
    %v97 = vld [vmem:[%s1 + $0x270] sm:$0xff]
    %v98 = vld [vmem:[%s1 + $0x278] sm:$0xff]
    %v99 = vld [vmem:[%s1 + $0x280] sm:$0xff]
    %v100 = vld [vmem:[%s1 + $0x288] sm:$0xff]
    %v101 = vld [vmem:[%s1 + $0x290] sm:$0xff]
    %v102 = vld [vmem:[%s1 + $0x298] sm:$0xff]
    %v103 = vld [vmem:[%s1 + $0x2a0] sm:$0xff]
    %v104 = vld [vmem:[%s1 + $0x2a8] sm:$0xff]
    %v105 = vld [vmem:[%s1 + $0x2b0] sm:$0xff]
    %v106 = vld [vmem:[%s1 + $0x2b8] sm:$0xff]
    %v107 = vld [vmem:[%s1 + $0x2c0] sm:$0xff]
    %v108 = vld [vmem:[%s1 + $0x2c8] sm:$0xff]
    %v109 = vld [vmem:[%s1 + $0x2d0] sm:$0xff]
    %v110 = vld [vmem:[%s1 + $0x2d8] sm:$0xff]
    %v111 = vld [vmem:[%s1 + $0x2e0] sm:$0xff]
    %v112 = vld [vmem:[%s1 + $0x2e8] sm:$0xff]
    %v113 = vld [vmem:[%s1 + $0x2f0] sm:$0xff]
    %v114 = vld [vmem:[%s1 + $0x2f8] sm:$0xff]
    %v115 = vld [vmem:[%s1 + $0x300] sm:$0xff]
    %v116 = vld [vmem:[%s1 + $0x308] sm:$0xff]
    %v117 = vld [vmem:[%s1 + $0x310] sm:$0xff]
    %v118 = vld [vmem:[%s1 + $0x318] sm:$0xff]
    %v119 = vld [vmem:[%s1 + $0x320] sm:$0xff]
    %v120 = vld [vmem:[%s1 + $0x328] sm:$0xff]
    %v121 = vld [vmem:[%s1 + $0x330] sm:$0xff]
    %v122 = vld [vmem:[%s1 + $0x338] sm:$0xff]
    %v123 = vld [vmem:[%s1 + $0x340] sm:$0xff]
    %v124 = vld [vmem:[%s1 + $0x348] sm:$0xff]
    %v125 = vld [vmem:[%s1 + $0x350] sm:$0xff]
    %v126 = vld [vmem:[%s1 + $0x358] sm:$0xff]
    %v127 = vld [vmem:[%s1 + $0x360] sm:$0xff]
    %v128 = vld [vmem:[%s1 + $0x368] sm:$0xff]
    %v129 = vld [vmem:[%s1 + $0x370] sm:$0xff]
    %v130 = vld [vmem:[%s1 + $0x378] sm:$0xff]
    %v131 = vld [vmem:[%s1 + $0x380] sm:$0xff]
    %v132 = vld [vmem:[%s1 + $0x388] sm:$0xff]
    %v133 = vld [vmem:[%s1 + $0x390] sm:$0xff]
    %v134 = vld [vmem:[%s1 + $0x398] sm:$0xff]
    %v135 = vld [vmem:[%s1 + $0x3a0] sm:$0xff]
    %v136 = vld [vmem:[%s1 + $0x3a8] sm:$0xff]
    %v137 = vld [vmem:[%s1 + $0x3b0] sm:$0xff]
    %v138 = vld [vmem:[%s1 + $0x3b8] sm:$0xff]
    %v139 = vld [vmem:[%s1 + $0x3c0] sm:$0xff]
    %v140 = vld [vmem:[%s1 + $0x3c8] sm:$0xff]
    %v141 = vld [vmem:[%s1 + $0x3d0] sm:$0xff]
    %v142 = vld [vmem:[%s1 + $0x3d8] sm:$0xff]
    %v143 = vld [vmem:[%s1 + $0x3e0] sm:$0xff]
    %v144 = vld [vmem:[%s1 + $0x3e8] sm:$0xff]
    %v145 = vld [vmem:[%s1 + $0x3f0] sm:$0xff]
    %v146 = vld [vmem:[%s1 + $0x3f8] sm:$0xff]
    %v147 = vld [vmem:[%s1 + $0x400] sm:$0xff]
    %v148 = vld [vmem:[%s1 + $0x408] sm:$0xff]
    %v149 = vld [vmem:[%s1 + $0x410] sm:$0xff]
    %v150 = vld [vmem:[%s1 + $0x418] sm:$0xff]
    %v151 = vld [vmem:[%s1 + $0x420] sm:$0xff]
    %v152 = vld [vmem:[%s1 + $0x428] sm:$0xff]
    %v153 = vld [vmem:[%s1 + $0x430] sm:$0xff]
    %v154 = vld [vmem:[%s1 + $0x438] sm:$0xff]
    %v155 = vld [vmem:[%s1 + $0x440] sm:$0xff]
    %v156 = vld [vmem:[%s1 + $0x448] sm:$0xff]
    %v157 = vld [vmem:[%s1 + $0x450] sm:$0xff]
    %v158 = vld [vmem:[%s1 + $0x458] sm:$0xff]
    %v159 = vld [vmem:[%s1 + $0x460] sm:$0xff]
    %v160 = vld [vmem:[%s1 + $0x468] sm:$0xff]
    %v161 = vld [vmem:[%s1 + $0x470] sm:$0xff]
    %v162 = vld [vmem:[%s1 + $0x478] sm:$0xff]
    %v163 = vld [vmem:[%s1 + $0x480] sm:$0xff]
    %v164 = vld [vmem:[%s1 + $0x488] sm:$0xff]
    %v165 = vld [vmem:[%s1 + $0x490] sm:$0xff]
    %v166 = vld [vmem:[%s1 + $0x498] sm:$0xff]
    %v167 = vld [vmem:[%s1 + $0x4a0] sm:$0xff]
    %v168 = vld [vmem:[%s1 + $0x4a8] sm:$0xff]
    %v169 = vld [vmem:[%s1 + $0x4b0] sm:$0xff]
    %v170 = vld [vmem:[%s1 + $0x4b8] sm:$0xff]
    %v171 = vld [vmem:[%s1 + $0x4c0] sm:$0xff]
    %v172 = vld [vmem:[%s1 + $0x4c8] sm:$0xff]
    %v173 = vld [vmem:[%s1 + $0x4d0] sm:$0xff]
    %v174 = vld [vmem:[%s1 + $0x4d8] sm:$0xff]
    %v175 = vld [vmem:[%s1 + $0x4e0] sm:$0xff]
    %v176 = vld [vmem:[%s1 + $0x4e8] sm:$0xff]
    %v177 = vld [vmem:[%s1 + $0x4f0] sm:$0xff]
    %v178 = vld [vmem:[%s1 + $0x4f8] sm:$0xff]
    %v179 = vld [vmem:[%s1 + $0x500] sm:$0xff]
    %v180 = vld [vmem:[%s1 + $0x508] sm:$0xff]
    %v181 = vld [vmem:[%s1 + $0x510] sm:$0xff]
    %v182 = vld [vmem:[%s1 + $0x518] sm:$0xff]
    %v183 = vld [vmem:[%s1 + $0x520] sm:$0xff]
    %v184 = vld [vmem:[%s1 + $0x528] sm:$0xff]
    %v185 = vld [vmem:[%s1 + $0x530] sm:$0xff]
    %v186 = vld [vmem:[%s1 + $0x538] sm:$0xff]
    %v187 = vld [vmem:[%s1 + $0x540] sm:$0xff]
    %v188 = vld [vmem:[%s1 + $0x548] sm:$0xff]
    %v189 = vld [vmem:[%s1 + $0x550] sm:$0xff]
    %v190 = vld [vmem:[%s1 + $0x558] sm:$0xff]
    %v191 = vld [vmem:[%s1 + $0x560] sm:$0xff]
    %v192 = vld [vmem:[%s1 + $0x568] sm:$0xff]
    %v193 = vld [vmem:[%s1 + $0x570] sm:$0xff]
    %v194 = vld [vmem:[%s1 + $0x578] sm:$0xff]
    %v195 = vld [vmem:[%s1 + $0x580] sm:$0xff]
    %v196 = vld [vmem:[%s1 + $0x588] sm:$0xff]
    %v197 = vld [vmem:[%s1 + $0x590] sm:$0xff]
    %v198 = vld [vmem:[%s1 + $0x598] sm:$0xff]
    %v199 = vld [vmem:[%s1 + $0x5a0] sm:$0xff]
    %v200 = vld [vmem:[%s1 + $0x5a8] sm:$0xff]
    %v201 = vld [vmem:[%s1 + $0x5b0] sm:$0xff]
    %v202 = vld [vmem:[%s1 + $0x5b8] sm:$0xff]
    %v203 = vld [vmem:[%s1 + $0x5c0] sm:$0xff]
    %v204 = vld [vmem:[%s1 + $0x5c8] sm:$0xff]
    %v205 = vld [vmem:[%s1 + $0x5d0] sm:$0xff]
    %v206 = vld [vmem:[%s1 + $0x5d8] sm:$0xff]
    %v207 = vld [vmem:[%s1 + $0x5e0] sm:$0xff]
    %v208 = vld [vmem:[%s1 + $0x5e8] sm:$0xff]
    %v209 = vld [vmem:[%s1 + $0x5f0] sm:$0xff]
    %v210 = vld [vmem:[%s1 + $0x5f8] sm:$0xff]
    %v211 = vld [vmem:[%s1 + $0x600] sm:$0xff]
    %v212 = vld [vmem:[%s1 + $0x608] sm:$0xff]
    %v213 = vld [vmem:[%s1 + $0x610] sm:$0xff]
    %v214 = vld [vmem:[%s1 + $0x618] sm:$0xff]
    %v215 = vld [vmem:[%s2] sm:$0x1]
    %v217 = vlaneseq
    %v218 = vshrl.u32 %v217, 7
    %v219 = vsub.s32 0, %v218
    %v220 = vrot.slane %v215, %v219
    %v226 = vcombine.high %v15, %v15
    %v228 = vunpack.c.l.s4 1983009808
    %v229 = vunpack.c.0.s8 %v228
    %v230 = vlaneseq
    %v231 = vshrl.u32 %v230, 7
    %v232 = vsub.s32 %v229, %v231
    %v233 = vrot.slane %v15, %v232
    %v235 = vunpack.c.l.s4 1983009808
    %v236 = vunpack.c.0.s8 %v235
    %v237 = vlaneseq
    %v238 = vshrl.u32 %v237, 7
    %v239 = vsub.s32 %v236, %v238
    %v240 = vrot.slane %v226, %v239
    %v241 = vcombine.high %v233, %v233
    %v242 = vcombine.high %v240, %v240
    %v243 = vcombine.high %v16, %v16
    %v245 = vunpack.c.l.s4 1983009808
    %v246 = vunpack.c.0.s8 %v245
    %v247 = vlaneseq
    %v248 = vshrl.u32 %v247, 7
    %v249 = vsub.s32 %v246, %v248
    %v250 = vrot.slane %v16, %v249
    %v252 = vunpack.c.l.s4 1983009808
    %v253 = vunpack.c.0.s8 %v252
    %v254 = vlaneseq
    %v255 = vshrl.u32 %v254, 7
    %v256 = vsub.s32 %v253, %v255
    %v257 = vrot.slane %v243, %v256
    %v258 = vcombine.high %v250, %v250
    %v259 = vcombine.high %v257, %v257
    %v260 = vcombine.high %v17, %v17
    %v262 = vunpack.c.l.s4 1983009808
    %v263 = vunpack.c.0.s8 %v262
    %v264 = vlaneseq
    %v265 = vshrl.u32 %v264, 7
    %v266 = vsub.s32 %v263, %v265
    %v267 = vrot.slane %v17, %v266
    %v269 = vunpack.c.l.s4 1983009808
    %v270 = vunpack.c.0.s8 %v269
    %v271 = vlaneseq
    %v272 = vshrl.u32 %v271, 7
    %v273 = vsub.s32 %v270, %v272
    %v274 = vrot.slane %v260, %v273
    %v275 = vcombine.high %v267, %v267
    %v276 = vcombine.high %v274, %v274
    %v278 = vunpack.c.l.s4 1983009808
    %v279 = vunpack.c.0.s8 %v278
    %v280 = vlaneseq
    %v281 = vshrl.u32 %v280, 7
    %v282 = vsub.s32 %v279, %v281
    %v283 = vrot.slane %v18, %v282
    %vm296 = vcmask 261120
    %v297 = vsel %vm296, %v283, 0
    %299 = vmatprep.subr.mxu0 0.0
    %300 = vmatpush1.msra.mxu0 %v19
    %301 = vmatprep.subr.mxu0 0.0
    %302 = vmatpush1.msra.mxu0 %v20
    %303 = vmatprep.subr.mxu0 0.0
    %304 = vmatpush1.msra.mxu0 %v21
    %305 = vmatprep.subr.mxu0 0.0
    %306 = vmatpush1.msra.mxu0 %v22
    %307 = vmatprep.subr.mxu0 0.0
    %308 = vmatpush1.msra.mxu0 %v23
    %309 = vmatprep.subr.mxu0 0.0
    %310 = vmatpush1.msra.mxu0 %v24
    %311 = vmatprep.subr.mxu0 0.0
    %312 = vmatpush1.msra.mxu0 %v25
    %313 = vmatprep.subr.mxu0 0.0
    %314 = vmatpush1.msra.mxu0 %v26
    %315 = vmatprep.subr.mxu0 0.0
    %316 = vmatpush1.msra.mxu0 %v27
    %317 = vmatprep.subr.mxu0 0.0
    %318 = vmatpush1.msra.mxu0 %v28
    %319 = vmatprep.subr.mxu0 0.0
    %320 = vmatpush1.msra.mxu0 %v29
    %321 = vmatprep.subr.mxu0 0.0
    %322 = vmatpush1.msra.mxu0 %v30
    %323 = vmatprep.subr.mxu0 0.0
    %324 = vmatpush1.msra.mxu0 %v31
    %325 = vmatprep.subr.mxu0 0.0
    %326 = vmatpush1.msra.mxu0 %v32
    %327 = vmatprep.subr.mxu0 0.0
    %328 = vmatpush1.msra.mxu0 %v33
    %329 = vmatprep.subr.mxu0 0.0
    %330 = vmatpush1.msra.mxu0 %v34
    %331 = vmatprep.subr.mxu0 0.0
    %332 = vmatpush1.msra.mxu0 %v35
    %333 = vmatprep.subr.mxu0 0.0
    %334 = vmatpush1.msra.mxu0 %v36
    %335 = vmatprep.subr.mxu0 0.0
    %336 = vmatpush1.msra.mxu0 %v37
    %337 = vmatprep.subr.mxu0 0.0
    %338 = vmatpush1.msra.mxu0 %v38
    %339 = vmatprep.subr.mxu0 0.0
    %340 = vmatpush1.msra.mxu0 %v39
    %341 = vmatprep.subr.mxu0 0.0
    %342 = vmatpush1.msra.mxu0 %v40
    %343 = vmatprep.subr.mxu0 0.0
    %344 = vmatpush1.msra.mxu0 %v41
    %345 = vmatprep.subr.mxu0 0.0
    %346 = vmatpush1.msra.mxu0 %v42
    %347 = vmatprep.subr.mxu0 0.0
    %348 = vmatpush1.msra.mxu0 %v43
    %349 = vmatprep.subr.mxu0 0.0
    %350 = vmatpush1.msra.mxu0 %v44
    %351 = vmatprep.subr.mxu0 0.0
    %352 = vmatpush1.msra.mxu0 %v45
    %353 = vmatprep.subr.mxu0 0.0
    %354 = vmatpush1.msra.mxu0 %v46
    %355 = vmatprep.subr.mxu0 0.0
    %356 = vmatpush1.msra.mxu0 %v47
    %357 = vmatprep.subr.mxu0 0.0
    %358 = vmatpush1.msra.mxu0 %v48
    %359 = vmatprep.subr.mxu0 0.0
    %360 = vmatpush1.msra.mxu0 %v49
    %361 = vmatprep.subr.mxu0 0.0
    %362 = vmatpush1.msra.mxu0 %v50
    %363 = vmatprep.mubr.f32.mxu0 %v241
    %364 = vmatmul.mubr.f32.gmra.mrb[0].mxu0 %v233
    %v365 = vpop.f32.mrb[0].mxu0
    %v366 = vadd.f32 %v220, %v365
    %v367 = vpop.f32.mrb[0].mxu0
    %368 = vdwg.mxu0
    %369 = vmatprep.subr.mxu0 0.0
    %370 = vmatpush1.msra.mxu0 %v51
    %371 = vmatprep.subr.mxu0 0.0
    %372 = vmatpush1.msra.mxu0 %v52
    %373 = vmatprep.subr.mxu0 0.0
    %374 = vmatpush1.msra.mxu0 %v53
    %375 = vmatprep.subr.mxu0 0.0
    %376 = vmatpush1.msra.mxu0 %v54
    %377 = vmatprep.subr.mxu0 0.0
    %378 = vmatpush1.msra.mxu0 %v55
    %379 = vmatprep.subr.mxu0 0.0
    %380 = vmatpush1.msra.mxu0 %v56
    %381 = vmatprep.subr.mxu0 0.0
    %382 = vmatpush1.msra.mxu0 %v57
    %383 = vmatprep.subr.mxu0 0.0
    %384 = vmatpush1.msra.mxu0 %v58
    %385 = vmatprep.subr.mxu0 0.0
    %386 = vmatpush1.msra.mxu0 %v59
    %387 = vmatprep.subr.mxu0 0.0
    %388 = vmatpush1.msra.mxu0 %v60
    %389 = vmatprep.subr.mxu0 0.0
    %390 = vmatpush1.msra.mxu0 %v61
    %391 = vmatprep.subr.mxu0 0.0
    %392 = vmatpush1.msra.mxu0 %v62
    %393 = vmatprep.subr.mxu0 0.0
    %394 = vmatpush1.msra.mxu0 %v63
    %395 = vmatprep.subr.mxu0 0.0
    %396 = vmatpush1.msra.mxu0 %v64
    %397 = vmatprep.subr.mxu0 0.0
    %398 = vmatpush1.msra.mxu0 %v65
    %399 = vmatprep.subr.mxu0 0.0
    %400 = vmatpush1.msra.mxu0 %v66
    %401 = vmatprep.subr.mxu0 0.0
    %402 = vmatpush1.msra.mxu0 %v67
    %403 = vmatprep.subr.mxu0 0.0
    %404 = vmatpush1.msra.mxu0 %v68
    %405 = vmatprep.subr.mxu0 0.0
    %406 = vmatpush1.msra.mxu0 %v69
    %407 = vmatprep.subr.mxu0 0.0
    %408 = vmatpush1.msra.mxu0 %v70
    %409 = vmatprep.subr.mxu0 0.0
    %410 = vmatpush1.msra.mxu0 %v71
    %411 = vmatprep.subr.mxu0 0.0
    %412 = vmatpush1.msra.mxu0 %v72
    %413 = vmatprep.subr.mxu0 0.0
    %414 = vmatpush1.msra.mxu0 %v73
    %415 = vmatprep.subr.mxu0 0.0
    %416 = vmatpush1.msra.mxu0 %v74
    %417 = vmatprep.subr.mxu0 0.0
    %418 = vmatpush1.msra.mxu0 %v75
    %419 = vmatprep.subr.mxu0 0.0
    %420 = vmatpush1.msra.mxu0 %v76
    %421 = vmatprep.subr.mxu0 0.0
    %422 = vmatpush1.msra.mxu0 %v77
    %423 = vmatprep.subr.mxu0 0.0
    %424 = vmatpush1.msra.mxu0 %v78
    %425 = vmatprep.subr.mxu0 0.0
    %426 = vmatpush1.msra.mxu0 %v79
    %427 = vmatprep.subr.mxu0 0.0
    %428 = vmatpush1.msra.mxu0 %v80
    %429 = vmatprep.subr.mxu0 0.0
    %430 = vmatpush1.msra.mxu0 %v81
    %431 = vmatprep.subr.mxu0 0.0
    %432 = vmatpush1.msra.mxu0 %v82
    %433 = vmatprep.mubr.f32.mxu0 %v242
    %434 = vmatmul.mubr.f32.gmra.mrb[0].mxu0 %v240
    %v435 = vpop.f32.mrb[0].mxu0
    %v436 = vadd.f32 %v366, %v435
    %v437 = vpop.f32.mrb[0].mxu0
    %438 = vdwg.mxu0
    %439 = vmatprep.subr.mxu0 0.0
    %440 = vmatpush1.msra.mxu0 %v83
    %441 = vmatprep.subr.mxu0 0.0
    %442 = vmatpush1.msra.mxu0 %v84
    %443 = vmatprep.subr.mxu0 0.0
    %444 = vmatpush1.msra.mxu0 %v85
    %445 = vmatprep.subr.mxu0 0.0
    %446 = vmatpush1.msra.mxu0 %v86
    %447 = vmatprep.subr.mxu0 0.0
    %448 = vmatpush1.msra.mxu0 %v87
    %449 = vmatprep.subr.mxu0 0.0
    %450 = vmatpush1.msra.mxu0 %v88
    %451 = vmatprep.subr.mxu0 0.0
    %452 = vmatpush1.msra.mxu0 %v89
    %453 = vmatprep.subr.mxu0 0.0
    %454 = vmatpush1.msra.mxu0 %v90
    %455 = vmatprep.subr.mxu0 0.0
    %456 = vmatpush1.msra.mxu0 %v91
    %457 = vmatprep.subr.mxu0 0.0
    %458 = vmatpush1.msra.mxu0 %v92
    %459 = vmatprep.subr.mxu0 0.0
    %460 = vmatpush1.msra.mxu0 %v93
    %461 = vmatprep.subr.mxu0 0.0
    %462 = vmatpush1.msra.mxu0 %v94
    %463 = vmatprep.subr.mxu0 0.0
    %464 = vmatpush1.msra.mxu0 %v95
    %465 = vmatprep.subr.mxu0 0.0
    %466 = vmatpush1.msra.mxu0 %v96
    %467 = vmatprep.subr.mxu0 0.0
    %468 = vmatpush1.msra.mxu0 %v97
    %469 = vmatprep.subr.mxu0 0.0
    %470 = vmatpush1.msra.mxu0 %v98
    %471 = vmatprep.subr.mxu0 0.0
    %472 = vmatpush1.msra.mxu0 %v99
    %473 = vmatprep.subr.mxu0 0.0
    %474 = vmatpush1.msra.mxu0 %v100
    %475 = vmatprep.subr.mxu0 0.0
    %476 = vmatpush1.msra.mxu0 %v101
    %477 = vmatprep.subr.mxu0 0.0
    %478 = vmatpush1.msra.mxu0 %v102
    %479 = vmatprep.subr.mxu0 0.0
    %480 = vmatpush1.msra.mxu0 %v103
    %481 = vmatprep.subr.mxu0 0.0
    %482 = vmatpush1.msra.mxu0 %v104
    %483 = vmatprep.subr.mxu0 0.0
    %484 = vmatpush1.msra.mxu0 %v105
    %485 = vmatprep.subr.mxu0 0.0
    %486 = vmatpush1.msra.mxu0 %v106
    %487 = vmatprep.subr.mxu0 0.0
    %488 = vmatpush1.msra.mxu0 %v107
    %489 = vmatprep.subr.mxu0 0.0
    %490 = vmatpush1.msra.mxu0 %v108
    %491 = vmatprep.subr.mxu0 0.0
    %492 = vmatpush1.msra.mxu0 %v109
    %493 = vmatprep.subr.mxu0 0.0
    %494 = vmatpush1.msra.mxu0 %v110
    %495 = vmatprep.subr.mxu0 0.0
    %496 = vmatpush1.msra.mxu0 %v111
    %497 = vmatprep.subr.mxu0 0.0
    %498 = vmatpush1.msra.mxu0 %v112
    %499 = vmatprep.subr.mxu0 0.0
    %500 = vmatpush1.msra.mxu0 %v113
    %501 = vmatprep.subr.mxu0 0.0
    %502 = vmatpush1.msra.mxu0 %v114
    %503 = vmatprep.mubr.f32.mxu0 %v258
    %504 = vmatmul.mubr.f32.gmra.mrb[0].mxu0 %v250
    %v505 = vpop.f32.mrb[0].mxu0
    %v506 = vadd.f32 %v436, %v505
    %v507 = vpop.f32.mrb[0].mxu0
    %508 = vdwg.mxu0
    %509 = vmatprep.subr.mxu0 0.0
    %510 = vmatpush1.msra.mxu0 %v115
    %511 = vmatprep.subr.mxu0 0.0
    %512 = vmatpush1.msra.mxu0 %v116
    %513 = vmatprep.subr.mxu0 0.0
    %514 = vmatpush1.msra.mxu0 %v117
    %515 = vmatprep.subr.mxu0 0.0
    %516 = vmatpush1.msra.mxu0 %v118
    %517 = vmatprep.subr.mxu0 0.0
    %518 = vmatpush1.msra.mxu0 %v119
    %519 = vmatprep.subr.mxu0 0.0
    %520 = vmatpush1.msra.mxu0 %v120
    %521 = vmatprep.subr.mxu0 0.0
    %522 = vmatpush1.msra.mxu0 %v121
    %523 = vmatprep.subr.mxu0 0.0
    %524 = vmatpush1.msra.mxu0 %v122
    %525 = vmatprep.subr.mxu0 0.0
    %526 = vmatpush1.msra.mxu0 %v123
    %527 = vmatprep.subr.mxu0 0.0
    %528 = vmatpush1.msra.mxu0 %v124
    %529 = vmatprep.subr.mxu0 0.0
    %530 = vmatpush1.msra.mxu0 %v125
    %531 = vmatprep.subr.mxu0 0.0
    %532 = vmatpush1.msra.mxu0 %v126
    %533 = vmatprep.subr.mxu0 0.0
    %534 = vmatpush1.msra.mxu0 %v127
    %535 = vmatprep.subr.mxu0 0.0
    %536 = vmatpush1.msra.mxu0 %v128
    %537 = vmatprep.subr.mxu0 0.0
    %538 = vmatpush1.msra.mxu0 %v129
    %539 = vmatprep.subr.mxu0 0.0
    %540 = vmatpush1.msra.mxu0 %v130
    %541 = vmatprep.subr.mxu0 0.0
    %542 = vmatpush1.msra.mxu0 %v131
    %543 = vmatprep.subr.mxu0 0.0
    %544 = vmatpush1.msra.mxu0 %v132
    %545 = vmatprep.subr.mxu0 0.0
    %546 = vmatpush1.msra.mxu0 %v133
    %547 = vmatprep.subr.mxu0 0.0
    %548 = vmatpush1.msra.mxu0 %v134
    %549 = vmatprep.subr.mxu0 0.0
    %550 = vmatpush1.msra.mxu0 %v135
    %551 = vmatprep.subr.mxu0 0.0
    %552 = vmatpush1.msra.mxu0 %v136
    %553 = vmatprep.subr.mxu0 0.0
    %554 = vmatpush1.msra.mxu0 %v137
    %555 = vmatprep.subr.mxu0 0.0
    %556 = vmatpush1.msra.mxu0 %v138
    %557 = vmatprep.subr.mxu0 0.0
    %558 = vmatpush1.msra.mxu0 %v139
    %559 = vmatprep.subr.mxu0 0.0
    %560 = vmatpush1.msra.mxu0 %v140
    %561 = vmatprep.subr.mxu0 0.0
    %562 = vmatpush1.msra.mxu0 %v141
    %563 = vmatprep.subr.mxu0 0.0
    %564 = vmatpush1.msra.mxu0 %v142
    %565 = vmatprep.subr.mxu0 0.0
    %566 = vmatpush1.msra.mxu0 %v143
    %567 = vmatprep.subr.mxu0 0.0
    %568 = vmatpush1.msra.mxu0 %v144
    %569 = vmatprep.subr.mxu0 0.0
    %570 = vmatpush1.msra.mxu0 %v145
    %571 = vmatprep.subr.mxu0 0.0
    %572 = vmatpush1.msra.mxu0 %v146
    %573 = vmatprep.mubr.f32.mxu0 %v259
    %574 = vmatmul.mubr.f32.gmra.mrb[0].mxu0 %v257
    %v575 = vpop.f32.mrb[0].mxu0
    %v576 = vadd.f32 %v506, %v575
    %v577 = vpop.f32.mrb[0].mxu0
    %578 = vdwg.mxu0
    %579 = vmatprep.subr.mxu0 0.0
    %580 = vmatpush1.msra.mxu0 %v147
    %581 = vmatprep.subr.mxu0 0.0
    %582 = vmatpush1.msra.mxu0 %v148
    %583 = vmatprep.subr.mxu0 0.0
    %584 = vmatpush1.msra.mxu0 %v149
    %585 = vmatprep.subr.mxu0 0.0
    %586 = vmatpush1.msra.mxu0 %v150
    %587 = vmatprep.subr.mxu0 0.0
    %588 = vmatpush1.msra.mxu0 %v151
    %589 = vmatprep.subr.mxu0 0.0
    %590 = vmatpush1.msra.mxu0 %v152
    %591 = vmatprep.subr.mxu0 0.0
    %592 = vmatpush1.msra.mxu0 %v153
    %593 = vmatprep.subr.mxu0 0.0
    %594 = vmatpush1.msra.mxu0 %v154
    %595 = vmatprep.subr.mxu0 0.0
    %596 = vmatpush1.msra.mxu0 %v155
    %597 = vmatprep.subr.mxu0 0.0
    %598 = vmatpush1.msra.mxu0 %v156
    %599 = vmatprep.subr.mxu0 0.0
    %600 = vmatpush1.msra.mxu0 %v157
    %601 = vmatprep.subr.mxu0 0.0
    %602 = vmatpush1.msra.mxu0 %v158
    %603 = vmatprep.subr.mxu0 0.0
    %604 = vmatpush1.msra.mxu0 %v159
    %605 = vmatprep.subr.mxu0 0.0
    %606 = vmatpush1.msra.mxu0 %v160
    %607 = vmatprep.subr.mxu0 0.0
    %608 = vmatpush1.msra.mxu0 %v161
    %609 = vmatprep.subr.mxu0 0.0
    %610 = vmatpush1.msra.mxu0 %v162
    %611 = vmatprep.subr.mxu0 0.0
    %612 = vmatpush1.msra.mxu0 %v163
    %613 = vmatprep.subr.mxu0 0.0
    %614 = vmatpush1.msra.mxu0 %v164
    %615 = vmatprep.subr.mxu0 0.0
    %616 = vmatpush1.msra.mxu0 %v165
    %617 = vmatprep.subr.mxu0 0.0
    %618 = vmatpush1.msra.mxu0 %v166
    %619 = vmatprep.subr.mxu0 0.0
    %620 = vmatpush1.msra.mxu0 %v167
    %621 = vmatprep.subr.mxu0 0.0
    %622 = vmatpush1.msra.mxu0 %v168
    %623 = vmatprep.subr.mxu0 0.0
    %624 = vmatpush1.msra.mxu0 %v169
    %625 = vmatprep.subr.mxu0 0.0
    %626 = vmatpush1.msra.mxu0 %v170
    %627 = vmatprep.subr.mxu0 0.0
    %628 = vmatpush1.msra.mxu0 %v171
    %629 = vmatprep.subr.mxu0 0.0
    %630 = vmatpush1.msra.mxu0 %v172
    %631 = vmatprep.subr.mxu0 0.0
    %632 = vmatpush1.msra.mxu0 %v173
    %633 = vmatprep.subr.mxu0 0.0
    %634 = vmatpush1.msra.mxu0 %v174
    %635 = vmatprep.subr.mxu0 0.0
    %636 = vmatpush1.msra.mxu0 %v175
    %637 = vmatprep.subr.mxu0 0.0
    %638 = vmatpush1.msra.mxu0 %v176
    %639 = vmatprep.subr.mxu0 0.0
    %640 = vmatpush1.msra.mxu0 %v177
    %641 = vmatprep.subr.mxu0 0.0
    %642 = vmatpush1.msra.mxu0 %v178
    %643 = vmatprep.mubr.f32.mxu0 %v275
    %644 = vmatmul.mubr.f32.gmra.mrb[0].mxu0 %v267
    %v645 = vpop.f32.mrb[0].mxu0
    %v646 = vadd.f32 %v576, %v645
    %v647 = vpop.f32.mrb[0].mxu0
    %648 = vdwg.mxu0
    %649 = vmatprep.subr.mxu0 0.0
    %650 = vmatpush1.msra.mxu0 %v179
    %651 = vmatprep.subr.mxu0 0.0
    %652 = vmatpush1.msra.mxu0 %v180
    %653 = vmatprep.subr.mxu0 0.0
    %654 = vmatpush1.msra.mxu0 %v181
    %655 = vmatprep.subr.mxu0 0.0
    %656 = vmatpush1.msra.mxu0 %v182
    %657 = vmatprep.subr.mxu0 0.0
    %658 = vmatpush1.msra.mxu0 %v183
    %659 = vmatprep.subr.mxu0 0.0
    %660 = vmatpush1.msra.mxu0 %v184
    %661 = vmatprep.subr.mxu0 0.0
    %662 = vmatpush1.msra.mxu0 %v185
    %663 = vmatprep.subr.mxu0 0.0
    %664 = vmatpush1.msra.mxu0 %v186
    %665 = vmatprep.subr.mxu0 0.0
    %666 = vmatpush1.msra.mxu0 %v187
    %667 = vmatprep.subr.mxu0 0.0
    %668 = vmatpush1.msra.mxu0 %v188
    %669 = vmatprep.subr.mxu0 0.0
    %670 = vmatpush1.msra.mxu0 %v189
    %671 = vmatprep.subr.mxu0 0.0
    %672 = vmatpush1.msra.mxu0 %v190
    %673 = vmatprep.subr.mxu0 0.0
    %674 = vmatpush1.msra.mxu0 %v191
    %675 = vmatprep.subr.mxu0 0.0
    %676 = vmatpush1.msra.mxu0 %v192
    %677 = vmatprep.subr.mxu0 0.0
    %678 = vmatpush1.msra.mxu0 %v193
    %679 = vmatprep.subr.mxu0 0.0
    %680 = vmatpush1.msra.mxu0 %v194
    %681 = vmatprep.subr.mxu0 0.0
    %682 = vmatpush1.msra.mxu0 %v195
    %683 = vmatprep.subr.mxu0 0.0
    %684 = vmatpush1.msra.mxu0 %v196
    %685 = vmatprep.subr.mxu0 0.0
    %686 = vmatpush1.msra.mxu0 %v197
    %687 = vmatprep.subr.mxu0 0.0
    %688 = vmatpush1.msra.mxu0 %v198
    %689 = vmatprep.subr.mxu0 0.0
    %690 = vmatpush1.msra.mxu0 %v199
    %691 = vmatprep.subr.mxu0 0.0
    %692 = vmatpush1.msra.mxu0 %v200
    %693 = vmatprep.subr.mxu0 0.0
    %694 = vmatpush1.msra.mxu0 %v201
    %695 = vmatprep.subr.mxu0 0.0
    %696 = vmatpush1.msra.mxu0 %v202
    %697 = vmatprep.subr.mxu0 0.0
    %698 = vmatpush1.msra.mxu0 %v203
    %699 = vmatprep.subr.mxu0 0.0
    %700 = vmatpush1.msra.mxu0 %v204
    %701 = vmatprep.subr.mxu0 0.0
    %702 = vmatpush1.msra.mxu0 %v205
    %703 = vmatprep.subr.mxu0 0.0
    %704 = vmatpush1.msra.mxu0 %v206
    %705 = vmatprep.subr.mxu0 0.0
    %706 = vmatpush1.msra.mxu0 %v207
    %707 = vmatprep.subr.mxu0 0.0
    %708 = vmatpush1.msra.mxu0 %v208
    %709 = vmatprep.subr.mxu0 0.0
    %710 = vmatpush1.msra.mxu0 %v209
    %711 = vmatprep.subr.mxu0 0.0
    %712 = vmatpush1.msra.mxu0 %v210
    %713 = vmatprep.mubr.f32.mxu0 %v276
    %714 = vmatmul.mubr.f32.gmra.mrb[0].mxu0 %v274
    %v715 = vpop.f32.mrb[0].mxu0
    %v716 = vadd.f32 %v646, %v715
    %v717 = vpop.f32.mrb[0].mxu0
    %718 = vdwg.mxu0
    %719 = vmatprep.subr.mxu0 0.0
    %720 = vmatpush1.msra.mxu0 %v211
    %721 = vmatprep.subr.mxu0 0.0
    %722 = vmatpush1.msra.mxu0 %v212
    %723 = vmatprep.subr.mxu0 0.0
    %724 = vmatpush1.msra.mxu0 %v213
    %725 = vmatprep.subr.mxu0 0.0
    %726 = vmatpush1.msra.mxu0 %v214
    %727 = vmatprep.subr.mxu0 0.0
    %728 = vmatpush1.msra.mxu0 0.0
    %729 = vmatprep.subr.mxu0 0.0
    %730 = vmatpush1.msra.mxu0 0.0
    %731 = vmatprep.subr.mxu0 0.0
    %732 = vmatpush1.msra.mxu0 0.0
    %733 = vmatprep.subr.mxu0 0.0
    %734 = vmatpush1.msra.mxu0 0.0
    %735 = vmatprep.subr.mxu0 0.0
    %736 = vmatpush1.msra.mxu0 0.0
    %737 = vmatprep.subr.mxu0 0.0
    %738 = vmatpush1.msra.mxu0 0.0
    %739 = vmatprep.subr.mxu0 0.0
    %740 = vmatpush1.msra.mxu0 0.0
    %741 = vmatprep.subr.mxu0 0.0
    %742 = vmatpush1.msra.mxu0 0.0
    %743 = vmatprep.subr.mxu0 0.0
    %744 = vmatpush1.msra.mxu0 0.0
    %745 = vmatprep.subr.mxu0 0.0
    %746 = vmatpush1.msra.mxu0 0.0
    %747 = vmatprep.subr.mxu0 0.0
    %748 = vmatpush1.msra.mxu0 0.0
    %749 = vmatprep.subr.mxu0 0.0
    %750 = vmatpush1.msra.mxu0 0.0
    %751 = vmatprep.subr.mxu0 0.0
    %752 = vmatpush1.msra.mxu0 0.0
    %753 = vmatprep.subr.mxu0 0.0
    %754 = vmatpush1.msra.mxu0 0.0
    %755 = vmatprep.subr.mxu0 0.0
    %756 = vmatpush1.msra.mxu0 0.0
    %757 = vmatprep.subr.mxu0 0.0
    %758 = vmatpush1.msra.mxu0 0.0
    %759 = vmatprep.subr.mxu0 0.0
    %760 = vmatpush1.msra.mxu0 0.0
    %761 = vmatprep.subr.mxu0 0.0
    %762 = vmatpush1.msra.mxu0 0.0
    %763 = vmatprep.subr.mxu0 0.0
    %764 = vmatpush1.msra.mxu0 0.0
    %765 = vmatprep.subr.mxu0 0.0
    %766 = vmatpush1.msra.mxu0 0.0
    %767 = vmatprep.subr.mxu0 0.0
    %768 = vmatpush1.msra.mxu0 0.0
    %769 = vmatprep.subr.mxu0 0.0
    %770 = vmatpush1.msra.mxu0 0.0
    %771 = vmatprep.subr.mxu0 0.0
    %772 = vmatpush1.msra.mxu0 0.0
    %773 = vmatprep.subr.mxu0 0.0
    %774 = vmatpush1.msra.mxu0 0.0
    %775 = vmatprep.subr.mxu0 0.0
    %776 = vmatpush1.msra.mxu0 0.0
    %777 = vmatprep.subr.mxu0 0.0
    %778 = vmatpush1.msra.mxu0 0.0
    %779 = vmatprep.subr.mxu0 0.0
    %780 = vmatpush1.msra.mxu0 0.0
    %781 = vmatprep.subr.mxu0 0.0
    %782 = vmatpush1.msra.mxu0 0.0
    %783 = vmatprep.mubr.f32.mxu0 0.0
    %784 = vmatmul.mubr.f32.gmra.mrb[0].mxu0 %v297
    %v785 = vpop.f32.mrb[0].mxu0
    %v786 = vadd.f32 %v716, %v785
    %v787 = vpop.f32.mrb[0].mxu0
    %788 = vdwg.mxu0
    %vm789 = vcmask 74752
    %790 = vst.msk [vmem:[#allocation2] sm:$0x3] %vm789, %v786
    // Predicated region
    $region14: #{cnn_forward.3} parent=1 // pred_check
      _
    $region15: #{cnn_forward.3} parent=1 // pred_check_branch
      %792 = sbr.rel (0) target = $region17
    $region16: #{cnn_forward.3} parent=1 // pred_region
      %s794 = ssub.s32 32, 32
      %795 = vsyncadd [#allocation3], %s794
      %s797 = sshll.u32 [#allocation2], 4
      %s798 = int_to_ptr.vmem [resolvable:$true] %s797
      %800 = dma.vmem_to_hbm [thread:$0]  %s798, 32, %s3, [#allocation3]
    $region17: #{cnn_forward.3} parent=1 // pred_fallthru
      _
    // Predicated region
    $region18: #{cnn_forward.3} parent=1 // pred_check
      _
    $region19: #{cnn_forward.3} parent=1 // pred_check_branch
      %802 = sbr.rel (0) target = $region21
    $region20: #{cnn_forward.3} parent=1 // pred_region
      %803 = dma.done [#allocation3], 32
    $region21: #{cnn_forward.3} parent=1 // pred_fallthru
      _
    %804 = vsyncpa [#allocation3], 1

// kernel: cnn_forward.2
$region0: #{cnn_forward.2}
  #allocation0 [shape = 'u32[]', space=smem, size = 0x4, offset = 0x4, fixed_abs, tag = 'smem constant byte address 0x4 - core index']
  #allocation1 [shape = 'u32[144,128]{1,0:T(1,128)}', space=vmem, size = 0x12000, scoped, tag = 'internal scratch']
  #allocation2 [shape = 'f32[2,1,1024]{2,1,0:T(1,128)}', space=vmem, size = 0x2000, scoped, tag = 'scratch operand']
  #allocation3 [shape = 'f32[2,25,892]{2,1,0:T(8,128)}', space=vmem, size = 0x38000, scoped, tag = 'scratch operand']
  #allocation4 [shape = 'f32[2,16,892]{2,1,0:T(8,128)}', space=vmem, size = 0x1c000, scoped, tag = 'scratch operand']
  #allocation5 [shape = 'f32[2,16,324]{2,1,0:T(8,128)}', space=vmem, size = 0xc000, scoped, tag = 'scratch operand']
  #allocation6 [shape = 'f32[2,400,248]{2,1,0:T(8,128)}', space=vmem, size = 0xc8000, scoped, tag = 'scratch operand']
  #allocation7 [shape = 'f32[2,32,248]{2,1,0:T(8,128)}', space=vmem, size = 0x10000, scoped, tag = 'scratch operand']
  %s0 = inlined_call_operand.vmem [shape: f32[2,28,28], index: 0, kind: input, shape index: {}]
  %s1 = inlined_call_operand.vmem [shape: f32[16,25], index: 1, kind: input, shape index: {}]
  %s2 = inlined_call_operand.vmem [shape: f32[16,1], index: 2, kind: input, shape index: {}]
  %s3 = inlined_call_operand.vmem [shape: f32[32,400], index: 3, kind: input, shape index: {}]
  %s4 = inlined_call_operand.vmem [shape: f32[32,1], index: 4, kind: input, shape index: {}]
  %s5 = inlined_call_operand.vmem [shape: f32[859,324], index: 5, kind: input, shape index: {}]
  %s6 = inlined_call_operand.vmem [shape: f32[229,49], index: 6, kind: input, shape index: {}]
  %s7 = inlined_call_operand.vmem [shape: f32[2,32,49], index: 7, kind: output, shape index: {}]
  %s8 = sld [smem:[#allocation0]]
  $region38: #{cnn_forward.2} parent=0
    _
  %s10 = ssub.s32 1, %s8
  %s11 = scalar_select 0, %s10, %s8
  // Predicated region
  $region2: #{cnn_forward.2} parent=0 // pred_check
    _
  $region3: #{cnn_forward.2} parent=0 // pred_check_branch
    %13 = sbr.rel (0) target = $region5
  $region4: #{cnn_forward.2} parent=0 // pred_region
    _
  $region5: #{cnn_forward.2} parent=0 // pred_fallthru
    _
  // Predicated region
  $region6: #{cnn_forward.2} parent=0 // pred_check
    _
  $region7: #{cnn_forward.2} parent=0 // pred_check_branch
    %15 = sbr.rel (0) target = $region9
  $region8: #{cnn_forward.2} parent=0 // pred_region
    _
  $region9: #{cnn_forward.2} parent=0 // pred_fallthru
    _
  // Predicated region
  $region10: #{cnn_forward.2} parent=0 // pred_check
    _
  $region11: #{cnn_forward.2} parent=0 // pred_check_branch
    %17 = sbr.rel (0) target = $region13
  $region12: #{cnn_forward.2} parent=0 // pred_region
    _
  $region13: #{cnn_forward.2} parent=0 // pred_fallthru
    _
  // Predicated region
  $region14: #{cnn_forward.2} parent=0 // pred_check
    _
  $region15: #{cnn_forward.2} parent=0 // pred_check_branch
    %19 = sbr.rel (0) target = $region17
  $region16: #{cnn_forward.2} parent=0 // pred_region
    _
  $region17: #{cnn_forward.2} parent=0 // pred_fallthru
    _
  // Predicated region
  $region18: #{cnn_forward.2} parent=0 // pred_check
    _
  $region19: #{cnn_forward.2} parent=0 // pred_check_branch
    %21 = sbr.rel (0) target = $region21
  $region20: #{cnn_forward.2} parent=0 // pred_region
    _
  $region21: #{cnn_forward.2} parent=0 // pred_fallthru
    _
  // Predicated region
  $region22: #{cnn_forward.2} parent=0 // pred_check
    _
  $region23: #{cnn_forward.2} parent=0 // pred_check_branch
    %23 = sbr.rel (0) target = $region25
  $region24: #{cnn_forward.2} parent=0 // pred_region
    _
  $region25: #{cnn_forward.2} parent=0 // pred_fallthru
    _
  // Predicated region
  $region26: #{cnn_forward.2} parent=0 // pred_check
    _
  $region27: #{cnn_forward.2} parent=0 // pred_check_branch
    %25 = sbr.rel (0) target = $region29
  $region28: #{cnn_forward.2} parent=0 // pred_region
    _
  $region29: #{cnn_forward.2} parent=0 // pred_fallthru
    _
  %26 = vst [vmem:[#allocation2] sm:$0xff] 0.0
  %27 = vst [vmem:[#allocation2 + $0x8] sm:$0xff] 0.0
  %v28 = vld [vmem:[%s0] sm:$0x1]
  %v29 = vld [vmem:[%s0 + $0x20] sm:$0x1]
  %v33 = vunpack.c.l.s4 1966171168
  %v34 = vunpack.c.0.s8 %v33
  %v35 = vlaneseq
  %v36 = vshrl.u32 %v35, 7
  %v37 = vsub.s32 %v34, %v36
  %v38 = vrot.slane %v28, %v37
  %v40 = vunpack.c.l.s4 1966171168
  %v41 = vunpack.c.0.s8 %v40
  %v42 = vlaneseq
  %v43 = vshrl.u32 %v42, 7
  %v44 = vsub.s32 %v41, %v43
  %v45 = vrot.slane %v38, %v44
  %v47 = vunpack.c.l.s4 1966171168
  %v48 = vunpack.c.0.s8 %v47
  %v49 = vlaneseq
  %v50 = vshrl.u32 %v49, 7
  %v51 = vsub.s32 %v48, %v50
  %v52 = vrot.slane %v29, %v51
  %v54 = vunpack.c.l.s4 1966171168
  %v55 = vunpack.c.0.s8 %v54
  %v56 = vlaneseq
  %v57 = vshrl.u32 %v56, 7
  %v58 = vsub.s32 %v55, %v57
  %v59 = vrot.slane %v52, %v58
  %60 = vrot.lane.b32.xlu0 %v45, 66
  %v61 = vpop.permute.xlu0 %60
  %62 = vrot.lane.b32.xlu0 %v59, 66
  %v63 = vpop.permute.xlu0 %62
  %v66 = vlaneseq
  %vm67 = vcmp.ge.s32.totalorder %v66, 66
  %vm68 = vcmp.lt.s32.totalorder %v66, 94
  %vm69 = vmand %vm67, %vm68
  %70 = vst.msk [vmem:[#allocation2] sm:$0x1] %vm69, %v61
  %71 = vst.msk [vmem:[#allocation2 + $0x8] sm:$0x1] %vm69, %v63
  %v72 = vld [vmem:[%s0 + $0x1] sm:$0x1]
  %v73 = vld [vmem:[%s0 + $0x21] sm:$0x1]
  %v77 = vunpack.c.l.s4 1966171168
  %v78 = vunpack.c.0.s8 %v77
  %v79 = vlaneseq
  %v80 = vshrl.u32 %v79, 7
  %v81 = vsub.s32 %v78, %v80
  %v82 = vrot.slane %v72, %v81
  %v84 = vunpack.c.l.s4 1966171168
  %v85 = vunpack.c.0.s8 %v84
  %v86 = vlaneseq
  %v87 = vshrl.u32 %v86, 7
  %v88 = vsub.s32 %v85, %v87
  %v89 = vrot.slane %v82, %v88
  %v91 = vunpack.c.l.s4 1966171168
  %v92 = vunpack.c.0.s8 %v91
  %v93 = vlaneseq
  %v94 = vshrl.u32 %v93, 7
  %v95 = vsub.s32 %v92, %v94
  %v96 = vrot.slane %v73, %v95
  %v98 = vunpack.c.l.s4 1966171168
  %v99 = vunpack.c.0.s8 %v98
  %v100 = vlaneseq
  %v101 = vshrl.u32 %v100, 7
  %v102 = vsub.s32 %v99, %v101
  %v103 = vrot.slane %v96, %v102
  %104 = vrot.lane.b32.xlu0 %v89, 98
  %v105 = vpop.permute.xlu0 %104
  %106 = vrot.lane.b32.xlu0 %v103, 98
  %v107 = vpop.permute.xlu0 %106
  %vm110 = vcmp.ge.s32.totalorder %v66, 98
  %vm111 = vcmp.lt.s32.totalorder %v66, 126
  %vm112 = vmand %vm110, %vm111
  %113 = vst.msk [vmem:[#allocation2] sm:$0x1] %vm112, %v105
  %114 = vst.msk [vmem:[#allocation2 + $0x8] sm:$0x1] %vm112, %v107
  %v115 = vld [vmem:[%s0 + $0x2] sm:$0x1]
  %v116 = vld [vmem:[%s0 + $0x22] sm:$0x1]
  %v120 = vunpack.c.l.s4 1966171168
  %v121 = vunpack.c.0.s8 %v120
  %v122 = vlaneseq
  %v123 = vshrl.u32 %v122, 7
  %v124 = vsub.s32 %v121, %v123
  %v125 = vrot.slane %v115, %v124
  %v127 = vunpack.c.l.s4 1966171168
  %v128 = vunpack.c.0.s8 %v127
  %v129 = vlaneseq
  %v130 = vshrl.u32 %v129, 7
  %v131 = vsub.s32 %v128, %v130
  %v132 = vrot.slane %v125, %v131
  %v134 = vunpack.c.l.s4 1966171168
  %v135 = vunpack.c.0.s8 %v134
  %v136 = vlaneseq
  %v137 = vshrl.u32 %v136, 7
  %v138 = vsub.s32 %v135, %v137
  %v139 = vrot.slane %v116, %v138
  %v141 = vunpack.c.l.s4 1966171168
  %v142 = vunpack.c.0.s8 %v141
  %v143 = vlaneseq
  %v144 = vshrl.u32 %v143, 7
  %v145 = vsub.s32 %v142, %v144
  %v146 = vrot.slane %v139, %v145
  %147 = vrot.lane.b32.xlu0 %v132, 2
  %v148 = vpop.permute.xlu0 %147
  %149 = vrot.lane.b32.xlu0 %v146, 2
  %v150 = vpop.permute.xlu0 %149
  %vm153 = vcmp.ge.s32.totalorder %v66, 2
  %vm154 = vcmp.lt.s32.totalorder %v66, 30
  %vm155 = vmand %vm153, %vm154
  %156 = vst.msk [vmem:[#allocation2 + $0x1] sm:$0x1] %vm155, %v148
  %157 = vst.msk [vmem:[#allocation2 + $0x9] sm:$0x1] %vm155, %v150
  %v158 = vld [vmem:[%s0 + $0x3] sm:$0x1]
  %v159 = vld [vmem:[%s0 + $0x23] sm:$0x1]
  %v163 = vunpack.c.l.s4 1966171168
  %v164 = vunpack.c.0.s8 %v163
  %v165 = vlaneseq
  %v166 = vshrl.u32 %v165, 7
  %v167 = vsub.s32 %v164, %v166
  %v168 = vrot.slane %v158, %v167
  %v170 = vunpack.c.l.s4 1966171168
  %v171 = vunpack.c.0.s8 %v170
  %v172 = vlaneseq
  %v173 = vshrl.u32 %v172, 7
  %v174 = vsub.s32 %v171, %v173
  %v175 = vrot.slane %v168, %v174
  %v177 = vunpack.c.l.s4 1966171168
  %v178 = vunpack.c.0.s8 %v177
  %v179 = vlaneseq
  %v180 = vshrl.u32 %v179, 7
  %v181 = vsub.s32 %v178, %v180
  %v182 = vrot.slane %v159, %v181
  %v184 = vunpack.c.l.s4 1966171168
  %v185 = vunpack.c.0.s8 %v184
  %v186 = vlaneseq
  %v187 = vshrl.u32 %v186, 7
  %v188 = vsub.s32 %v185, %v187
  %v189 = vrot.slane %v182, %v188
  %190 = vrot.lane.b32.xlu0 %v175, 34
  %v191 = vpop.permute.xlu0 %190
  %192 = vrot.lane.b32.xlu0 %v189, 34
  %v193 = vpop.permute.xlu0 %192
  %vm196 = vcmp.ge.s32.totalorder %v66, 34
  %vm197 = vcmp.lt.s32.totalorder %v66, 62
  %vm198 = vmand %vm196, %vm197
  %199 = vst.msk [vmem:[#allocation2 + $0x1] sm:$0x1] %vm198, %v191
  %200 = vst.msk [vmem:[#allocation2 + $0x9] sm:$0x1] %vm198, %v193
  %v201 = vld [vmem:[%s0 + $0x4] sm:$0x1]
  %v202 = vld [vmem:[%s0 + $0x24] sm:$0x1]
  %v206 = vunpack.c.l.s4 1966171168
  %v207 = vunpack.c.0.s8 %v206
  %v208 = vlaneseq
  %v209 = vshrl.u32 %v208, 7
  %v210 = vsub.s32 %v207, %v209
  %v211 = vrot.slane %v201, %v210
  %v213 = vunpack.c.l.s4 1966171168
  %v214 = vunpack.c.0.s8 %v213
  %v215 = vlaneseq
  %v216 = vshrl.u32 %v215, 7
  %v217 = vsub.s32 %v214, %v216
  %v218 = vrot.slane %v211, %v217
  %v220 = vunpack.c.l.s4 1966171168
  %v221 = vunpack.c.0.s8 %v220
  %v222 = vlaneseq
  %v223 = vshrl.u32 %v222, 7
  %v224 = vsub.s32 %v221, %v223
  %v225 = vrot.slane %v202, %v224
  %v227 = vunpack.c.l.s4 1966171168
  %v228 = vunpack.c.0.s8 %v227
  %v229 = vlaneseq
  %v230 = vshrl.u32 %v229, 7
  %v231 = vsub.s32 %v228, %v230
  %v232 = vrot.slane %v225, %v231
  %233 = vrot.lane.b32.xlu0 %v218, 66
  %v234 = vpop.permute.xlu0 %233
  %235 = vrot.lane.b32.xlu0 %v232, 66
  %v236 = vpop.permute.xlu0 %235
  %239 = vst.msk [vmem:[#allocation2 + $0x1] sm:$0x1] %vm69, %v234
  %240 = vst.msk [vmem:[#allocation2 + $0x9] sm:$0x1] %vm69, %v236
  %v241 = vld [vmem:[%s0 + $0x5] sm:$0x1]
  %v242 = vld [vmem:[%s0 + $0x25] sm:$0x1]
  %v246 = vunpack.c.l.s4 1966171168
  %v247 = vunpack.c.0.s8 %v246
  %v248 = vlaneseq
  %v249 = vshrl.u32 %v248, 7
  %v250 = vsub.s32 %v247, %v249
  %v251 = vrot.slane %v241, %v250
  %v253 = vunpack.c.l.s4 1966171168
  %v254 = vunpack.c.0.s8 %v253
  %v255 = vlaneseq
  %v256 = vshrl.u32 %v255, 7
  %v257 = vsub.s32 %v254, %v256
  %v258 = vrot.slane %v251, %v257
  %v260 = vunpack.c.l.s4 1966171168
  %v261 = vunpack.c.0.s8 %v260
  %v262 = vlaneseq
  %v263 = vshrl.u32 %v262, 7
  %v264 = vsub.s32 %v261, %v263
  %v265 = vrot.slane %v242, %v264
  %v267 = vunpack.c.l.s4 1966171168
  %v268 = vunpack.c.0.s8 %v267
  %v269 = vlaneseq
  %v270 = vshrl.u32 %v269, 7
  %v271 = vsub.s32 %v268, %v270
  %v272 = vrot.slane %v265, %v271
  %273 = vrot.lane.b32.xlu0 %v258, 98
  %v274 = vpop.permute.xlu0 %273
  %275 = vrot.lane.b32.xlu0 %v272, 98
  %v276 = vpop.permute.xlu0 %275
  %279 = vst.msk [vmem:[#allocation2 + $0x1] sm:$0x1] %vm112, %v274
  %280 = vst.msk [vmem:[#allocation2 + $0x9] sm:$0x1] %vm112, %v276
  %v281 = vld [vmem:[%s0 + $0x6] sm:$0x1]
  %v282 = vld [vmem:[%s0 + $0x26] sm:$0x1]
  %v286 = vunpack.c.l.s4 1966171168
  %v287 = vunpack.c.0.s8 %v286
  %v288 = vlaneseq
  %v289 = vshrl.u32 %v288, 7
  %v290 = vsub.s32 %v287, %v289
  %v291 = vrot.slane %v281, %v290
  %v293 = vunpack.c.l.s4 1966171168
  %v294 = vunpack.c.0.s8 %v293
  %v295 = vlaneseq
  %v296 = vshrl.u32 %v295, 7
  %v297 = vsub.s32 %v294, %v296
  %v298 = vrot.slane %v291, %v297
  %v300 = vunpack.c.l.s4 1966171168
  %v301 = vunpack.c.0.s8 %v300
  %v302 = vlaneseq
  %v303 = vshrl.u32 %v302, 7
  %v304 = vsub.s32 %v301, %v303
  %v305 = vrot.slane %v282, %v304
  %v307 = vunpack.c.l.s4 1966171168
  %v308 = vunpack.c.0.s8 %v307
  %v309 = vlaneseq
  %v310 = vshrl.u32 %v309, 7
  %v311 = vsub.s32 %v308, %v310
  %v312 = vrot.slane %v305, %v311
  %313 = vrot.lane.b32.xlu0 %v298, 2
  %v314 = vpop.permute.xlu0 %313
  %315 = vrot.lane.b32.xlu0 %v312, 2
  %v316 = vpop.permute.xlu0 %315
  %319 = vst.msk [vmem:[#allocation2 + $0x2] sm:$0x1] %vm155, %v314
  %320 = vst.msk [vmem:[#allocation2 + $0xa] sm:$0x1] %vm155, %v316
  %v321 = vld [vmem:[%s0 + $0x7] sm:$0x1]
  %v322 = vld [vmem:[%s0 + $0x27] sm:$0x1]
  %v326 = vunpack.c.l.s4 1966171168
  %v327 = vunpack.c.0.s8 %v326
  %v328 = vlaneseq
  %v329 = vshrl.u32 %v328, 7
  %v330 = vsub.s32 %v327, %v329
  %v331 = vrot.slane %v321, %v330
  %v333 = vunpack.c.l.s4 1966171168
  %v334 = vunpack.c.0.s8 %v333
  %v335 = vlaneseq
  %v336 = vshrl.u32 %v335, 7
  %v337 = vsub.s32 %v334, %v336
  %v338 = vrot.slane %v331, %v337
  %v340 = vunpack.c.l.s4 1966171168
  %v341 = vunpack.c.0.s8 %v340
  %v342 = vlaneseq
  %v343 = vshrl.u32 %v342, 7
  %v344 = vsub.s32 %v341, %v343
  %v345 = vrot.slane %v322, %v344
  %v347 = vunpack.c.l.s4 1966171168
  %v348 = vunpack.c.0.s8 %v347
  %v349 = vlaneseq
  %v350 = vshrl.u32 %v349, 7
  %v351 = vsub.s32 %v348, %v350
  %v352 = vrot.slane %v345, %v351
  %353 = vrot.lane.b32.xlu0 %v338, 34
  %v354 = vpop.permute.xlu0 %353
  %355 = vrot.lane.b32.xlu0 %v352, 34
  %v356 = vpop.permute.xlu0 %355
  %359 = vst.msk [vmem:[#allocation2 + $0x2] sm:$0x1] %vm198, %v354
  %360 = vst.msk [vmem:[#allocation2 + $0xa] sm:$0x1] %vm198, %v356
  %v361 = vld [vmem:[%s0 + $0x8] sm:$0x1]
  %v362 = vld [vmem:[%s0 + $0x28] sm:$0x1]
  %v366 = vunpack.c.l.s4 1966171168
  %v367 = vunpack.c.0.s8 %v366
  %v368 = vlaneseq
  %v369 = vshrl.u32 %v368, 7
  %v370 = vsub.s32 %v367, %v369
  %v371 = vrot.slane %v361, %v370
  %v373 = vunpack.c.l.s4 1966171168
  %v374 = vunpack.c.0.s8 %v373
  %v375 = vlaneseq
  %v376 = vshrl.u32 %v375, 7
  %v377 = vsub.s32 %v374, %v376
  %v378 = vrot.slane %v371, %v377
  %v380 = vunpack.c.l.s4 1966171168
  %v381 = vunpack.c.0.s8 %v380
  %v382 = vlaneseq
  %v383 = vshrl.u32 %v382, 7
  %v384 = vsub.s32 %v381, %v383
  %v385 = vrot.slane %v362, %v384
  %v387 = vunpack.c.l.s4 1966171168
  %v388 = vunpack.c.0.s8 %v387
  %v389 = vlaneseq
  %v390 = vshrl.u32 %v389, 7
  %v391 = vsub.s32 %v388, %v390
  %v392 = vrot.slane %v385, %v391
  %393 = vrot.lane.b32.xlu0 %v378, 66
  %v394 = vpop.permute.xlu0 %393
  %395 = vrot.lane.b32.xlu0 %v392, 66
  %v396 = vpop.permute.xlu0 %395
  %399 = vst.msk [vmem:[#allocation2 + $0x2] sm:$0x1] %vm69, %v394
  %400 = vst.msk [vmem:[#allocation2 + $0xa] sm:$0x1] %vm69, %v396
  %v401 = vld [vmem:[%s0 + $0x9] sm:$0x1]
  %v402 = vld [vmem:[%s0 + $0x29] sm:$0x1]
  %v406 = vunpack.c.l.s4 1966171168
  %v407 = vunpack.c.0.s8 %v406
  %v408 = vlaneseq
  %v409 = vshrl.u32 %v408, 7
  %v410 = vsub.s32 %v407, %v409
  %v411 = vrot.slane %v401, %v410
  %v413 = vunpack.c.l.s4 1966171168
  %v414 = vunpack.c.0.s8 %v413
  %v415 = vlaneseq
  %v416 = vshrl.u32 %v415, 7
  %v417 = vsub.s32 %v414, %v416
  %v418 = vrot.slane %v411, %v417
  %v420 = vunpack.c.l.s4 1966171168
  %v421 = vunpack.c.0.s8 %v420
  %v422 = vlaneseq
  %v423 = vshrl.u32 %v422, 7
  %v424 = vsub.s32 %v421, %v423
  %v425 = vrot.slane %v402, %v424
  %v427 = vunpack.c.l.s4 1966171168
  %v428 = vunpack.c.0.s8 %v427
  %v429 = vlaneseq
  %v430 = vshrl.u32 %v429, 7
  %v431 = vsub.s32 %v428, %v430
  %v432 = vrot.slane %v425, %v431
  %433 = vrot.lane.b32.xlu0 %v418, 98
  %v434 = vpop.permute.xlu0 %433
  %435 = vrot.lane.b32.xlu0 %v432, 98
  %v436 = vpop.permute.xlu0 %435
  %439 = vst.msk [vmem:[#allocation2 + $0x2] sm:$0x1] %vm112, %v434
  %440 = vst.msk [vmem:[#allocation2 + $0xa] sm:$0x1] %vm112, %v436
  %v441 = vld [vmem:[%s0 + $0xa] sm:$0x1]
  %v442 = vld [vmem:[%s0 + $0x2a] sm:$0x1]
  %v446 = vunpack.c.l.s4 1966171168
  %v447 = vunpack.c.0.s8 %v446
  %v448 = vlaneseq
  %v449 = vshrl.u32 %v448, 7
  %v450 = vsub.s32 %v447, %v449
  %v451 = vrot.slane %v441, %v450
  %v453 = vunpack.c.l.s4 1966171168
  %v454 = vunpack.c.0.s8 %v453
  %v455 = vlaneseq
  %v456 = vshrl.u32 %v455, 7
  %v457 = vsub.s32 %v454, %v456
  %v458 = vrot.slane %v451, %v457
  %v460 = vunpack.c.l.s4 1966171168
  %v461 = vunpack.c.0.s8 %v460
  %v462 = vlaneseq
  %v463 = vshrl.u32 %v462, 7
  %v464 = vsub.s32 %v461, %v463
  %v465 = vrot.slane %v442, %v464
  %v467 = vunpack.c.l.s4 1966171168
  %v468 = vunpack.c.0.s8 %v467
  %v469 = vlaneseq
  %v470 = vshrl.u32 %v469, 7
  %v471 = vsub.s32 %v468, %v470
  %v472 = vrot.slane %v465, %v471
  %473 = vrot.lane.b32.xlu0 %v458, 2
  %v474 = vpop.permute.xlu0 %473
  %475 = vrot.lane.b32.xlu0 %v472, 2
  %v476 = vpop.permute.xlu0 %475
  %479 = vst.msk [vmem:[#allocation2 + $0x3] sm:$0x1] %vm155, %v474
  %480 = vst.msk [vmem:[#allocation2 + $0xb] sm:$0x1] %vm155, %v476
  %v481 = vld [vmem:[%s0 + $0xb] sm:$0x1]
  %v482 = vld [vmem:[%s0 + $0x2b] sm:$0x1]
  %v486 = vunpack.c.l.s4 1966171168
  %v487 = vunpack.c.0.s8 %v486
  %v488 = vlaneseq
  %v489 = vshrl.u32 %v488, 7
  %v490 = vsub.s32 %v487, %v489
  %v491 = vrot.slane %v481, %v490
  %v493 = vunpack.c.l.s4 1966171168
  %v494 = vunpack.c.0.s8 %v493
  %v495 = vlaneseq
  %v496 = vshrl.u32 %v495, 7
  %v497 = vsub.s32 %v494, %v496
  %v498 = vrot.slane %v491, %v497
  %v500 = vunpack.c.l.s4 1966171168
  %v501 = vunpack.c.0.s8 %v500
  %v502 = vlaneseq
  %v503 = vshrl.u32 %v502, 7
  %v504 = vsub.s32 %v501, %v503
  %v505 = vrot.slane %v482, %v504
  %v507 = vunpack.c.l.s4 1966171168
  %v508 = vunpack.c.0.s8 %v507
  %v509 = vlaneseq
  %v510 = vshrl.u32 %v509, 7
  %v511 = vsub.s32 %v508, %v510
  %v512 = vrot.slane %v505, %v511
  %513 = vrot.lane.b32.xlu0 %v498, 34
  %v514 = vpop.permute.xlu0 %513
  %515 = vrot.lane.b32.xlu0 %v512, 34
  %v516 = vpop.permute.xlu0 %515
  %519 = vst.msk [vmem:[#allocation2 + $0x3] sm:$0x1] %vm198, %v514
  %520 = vst.msk [vmem:[#allocation2 + $0xb] sm:$0x1] %vm198, %v516
  %v521 = vld [vmem:[%s0 + $0xc] sm:$0x1]
  %v522 = vld [vmem:[%s0 + $0x2c] sm:$0x1]
  %v526 = vunpack.c.l.s4 1966171168
  %v527 = vunpack.c.0.s8 %v526
  %v528 = vlaneseq
  %v529 = vshrl.u32 %v528, 7
  %v530 = vsub.s32 %v527, %v529
  %v531 = vrot.slane %v521, %v530
  %v533 = vunpack.c.l.s4 1966171168
  %v534 = vunpack.c.0.s8 %v533
  %v535 = vlaneseq
  %v536 = vshrl.u32 %v535, 7
  %v537 = vsub.s32 %v534, %v536
  %v538 = vrot.slane %v531, %v537
  %v540 = vunpack.c.l.s4 1966171168
  %v541 = vunpack.c.0.s8 %v540
  %v542 = vlaneseq
  %v543 = vshrl.u32 %v542, 7
  %v544 = vsub.s32 %v541, %v543
  %v545 = vrot.slane %v522, %v544
  %v547 = vunpack.c.l.s4 1966171168
  %v548 = vunpack.c.0.s8 %v547
  %v549 = vlaneseq
  %v550 = vshrl.u32 %v549, 7
  %v551 = vsub.s32 %v548, %v550
  %v552 = vrot.slane %v545, %v551
  %553 = vrot.lane.b32.xlu0 %v538, 66
  %v554 = vpop.permute.xlu0 %553
  %555 = vrot.lane.b32.xlu0 %v552, 66
  %v556 = vpop.permute.xlu0 %555
  %559 = vst.msk [vmem:[#allocation2 + $0x3] sm:$0x1] %vm69, %v554
  %560 = vst.msk [vmem:[#allocation2 + $0xb] sm:$0x1] %vm69, %v556
  %v561 = vld [vmem:[%s0 + $0xd] sm:$0x1]
  %v562 = vld [vmem:[%s0 + $0x2d] sm:$0x1]
  %v566 = vunpack.c.l.s4 1966171168
  %v567 = vunpack.c.0.s8 %v566
  %v568 = vlaneseq
  %v569 = vshrl.u32 %v568, 7
  %v570 = vsub.s32 %v567, %v569
  %v571 = vrot.slane %v561, %v570
  %v573 = vunpack.c.l.s4 1966171168
  %v574 = vunpack.c.0.s8 %v573
  %v575 = vlaneseq
  %v576 = vshrl.u32 %v575, 7
  %v577 = vsub.s32 %v574, %v576
  %v578 = vrot.slane %v571, %v577
  %v580 = vunpack.c.l.s4 1966171168
  %v581 = vunpack.c.0.s8 %v580
  %v582 = vlaneseq
  %v583 = vshrl.u32 %v582, 7
  %v584 = vsub.s32 %v581, %v583
  %v585 = vrot.slane %v562, %v584
  %v587 = vunpack.c.l.s4 1966171168
  %v588 = vunpack.c.0.s8 %v587
  %v589 = vlaneseq
  %v590 = vshrl.u32 %v589, 7
  %v591 = vsub.s32 %v588, %v590
  %v592 = vrot.slane %v585, %v591
  %593 = vrot.lane.b32.xlu0 %v578, 98
  %v594 = vpop.permute.xlu0 %593
  %595 = vrot.lane.b32.xlu0 %v592, 98
  %v596 = vpop.permute.xlu0 %595
  %599 = vst.msk [vmem:[#allocation2 + $0x3] sm:$0x1] %vm112, %v594
  %600 = vst.msk [vmem:[#allocation2 + $0xb] sm:$0x1] %vm112, %v596
  %v601 = vld [vmem:[%s0 + $0xe] sm:$0x1]
  %v602 = vld [vmem:[%s0 + $0x2e] sm:$0x1]
  %v606 = vunpack.c.l.s4 1966171168
  %v607 = vunpack.c.0.s8 %v606
  %v608 = vlaneseq
  %v609 = vshrl.u32 %v608, 7
  %v610 = vsub.s32 %v607, %v609
  %v611 = vrot.slane %v601, %v610
  %v613 = vunpack.c.l.s4 1966171168
  %v614 = vunpack.c.0.s8 %v613
  %v615 = vlaneseq
  %v616 = vshrl.u32 %v615, 7
  %v617 = vsub.s32 %v614, %v616
  %v618 = vrot.slane %v611, %v617
  %v620 = vunpack.c.l.s4 1966171168
  %v621 = vunpack.c.0.s8 %v620
  %v622 = vlaneseq
  %v623 = vshrl.u32 %v622, 7
  %v624 = vsub.s32 %v621, %v623
  %v625 = vrot.slane %v602, %v624
  %v627 = vunpack.c.l.s4 1966171168
  %v628 = vunpack.c.0.s8 %v627
  %v629 = vlaneseq
  %v630 = vshrl.u32 %v629, 7
  %v631 = vsub.s32 %v628, %v630
  %v632 = vrot.slane %v625, %v631
  %633 = vrot.lane.b32.xlu0 %v618, 2
  %v634 = vpop.permute.xlu0 %633
  %635 = vrot.lane.b32.xlu0 %v632, 2
  %v636 = vpop.permute.xlu0 %635
  %639 = vst.msk [vmem:[#allocation2 + $0x4] sm:$0x1] %vm155, %v634
  %640 = vst.msk [vmem:[#allocation2 + $0xc] sm:$0x1] %vm155, %v636
  %v641 = vld [vmem:[%s0 + $0xf] sm:$0x1]
  %v642 = vld [vmem:[%s0 + $0x2f] sm:$0x1]
  %v646 = vunpack.c.l.s4 1966171168
  %v647 = vunpack.c.0.s8 %v646
  %v648 = vlaneseq
  %v649 = vshrl.u32 %v648, 7
  %v650 = vsub.s32 %v647, %v649
  %v651 = vrot.slane %v641, %v650
  %v653 = vunpack.c.l.s4 1966171168
  %v654 = vunpack.c.0.s8 %v653
  %v655 = vlaneseq
  %v656 = vshrl.u32 %v655, 7
  %v657 = vsub.s32 %v654, %v656
  %v658 = vrot.slane %v651, %v657
  %v660 = vunpack.c.l.s4 1966171168
  %v661 = vunpack.c.0.s8 %v660
  %v662 = vlaneseq
  %v663 = vshrl.u32 %v662, 7
  %v664 = vsub.s32 %v661, %v663
  %v665 = vrot.slane %v642, %v664
  %v667 = vunpack.c.l.s4 1966171168
  %v668 = vunpack.c.0.s8 %v667
  %v669 = vlaneseq
  %v670 = vshrl.u32 %v669, 7
  %v671 = vsub.s32 %v668, %v670
  %v672 = vrot.slane %v665, %v671
  %673 = vrot.lane.b32.xlu0 %v658, 34
  %v674 = vpop.permute.xlu0 %673
  %675 = vrot.lane.b32.xlu0 %v672, 34
  %v676 = vpop.permute.xlu0 %675
  %679 = vst.msk [vmem:[#allocation2 + $0x4] sm:$0x1] %vm198, %v674
  %680 = vst.msk [vmem:[#allocation2 + $0xc] sm:$0x1] %vm198, %v676
  %v681 = vld [vmem:[%s0 + $0x10] sm:$0x1]
  %v682 = vld [vmem:[%s0 + $0x30] sm:$0x1]
  %v686 = vunpack.c.l.s4 1966171168
  %v687 = vunpack.c.0.s8 %v686
  %v688 = vlaneseq
  %v689 = vshrl.u32 %v688, 7
  %v690 = vsub.s32 %v687, %v689
  %v691 = vrot.slane %v681, %v690
  %v693 = vunpack.c.l.s4 1966171168
  %v694 = vunpack.c.0.s8 %v693
  %v695 = vlaneseq
  %v696 = vshrl.u32 %v695, 7
  %v697 = vsub.s32 %v694, %v696
  %v698 = vrot.slane %v691, %v697
  %v700 = vunpack.c.l.s4 1966171168
  %v701 = vunpack.c.0.s8 %v700
  %v702 = vlaneseq
  %v703 = vshrl.u32 %v702, 7
  %v704 = vsub.s32 %v701, %v703
  %v705 = vrot.slane %v682, %v704
  %v707 = vunpack.c.l.s4 1966171168
  %v708 = vunpack.c.0.s8 %v707
  %v709 = vlaneseq
  %v710 = vshrl.u32 %v709, 7
  %v711 = vsub.s32 %v708, %v710
  %v712 = vrot.slane %v705, %v711
  %713 = vrot.lane.b32.xlu0 %v698, 66
  %v714 = vpop.permute.xlu0 %713
  %715 = vrot.lane.b32.xlu0 %v712, 66
  %v716 = vpop.permute.xlu0 %715
  %719 = vst.msk [vmem:[#allocation2 + $0x4] sm:$0x1] %vm69, %v714
  %720 = vst.msk [vmem:[#allocation2 + $0xc] sm:$0x1] %vm69, %v716
  %v721 = vld [vmem:[%s0 + $0x11] sm:$0x1]
  %v722 = vld [vmem:[%s0 + $0x31] sm:$0x1]
  %v726 = vunpack.c.l.s4 1966171168
  %v727 = vunpack.c.0.s8 %v726
  %v728 = vlaneseq
  %v729 = vshrl.u32 %v728, 7
  %v730 = vsub.s32 %v727, %v729
  %v731 = vrot.slane %v721, %v730
  %v733 = vunpack.c.l.s4 1966171168
  %v734 = vunpack.c.0.s8 %v733
  %v735 = vlaneseq
  %v736 = vshrl.u32 %v735, 7
  %v737 = vsub.s32 %v734, %v736
  %v738 = vrot.slane %v731, %v737
  %v740 = vunpack.c.l.s4 1966171168
  %v741 = vunpack.c.0.s8 %v740
  %v742 = vlaneseq
  %v743 = vshrl.u32 %v742, 7
  %v744 = vsub.s32 %v741, %v743
  %v745 = vrot.slane %v722, %v744
  %v747 = vunpack.c.l.s4 1966171168
  %v748 = vunpack.c.0.s8 %v747
  %v749 = vlaneseq
  %v750 = vshrl.u32 %v749, 7
  %v751 = vsub.s32 %v748, %v750
  %v752 = vrot.slane %v745, %v751
  %753 = vrot.lane.b32.xlu0 %v738, 98
  %v754 = vpop.permute.xlu0 %753
  %755 = vrot.lane.b32.xlu0 %v752, 98
  %v756 = vpop.permute.xlu0 %755
  %759 = vst.msk [vmem:[#allocation2 + $0x4] sm:$0x1] %vm112, %v754
  %760 = vst.msk [vmem:[#allocation2 + $0xc] sm:$0x1] %vm112, %v756
  %v761 = vld [vmem:[%s0 + $0x12] sm:$0x1]
  %v762 = vld [vmem:[%s0 + $0x32] sm:$0x1]
  %v766 = vunpack.c.l.s4 1966171168
  %v767 = vunpack.c.0.s8 %v766
  %v768 = vlaneseq
  %v769 = vshrl.u32 %v768, 7
  %v770 = vsub.s32 %v767, %v769
  %v771 = vrot.slane %v761, %v770
  %v773 = vunpack.c.l.s4 1966171168
  %v774 = vunpack.c.0.s8 %v773
  %v775 = vlaneseq
  %v776 = vshrl.u32 %v775, 7
  %v777 = vsub.s32 %v774, %v776
  %v778 = vrot.slane %v771, %v777
  %v780 = vunpack.c.l.s4 1966171168
  %v781 = vunpack.c.0.s8 %v780
  %v782 = vlaneseq
  %v783 = vshrl.u32 %v782, 7
  %v784 = vsub.s32 %v781, %v783
  %v785 = vrot.slane %v762, %v784
  %v787 = vunpack.c.l.s4 1966171168
  %v788 = vunpack.c.0.s8 %v787
  %v789 = vlaneseq
  %v790 = vshrl.u32 %v789, 7
  %v791 = vsub.s32 %v788, %v790
  %v792 = vrot.slane %v785, %v791
  %793 = vrot.lane.b32.xlu0 %v778, 2
  %v794 = vpop.permute.xlu0 %793
  %795 = vrot.lane.b32.xlu0 %v792, 2
  %v796 = vpop.permute.xlu0 %795
  %799 = vst.msk [vmem:[#allocation2 + $0x5] sm:$0x1] %vm155, %v794
  %800 = vst.msk [vmem:[#allocation2 + $0xd] sm:$0x1] %vm155, %v796
  %v801 = vld [vmem:[%s0 + $0x13] sm:$0x1]
  %v802 = vld [vmem:[%s0 + $0x33] sm:$0x1]
  %v806 = vunpack.c.l.s4 1966171168
  %v807 = vunpack.c.0.s8 %v806
  %v808 = vlaneseq
  %v809 = vshrl.u32 %v808, 7
  %v810 = vsub.s32 %v807, %v809
  %v811 = vrot.slane %v801, %v810
  %v813 = vunpack.c.l.s4 1966171168
  %v814 = vunpack.c.0.s8 %v813
  %v815 = vlaneseq
  %v816 = vshrl.u32 %v815, 7
  %v817 = vsub.s32 %v814, %v816
  %v818 = vrot.slane %v811, %v817
  %v820 = vunpack.c.l.s4 1966171168
  %v821 = vunpack.c.0.s8 %v820
  %v822 = vlaneseq
  %v823 = vshrl.u32 %v822, 7
  %v824 = vsub.s32 %v821, %v823
  %v825 = vrot.slane %v802, %v824
  %v827 = vunpack.c.l.s4 1966171168
  %v828 = vunpack.c.0.s8 %v827
  %v829 = vlaneseq
  %v830 = vshrl.u32 %v829, 7
  %v831 = vsub.s32 %v828, %v830
  %v832 = vrot.slane %v825, %v831
  %833 = vrot.lane.b32.xlu0 %v818, 34
  %v834 = vpop.permute.xlu0 %833
  %835 = vrot.lane.b32.xlu0 %v832, 34
  %v836 = vpop.permute.xlu0 %835
  %839 = vst.msk [vmem:[#allocation2 + $0x5] sm:$0x1] %vm198, %v834
  %840 = vst.msk [vmem:[#allocation2 + $0xd] sm:$0x1] %vm198, %v836
  %v841 = vld [vmem:[%s0 + $0x14] sm:$0x1]
  %v842 = vld [vmem:[%s0 + $0x34] sm:$0x1]
  %v846 = vunpack.c.l.s4 1966171168
  %v847 = vunpack.c.0.s8 %v846
  %v848 = vlaneseq
  %v849 = vshrl.u32 %v848, 7
  %v850 = vsub.s32 %v847, %v849
  %v851 = vrot.slane %v841, %v850
  %v853 = vunpack.c.l.s4 1966171168
  %v854 = vunpack.c.0.s8 %v853
  %v855 = vlaneseq
  %v856 = vshrl.u32 %v855, 7
  %v857 = vsub.s32 %v854, %v856
  %v858 = vrot.slane %v851, %v857
  %v860 = vunpack.c.l.s4 1966171168
  %v861 = vunpack.c.0.s8 %v860
  %v862 = vlaneseq
  %v863 = vshrl.u32 %v862, 7
  %v864 = vsub.s32 %v861, %v863
  %v865 = vrot.slane %v842, %v864
  %v867 = vunpack.c.l.s4 1966171168
  %v868 = vunpack.c.0.s8 %v867
  %v869 = vlaneseq
  %v870 = vshrl.u32 %v869, 7
  %v871 = vsub.s32 %v868, %v870
  %v872 = vrot.slane %v865, %v871
  %873 = vrot.lane.b32.xlu0 %v858, 66
  %v874 = vpop.permute.xlu0 %873
  %875 = vrot.lane.b32.xlu0 %v872, 66
  %v876 = vpop.permute.xlu0 %875
  %879 = vst.msk [vmem:[#allocation2 + $0x5] sm:$0x1] %vm69, %v874
  %880 = vst.msk [vmem:[#allocation2 + $0xd] sm:$0x1] %vm69, %v876
  %v881 = vld [vmem:[%s0 + $0x15] sm:$0x1]
  %v882 = vld [vmem:[%s0 + $0x35] sm:$0x1]
  %v886 = vunpack.c.l.s4 1966171168
  %v887 = vunpack.c.0.s8 %v886
  %v888 = vlaneseq
  %v889 = vshrl.u32 %v888, 7
  %v890 = vsub.s32 %v887, %v889
  %v891 = vrot.slane %v881, %v890
  %v893 = vunpack.c.l.s4 1966171168
  %v894 = vunpack.c.0.s8 %v893
  %v895 = vlaneseq
  %v896 = vshrl.u32 %v895, 7
  %v897 = vsub.s32 %v894, %v896
  %v898 = vrot.slane %v891, %v897
  %v900 = vunpack.c.l.s4 1966171168
  %v901 = vunpack.c.0.s8 %v900
  %v902 = vlaneseq
  %v903 = vshrl.u32 %v902, 7
  %v904 = vsub.s32 %v901, %v903
  %v905 = vrot.slane %v882, %v904
  %v907 = vunpack.c.l.s4 1966171168
  %v908 = vunpack.c.0.s8 %v907
  %v909 = vlaneseq
  %v910 = vshrl.u32 %v909, 7
  %v911 = vsub.s32 %v908, %v910
  %v912 = vrot.slane %v905, %v911
  %913 = vrot.lane.b32.xlu0 %v898, 98
  %v914 = vpop.permute.xlu0 %913
  %915 = vrot.lane.b32.xlu0 %v912, 98
  %v916 = vpop.permute.xlu0 %915
  %919 = vst.msk [vmem:[#allocation2 + $0x5] sm:$0x1] %vm112, %v914
  %920 = vst.msk [vmem:[#allocation2 + $0xd] sm:$0x1] %vm112, %v916
  %v921 = vld [vmem:[%s0 + $0x16] sm:$0x1]
  %v922 = vld [vmem:[%s0 + $0x36] sm:$0x1]
  %v926 = vunpack.c.l.s4 1966171168
  %v927 = vunpack.c.0.s8 %v926
  %v928 = vlaneseq
  %v929 = vshrl.u32 %v928, 7
  %v930 = vsub.s32 %v927, %v929
  %v931 = vrot.slane %v921, %v930
  %v933 = vunpack.c.l.s4 1966171168
  %v934 = vunpack.c.0.s8 %v933
  %v935 = vlaneseq
  %v936 = vshrl.u32 %v935, 7
  %v937 = vsub.s32 %v934, %v936
  %v938 = vrot.slane %v931, %v937
  %v940 = vunpack.c.l.s4 1966171168
  %v941 = vunpack.c.0.s8 %v940
  %v942 = vlaneseq
  %v943 = vshrl.u32 %v942, 7
  %v944 = vsub.s32 %v941, %v943
  %v945 = vrot.slane %v922, %v944
  %v947 = vunpack.c.l.s4 1966171168
  %v948 = vunpack.c.0.s8 %v947
  %v949 = vlaneseq
  %v950 = vshrl.u32 %v949, 7
  %v951 = vsub.s32 %v948, %v950
  %v952 = vrot.slane %v945, %v951
  %953 = vrot.lane.b32.xlu0 %v938, 2
  %v954 = vpop.permute.xlu0 %953
  %955 = vrot.lane.b32.xlu0 %v952, 2
  %v956 = vpop.permute.xlu0 %955
  %959 = vst.msk [vmem:[#allocation2 + $0x6] sm:$0x1] %vm155, %v954
  %960 = vst.msk [vmem:[#allocation2 + $0xe] sm:$0x1] %vm155, %v956
  %v961 = vld [vmem:[%s0 + $0x17] sm:$0x1]
  %v962 = vld [vmem:[%s0 + $0x37] sm:$0x1]
  %v966 = vunpack.c.l.s4 1966171168
  %v967 = vunpack.c.0.s8 %v966
  %v968 = vlaneseq
  %v969 = vshrl.u32 %v968, 7
  %v970 = vsub.s32 %v967, %v969
  %v971 = vrot.slane %v961, %v970
  %v973 = vunpack.c.l.s4 1966171168
  %v974 = vunpack.c.0.s8 %v973
  %v975 = vlaneseq
  %v976 = vshrl.u32 %v975, 7
  %v977 = vsub.s32 %v974, %v976
  %v978 = vrot.slane %v971, %v977
  %v980 = vunpack.c.l.s4 1966171168
  %v981 = vunpack.c.0.s8 %v980
  %v982 = vlaneseq
  %v983 = vshrl.u32 %v982, 7
  %v984 = vsub.s32 %v981, %v983
  %v985 = vrot.slane %v962, %v984
  %v987 = vunpack.c.l.s4 1966171168
  %v988 = vunpack.c.0.s8 %v987
  %v989 = vlaneseq
  %v990 = vshrl.u32 %v989, 7
  %v991 = vsub.s32 %v988, %v990
  %v992 = vrot.slane %v985, %v991
  %993 = vrot.lane.b32.xlu0 %v978, 34
  %v994 = vpop.permute.xlu0 %993
  %995 = vrot.lane.b32.xlu0 %v992, 34
  %v996 = vpop.permute.xlu0 %995
  %999 = vst.msk [vmem:[#allocation2 + $0x6] sm:$0x1] %vm198, %v994
  %1000 = vst.msk [vmem:[#allocation2 + $0xe] sm:$0x1] %vm198, %v996
  %v1001 = vld [vmem:[%s0 + $0x18] sm:$0x1]
  %v1002 = vld [vmem:[%s0 + $0x38] sm:$0x1]
  %v1006 = vunpack.c.l.s4 1966171168
  %v1007 = vunpack.c.0.s8 %v1006
  %v1008 = vlaneseq
  %v1009 = vshrl.u32 %v1008, 7
  %v1010 = vsub.s32 %v1007, %v1009
  %v1011 = vrot.slane %v1001, %v1010
  %v1013 = vunpack.c.l.s4 1966171168
  %v1014 = vunpack.c.0.s8 %v1013
  %v1015 = vlaneseq
  %v1016 = vshrl.u32 %v1015, 7
  %v1017 = vsub.s32 %v1014, %v1016
  %v1018 = vrot.slane %v1011, %v1017
  %v1020 = vunpack.c.l.s4 1966171168
  %v1021 = vunpack.c.0.s8 %v1020
  %v1022 = vlaneseq
  %v1023 = vshrl.u32 %v1022, 7
  %v1024 = vsub.s32 %v1021, %v1023
  %v1025 = vrot.slane %v1002, %v1024
  %v1027 = vunpack.c.l.s4 1966171168
  %v1028 = vunpack.c.0.s8 %v1027
  %v1029 = vlaneseq
  %v1030 = vshrl.u32 %v1029, 7
  %v1031 = vsub.s32 %v1028, %v1030
  %v1032 = vrot.slane %v1025, %v1031
  %1033 = vrot.lane.b32.xlu0 %v1018, 66
  %v1034 = vpop.permute.xlu0 %1033
  %1035 = vrot.lane.b32.xlu0 %v1032, 66
  %v1036 = vpop.permute.xlu0 %1035
  %1039 = vst.msk [vmem:[#allocation2 + $0x6] sm:$0x1] %vm69, %v1034
  %1040 = vst.msk [vmem:[#allocation2 + $0xe] sm:$0x1] %vm69, %v1036
  %v1041 = vld [vmem:[%s0 + $0x19] sm:$0x1]
  %v1042 = vld [vmem:[%s0 + $0x39] sm:$0x1]
  %v1046 = vunpack.c.l.s4 1966171168
  %v1047 = vunpack.c.0.s8 %v1046
  %v1048 = vlaneseq
  %v1049 = vshrl.u32 %v1048, 7
  %v1050 = vsub.s32 %v1047, %v1049
  %v1051 = vrot.slane %v1041, %v1050
  %v1053 = vunpack.c.l.s4 1966171168
  %v1054 = vunpack.c.0.s8 %v1053
  %v1055 = vlaneseq
  %v1056 = vshrl.u32 %v1055, 7
  %v1057 = vsub.s32 %v1054, %v1056
  %v1058 = vrot.slane %v1051, %v1057
  %v1060 = vunpack.c.l.s4 1966171168
  %v1061 = vunpack.c.0.s8 %v1060
  %v1062 = vlaneseq
  %v1063 = vshrl.u32 %v1062, 7
  %v1064 = vsub.s32 %v1061, %v1063
  %v1065 = vrot.slane %v1042, %v1064
  %v1067 = vunpack.c.l.s4 1966171168
  %v1068 = vunpack.c.0.s8 %v1067
  %v1069 = vlaneseq
  %v1070 = vshrl.u32 %v1069, 7
  %v1071 = vsub.s32 %v1068, %v1070
  %v1072 = vrot.slane %v1065, %v1071
  %1073 = vrot.lane.b32.xlu0 %v1058, 98
  %v1074 = vpop.permute.xlu0 %1073
  %1075 = vrot.lane.b32.xlu0 %v1072, 98
  %v1076 = vpop.permute.xlu0 %1075
  %1079 = vst.msk [vmem:[#allocation2 + $0x6] sm:$0x1] %vm112, %v1074
  %1080 = vst.msk [vmem:[#allocation2 + $0xe] sm:$0x1] %vm112, %v1076
  %v1081 = vld [vmem:[%s0 + $0x1a] sm:$0x1]
  %v1082 = vld [vmem:[%s0 + $0x3a] sm:$0x1]
  %v1086 = vunpack.c.l.s4 1966171168
  %v1087 = vunpack.c.0.s8 %v1086
  %v1088 = vlaneseq
  %v1089 = vshrl.u32 %v1088, 7
  %v1090 = vsub.s32 %v1087, %v1089
  %v1091 = vrot.slane %v1081, %v1090
  %v1093 = vunpack.c.l.s4 1966171168
  %v1094 = vunpack.c.0.s8 %v1093
  %v1095 = vlaneseq
  %v1096 = vshrl.u32 %v1095, 7
  %v1097 = vsub.s32 %v1094, %v1096
  %v1098 = vrot.slane %v1091, %v1097
  %v1100 = vunpack.c.l.s4 1966171168
  %v1101 = vunpack.c.0.s8 %v1100
  %v1102 = vlaneseq
  %v1103 = vshrl.u32 %v1102, 7
  %v1104 = vsub.s32 %v1101, %v1103
  %v1105 = vrot.slane %v1082, %v1104
  %v1107 = vunpack.c.l.s4 1966171168
  %v1108 = vunpack.c.0.s8 %v1107
  %v1109 = vlaneseq
  %v1110 = vshrl.u32 %v1109, 7
  %v1111 = vsub.s32 %v1108, %v1110
  %v1112 = vrot.slane %v1105, %v1111
  %1113 = vrot.lane.b32.xlu0 %v1098, 2
  %v1114 = vpop.permute.xlu0 %1113
  %1115 = vrot.lane.b32.xlu0 %v1112, 2
  %v1116 = vpop.permute.xlu0 %1115
  %1119 = vst.msk [vmem:[#allocation2 + $0x7] sm:$0x1] %vm155, %v1114
  %1120 = vst.msk [vmem:[#allocation2 + $0xf] sm:$0x1] %vm155, %v1116
  %v1121 = vld [vmem:[%s0 + $0x1b] sm:$0x1]
  %v1122 = vld [vmem:[%s0 + $0x3b] sm:$0x1]
  %v1126 = vunpack.c.l.s4 1966171168
  %v1127 = vunpack.c.0.s8 %v1126
  %v1128 = vlaneseq
  %v1129 = vshrl.u32 %v1128, 7
  %v1130 = vsub.s32 %v1127, %v1129
  %v1131 = vrot.slane %v1121, %v1130
  %v1133 = vunpack.c.l.s4 1966171168
  %v1134 = vunpack.c.0.s8 %v1133
  %v1135 = vlaneseq
  %v1136 = vshrl.u32 %v1135, 7
  %v1137 = vsub.s32 %v1134, %v1136
  %v1138 = vrot.slane %v1131, %v1137
  %v1140 = vunpack.c.l.s4 1966171168
  %v1141 = vunpack.c.0.s8 %v1140
  %v1142 = vlaneseq
  %v1143 = vshrl.u32 %v1142, 7
  %v1144 = vsub.s32 %v1141, %v1143
  %v1145 = vrot.slane %v1122, %v1144
  %v1147 = vunpack.c.l.s4 1966171168
  %v1148 = vunpack.c.0.s8 %v1147
  %v1149 = vlaneseq
  %v1150 = vshrl.u32 %v1149, 7
  %v1151 = vsub.s32 %v1148, %v1150
  %v1152 = vrot.slane %v1145, %v1151
  %1153 = vrot.lane.b32.xlu0 %v1138, 34
  %v1154 = vpop.permute.xlu0 %1153
  %1155 = vrot.lane.b32.xlu0 %v1152, 34
  %v1156 = vpop.permute.xlu0 %1155
  %1159 = vst.msk [vmem:[#allocation2 + $0x7] sm:$0x1] %vm198, %v1154
  %1160 = vst.msk [vmem:[#allocation2 + $0xf] sm:$0x1] %vm198, %v1156
  %v1161 = vld [vmem:[#allocation2] sm:$0x7f]
  %v1162 = vld [vmem:[#allocation2 + $0x8] sm:$0x7f]
  %vm1163 = vcmp.ge.s32.totalorder %v66, 0
  %vm1164 = vcmp.lt.s32.totalorder %v66, 892
  %vm1165 = vmand %vm1163, %vm1164
  %1166 = vst.msk [vmem:[#allocation3] ss:$8 sm:$0xf] %vm1165, %v1161
  %1167 = vst.msk [vmem:[#allocation3] ss:$8 sm:$0x70] %vm1165, %v1161
  %s1168 = scalar_lea.vmem [#allocation3], 224
  %1169 = vst.msk [vmem:[%s1168] ss:$8 sm:$0xf] %vm1165, %v1162
  %1170 = vst.msk [vmem:[%s1168] ss:$8 sm:$0x70] %vm1165, %v1162
  %v1171 = vld [vmem:[#allocation2] sm:$0x7f]
  %v1172 = vld [vmem:[#allocation2 + $0x8] sm:$0x7f]
  %1175 = vrot.lane.b32.xlu0 %v1171, 127
  %v1176 = vpop.permute.xlu0 %1175
  %1177 = vrot.lane.b32.xlu0 %v1172, 127
  %v1178 = vpop.permute.xlu0 %1177
  %v1179 = vrot.slane %v1176, 1
  %v1180 = vrot.slane %v1178, 1
  %vm1181 = vcmask 1039360
  %v1182 = vsel %vm1181, %v1176, %v1179
  %v1183 = vsel %vm1181, %v1178, %v1180
  %s1186 = scalar_lea.vmem [#allocation3], 1
  %1187 = vst.msk [vmem:[%s1186] ss:$8 sm:$0xf] %vm1165, %v1182
  %1188 = vst.msk [vmem:[%s1186] ss:$8 sm:$0x70] %vm1165, %v1182
  %s1189 = scalar_lea.vmem [#allocation3], 225
  %1190 = vst.msk [vmem:[%s1189] ss:$8 sm:$0xf] %vm1165, %v1183
  %1191 = vst.msk [vmem:[%s1189] ss:$8 sm:$0x70] %vm1165, %v1183
  %v1192 = vld [vmem:[#allocation2] sm:$0x7f]
  %v1193 = vld [vmem:[#allocation2 + $0x8] sm:$0x7f]
  %1196 = vrot.lane.b32.xlu0 %v1192, 126
  %v1197 = vpop.permute.xlu0 %1196
  %1198 = vrot.lane.b32.xlu0 %v1193, 126
  %v1199 = vpop.permute.xlu0 %1198
  %v1200 = vrot.slane %v1197, 1
  %v1201 = vrot.slane %v1199, 1
  %vm1202 = vcmask 1031168
  %v1203 = vsel %vm1202, %v1197, %v1200
  %v1204 = vsel %vm1202, %v1199, %v1201
  %s1207 = scalar_lea.vmem [#allocation3], 2
  %1208 = vst.msk [vmem:[%s1207] ss:$8 sm:$0xf] %vm1165, %v1203
  %1209 = vst.msk [vmem:[%s1207] ss:$8 sm:$0x70] %vm1165, %v1203
  %s1210 = scalar_lea.vmem [#allocation3], 226
  %1211 = vst.msk [vmem:[%s1210] ss:$8 sm:$0xf] %vm1165, %v1204
  %1212 = vst.msk [vmem:[%s1210] ss:$8 sm:$0x70] %vm1165, %v1204
  %v1213 = vld [vmem:[#allocation2] sm:$0x7f]
  %v1214 = vld [vmem:[#allocation2 + $0x8] sm:$0x7f]
  %1217 = vrot.lane.b32.xlu0 %v1213, 125
  %v1218 = vpop.permute.xlu0 %1217
  %1219 = vrot.lane.b32.xlu0 %v1214, 125
  %v1220 = vpop.permute.xlu0 %1219
  %v1221 = vrot.slane %v1218, 1
  %v1222 = vrot.slane %v1220, 1
  %vm1223 = vcmask 1022976
  %v1224 = vsel %vm1223, %v1218, %v1221
  %v1225 = vsel %vm1223, %v1220, %v1222
  %s1228 = scalar_lea.vmem [#allocation3], 3
  %1229 = vst.msk [vmem:[%s1228] ss:$8 sm:$0xf] %vm1165, %v1224
  %1230 = vst.msk [vmem:[%s1228] ss:$8 sm:$0x70] %vm1165, %v1224
  %s1231 = scalar_lea.vmem [#allocation3], 227
  %1232 = vst.msk [vmem:[%s1231] ss:$8 sm:$0xf] %vm1165, %v1225
  %1233 = vst.msk [vmem:[%s1231] ss:$8 sm:$0x70] %vm1165, %v1225
  %v1234 = vld [vmem:[#allocation2] sm:$0xff]
  %v1235 = vld [vmem:[#allocation2 + $0x8] sm:$0xff]
  %1238 = vrot.lane.b32.xlu0 %v1234, 124
  %v1239 = vpop.permute.xlu0 %1238
  %1240 = vrot.lane.b32.xlu0 %v1235, 124
  %v1241 = vpop.permute.xlu0 %1240
  %v1242 = vrot.slane %v1239, 1
  %v1243 = vrot.slane %v1241, 1
  %vm1244 = vcmask 1014784
  %v1245 = vsel %vm1244, %v1239, %v1242
  %v1246 = vsel %vm1244, %v1241, %v1243
  %s1249 = scalar_lea.vmem [#allocation3], 4
  %1250 = vst.msk [vmem:[%s1249] ss:$8 sm:$0xf] %vm1165, %v1245
  %1251 = vst.msk [vmem:[%s1249] ss:$8 sm:$0x70] %vm1165, %v1245
  %s1252 = scalar_lea.vmem [#allocation3], 228
  %1253 = vst.msk [vmem:[%s1252] ss:$8 sm:$0xf] %vm1165, %v1246
  %1254 = vst.msk [vmem:[%s1252] ss:$8 sm:$0x70] %vm1165, %v1246
  %v1255 = vld [vmem:[#allocation2] sm:$0xff]
  %v1256 = vld [vmem:[#allocation2 + $0x8] sm:$0xff]
  %1259 = vrot.lane.b32.xlu0 %v1255, 96
  %v1260 = vpop.permute.xlu0 %1259
  %1261 = vrot.lane.b32.xlu0 %v1256, 96
  %v1262 = vpop.permute.xlu0 %1261
  %v1263 = vrot.slane %v1260, 1
  %v1264 = vrot.slane %v1262, 1
  %vm1265 = vcmask 785408
  %v1266 = vsel %vm1265, %v1260, %v1263
  %v1267 = vsel %vm1265, %v1262, %v1264
  %s1270 = scalar_lea.vmem [#allocation3], 5
  %1271 = vst.msk [vmem:[%s1270] ss:$8 sm:$0xf] %vm1165, %v1266
  %1272 = vst.msk [vmem:[%s1270] ss:$8 sm:$0x70] %vm1165, %v1266
  %s1273 = scalar_lea.vmem [#allocation3], 229
  %1274 = vst.msk [vmem:[%s1273] ss:$8 sm:$0xf] %vm1165, %v1267
  %1275 = vst.msk [vmem:[%s1273] ss:$8 sm:$0x70] %vm1165, %v1267
  %v1276 = vld [vmem:[#allocation2] sm:$0xff]
  %v1277 = vld [vmem:[#allocation2 + $0x8] sm:$0xff]
  %1280 = vrot.lane.b32.xlu0 %v1276, 95
  %v1281 = vpop.permute.xlu0 %1280
  %1282 = vrot.lane.b32.xlu0 %v1277, 95
  %v1283 = vpop.permute.xlu0 %1282
  %v1284 = vrot.slane %v1281, 1
  %v1285 = vrot.slane %v1283, 1
  %vm1286 = vcmask 777216
  %v1287 = vsel %vm1286, %v1281, %v1284
  %v1288 = vsel %vm1286, %v1283, %v1285
  %s1291 = scalar_lea.vmem [#allocation3], 6
  %1292 = vst.msk [vmem:[%s1291] ss:$8 sm:$0xf] %vm1165, %v1287
  %1293 = vst.msk [vmem:[%s1291] ss:$8 sm:$0x70] %vm1165, %v1287
  %s1294 = scalar_lea.vmem [#allocation3], 230
  %1295 = vst.msk [vmem:[%s1294] ss:$8 sm:$0xf] %vm1165, %v1288
  %1296 = vst.msk [vmem:[%s1294] ss:$8 sm:$0x70] %vm1165, %v1288
  %v1297 = vld [vmem:[#allocation2] sm:$0xff]
  %v1298 = vld [vmem:[#allocation2 + $0x8] sm:$0xff]
  %1301 = vrot.lane.b32.xlu0 %v1297, 94
  %v1302 = vpop.permute.xlu0 %1301
  %1303 = vrot.lane.b32.xlu0 %v1298, 94
  %v1304 = vpop.permute.xlu0 %1303
  %v1305 = vrot.slane %v1302, 1
  %v1306 = vrot.slane %v1304, 1
  %vm1307 = vcmask 769024
  %v1308 = vsel %vm1307, %v1302, %v1305
  %v1309 = vsel %vm1307, %v1304, %v1306
  %s1312 = scalar_lea.vmem [#allocation3], 7
  %1313 = vst.msk [vmem:[%s1312] ss:$8 sm:$0xf] %vm1165, %v1308
  %1314 = vst.msk [vmem:[%s1312] ss:$8 sm:$0x70] %vm1165, %v1308
  %s1315 = scalar_lea.vmem [#allocation3], 231
  %1316 = vst.msk [vmem:[%s1315] ss:$8 sm:$0xf] %vm1165, %v1309
  %1317 = vst.msk [vmem:[%s1315] ss:$8 sm:$0x70] %vm1165, %v1309
  %v1318 = vld [vmem:[#allocation2] sm:$0xff]
  %v1319 = vld [vmem:[#allocation2 + $0x8] sm:$0xff]
  %1322 = vrot.lane.b32.xlu0 %v1318, 93
  %v1323 = vpop.permute.xlu0 %1322
  %1324 = vrot.lane.b32.xlu0 %v1319, 93
  %v1325 = vpop.permute.xlu0 %1324
  %v1326 = vrot.slane %v1323, 1
  %v1327 = vrot.slane %v1325, 1
  %vm1328 = vcmask 760832
  %v1329 = vsel %vm1328, %v1323, %v1326
  %v1330 = vsel %vm1328, %v1325, %v1327
  %s1333 = scalar_lea.vmem [#allocation3], 56
  %1334 = vst.msk [vmem:[%s1333] ss:$8 sm:$0xf] %vm1165, %v1329
  %1335 = vst.msk [vmem:[%s1333] ss:$8 sm:$0x70] %vm1165, %v1329
  %s1336 = scalar_lea.vmem [#allocation3], 280
  %1337 = vst.msk [vmem:[%s1336] ss:$8 sm:$0xf] %vm1165, %v1330
  %1338 = vst.msk [vmem:[%s1336] ss:$8 sm:$0x70] %vm1165, %v1330
  %v1339 = vld [vmem:[#allocation2] sm:$0xff]
  %v1340 = vld [vmem:[#allocation2 + $0x8] sm:$0xff]
  %1343 = vrot.lane.b32.xlu0 %v1339, 92
  %v1344 = vpop.permute.xlu0 %1343
  %1345 = vrot.lane.b32.xlu0 %v1340, 92
  %v1346 = vpop.permute.xlu0 %1345
  %v1347 = vrot.slane %v1344, 1
  %v1348 = vrot.slane %v1346, 1
  %vm1349 = vcmask 752640
  %v1350 = vsel %vm1349, %v1344, %v1347
  %v1351 = vsel %vm1349, %v1346, %v1348
  %s1354 = scalar_lea.vmem [#allocation3], 57
  %1355 = vst.msk [vmem:[%s1354] ss:$8 sm:$0xf] %vm1165, %v1350
  %1356 = vst.msk [vmem:[%s1354] ss:$8 sm:$0x70] %vm1165, %v1350
  %s1357 = scalar_lea.vmem [#allocation3], 281
  %1358 = vst.msk [vmem:[%s1357] ss:$8 sm:$0xf] %vm1165, %v1351
  %1359 = vst.msk [vmem:[%s1357] ss:$8 sm:$0x70] %vm1165, %v1351
  %v1360 = vld [vmem:[#allocation2] sm:$0xff]
  %v1361 = vld [vmem:[#allocation2 + $0x8] sm:$0xff]
  %1364 = vrot.lane.b32.xlu0 %v1360, 64
  %v1365 = vpop.permute.xlu0 %1364
  %1366 = vrot.lane.b32.xlu0 %v1361, 64
  %v1367 = vpop.permute.xlu0 %1366
  %v1368 = vrot.slane %v1365, 1
  %v1369 = vrot.slane %v1367, 1
  %vm1370 = vcmask 523264
  %v1371 = vsel %vm1370, %v1365, %v1368
  %v1372 = vsel %vm1370, %v1367, %v1369
  %s1375 = scalar_lea.vmem [#allocation3], 58
  %1376 = vst.msk [vmem:[%s1375] ss:$8 sm:$0xf] %vm1165, %v1371
  %1377 = vst.msk [vmem:[%s1375] ss:$8 sm:$0x70] %vm1165, %v1371
  %s1378 = scalar_lea.vmem [#allocation3], 282
  %1379 = vst.msk [vmem:[%s1378] ss:$8 sm:$0xf] %vm1165, %v1372
  %1380 = vst.msk [vmem:[%s1378] ss:$8 sm:$0x70] %vm1165, %v1372
  %v1381 = vld [vmem:[#allocation2] sm:$0xff]
  %v1382 = vld [vmem:[#allocation2 + $0x8] sm:$0xff]
  %1385 = vrot.lane.b32.xlu0 %v1381, 63
  %v1386 = vpop.permute.xlu0 %1385
  %1387 = vrot.lane.b32.xlu0 %v1382, 63
  %v1388 = vpop.permute.xlu0 %1387
  %v1389 = vrot.slane %v1386, 1
  %v1390 = vrot.slane %v1388, 1
  %vm1391 = vcmask 515072
  %v1392 = vsel %vm1391, %v1386, %v1389
  %v1393 = vsel %vm1391, %v1388, %v1390
  %s1396 = scalar_lea.vmem [#allocation3], 59
  %1397 = vst.msk [vmem:[%s1396] ss:$8 sm:$0xf] %vm1165, %v1392
  %1398 = vst.msk [vmem:[%s1396] ss:$8 sm:$0x70] %vm1165, %v1392
  %s1399 = scalar_lea.vmem [#allocation3], 283
  %1400 = vst.msk [vmem:[%s1399] ss:$8 sm:$0xf] %vm1165, %v1393
  %1401 = vst.msk [vmem:[%s1399] ss:$8 sm:$0x70] %vm1165, %v1393
  %v1402 = vld [vmem:[#allocation2] sm:$0xff]
  %v1403 = vld [vmem:[#allocation2 + $0x8] sm:$0xff]
  %1406 = vrot.lane.b32.xlu0 %v1402, 62
  %v1407 = vpop.permute.xlu0 %1406
  %1408 = vrot.lane.b32.xlu0 %v1403, 62
  %v1409 = vpop.permute.xlu0 %1408
  %v1410 = vrot.slane %v1407, 1
  %v1411 = vrot.slane %v1409, 1
  %vm1412 = vcmask 506880
  %v1413 = vsel %vm1412, %v1407, %v1410
  %v1414 = vsel %vm1412, %v1409, %v1411
  %s1417 = scalar_lea.vmem [#allocation3], 60
  %1418 = vst.msk [vmem:[%s1417] ss:$8 sm:$0xf] %vm1165, %v1413
  %1419 = vst.msk [vmem:[%s1417] ss:$8 sm:$0x70] %vm1165, %v1413
  %s1420 = scalar_lea.vmem [#allocation3], 284
  %1421 = vst.msk [vmem:[%s1420] ss:$8 sm:$0xf] %vm1165, %v1414
  %1422 = vst.msk [vmem:[%s1420] ss:$8 sm:$0x70] %vm1165, %v1414
  %v1423 = vld [vmem:[#allocation2] sm:$0xff]
  %v1424 = vld [vmem:[#allocation2 + $0x8] sm:$0xff]
  %1427 = vrot.lane.b32.xlu0 %v1423, 61
  %v1428 = vpop.permute.xlu0 %1427
  %1429 = vrot.lane.b32.xlu0 %v1424, 61
  %v1430 = vpop.permute.xlu0 %1429
  %v1431 = vrot.slane %v1428, 1
  %v1432 = vrot.slane %v1430, 1
  %vm1433 = vcmask 498688
  %v1434 = vsel %vm1433, %v1428, %v1431
  %v1435 = vsel %vm1433, %v1430, %v1432
  %s1438 = scalar_lea.vmem [#allocation3], 61
  %1439 = vst.msk [vmem:[%s1438] ss:$8 sm:$0xf] %vm1165, %v1434
  %1440 = vst.msk [vmem:[%s1438] ss:$8 sm:$0x70] %vm1165, %v1434
  %s1441 = scalar_lea.vmem [#allocation3], 285
  %1442 = vst.msk [vmem:[%s1441] ss:$8 sm:$0xf] %vm1165, %v1435
  %1443 = vst.msk [vmem:[%s1441] ss:$8 sm:$0x70] %vm1165, %v1435
  %v1444 = vld [vmem:[#allocation2] sm:$0xff]
  %v1445 = vld [vmem:[#allocation2 + $0x8] sm:$0xff]
  %1448 = vrot.lane.b32.xlu0 %v1444, 60
  %v1449 = vpop.permute.xlu0 %1448
  %1450 = vrot.lane.b32.xlu0 %v1445, 60
  %v1451 = vpop.permute.xlu0 %1450
  %v1452 = vrot.slane %v1449, 1
  %v1453 = vrot.slane %v1451, 1
  %vm1454 = vcmask 490496
  %v1455 = vsel %vm1454, %v1449, %v1452
  %v1456 = vsel %vm1454, %v1451, %v1453
  %s1459 = scalar_lea.vmem [#allocation3], 62
  %1460 = vst.msk [vmem:[%s1459] ss:$8 sm:$0xf] %vm1165, %v1455
  %1461 = vst.msk [vmem:[%s1459] ss:$8 sm:$0x70] %vm1165, %v1455
  %s1462 = scalar_lea.vmem [#allocation3], 286
  %1463 = vst.msk [vmem:[%s1462] ss:$8 sm:$0xf] %vm1165, %v1456
  %1464 = vst.msk [vmem:[%s1462] ss:$8 sm:$0x70] %vm1165, %v1456
  %v1465 = vld [vmem:[#allocation2] sm:$0xff]
  %v1466 = vld [vmem:[#allocation2 + $0x8] sm:$0xff]
  %1469 = vrot.lane.b32.xlu0 %v1465, 32
  %v1470 = vpop.permute.xlu0 %1469
  %1471 = vrot.lane.b32.xlu0 %v1466, 32
  %v1472 = vpop.permute.xlu0 %1471
  %v1473 = vrot.slane %v1470, 1
  %v1474 = vrot.slane %v1472, 1
  %vm1475 = vcmask 261120
  %v1476 = vsel %vm1475, %v1470, %v1473
  %v1477 = vsel %vm1475, %v1472, %v1474
  %s1480 = scalar_lea.vmem [#allocation3], 63
  %1481 = vst.msk [vmem:[%s1480] ss:$8 sm:$0xf] %vm1165, %v1476
  %1482 = vst.msk [vmem:[%s1480] ss:$8 sm:$0x70] %vm1165, %v1476
  %s1483 = scalar_lea.vmem [#allocation3], 287
  %1484 = vst.msk [vmem:[%s1483] ss:$8 sm:$0xf] %vm1165, %v1477
  %1485 = vst.msk [vmem:[%s1483] ss:$8 sm:$0x70] %vm1165, %v1477
  %v1486 = vld [vmem:[#allocation2] sm:$0xff]
  %v1487 = vld [vmem:[#allocation2 + $0x8] sm:$0xff]
  %1490 = vrot.lane.b32.xlu0 %v1486, 31
  %v1491 = vpop.permute.xlu0 %1490
  %1492 = vrot.lane.b32.xlu0 %v1487, 31
  %v1493 = vpop.permute.xlu0 %1492
  %v1494 = vrot.slane %v1491, 1
  %v1495 = vrot.slane %v1493, 1
  %vm1496 = vcmask 252928
  %v1497 = vsel %vm1496, %v1491, %v1494
  %v1498 = vsel %vm1496, %v1493, %v1495
  %s1501 = scalar_lea.vmem [#allocation3], 112
  %1502 = vst.msk [vmem:[%s1501] ss:$8 sm:$0xf] %vm1165, %v1497
  %1503 = vst.msk [vmem:[%s1501] ss:$8 sm:$0x70] %vm1165, %v1497
  %s1504 = scalar_lea.vmem [#allocation3], 336
  %1505 = vst.msk [vmem:[%s1504] ss:$8 sm:$0xf] %vm1165, %v1498
  %1506 = vst.msk [vmem:[%s1504] ss:$8 sm:$0x70] %vm1165, %v1498
  %v1507 = vld [vmem:[#allocation2] sm:$0xff]
  %v1508 = vld [vmem:[#allocation2 + $0x8] sm:$0xff]
  %1511 = vrot.lane.b32.xlu0 %v1507, 30
  %v1512 = vpop.permute.xlu0 %1511
  %1513 = vrot.lane.b32.xlu0 %v1508, 30
  %v1514 = vpop.permute.xlu0 %1513
  %v1515 = vrot.slane %v1512, 1
  %v1516 = vrot.slane %v1514, 1
  %vm1517 = vcmask 244736
  %v1518 = vsel %vm1517, %v1512, %v1515
  %v1519 = vsel %vm1517, %v1514, %v1516
  %s1522 = scalar_lea.vmem [#allocation3], 113
  %1523 = vst.msk [vmem:[%s1522] ss:$8 sm:$0xf] %vm1165, %v1518
  %1524 = vst.msk [vmem:[%s1522] ss:$8 sm:$0x70] %vm1165, %v1518
  %s1525 = scalar_lea.vmem [#allocation3], 337
  %1526 = vst.msk [vmem:[%s1525] ss:$8 sm:$0xf] %vm1165, %v1519
  %1527 = vst.msk [vmem:[%s1525] ss:$8 sm:$0x70] %vm1165, %v1519
  %v1528 = vld [vmem:[#allocation2] sm:$0xff]
  %v1529 = vld [vmem:[#allocation2 + $0x8] sm:$0xff]
  %1532 = vrot.lane.b32.xlu0 %v1528, 29
  %v1533 = vpop.permute.xlu0 %1532
  %1534 = vrot.lane.b32.xlu0 %v1529, 29
  %v1535 = vpop.permute.xlu0 %1534
  %v1536 = vrot.slane %v1533, 1
  %v1537 = vrot.slane %v1535, 1
  %vm1538 = vcmask 236544
  %v1539 = vsel %vm1538, %v1533, %v1536
  %v1540 = vsel %vm1538, %v1535, %v1537
  %s1543 = scalar_lea.vmem [#allocation3], 114
  %1544 = vst.msk [vmem:[%s1543] ss:$8 sm:$0xf] %vm1165, %v1539
  %1545 = vst.msk [vmem:[%s1543] ss:$8 sm:$0x70] %vm1165, %v1539
  %s1546 = scalar_lea.vmem [#allocation3], 338
  %1547 = vst.msk [vmem:[%s1546] ss:$8 sm:$0xf] %vm1165, %v1540
  %1548 = vst.msk [vmem:[%s1546] ss:$8 sm:$0x70] %vm1165, %v1540
  %v1549 = vld [vmem:[#allocation2] sm:$0xff]
  %v1550 = vld [vmem:[#allocation2 + $0x8] sm:$0xff]
  %1553 = vrot.lane.b32.xlu0 %v1549, 28
  %v1554 = vpop.permute.xlu0 %1553
  %1555 = vrot.lane.b32.xlu0 %v1550, 28
  %v1556 = vpop.permute.xlu0 %1555
  %v1557 = vrot.slane %v1554, 1
  %v1558 = vrot.slane %v1556, 1
  %vm1559 = vcmask 228352
  %v1560 = vsel %vm1559, %v1554, %v1557
  %v1561 = vsel %vm1559, %v1556, %v1558
  %s1564 = scalar_lea.vmem [#allocation3], 115
  %1565 = vst.msk [vmem:[%s1564] ss:$8 sm:$0xf] %vm1165, %v1560
  %1566 = vst.msk [vmem:[%s1564] ss:$8 sm:$0x70] %vm1165, %v1560
  %s1567 = scalar_lea.vmem [#allocation3], 339
  %1568 = vst.msk [vmem:[%s1567] ss:$8 sm:$0xf] %vm1165, %v1561
  %1569 = vst.msk [vmem:[%s1567] ss:$8 sm:$0x70] %vm1165, %v1561
  %v1570 = vld [vmem:[#allocation2 + $0x1] sm:$0x7f]
  %v1571 = vld [vmem:[#allocation2 + $0x9] sm:$0x7f]
  %s1572 = scalar_lea.vmem [#allocation3], 116
  %1573 = vst.msk [vmem:[%s1572] ss:$8 sm:$0xf] %vm1165, %v1570
  %1574 = vst.msk [vmem:[%s1572] ss:$8 sm:$0x70] %vm1165, %v1570
  %s1575 = scalar_lea.vmem [#allocation3], 340
  %1576 = vst.msk [vmem:[%s1575] ss:$8 sm:$0xf] %vm1165, %v1571
  %1577 = vst.msk [vmem:[%s1575] ss:$8 sm:$0x70] %vm1165, %v1571
  %v1578 = vld [vmem:[#allocation2 + $0x1] sm:$0x7f]
  %v1579 = vld [vmem:[#allocation2 + $0x9] sm:$0x7f]
  %1582 = vrot.lane.b32.xlu0 %v1578, 127
  %v1583 = vpop.permute.xlu0 %1582
  %1584 = vrot.lane.b32.xlu0 %v1579, 127
  %v1585 = vpop.permute.xlu0 %1584
  %v1586 = vrot.slane %v1583, 1
  %v1587 = vrot.slane %v1585, 1
  %v1588 = vsel %vm1181, %v1583, %v1586
  %v1589 = vsel %vm1181, %v1585, %v1587
  %s1592 = scalar_lea.vmem [#allocation3], 117
  %1593 = vst.msk [vmem:[%s1592] ss:$8 sm:$0xf] %vm1165, %v1588
  %1594 = vst.msk [vmem:[%s1592] ss:$8 sm:$0x70] %vm1165, %v1588
  %s1595 = scalar_lea.vmem [#allocation3], 341
  %1596 = vst.msk [vmem:[%s1595] ss:$8 sm:$0xf] %vm1165, %v1589
  %1597 = vst.msk [vmem:[%s1595] ss:$8 sm:$0x70] %vm1165, %v1589
  %v1598 = vld [vmem:[#allocation2 + $0x1] sm:$0x7f]
  %v1599 = vld [vmem:[#allocation2 + $0x9] sm:$0x7f]
  %1602 = vrot.lane.b32.xlu0 %v1598, 126
  %v1603 = vpop.permute.xlu0 %1602
  %1604 = vrot.lane.b32.xlu0 %v1599, 126
  %v1605 = vpop.permute.xlu0 %1604
  %v1606 = vrot.slane %v1603, 1
  %v1607 = vrot.slane %v1605, 1
  %v1608 = vsel %vm1202, %v1603, %v1606
  %v1609 = vsel %vm1202, %v1605, %v1607
  %s1612 = scalar_lea.vmem [#allocation3], 118
  %1613 = vst.msk [vmem:[%s1612] ss:$8 sm:$0xf] %vm1165, %v1608
  %1614 = vst.msk [vmem:[%s1612] ss:$8 sm:$0x70] %vm1165, %v1608
  %s1615 = scalar_lea.vmem [#allocation3], 342
  %1616 = vst.msk [vmem:[%s1615] ss:$8 sm:$0xf] %vm1165, %v1609
  %1617 = vst.msk [vmem:[%s1615] ss:$8 sm:$0x70] %vm1165, %v1609
  %v1618 = vld [vmem:[#allocation2 + $0x1] sm:$0x7f]
  %v1619 = vld [vmem:[#allocation2 + $0x9] sm:$0x7f]
  %1622 = vrot.lane.b32.xlu0 %v1618, 125
  %v1623 = vpop.permute.xlu0 %1622
  %1624 = vrot.lane.b32.xlu0 %v1619, 125
  %v1625 = vpop.permute.xlu0 %1624
  %v1626 = vrot.slane %v1623, 1
  %v1627 = vrot.slane %v1625, 1
  %v1628 = vsel %vm1223, %v1623, %v1626
  %v1629 = vsel %vm1223, %v1625, %v1627
  %s1632 = scalar_lea.vmem [#allocation3], 119
  %1633 = vst.msk [vmem:[%s1632] ss:$8 sm:$0xf] %vm1165, %v1628
  %1634 = vst.msk [vmem:[%s1632] ss:$8 sm:$0x70] %vm1165, %v1628
  %s1635 = scalar_lea.vmem [#allocation3], 343
  %1636 = vst.msk [vmem:[%s1635] ss:$8 sm:$0xf] %vm1165, %v1629
  %1637 = vst.msk [vmem:[%s1635] ss:$8 sm:$0x70] %vm1165, %v1629
  %v1638 = vld [vmem:[#allocation2 + $0x1] sm:$0xff]
  %v1639 = vld [vmem:[#allocation2 + $0x9] sm:$0xff]
  %1642 = vrot.lane.b32.xlu0 %v1638, 124
  %v1643 = vpop.permute.xlu0 %1642
  %1644 = vrot.lane.b32.xlu0 %v1639, 124
  %v1645 = vpop.permute.xlu0 %1644
  %v1646 = vrot.slane %v1643, 1
  %v1647 = vrot.slane %v1645, 1
  %v1648 = vsel %vm1244, %v1643, %v1646
  %v1649 = vsel %vm1244, %v1645, %v1647
  %s1652 = scalar_lea.vmem [#allocation3], 168
  %1653 = vst.msk [vmem:[%s1652] ss:$8 sm:$0xf] %vm1165, %v1648
  %1654 = vst.msk [vmem:[%s1652] ss:$8 sm:$0x70] %vm1165, %v1648
  %s1655 = scalar_lea.vmem [#allocation3], 392
  %1656 = vst.msk [vmem:[%s1655] ss:$8 sm:$0xf] %vm1165, %v1649
  %1657 = vst.msk [vmem:[%s1655] ss:$8 sm:$0x70] %vm1165, %v1649
  %v1658 = vld [vmem:[%s1] sm:$0xff]
  %v1659 = vld [vmem:[%s1 + $0x8] sm:$0xff]
  %v1660 = vld [vmem:[#allocation3] sm:$0xff]
  %v1661 = vld [vmem:[#allocation3 + $0x8] sm:$0xff]
  %v1662 = vld [vmem:[#allocation3 + $0x10] sm:$0xff]
  %v1663 = vld [vmem:[#allocation3 + $0x18] sm:$0xff]
  %v1664 = vld [vmem:[#allocation3 + $0x20] sm:$0xff]
  %v1665 = vld [vmem:[#allocation3 + $0x28] sm:$0xff]
  %v1666 = vld [vmem:[#allocation3 + $0x30] sm:$0xff]
  %v1667 = vld [vmem:[#allocation3 + $0x38] sm:$0xff]
  %v1668 = vld [vmem:[#allocation3 + $0x40] sm:$0xff]
  %v1669 = vld [vmem:[#allocation3 + $0x48] sm:$0xff]
  %v1670 = vld [vmem:[#allocation3 + $0x50] sm:$0xff]
  %v1671 = vld [vmem:[#allocation3 + $0x58] sm:$0xff]
  %v1672 = vld [vmem:[#allocation3 + $0x60] sm:$0xff]
  %v1673 = vld [vmem:[#allocation3 + $0x68] sm:$0xff]
  %v1674 = vld [vmem:[#allocation3 + $0x70] sm:$0xff]
  %v1675 = vld [vmem:[#allocation3 + $0x78] sm:$0xff]
  %v1676 = vld [vmem:[#allocation3 + $0x80] sm:$0xff]
  %v1677 = vld [vmem:[#allocation3 + $0x88] sm:$0xff]
  %v1678 = vld [vmem:[#allocation3 + $0x90] sm:$0xff]
  %v1679 = vld [vmem:[#allocation3 + $0x98] sm:$0xff]
  %v1680 = vld [vmem:[#allocation3 + $0xa0] sm:$0xff]
  %v1681 = vld [vmem:[#allocation3 + $0xa8] sm:$0x1]
  %v1682 = vld [vmem:[#allocation3 + $0xb0] sm:$0x1]
  %v1683 = vld [vmem:[#allocation3 + $0xb8] sm:$0x1]
  %v1684 = vld [vmem:[#allocation3 + $0xc0] sm:$0x1]
  %v1685 = vld [vmem:[#allocation3 + $0xc8] sm:$0x1]
  %v1686 = vld [vmem:[#allocation3 + $0xd0] sm:$0x1]
  %v1687 = vld [vmem:[#allocation3 + $0xd8] sm:$0x1]
  %v1688 = vld [vmem:[%s2] sm:$0xff]
  %v1689 = vld [vmem:[%s2 + $0x8] sm:$0xff]
  %1691 = vset.pattern.permute.xlu0 0
  %1692 = vperm.xlu0 %1691, %v1688
  %v1693 = vpop.permute.xlu0 %1692
  %1696 = vset.pattern.permute.xlu0 0
  %1697 = vperm.xlu0 %1696, %v1689
  %v1698 = vpop.permute.xlu0 %1697
  %vm1700 = vcmask 203776
  %v1702 = vsel %vm1700, %v1658, 0
  %v1705 = vsel %vm1700, %v1659, 0
  %vm1707 = vcmask 1040384
  %v1709 = vsel %vm1707, %v1681, 0
  %v1712 = vsel %vm1707, %v1682, 0
  %v1715 = vsel %vm1707, %v1683, 0
  %v1718 = vsel %vm1707, %v1684, 0
  %v1721 = vsel %vm1707, %v1685, 0
  %v1724 = vsel %vm1707, %v1686, 0
  %v1727 = vsel %vm1707, %v1687, 0
  %1729 = vmatprep.subr.mxu0 %v1661
  %1730 = vmatpush1.msra.mxu0 %v1660
  %1731 = vmatprep.subr.mxu0 %v1668
  %1732 = vmatpush1.msra.mxu0 %v1667
  %1733 = vmatprep.subr.mxu0 %v1675
  %1734 = vmatpush1.msra.mxu0 %v1674
  %1735 = vmatprep.subr.mxu0 %v1712
  %1736 = vmatpush1.msra.mxu0 %v1709
  %1737 = vmatprep.subr.mxu0 0.0
  %1738 = vmatpush1.msra.mxu0 0.0
  %1739 = vmatprep.subr.mxu0 0.0
  %1740 = vmatpush1.msra.mxu0 0.0
  %1741 = vmatprep.subr.mxu0 0.0
  %1742 = vmatpush1.msra.mxu0 0.0
  %1743 = vmatprep.subr.mxu0 0.0
  %1744 = vmatpush1.msra.mxu0 0.0
  %1745 = vmatprep.subr.mxu0 0.0
  %1746 = vmatpush1.msra.mxu0 0.0
  %1747 = vmatprep.subr.mxu0 0.0
  %1748 = vmatpush1.msra.mxu0 0.0
  %1749 = vmatprep.subr.mxu0 0.0
  %1750 = vmatpush1.msra.mxu0 0.0
  %1751 = vmatprep.subr.mxu0 0.0
  %1752 = vmatpush1.msra.mxu0 0.0
  %1753 = vmatprep.subr.mxu0 0.0
  %1754 = vmatpush1.msra.mxu0 0.0
  %1755 = vmatprep.subr.mxu0 0.0
  %1756 = vmatpush1.msra.mxu0 0.0
  %1757 = vmatprep.subr.mxu0 0.0
  %1758 = vmatpush1.msra.mxu0 0.0
  %1759 = vmatprep.subr.mxu0 0.0
  %1760 = vmatpush1.msra.mxu0 0.0
  %1761 = vmatprep.subr.mxu0 0.0
  %1762 = vmatpush1.msra.mxu0 0.0
  %1763 = vmatprep.subr.mxu0 0.0
  %1764 = vmatpush1.msra.mxu0 0.0
  %1765 = vmatprep.subr.mxu0 0.0
  %1766 = vmatpush1.msra.mxu0 0.0
  %1767 = vmatprep.subr.mxu0 0.0
  %1768 = vmatpush1.msra.mxu0 0.0
  %1769 = vmatprep.subr.mxu0 0.0
  %1770 = vmatpush1.msra.mxu0 0.0
  %1771 = vmatprep.subr.mxu0 0.0
  %1772 = vmatpush1.msra.mxu0 0.0
  %1773 = vmatprep.subr.mxu0 0.0
  %1774 = vmatpush1.msra.mxu0 0.0
  %1775 = vmatprep.subr.mxu0 0.0
  %1776 = vmatpush1.msra.mxu0 0.0
  %1777 = vmatprep.subr.mxu0 0.0
  %1778 = vmatpush1.msra.mxu0 0.0
  %1779 = vmatprep.subr.mxu0 0.0
  %1780 = vmatpush1.msra.mxu0 0.0
  %1781 = vmatprep.subr.mxu0 0.0
  %1782 = vmatpush1.msra.mxu0 0.0
  %1783 = vmatprep.subr.mxu0 0.0
  %1784 = vmatpush1.msra.mxu0 0.0
  %1785 = vmatprep.subr.mxu0 0.0
  %1786 = vmatpush1.msra.mxu0 0.0
  %1787 = vmatprep.subr.mxu0 0.0
  %1788 = vmatpush1.msra.mxu0 0.0
  %1789 = vmatprep.subr.mxu0 0.0
  %1790 = vmatpush1.msra.mxu0 0.0
  %1791 = vmatprep.subr.mxu0 0.0
  %1792 = vmatpush1.msra.mxu0 0.0
  %1793 = vmatprep.mubr.f32.mxu0 0.0
  %1794 = vmatmul.mubr.f32.gmra.mrb[0].mxu0 %v1702
  %v1795 = vpop.f32.mrb[0].mxu0
  %v1796 = vadd.f32 %v1693, %v1795
  %v1797 = vpop.f32.mrb[0].mxu0
  %v1798 = vadd.f32 %v1693, %v1797
  %1799 = vmatprep.mubr.f32.mxu0 0.0
  %1800 = vmatmul.mubr.f32.gmra.mrb[0].mxu0 %v1705
  %v1801 = vpop.f32.mrb[0].mxu0
  %v1802 = vadd.f32 %v1698, %v1801
  %v1803 = vpop.f32.mrb[0].mxu0
  %v1804 = vadd.f32 %v1698, %v1803
  %1805 = vdwg.mxu0
  %1806 = vmatprep.subr.mxu0 %v1663
  %1807 = vmatpush1.msra.mxu0 %v1662
  %1808 = vmatprep.subr.mxu0 %v1670
  %1809 = vmatpush1.msra.mxu0 %v1669
  %1810 = vmatprep.subr.mxu0 %v1677
  %1811 = vmatpush1.msra.mxu0 %v1676
  %1812 = vmatprep.subr.mxu0 %v1718
  %1813 = vmatpush1.msra.mxu0 %v1715
  %1814 = vmatprep.subr.mxu0 0.0
  %1815 = vmatpush1.msra.mxu0 0.0
  %1816 = vmatprep.subr.mxu0 0.0
  %1817 = vmatpush1.msra.mxu0 0.0
  %1818 = vmatprep.subr.mxu0 0.0
  %1819 = vmatpush1.msra.mxu0 0.0
  %1820 = vmatprep.subr.mxu0 0.0
  %1821 = vmatpush1.msra.mxu0 0.0
  %1822 = vmatprep.subr.mxu0 0.0
  %1823 = vmatpush1.msra.mxu0 0.0
  %1824 = vmatprep.subr.mxu0 0.0
  %1825 = vmatpush1.msra.mxu0 0.0
  %1826 = vmatprep.subr.mxu0 0.0
  %1827 = vmatpush1.msra.mxu0 0.0
  %1828 = vmatprep.subr.mxu0 0.0
  %1829 = vmatpush1.msra.mxu0 0.0
  %1830 = vmatprep.subr.mxu0 0.0
  %1831 = vmatpush1.msra.mxu0 0.0
  %1832 = vmatprep.subr.mxu0 0.0
  %1833 = vmatpush1.msra.mxu0 0.0
  %1834 = vmatprep.subr.mxu0 0.0
  %1835 = vmatpush1.msra.mxu0 0.0
  %1836 = vmatprep.subr.mxu0 0.0
  %1837 = vmatpush1.msra.mxu0 0.0
  %1838 = vmatprep.subr.mxu0 0.0
  %1839 = vmatpush1.msra.mxu0 0.0
  %1840 = vmatprep.subr.mxu0 0.0
  %1841 = vmatpush1.msra.mxu0 0.0
  %1842 = vmatprep.subr.mxu0 0.0
  %1843 = vmatpush1.msra.mxu0 0.0
  %1844 = vmatprep.subr.mxu0 0.0
  %1845 = vmatpush1.msra.mxu0 0.0
  %1846 = vmatprep.subr.mxu0 0.0
  %1847 = vmatpush1.msra.mxu0 0.0
  %1848 = vmatprep.subr.mxu0 0.0
  %1849 = vmatpush1.msra.mxu0 0.0
  %1850 = vmatprep.subr.mxu0 0.0
  %1851 = vmatpush1.msra.mxu0 0.0
  %1852 = vmatprep.subr.mxu0 0.0
  %1853 = vmatpush1.msra.mxu0 0.0
  %1854 = vmatprep.subr.mxu0 0.0
  %1855 = vmatpush1.msra.mxu0 0.0
  %1856 = vmatprep.subr.mxu0 0.0
  %1857 = vmatpush1.msra.mxu0 0.0
  %1858 = vmatprep.subr.mxu0 0.0
  %1859 = vmatpush1.msra.mxu0 0.0
  %1860 = vmatprep.subr.mxu0 0.0
  %1861 = vmatpush1.msra.mxu0 0.0
  %1862 = vmatprep.subr.mxu0 0.0
  %1863 = vmatpush1.msra.mxu0 0.0
  %1864 = vmatprep.subr.mxu0 0.0
  %1865 = vmatpush1.msra.mxu0 0.0
  %1866 = vmatprep.subr.mxu0 0.0
  %1867 = vmatpush1.msra.mxu0 0.0
  %1868 = vmatprep.subr.mxu0 0.0
  %1869 = vmatpush1.msra.mxu0 0.0
  %1870 = vmatprep.mubr.f32.mxu0 0.0
  %1871 = vmatmul.mubr.f32.gmra.mrb[0].mxu0 %v1702
  %v1872 = vpop.f32.mrb[0].mxu0
  %v1873 = vadd.f32 %v1693, %v1872
  %v1874 = vpop.f32.mrb[0].mxu0
  %v1875 = vadd.f32 %v1693, %v1874
  %1876 = vmatprep.mubr.f32.mxu0 0.0
  %1877 = vmatmul.mubr.f32.gmra.mrb[0].mxu0 %v1705
  %v1878 = vpop.f32.mrb[0].mxu0
  %v1879 = vadd.f32 %v1698, %v1878
  %v1880 = vpop.f32.mrb[0].mxu0
  %v1881 = vadd.f32 %v1698, %v1880
  %1882 = vdwg.mxu0
  %1883 = vmatprep.subr.mxu0 %v1665
  %1884 = vmatpush1.msra.mxu0 %v1664
  %1885 = vmatprep.subr.mxu0 %v1672
  %1886 = vmatpush1.msra.mxu0 %v1671
  %1887 = vmatprep.subr.mxu0 %v1679
  %1888 = vmatpush1.msra.mxu0 %v1678
  %1889 = vmatprep.subr.mxu0 %v1724
  %1890 = vmatpush1.msra.mxu0 %v1721
  %1891 = vmatprep.subr.mxu0 0.0
  %1892 = vmatpush1.msra.mxu0 0.0
  %1893 = vmatprep.subr.mxu0 0.0
  %1894 = vmatpush1.msra.mxu0 0.0
  %1895 = vmatprep.subr.mxu0 0.0
  %1896 = vmatpush1.msra.mxu0 0.0
  %1897 = vmatprep.subr.mxu0 0.0
  %1898 = vmatpush1.msra.mxu0 0.0
  %1899 = vmatprep.subr.mxu0 0.0
  %1900 = vmatpush1.msra.mxu0 0.0
  %1901 = vmatprep.subr.mxu0 0.0
  %1902 = vmatpush1.msra.mxu0 0.0
  %1903 = vmatprep.subr.mxu0 0.0
  %1904 = vmatpush1.msra.mxu0 0.0
  %1905 = vmatprep.subr.mxu0 0.0
  %1906 = vmatpush1.msra.mxu0 0.0
  %1907 = vmatprep.subr.mxu0 0.0
  %1908 = vmatpush1.msra.mxu0 0.0
  %1909 = vmatprep.subr.mxu0 0.0
  %1910 = vmatpush1.msra.mxu0 0.0
  %1911 = vmatprep.subr.mxu0 0.0
  %1912 = vmatpush1.msra.mxu0 0.0
  %1913 = vmatprep.subr.mxu0 0.0
  %1914 = vmatpush1.msra.mxu0 0.0
  %1915 = vmatprep.subr.mxu0 0.0
  %1916 = vmatpush1.msra.mxu0 0.0
  %1917 = vmatprep.subr.mxu0 0.0
  %1918 = vmatpush1.msra.mxu0 0.0
  %1919 = vmatprep.subr.mxu0 0.0
  %1920 = vmatpush1.msra.mxu0 0.0
  %1921 = vmatprep.subr.mxu0 0.0
  %1922 = vmatpush1.msra.mxu0 0.0
  %1923 = vmatprep.subr.mxu0 0.0
  %1924 = vmatpush1.msra.mxu0 0.0
  %1925 = vmatprep.subr.mxu0 0.0
  %1926 = vmatpush1.msra.mxu0 0.0
  %1927 = vmatprep.subr.mxu0 0.0
  %1928 = vmatpush1.msra.mxu0 0.0
  %1929 = vmatprep.subr.mxu0 0.0
  %1930 = vmatpush1.msra.mxu0 0.0
  %1931 = vmatprep.subr.mxu0 0.0
  %1932 = vmatpush1.msra.mxu0 0.0
  %1933 = vmatprep.subr.mxu0 0.0
  %1934 = vmatpush1.msra.mxu0 0.0
  %1935 = vmatprep.subr.mxu0 0.0
  %1936 = vmatpush1.msra.mxu0 0.0
  %1937 = vmatprep.subr.mxu0 0.0
  %1938 = vmatpush1.msra.mxu0 0.0
  %1939 = vmatprep.subr.mxu0 0.0
  %1940 = vmatpush1.msra.mxu0 0.0
  %1941 = vmatprep.subr.mxu0 0.0
  %1942 = vmatpush1.msra.mxu0 0.0
  %1943 = vmatprep.subr.mxu0 0.0
  %1944 = vmatpush1.msra.mxu0 0.0
  %1945 = vmatprep.subr.mxu0 0.0
  %1946 = vmatpush1.msra.mxu0 0.0
  %1947 = vmatprep.mubr.f32.mxu0 0.0
  %1948 = vmatmul.mubr.f32.gmra.mrb[0].mxu0 %v1702
  %v1949 = vpop.f32.mrb[0].mxu0
  %v1950 = vadd.f32 %v1693, %v1949
  %v1951 = vpop.f32.mrb[0].mxu0
  %v1952 = vadd.f32 %v1693, %v1951
  %1953 = vmatprep.mubr.f32.mxu0 0.0
  %1954 = vmatmul.mubr.f32.gmra.mrb[0].mxu0 %v1705
  %v1955 = vpop.f32.mrb[0].mxu0
  %v1956 = vadd.f32 %v1698, %v1955
  %v1957 = vpop.f32.mrb[0].mxu0
  %v1958 = vadd.f32 %v1698, %v1957
  %1959 = vdwg.mxu0
  %1960 = vmatprep.subr.mxu0 0.0
  %1961 = vmatpush1.msra.mxu0 %v1666
  %1962 = vmatprep.subr.mxu0 0.0
  %1963 = vmatpush1.msra.mxu0 %v1673
  %1964 = vmatprep.subr.mxu0 0.0
  %1965 = vmatpush1.msra.mxu0 %v1680
  %1966 = vmatprep.subr.mxu0 0.0
  %1967 = vmatpush1.msra.mxu0 %v1727
  %1968 = vmatprep.subr.mxu0 0.0
  %1969 = vmatpush1.msra.mxu0 0.0
  %1970 = vmatprep.subr.mxu0 0.0
  %1971 = vmatpush1.msra.mxu0 0.0
  %1972 = vmatprep.subr.mxu0 0.0
  %1973 = vmatpush1.msra.mxu0 0.0
  %1974 = vmatprep.subr.mxu0 0.0
  %1975 = vmatpush1.msra.mxu0 0.0
  %1976 = vmatprep.subr.mxu0 0.0
  %1977 = vmatpush1.msra.mxu0 0.0
  %1978 = vmatprep.subr.mxu0 0.0
  %1979 = vmatpush1.msra.mxu0 0.0
  %1980 = vmatprep.subr.mxu0 0.0
  %1981 = vmatpush1.msra.mxu0 0.0
  %1982 = vmatprep.subr.mxu0 0.0
  %1983 = vmatpush1.msra.mxu0 0.0
  %1984 = vmatprep.subr.mxu0 0.0
  %1985 = vmatpush1.msra.mxu0 0.0
  %1986 = vmatprep.subr.mxu0 0.0
  %1987 = vmatpush1.msra.mxu0 0.0
  %1988 = vmatprep.subr.mxu0 0.0
  %1989 = vmatpush1.msra.mxu0 0.0
  %1990 = vmatprep.subr.mxu0 0.0
  %1991 = vmatpush1.msra.mxu0 0.0
  %1992 = vmatprep.subr.mxu0 0.0
  %1993 = vmatpush1.msra.mxu0 0.0
  %1994 = vmatprep.subr.mxu0 0.0
  %1995 = vmatpush1.msra.mxu0 0.0
  %1996 = vmatprep.subr.mxu0 0.0
  %1997 = vmatpush1.msra.mxu0 0.0
  %1998 = vmatprep.subr.mxu0 0.0
  %1999 = vmatpush1.msra.mxu0 0.0
  %2000 = vmatprep.subr.mxu0 0.0
  %2001 = vmatpush1.msra.mxu0 0.0
  %2002 = vmatprep.subr.mxu0 0.0
  %2003 = vmatpush1.msra.mxu0 0.0
  %2004 = vmatprep.subr.mxu0 0.0
  %2005 = vmatpush1.msra.mxu0 0.0
  %2006 = vmatprep.subr.mxu0 0.0
  %2007 = vmatpush1.msra.mxu0 0.0
  %2008 = vmatprep.subr.mxu0 0.0
  %2009 = vmatpush1.msra.mxu0 0.0
  %2010 = vmatprep.subr.mxu0 0.0
  %2011 = vmatpush1.msra.mxu0 0.0
  %2012 = vmatprep.subr.mxu0 0.0
  %2013 = vmatpush1.msra.mxu0 0.0
  %2014 = vmatprep.subr.mxu0 0.0
  %2015 = vmatpush1.msra.mxu0 0.0
  %2016 = vmatprep.subr.mxu0 0.0
  %2017 = vmatpush1.msra.mxu0 0.0
  %2018 = vmatprep.subr.mxu0 0.0
  %2019 = vmatpush1.msra.mxu0 0.0
  %2020 = vmatprep.subr.mxu0 0.0
  %2021 = vmatpush1.msra.mxu0 0.0
  %2022 = vmatprep.subr.mxu0 0.0
  %2023 = vmatpush1.msra.mxu0 0.0
  %2024 = vmatprep.mubr.f32.mxu0 0.0
  %2025 = vmatmul.mubr.f32.gmra.mrb[0].mxu0 %v1702
  %v2026 = vpop.f32.mrb[0].mxu0
  %v2027 = vadd.f32 %v1693, %v2026
  %v2028 = vpop.f32.mrb[0].mxu0
  %2029 = vmatprep.mubr.f32.mxu0 0.0
  %2030 = vmatmul.mubr.f32.gmra.mrb[0].mxu0 %v1705
  %v2031 = vpop.f32.mrb[0].mxu0
  %v2032 = vadd.f32 %v1698, %v2031
  %v2033 = vpop.f32.mrb[0].mxu0
  %2034 = vdwg.mxu0
  %v2035 = vmax.f32 %v1796, 0.0
  %v2036 = vmax.f32 %v1798, 0.0
  %v2037 = vmax.f32 %v1873, 0.0
  %v2038 = vmax.f32 %v1875, 0.0
  %v2039 = vmax.f32 %v1950, 0.0
  %v2040 = vmax.f32 %v1952, 0.0
  %v2041 = vmax.f32 %v2027, 0.0
  %v2042 = vmax.f32 %v1802, 0.0
  %v2043 = vmax.f32 %v1804, 0.0
  %v2044 = vmax.f32 %v1879, 0.0
  %v2045 = vmax.f32 %v1881, 0.0
  %v2046 = vmax.f32 %v1956, 0.0
  %v2047 = vmax.f32 %v1958, 0.0
  %v2048 = vmax.f32 %v2032, 0.0
  %2049 = vst [vmem:[#allocation4] sm:$0xff] %v2035
  %2050 = vst [vmem:[#allocation4 + $0x8] sm:$0xff] %v2036
  %2051 = vst [vmem:[#allocation4 + $0x10] sm:$0xff] %v2037
  %2052 = vst [vmem:[#allocation4 + $0x18] sm:$0xff] %v2038
  %2053 = vst [vmem:[#allocation4 + $0x20] sm:$0xff] %v2039
  %2054 = vst [vmem:[#allocation4 + $0x28] sm:$0xff] %v2040
  %2055 = vst.msk [vmem:[#allocation4 + $0x30] sm:$0xff] %vm1244, %v2041
  %2056 = vst [vmem:[#allocation4 + $0x38] sm:$0xff] %v2042
  %2057 = vst [vmem:[#allocation4 + $0x40] sm:$0xff] %v2043
  %2058 = vst [vmem:[#allocation4 + $0x48] sm:$0xff] %v2044
  %2059 = vst [vmem:[#allocation4 + $0x50] sm:$0xff] %v2045
  %2060 = vst [vmem:[#allocation4 + $0x58] sm:$0xff] %v2046
  %2061 = vst [vmem:[#allocation4 + $0x60] sm:$0xff] %v2047
  %2062 = vst.msk [vmem:[#allocation4 + $0x68] sm:$0xff] %vm1244, %v2048
  %v2063 = vld [vmem:[%s1] sm:$0xff]
  %v2064 = vld [vmem:[%s1 + $0x8] sm:$0xff]
  %s2065 = scalar_lea.vmem [#allocation3], 224
  %v2066 = vld [vmem:[%s2065] sm:$0xff]
  %v2067 = vld [vmem:[%s2065 + $0x8] sm:$0xff]
  %v2068 = vld [vmem:[%s2065 + $0x10] sm:$0xff]
  %v2069 = vld [vmem:[%s2065 + $0x18] sm:$0xff]
  %v2070 = vld [vmem:[%s2065 + $0x20] sm:$0xff]
  %v2071 = vld [vmem:[%s2065 + $0x28] sm:$0xff]
  %v2072 = vld [vmem:[%s2065 + $0x30] sm:$0xff]
  %v2073 = vld [vmem:[%s2065 + $0x38] sm:$0xff]
  %v2074 = vld [vmem:[%s2065 + $0x40] sm:$0xff]
  %v2075 = vld [vmem:[%s2065 + $0x48] sm:$0xff]
  %v2076 = vld [vmem:[%s2065 + $0x50] sm:$0xff]
  %v2077 = vld [vmem:[%s2065 + $0x58] sm:$0xff]
  %v2078 = vld [vmem:[%s2065 + $0x60] sm:$0xff]
  %v2079 = vld [vmem:[%s2065 + $0x68] sm:$0xff]
  %v2080 = vld [vmem:[%s2065 + $0x70] sm:$0xff]
  %v2081 = vld [vmem:[%s2065 + $0x78] sm:$0xff]
  %v2082 = vld [vmem:[%s2065 + $0x80] sm:$0xff]
  %v2083 = vld [vmem:[%s2065 + $0x88] sm:$0xff]
  %v2084 = vld [vmem:[%s2065 + $0x90] sm:$0xff]
  %v2085 = vld [vmem:[%s2065 + $0x98] sm:$0xff]
  %v2086 = vld [vmem:[%s2065 + $0xa0] sm:$0xff]
  %v2087 = vld [vmem:[%s2065 + $0xa8] sm:$0x1]
  %v2088 = vld [vmem:[%s2065 + $0xb0] sm:$0x1]
  %v2089 = vld [vmem:[%s2065 + $0xb8] sm:$0x1]
  %v2090 = vld [vmem:[%s2065 + $0xc0] sm:$0x1]
  %v2091 = vld [vmem:[%s2065 + $0xc8] sm:$0x1]
  %v2092 = vld [vmem:[%s2065 + $0xd0] sm:$0x1]
  %v2093 = vld [vmem:[%s2065 + $0xd8] sm:$0x1]
  %v2094 = vld [vmem:[%s2] sm:$0xff]
  %v2095 = vld [vmem:[%s2 + $0x8] sm:$0xff]
  %2097 = vset.pattern.permute.xlu0 0
  %2098 = vperm.xlu0 %2097, %v2094
  %v2099 = vpop.permute.xlu0 %2098
  %2102 = vset.pattern.permute.xlu0 0
  %2103 = vperm.xlu0 %2102, %v2095
  %v2104 = vpop.permute.xlu0 %2103
  %v2107 = vsel %vm1700, %v2063, 0
  %v2110 = vsel %vm1700, %v2064, 0
  %v2113 = vsel %vm1707, %v2087, 0
  %v2116 = vsel %vm1707, %v2088, 0
  %v2119 = vsel %vm1707, %v2089, 0
  %v2122 = vsel %vm1707, %v2090, 0
  %v2125 = vsel %vm1707, %v2091, 0
  %v2128 = vsel %vm1707, %v2092, 0
  %v2131 = vsel %vm1707, %v2093, 0
  %2133 = vmatprep.subr.mxu0 %v2067
  %2134 = vmatpush1.msra.mxu0 %v2066
  %2135 = vmatprep.subr.mxu0 %v2074
  %2136 = vmatpush1.msra.mxu0 %v2073
  %2137 = vmatprep.subr.mxu0 %v2081
  %2138 = vmatpush1.msra.mxu0 %v2080
  %2139 = vmatprep.subr.mxu0 %v2116
  %2140 = vmatpush1.msra.mxu0 %v2113
  %2141 = vmatprep.subr.mxu0 0.0
  %2142 = vmatpush1.msra.mxu0 0.0
  %2143 = vmatprep.subr.mxu0 0.0
  %2144 = vmatpush1.msra.mxu0 0.0
  %2145 = vmatprep.subr.mxu0 0.0
  %2146 = vmatpush1.msra.mxu0 0.0
  %2147 = vmatprep.subr.mxu0 0.0
  %2148 = vmatpush1.msra.mxu0 0.0
  %2149 = vmatprep.subr.mxu0 0.0
  %2150 = vmatpush1.msra.mxu0 0.0
  %2151 = vmatprep.subr.mxu0 0.0
  %2152 = vmatpush1.msra.mxu0 0.0
  %2153 = vmatprep.subr.mxu0 0.0
  %2154 = vmatpush1.msra.mxu0 0.0
  %2155 = vmatprep.subr.mxu0 0.0
  %2156 = vmatpush1.msra.mxu0 0.0
  %2157 = vmatprep.subr.mxu0 0.0
  %2158 = vmatpush1.msra.mxu0 0.0
  %2159 = vmatprep.subr.mxu0 0.0
  %2160 = vmatpush1.msra.mxu0 0.0
  %2161 = vmatprep.subr.mxu0 0.0
  %2162 = vmatpush1.msra.mxu0 0.0
  %2163 = vmatprep.subr.mxu0 0.0
  %2164 = vmatpush1.msra.mxu0 0.0
  %2165 = vmatprep.subr.mxu0 0.0
  %2166 = vmatpush1.msra.mxu0 0.0
  %2167 = vmatprep.subr.mxu0 0.0
  %2168 = vmatpush1.msra.mxu0 0.0
  %2169 = vmatprep.subr.mxu0 0.0
  %2170 = vmatpush1.msra.mxu0 0.0
  %2171 = vmatprep.subr.mxu0 0.0
  %2172 = vmatpush1.msra.mxu0 0.0
  %2173 = vmatprep.subr.mxu0 0.0
  %2174 = vmatpush1.msra.mxu0 0.0
  %2175 = vmatprep.subr.mxu0 0.0
  %2176 = vmatpush1.msra.mxu0 0.0
  %2177 = vmatprep.subr.mxu0 0.0
  %2178 = vmatpush1.msra.mxu0 0.0
  %2179 = vmatprep.subr.mxu0 0.0
  %2180 = vmatpush1.msra.mxu0 0.0
  %2181 = vmatprep.subr.mxu0 0.0
  %2182 = vmatpush1.msra.mxu0 0.0
  %2183 = vmatprep.subr.mxu0 0.0
  %2184 = vmatpush1.msra.mxu0 0.0
  %2185 = vmatprep.subr.mxu0 0.0
  %2186 = vmatpush1.msra.mxu0 0.0
  %2187 = vmatprep.subr.mxu0 0.0
  %2188 = vmatpush1.msra.mxu0 0.0
  %2189 = vmatprep.subr.mxu0 0.0
  %2190 = vmatpush1.msra.mxu0 0.0
  %2191 = vmatprep.subr.mxu0 0.0
  %2192 = vmatpush1.msra.mxu0 0.0
  %2193 = vmatprep.subr.mxu0 0.0
  %2194 = vmatpush1.msra.mxu0 0.0
  %2195 = vmatprep.subr.mxu0 0.0
  %2196 = vmatpush1.msra.mxu0 0.0
  %2197 = vmatprep.mubr.f32.mxu0 0.0
  %2198 = vmatmul.mubr.f32.gmra.mrb[0].mxu0 %v2107
  %v2199 = vpop.f32.mrb[0].mxu0
  %v2200 = vadd.f32 %v2099, %v2199
  %v2201 = vpop.f32.mrb[0].mxu0
  %v2202 = vadd.f32 %v2099, %v2201
  %2203 = vmatprep.mubr.f32.mxu0 0.0
  %2204 = vmatmul.mubr.f32.gmra.mrb[0].mxu0 %v2110
  %v2205 = vpop.f32.mrb[0].mxu0
  %v2206 = vadd.f32 %v2104, %v2205
  %v2207 = vpop.f32.mrb[0].mxu0
  %v2208 = vadd.f32 %v2104, %v2207
  %2209 = vdwg.mxu0
  %2210 = vmatprep.subr.mxu0 %v2069
  %2211 = vmatpush1.msra.mxu0 %v2068
  %2212 = vmatprep.subr.mxu0 %v2076
  %2213 = vmatpush1.msra.mxu0 %v2075
  %2214 = vmatprep.subr.mxu0 %v2083
  %2215 = vmatpush1.msra.mxu0 %v2082
  %2216 = vmatprep.subr.mxu0 %v2122
  %2217 = vmatpush1.msra.mxu0 %v2119
  %2218 = vmatprep.subr.mxu0 0.0
  %2219 = vmatpush1.msra.mxu0 0.0
  %2220 = vmatprep.subr.mxu0 0.0
  %2221 = vmatpush1.msra.mxu0 0.0
  %2222 = vmatprep.subr.mxu0 0.0
  %2223 = vmatpush1.msra.mxu0 0.0
  %2224 = vmatprep.subr.mxu0 0.0
  %2225 = vmatpush1.msra.mxu0 0.0
  %2226 = vmatprep.subr.mxu0 0.0
  %2227 = vmatpush1.msra.mxu0 0.0
  %2228 = vmatprep.subr.mxu0 0.0
  %2229 = vmatpush1.msra.mxu0 0.0
  %2230 = vmatprep.subr.mxu0 0.0
  %2231 = vmatpush1.msra.mxu0 0.0
  %2232 = vmatprep.subr.mxu0 0.0
  %2233 = vmatpush1.msra.mxu0 0.0
  %2234 = vmatprep.subr.mxu0 0.0
  %2235 = vmatpush1.msra.mxu0 0.0
  %2236 = vmatprep.subr.mxu0 0.0
  %2237 = vmatpush1.msra.mxu0 0.0
  %2238 = vmatprep.subr.mxu0 0.0
  %2239 = vmatpush1.msra.mxu0 0.0
  %2240 = vmatprep.subr.mxu0 0.0
  %2241 = vmatpush1.msra.mxu0 0.0
  %2242 = vmatprep.subr.mxu0 0.0
  %2243 = vmatpush1.msra.mxu0 0.0
  %2244 = vmatprep.subr.mxu0 0.0
  %2245 = vmatpush1.msra.mxu0 0.0
  %2246 = vmatprep.subr.mxu0 0.0
  %2247 = vmatpush1.msra.mxu0 0.0
  %2248 = vmatprep.subr.mxu0 0.0
  %2249 = vmatpush1.msra.mxu0 0.0
  %2250 = vmatprep.subr.mxu0 0.0
  %2251 = vmatpush1.msra.mxu0 0.0
  %2252 = vmatprep.subr.mxu0 0.0
  %2253 = vmatpush1.msra.mxu0 0.0
  %2254 = vmatprep.subr.mxu0 0.0
  %2255 = vmatpush1.msra.mxu0 0.0
  %2256 = vmatprep.subr.mxu0 0.0
  %2257 = vmatpush1.msra.mxu0 0.0
  %2258 = vmatprep.subr.mxu0 0.0
  %2259 = vmatpush1.msra.mxu0 0.0
  %2260 = vmatprep.subr.mxu0 0.0
  %2261 = vmatpush1.msra.mxu0 0.0
  %2262 = vmatprep.subr.mxu0 0.0
  %2263 = vmatpush1.msra.mxu0 0.0
  %2264 = vmatprep.subr.mxu0 0.0
  %2265 = vmatpush1.msra.mxu0 0.0
  %2266 = vmatprep.subr.mxu0 0.0
  %2267 = vmatpush1.msra.mxu0 0.0
  %2268 = vmatprep.subr.mxu0 0.0
  %2269 = vmatpush1.msra.mxu0 0.0
  %2270 = vmatprep.subr.mxu0 0.0
  %2271 = vmatpush1.msra.mxu0 0.0
  %2272 = vmatprep.subr.mxu0 0.0
  %2273 = vmatpush1.msra.mxu0 0.0
  %2274 = vmatprep.mubr.f32.mxu0 0.0
  %2275 = vmatmul.mubr.f32.gmra.mrb[0].mxu0 %v2107
  %v2276 = vpop.f32.mrb[0].mxu0
  %v2277 = vadd.f32 %v2099, %v2276
  %v2278 = vpop.f32.mrb[0].mxu0
  %v2279 = vadd.f32 %v2099, %v2278
  %2280 = vmatprep.mubr.f32.mxu0 0.0
  %2281 = vmatmul.mubr.f32.gmra.mrb[0].mxu0 %v2110
  %v2282 = vpop.f32.mrb[0].mxu0
  %v2283 = vadd.f32 %v2104, %v2282
  %v2284 = vpop.f32.mrb[0].mxu0
  %v2285 = vadd.f32 %v2104, %v2284
  %2286 = vdwg.mxu0
  %2287 = vmatprep.subr.mxu0 %v2071
  %2288 = vmatpush1.msra.mxu0 %v2070
  %2289 = vmatprep.subr.mxu0 %v2078
  %2290 = vmatpush1.msra.mxu0 %v2077
  %2291 = vmatprep.subr.mxu0 %v2085
  %2292 = vmatpush1.msra.mxu0 %v2084
  %2293 = vmatprep.subr.mxu0 %v2128
  %2294 = vmatpush1.msra.mxu0 %v2125
  %2295 = vmatprep.subr.mxu0 0.0
  %2296 = vmatpush1.msra.mxu0 0.0
  %2297 = vmatprep.subr.mxu0 0.0
  %2298 = vmatpush1.msra.mxu0 0.0
  %2299 = vmatprep.subr.mxu0 0.0
  %2300 = vmatpush1.msra.mxu0 0.0
  %2301 = vmatprep.subr.mxu0 0.0
  %2302 = vmatpush1.msra.mxu0 0.0
  %2303 = vmatprep.subr.mxu0 0.0
  %2304 = vmatpush1.msra.mxu0 0.0
  %2305 = vmatprep.subr.mxu0 0.0
  %2306 = vmatpush1.msra.mxu0 0.0
  %2307 = vmatprep.subr.mxu0 0.0
  %2308 = vmatpush1.msra.mxu0 0.0
  %2309 = vmatprep.subr.mxu0 0.0
  %2310 = vmatpush1.msra.mxu0 0.0
  %2311 = vmatprep.subr.mxu0 0.0
  %2312 = vmatpush1.msra.mxu0 0.0
  %2313 = vmatprep.subr.mxu0 0.0
  %2314 = vmatpush1.msra.mxu0 0.0
  %2315 = vmatprep.subr.mxu0 0.0
  %2316 = vmatpush1.msra.mxu0 0.0
  %2317 = vmatprep.subr.mxu0 0.0
  %2318 = vmatpush1.msra.mxu0 0.0
  %2319 = vmatprep.subr.mxu0 0.0
  %2320 = vmatpush1.msra.mxu0 0.0
  %2321 = vmatprep.subr.mxu0 0.0
  %2322 = vmatpush1.msra.mxu0 0.0
  %2323 = vmatprep.subr.mxu0 0.0
  %2324 = vmatpush1.msra.mxu0 0.0
  %2325 = vmatprep.subr.mxu0 0.0
  %2326 = vmatpush1.msra.mxu0 0.0
  %2327 = vmatprep.subr.mxu0 0.0
  %2328 = vmatpush1.msra.mxu0 0.0
  %2329 = vmatprep.subr.mxu0 0.0
  %2330 = vmatpush1.msra.mxu0 0.0
  %2331 = vmatprep.subr.mxu0 0.0
  %2332 = vmatpush1.msra.mxu0 0.0
  %2333 = vmatprep.subr.mxu0 0.0
  %2334 = vmatpush1.msra.mxu0 0.0
  %2335 = vmatprep.subr.mxu0 0.0
  %2336 = vmatpush1.msra.mxu0 0.0
  %2337 = vmatprep.subr.mxu0 0.0
  %2338 = vmatpush1.msra.mxu0 0.0
  %2339 = vmatprep.subr.mxu0 0.0
  %2340 = vmatpush1.msra.mxu0 0.0
  %2341 = vmatprep.subr.mxu0 0.0
  %2342 = vmatpush1.msra.mxu0 0.0
  %2343 = vmatprep.subr.mxu0 0.0
  %2344 = vmatpush1.msra.mxu0 0.0
  %2345 = vmatprep.subr.mxu0 0.0
  %2346 = vmatpush1.msra.mxu0 0.0
  %2347 = vmatprep.subr.mxu0 0.0
  %2348 = vmatpush1.msra.mxu0 0.0
  %2349 = vmatprep.subr.mxu0 0.0
  %2350 = vmatpush1.msra.mxu0 0.0
  %2351 = vmatprep.mubr.f32.mxu0 0.0
  %2352 = vmatmul.mubr.f32.gmra.mrb[0].mxu0 %v2107
  %v2353 = vpop.f32.mrb[0].mxu0
  %v2354 = vadd.f32 %v2099, %v2353
  %v2355 = vpop.f32.mrb[0].mxu0
  %v2356 = vadd.f32 %v2099, %v2355
  %2357 = vmatprep.mubr.f32.mxu0 0.0
  %2358 = vmatmul.mubr.f32.gmra.mrb[0].mxu0 %v2110
  %v2359 = vpop.f32.mrb[0].mxu0
  %v2360 = vadd.f32 %v2104, %v2359
  %v2361 = vpop.f32.mrb[0].mxu0
  %v2362 = vadd.f32 %v2104, %v2361
  %2363 = vdwg.mxu0
  %2364 = vmatprep.subr.mxu0 0.0
  %2365 = vmatpush1.msra.mxu0 %v2072
  %2366 = vmatprep.subr.mxu0 0.0
  %2367 = vmatpush1.msra.mxu0 %v2079
  %2368 = vmatprep.subr.mxu0 0.0
  %2369 = vmatpush1.msra.mxu0 %v2086
  %2370 = vmatprep.subr.mxu0 0.0
  %2371 = vmatpush1.msra.mxu0 %v2131
  %2372 = vmatprep.subr.mxu0 0.0
  %2373 = vmatpush1.msra.mxu0 0.0
  %2374 = vmatprep.subr.mxu0 0.0
  %2375 = vmatpush1.msra.mxu0 0.0
  %2376 = vmatprep.subr.mxu0 0.0
  %2377 = vmatpush1.msra.mxu0 0.0
  %2378 = vmatprep.subr.mxu0 0.0
  %2379 = vmatpush1.msra.mxu0 0.0
  %2380 = vmatprep.subr.mxu0 0.0
  %2381 = vmatpush1.msra.mxu0 0.0
  %2382 = vmatprep.subr.mxu0 0.0
  %2383 = vmatpush1.msra.mxu0 0.0
  %2384 = vmatprep.subr.mxu0 0.0
  %2385 = vmatpush1.msra.mxu0 0.0
  %2386 = vmatprep.subr.mxu0 0.0
  %2387 = vmatpush1.msra.mxu0 0.0
  %2388 = vmatprep.subr.mxu0 0.0
  %2389 = vmatpush1.msra.mxu0 0.0
  %2390 = vmatprep.subr.mxu0 0.0
  %2391 = vmatpush1.msra.mxu0 0.0
  %2392 = vmatprep.subr.mxu0 0.0
  %2393 = vmatpush1.msra.mxu0 0.0
  %2394 = vmatprep.subr.mxu0 0.0
  %2395 = vmatpush1.msra.mxu0 0.0
  %2396 = vmatprep.subr.mxu0 0.0
  %2397 = vmatpush1.msra.mxu0 0.0
  %2398 = vmatprep.subr.mxu0 0.0
  %2399 = vmatpush1.msra.mxu0 0.0
  %2400 = vmatprep.subr.mxu0 0.0
  %2401 = vmatpush1.msra.mxu0 0.0
  %2402 = vmatprep.subr.mxu0 0.0
  %2403 = vmatpush1.msra.mxu0 0.0
  %2404 = vmatprep.subr.mxu0 0.0
  %2405 = vmatpush1.msra.mxu0 0.0
  %2406 = vmatprep.subr.mxu0 0.0
  %2407 = vmatpush1.msra.mxu0 0.0
  %2408 = vmatprep.subr.mxu0 0.0
  %2409 = vmatpush1.msra.mxu0 0.0
  %2410 = vmatprep.subr.mxu0 0.0
  %2411 = vmatpush1.msra.mxu0 0.0
  %2412 = vmatprep.subr.mxu0 0.0
  %2413 = vmatpush1.msra.mxu0 0.0
  %2414 = vmatprep.subr.mxu0 0.0
  %2415 = vmatpush1.msra.mxu0 0.0
  %2416 = vmatprep.subr.mxu0 0.0
  %2417 = vmatpush1.msra.mxu0 0.0
  %2418 = vmatprep.subr.mxu0 0.0
  %2419 = vmatpush1.msra.mxu0 0.0
  %2420 = vmatprep.subr.mxu0 0.0
  %2421 = vmatpush1.msra.mxu0 0.0
  %2422 = vmatprep.subr.mxu0 0.0
  %2423 = vmatpush1.msra.mxu0 0.0
  %2424 = vmatprep.subr.mxu0 0.0
  %2425 = vmatpush1.msra.mxu0 0.0
  %2426 = vmatprep.subr.mxu0 0.0
  %2427 = vmatpush1.msra.mxu0 0.0
  %2428 = vmatprep.mubr.f32.mxu0 0.0
  %2429 = vmatmul.mubr.f32.gmra.mrb[0].mxu0 %v2107
  %v2430 = vpop.f32.mrb[0].mxu0
  %v2431 = vadd.f32 %v2099, %v2430
  %v2432 = vpop.f32.mrb[0].mxu0
  %2433 = vmatprep.mubr.f32.mxu0 0.0
  %2434 = vmatmul.mubr.f32.gmra.mrb[0].mxu0 %v2110
  %v2435 = vpop.f32.mrb[0].mxu0
  %v2436 = vadd.f32 %v2104, %v2435
  %v2437 = vpop.f32.mrb[0].mxu0
  %2438 = vdwg.mxu0
  %v2439 = vmax.f32 %v2200, 0.0
  %v2440 = vmax.f32 %v2202, 0.0
  %v2441 = vmax.f32 %v2277, 0.0
  %v2442 = vmax.f32 %v2279, 0.0
  %v2443 = vmax.f32 %v2354, 0.0
  %v2444 = vmax.f32 %v2356, 0.0
  %v2445 = vmax.f32 %v2431, 0.0
  %v2446 = vmax.f32 %v2206, 0.0
  %v2447 = vmax.f32 %v2208, 0.0
  %v2448 = vmax.f32 %v2283, 0.0
  %v2449 = vmax.f32 %v2285, 0.0
  %v2450 = vmax.f32 %v2360, 0.0
  %v2451 = vmax.f32 %v2362, 0.0
  %v2452 = vmax.f32 %v2436, 0.0
  %s2453 = scalar_lea.vmem [#allocation4], 112
  %2454 = vst [vmem:[%s2453] sm:$0xff] %v2439
  %2455 = vst [vmem:[%s2453 + $0x8] sm:$0xff] %v2440
  %2456 = vst [vmem:[%s2453 + $0x10] sm:$0xff] %v2441
  %2457 = vst [vmem:[%s2453 + $0x18] sm:$0xff] %v2442
  %2458 = vst [vmem:[%s2453 + $0x20] sm:$0xff] %v2443
  %2459 = vst [vmem:[%s2453 + $0x28] sm:$0xff] %v2444
  %2460 = vst.msk [vmem:[%s2453 + $0x30] sm:$0xff] %vm1244, %v2445
  %2461 = vst [vmem:[%s2453 + $0x38] sm:$0xff] %v2446
  %2462 = vst [vmem:[%s2453 + $0x40] sm:$0xff] %v2447
  %2463 = vst [vmem:[%s2453 + $0x48] sm:$0xff] %v2448
  %2464 = vst [vmem:[%s2453 + $0x50] sm:$0xff] %v2449
  %2465 = vst [vmem:[%s2453 + $0x58] sm:$0xff] %v2450
  %2466 = vst [vmem:[%s2453 + $0x60] sm:$0xff] %v2451
  %2467 = vst.msk [vmem:[%s2453 + $0x68] sm:$0xff] %vm1244, %v2452
  %v2468 = vld [vmem:[#allocation4] sm:$0xff]
  %v2469 = vld [vmem:[#allocation4 + $0x8] sm:$0xff]
  %v2470 = vld [vmem:[#allocation4 + $0x10] sm:$0xff]
  %v2471 = vld [vmem:[#allocation4 + $0x18] sm:$0xff]
  %v2472 = vld [vmem:[#allocation4 + $0x20] sm:$0xff]
  %v2473 = vld [vmem:[#allocation4 + $0x28] sm:$0xff]
  %v2474 = vld [vmem:[#allocation4 + $0x30] sm:$0xff]
  %v2475 = vld [vmem:[#allocation4 + $0x38] sm:$0xff]
  %v2476 = vld [vmem:[#allocation4 + $0x40] sm:$0xff]
  %v2477 = vld [vmem:[#allocation4 + $0x48] sm:$0xff]
  %v2478 = vld [vmem:[#allocation4 + $0x50] sm:$0xff]
  %v2479 = vld [vmem:[#allocation4 + $0x58] sm:$0xff]
  %v2480 = vld [vmem:[#allocation4 + $0x60] sm:$0xff]
  %v2481 = vld [vmem:[#allocation4 + $0x68] sm:$0xff]
  %2496 = vrot.lane.b32.xlu0 %v2468, 127
  %v2497 = vpop.permute.xlu0 %2496
  %2498 = vrot.lane.b32.xlu0 %v2469, 127
  %v2499 = vpop.permute.xlu0 %2498
  %2500 = vrot.lane.b32.xlu0 %v2470, 127
  %v2501 = vpop.permute.xlu0 %2500
  %2502 = vrot.lane.b32.xlu0 %v2471, 127
  %v2503 = vpop.permute.xlu0 %2502
  %2504 = vrot.lane.b32.xlu0 %v2472, 127
  %v2505 = vpop.permute.xlu0 %2504
  %2506 = vrot.lane.b32.xlu0 %v2473, 127
  %v2507 = vpop.permute.xlu0 %2506
  %2508 = vrot.lane.b32.xlu0 %v2474, 127
  %v2509 = vpop.permute.xlu0 %2508
  %2510 = vrot.lane.b32.xlu0 %v2475, 127
  %v2511 = vpop.permute.xlu0 %2510
  %2512 = vrot.lane.b32.xlu0 %v2476, 127
  %v2513 = vpop.permute.xlu0 %2512
  %2514 = vrot.lane.b32.xlu0 %v2477, 127
  %v2515 = vpop.permute.xlu0 %2514
  %2516 = vrot.lane.b32.xlu0 %v2478, 127
  %v2517 = vpop.permute.xlu0 %2516
  %2518 = vrot.lane.b32.xlu0 %v2479, 127
  %v2519 = vpop.permute.xlu0 %2518
  %2520 = vrot.lane.b32.xlu0 %v2480, 127
  %v2521 = vpop.permute.xlu0 %2520
  %2522 = vrot.lane.b32.xlu0 %v2481, 127
  %v2523 = vpop.permute.xlu0 %2522
  %v2524 = vsel %vm1181, %v2497, %v2499
  %v2525 = vsel %vm1181, %v2499, %v2501
  %v2526 = vsel %vm1181, %v2501, %v2503
  %v2527 = vsel %vm1181, %v2503, %v2505
  %v2528 = vsel %vm1181, %v2505, %v2507
  %v2529 = vsel %vm1181, %v2507, %v2509
  %v2530 = vsel %vm1181, %v2511, %v2513
  %v2531 = vsel %vm1181, %v2513, %v2515
  %v2532 = vsel %vm1181, %v2515, %v2517
  %v2533 = vsel %vm1181, %v2517, %v2519
  %v2534 = vsel %vm1181, %v2519, %v2521
  %v2535 = vsel %vm1181, %v2521, %v2523
  %v2550 = vmax.f32 %v2468, %v2524
  %v2551 = vmax.f32 %v2469, %v2525
  %v2552 = vmax.f32 %v2470, %v2526
  %v2553 = vmax.f32 %v2471, %v2527
  %v2554 = vmax.f32 %v2472, %v2528
  %v2555 = vmax.f32 %v2473, %v2529
  %v2556 = vmax.f32 %v2474, %v2509
  %v2557 = vmax.f32 %v2475, %v2530
  %v2558 = vmax.f32 %v2476, %v2531
  %v2559 = vmax.f32 %v2477, %v2532
  %v2560 = vmax.f32 %v2478, %v2533
  %v2561 = vmax.f32 %v2479, %v2534
  %v2562 = vmax.f32 %v2480, %v2535
  %v2563 = vmax.f32 %v2481, %v2523
  %2578 = vrot.lane.b32.xlu0 %v2550, 96
  %v2579 = vpop.permute.xlu0 %2578
  %2580 = vrot.lane.b32.xlu0 %v2551, 96
  %v2581 = vpop.permute.xlu0 %2580
  %2582 = vrot.lane.b32.xlu0 %v2552, 96
  %v2583 = vpop.permute.xlu0 %2582
  %2584 = vrot.lane.b32.xlu0 %v2553, 96
  %v2585 = vpop.permute.xlu0 %2584
  %2586 = vrot.lane.b32.xlu0 %v2554, 96
  %v2587 = vpop.permute.xlu0 %2586
  %2588 = vrot.lane.b32.xlu0 %v2555, 96
  %v2589 = vpop.permute.xlu0 %2588
  %2590 = vrot.lane.b32.xlu0 %v2556, 96
  %v2591 = vpop.permute.xlu0 %2590
  %2592 = vrot.lane.b32.xlu0 %v2557, 96
  %v2593 = vpop.permute.xlu0 %2592
  %2594 = vrot.lane.b32.xlu0 %v2558, 96
  %v2595 = vpop.permute.xlu0 %2594
  %2596 = vrot.lane.b32.xlu0 %v2559, 96
  %v2597 = vpop.permute.xlu0 %2596
  %2598 = vrot.lane.b32.xlu0 %v2560, 96
  %v2599 = vpop.permute.xlu0 %2598
  %2600 = vrot.lane.b32.xlu0 %v2561, 96
  %v2601 = vpop.permute.xlu0 %2600
  %2602 = vrot.lane.b32.xlu0 %v2562, 96
  %v2603 = vpop.permute.xlu0 %2602
  %2604 = vrot.lane.b32.xlu0 %v2563, 96
  %v2605 = vpop.permute.xlu0 %2604
  %v2606 = vsel %vm1265, %v2579, %v2581
  %v2607 = vsel %vm1265, %v2581, %v2583
  %v2608 = vsel %vm1265, %v2583, %v2585
  %v2609 = vsel %vm1265, %v2585, %v2587
  %v2610 = vsel %vm1265, %v2587, %v2589
  %v2611 = vsel %vm1265, %v2589, %v2591
  %v2612 = vsel %vm1265, %v2593, %v2595
  %v2613 = vsel %vm1265, %v2595, %v2597
  %v2614 = vsel %vm1265, %v2597, %v2599
  %v2615 = vsel %vm1265, %v2599, %v2601
  %v2616 = vsel %vm1265, %v2601, %v2603
  %v2617 = vsel %vm1265, %v2603, %v2605
  %v2632 = vmax.f32 %v2550, %v2606
  %v2633 = vmax.f32 %v2551, %v2607
  %v2634 = vmax.f32 %v2552, %v2608
  %v2635 = vmax.f32 %v2553, %v2609
  %v2636 = vmax.f32 %v2554, %v2610
  %v2637 = vmax.f32 %v2555, %v2611
  %v2638 = vmax.f32 %v2556, %v2591
  %v2639 = vmax.f32 %v2557, %v2612
  %v2640 = vmax.f32 %v2558, %v2613
  %v2641 = vmax.f32 %v2559, %v2614
  %v2642 = vmax.f32 %v2560, %v2615
  %v2643 = vmax.f32 %v2561, %v2616
  %v2644 = vmax.f32 %v2562, %v2617
  %v2645 = vmax.f32 %v2563, %v2605
  %v2646 = vld [vmem:[%s5] sm:$0xff]
  %v2647 = vld [vmem:[%s5 + $0x8] sm:$0xff]
  %v2648 = vld [vmem:[%s5 + $0x10] sm:$0xff]
  %v2649 = vld [vmem:[%s5 + $0x18] sm:$0xff]
  %v2650 = vld [vmem:[%s5 + $0x20] sm:$0xff]
  %v2651 = vld [vmem:[%s5 + $0x28] sm:$0xff]
  %v2652 = vld [vmem:[%s5 + $0x30] sm:$0xff]
  %v2653 = vld [vmem:[%s5 + $0x38] sm:$0xff]
  %v2654 = vld [vmem:[%s5 + $0x40] sm:$0xff]
  %v2655 = vld [vmem:[%s5 + $0x48] sm:$0xff]
  %v2656 = vld [vmem:[%s5 + $0x50] sm:$0xff]
  %v2657 = vld [vmem:[%s5 + $0x58] sm:$0xff]
  %v2658 = vld [vmem:[%s5 + $0x60] sm:$0xff]
  %v2659 = vld [vmem:[%s5 + $0x68] sm:$0xff]
  %v2660 = vld [vmem:[%s5 + $0x70] sm:$0xff]
  %v2661 = vld [vmem:[%s5 + $0x78] sm:$0xff]
  %v2662 = vld [vmem:[%s5 + $0x80] sm:$0xff]
  %v2663 = vld [vmem:[%s5 + $0x88] sm:$0xff]
  %v2664 = vld [vmem:[%s5 + $0x90] sm:$0xff]
  %v2665 = vld [vmem:[%s5 + $0x98] sm:$0xff]
  %v2666 = vld [vmem:[%s5 + $0xa0] sm:$0xff]
  %v2667 = vld [vmem:[%s5 + $0xa8] sm:$0xff]
  %v2668 = vld [vmem:[%s5 + $0xb0] sm:$0xff]
  %v2669 = vld [vmem:[%s5 + $0xb8] sm:$0xff]
  %v2670 = vld [vmem:[%s5 + $0xc0] sm:$0xff]
  %v2671 = vld [vmem:[%s5 + $0xc8] sm:$0xff]
  %v2672 = vld [vmem:[%s5 + $0xd0] sm:$0xff]
  %v2673 = vld [vmem:[%s5 + $0xd8] sm:$0xff]
  %v2674 = vld [vmem:[%s5 + $0xe0] sm:$0xff]
  %v2675 = vld [vmem:[%s5 + $0xe8] sm:$0xff]
  %v2676 = vld [vmem:[%s5 + $0xf0] sm:$0xff]
  %v2677 = vld [vmem:[%s5 + $0xf8] sm:$0xff]
  %v2678 = vld [vmem:[%s5 + $0x100] sm:$0xff]
  %v2679 = vld [vmem:[%s5 + $0x108] sm:$0xff]
  %v2680 = vld [vmem:[%s5 + $0x110] sm:$0xff]
  %v2681 = vld [vmem:[%s5 + $0x118] sm:$0xff]
  %v2682 = vld [vmem:[%s5 + $0x120] sm:$0xff]
  %v2683 = vld [vmem:[%s5 + $0x128] sm:$0xff]
  %v2684 = vld [vmem:[%s5 + $0x130] sm:$0xff]
  %v2685 = vld [vmem:[%s5 + $0x138] sm:$0xff]
  %v2686 = vld [vmem:[%s5 + $0x140] sm:$0xff]
  %v2687 = vld [vmem:[%s5 + $0x148] sm:$0xff]
  %v2688 = vld [vmem:[%s5 + $0x150] sm:$0xff]
  %v2689 = vld [vmem:[%s5 + $0x158] sm:$0xff]
  %v2690 = vld [vmem:[%s5 + $0x160] sm:$0xff]
  %v2691 = vld [vmem:[%s5 + $0x168] sm:$0xff]
  %v2692 = vld [vmem:[%s5 + $0x170] sm:$0xff]
  %v2693 = vld [vmem:[%s5 + $0x178] sm:$0xff]
  %v2694 = vld [vmem:[%s5 + $0x180] sm:$0xff]
  %v2695 = vld [vmem:[%s5 + $0x188] sm:$0xff]
  %v2696 = vld [vmem:[%s5 + $0x190] sm:$0xff]
  %v2697 = vld [vmem:[%s5 + $0x198] sm:$0xff]
  %v2698 = vld [vmem:[%s5 + $0x1a0] sm:$0xff]
  %v2699 = vld [vmem:[%s5 + $0x1a8] sm:$0xff]
  %v2700 = vld [vmem:[%s5 + $0x1b0] sm:$0xff]
  %v2701 = vld [vmem:[%s5 + $0x1b8] sm:$0xff]
  %v2702 = vld [vmem:[%s5 + $0x1c0] sm:$0xff]
  %v2703 = vld [vmem:[%s5 + $0x1c8] sm:$0xff]
  %v2704 = vld [vmem:[%s5 + $0x1d0] sm:$0xff]
  %v2705 = vld [vmem:[%s5 + $0x1d8] sm:$0xff]
  %v2706 = vld [vmem:[%s5 + $0x1e0] sm:$0xff]
  %v2707 = vld [vmem:[%s5 + $0x1e8] sm:$0xff]
  %v2708 = vld [vmem:[%s5 + $0x1f0] sm:$0xff]
  %v2709 = vld [vmem:[%s5 + $0x1f8] sm:$0xff]
  %v2710 = vld [vmem:[%s5 + $0x200] sm:$0xff]
  %v2711 = vld [vmem:[%s5 + $0x208] sm:$0xff]
  %v2712 = vld [vmem:[%s5 + $0x210] sm:$0xff]
  %v2713 = vld [vmem:[%s5 + $0x218] sm:$0xff]
  %v2714 = vld [vmem:[%s5 + $0x220] sm:$0xff]
  %v2715 = vld [vmem:[%s5 + $0x228] sm:$0xff]
  %v2716 = vld [vmem:[%s5 + $0x230] sm:$0xff]
  %v2717 = vld [vmem:[%s5 + $0x238] sm:$0xff]
  %v2718 = vld [vmem:[%s5 + $0x240] sm:$0xff]
  %v2719 = vld [vmem:[%s5 + $0x248] sm:$0xff]
  %v2720 = vld [vmem:[%s5 + $0x250] sm:$0xff]
  %v2721 = vld [vmem:[%s5 + $0x258] sm:$0xff]
  %v2722 = vld [vmem:[%s5 + $0x260] sm:$0xff]
  %v2723 = vld [vmem:[%s5 + $0x268] sm:$0xff]
  %v2724 = vld [vmem:[%s5 + $0x270] sm:$0xff]
  %v2725 = vld [vmem:[%s5 + $0x278] sm:$0xff]
  %v2726 = vld [vmem:[%s5 + $0x280] sm:$0xff]
  %v2727 = vld [vmem:[%s5 + $0x288] sm:$0xff]
  %v2728 = vld [vmem:[%s5 + $0x290] sm:$0xff]
  %v2729 = vld [vmem:[%s5 + $0x298] sm:$0xff]
  %v2730 = vld [vmem:[%s5 + $0x2a0] sm:$0xff]
  %v2731 = vld [vmem:[%s5 + $0x2a8] sm:$0xff]
  %v2732 = vld [vmem:[%s5 + $0x2b0] sm:$0xff]
  %v2733 = vld [vmem:[%s5 + $0x2b8] sm:$0xff]
  %v2734 = vld [vmem:[%s5 + $0x2c0] sm:$0xff]
  %v2735 = vld [vmem:[%s5 + $0x2c8] sm:$0xff]
  %v2736 = vld [vmem:[%s5 + $0x2d0] sm:$0xff]
  %v2737 = vld [vmem:[%s5 + $0x2d8] sm:$0xff]
  %v2738 = vld [vmem:[%s5 + $0x2e0] sm:$0xff]
  %v2739 = vld [vmem:[%s5 + $0x2e8] sm:$0xff]
  %v2740 = vld [vmem:[%s5 + $0x2f0] sm:$0xff]
  %v2741 = vld [vmem:[%s5 + $0x2f8] sm:$0xff]
  %v2742 = vld [vmem:[%s5 + $0x300] sm:$0xff]
  %v2743 = vld [vmem:[%s5 + $0x308] sm:$0xff]
  %v2744 = vld [vmem:[%s5 + $0x310] sm:$0xff]
  %v2745 = vld [vmem:[%s5 + $0x318] sm:$0xff]
  %v2746 = vld [vmem:[%s5 + $0x320] sm:$0xff]
  %v2747 = vld [vmem:[%s5 + $0x328] sm:$0xff]
  %v2748 = vld [vmem:[%s5 + $0x330] sm:$0xff]
  %v2749 = vld [vmem:[%s5 + $0x338] sm:$0xff]
  %v2750 = vld [vmem:[%s5 + $0x340] sm:$0xff]
  %v2751 = vld [vmem:[%s5 + $0x348] sm:$0xff]
  %v2752 = vld [vmem:[%s5 + $0x350] sm:$0xff]
  %v2753 = vld [vmem:[%s5 + $0x358] sm:$0xff]
  %v2754 = vld [vmem:[%s5 + $0x360] sm:$0xff]
  %v2755 = vld [vmem:[%s5 + $0x368] sm:$0xff]
  %v2756 = vld [vmem:[%s5 + $0x370] sm:$0xff]
  %v2757 = vld [vmem:[%s5 + $0x378] sm:$0xff]
  %v2758 = vld [vmem:[%s5 + $0x380] sm:$0xff]
  %v2759 = vld [vmem:[%s5 + $0x388] sm:$0xff]
  %v2760 = vld [vmem:[%s5 + $0x390] sm:$0xff]
  %v2761 = vld [vmem:[%s5 + $0x398] sm:$0xff]
  %v2762 = vld [vmem:[%s5 + $0x3a0] sm:$0xff]
  %v2763 = vld [vmem:[%s5 + $0x3a8] sm:$0xff]
  %v2764 = vld [vmem:[%s5 + $0x3b0] sm:$0xff]
  %v2765 = vld [vmem:[%s5 + $0x3b8] sm:$0xff]
  %v2766 = vld [vmem:[%s5 + $0x3c0] sm:$0xff]
  %v2767 = vld [vmem:[%s5 + $0x3c8] sm:$0xff]
  %v2768 = vld [vmem:[%s5 + $0x3d0] sm:$0xff]
  %v2769 = vld [vmem:[%s5 + $0x3d8] sm:$0xff]
  %v2770 = vld [vmem:[%s5 + $0x3e0] sm:$0xff]
  %v2771 = vld [vmem:[%s5 + $0x3e8] sm:$0xff]
  %v2772 = vld [vmem:[%s5 + $0x3f0] sm:$0xff]
  %v2773 = vld [vmem:[%s5 + $0x3f8] sm:$0xff]
  %v2774 = vld [vmem:[%s5 + $0x400] sm:$0xff]
  %v2775 = vld [vmem:[%s5 + $0x408] sm:$0xff]
  %v2776 = vld [vmem:[%s5 + $0x410] sm:$0xff]
  %v2777 = vld [vmem:[%s5 + $0x418] sm:$0xff]
  %v2778 = vld [vmem:[%s5 + $0x420] sm:$0xff]
  %v2779 = vld [vmem:[%s5 + $0x428] sm:$0xff]
  %v2780 = vld [vmem:[%s5 + $0x430] sm:$0xff]
  %v2781 = vld [vmem:[%s5 + $0x438] sm:$0xff]
  %v2782 = vld [vmem:[%s5 + $0x440] sm:$0xff]
  %v2783 = vld [vmem:[%s5 + $0x448] sm:$0xff]
  %v2784 = vld [vmem:[%s5 + $0x450] sm:$0xff]
  %v2785 = vld [vmem:[%s5 + $0x458] sm:$0xff]
  %v2786 = vld [vmem:[%s5 + $0x460] sm:$0xff]
  %v2787 = vld [vmem:[%s5 + $0x468] sm:$0xff]
  %v2788 = vld [vmem:[%s5 + $0x470] sm:$0xff]
  %v2789 = vld [vmem:[%s5 + $0x478] sm:$0xff]
  %v2790 = vld [vmem:[%s5 + $0x480] sm:$0xff]
  %v2791 = vld [vmem:[%s5 + $0x488] sm:$0xff]
  %v2792 = vld [vmem:[%s5 + $0x490] sm:$0xff]
  %v2793 = vld [vmem:[%s5 + $0x498] sm:$0xff]
  %v2794 = vld [vmem:[%s5 + $0x4a0] sm:$0xff]
  %v2795 = vld [vmem:[%s5 + $0x4a8] sm:$0xff]
  %v2796 = vld [vmem:[%s5 + $0x4b0] sm:$0xff]
  %v2797 = vld [vmem:[%s5 + $0x4b8] sm:$0xff]
  %v2798 = vld [vmem:[%s5 + $0x4c0] sm:$0xff]
  %v2799 = vld [vmem:[%s5 + $0x4c8] sm:$0xff]
  %v2800 = vld [vmem:[%s5 + $0x4d0] sm:$0xff]
  %v2801 = vld [vmem:[%s5 + $0x4d8] sm:$0xff]
  %v2802 = vld [vmem:[%s5 + $0x4e0] sm:$0xff]
  %v2803 = vld [vmem:[%s5 + $0x4e8] sm:$0xff]
  %v2804 = vld [vmem:[%s5 + $0x4f0] sm:$0xff]
  %v2805 = vld [vmem:[%s5 + $0x4f8] sm:$0xff]
  %v2806 = vld [vmem:[%s5 + $0x500] sm:$0xff]
  %v2807 = vld [vmem:[%s5 + $0x508] sm:$0xff]
  %v2808 = vld [vmem:[%s5 + $0x510] sm:$0xff]
  %v2809 = vld [vmem:[%s5 + $0x518] sm:$0xff]
  %v2810 = vld [vmem:[%s5 + $0x520] sm:$0xff]
  %v2811 = vld [vmem:[%s5 + $0x528] sm:$0xff]
  %v2812 = vld [vmem:[%s5 + $0x530] sm:$0xff]
  %v2813 = vld [vmem:[%s5 + $0x538] sm:$0xff]
  %v2814 = vld [vmem:[%s5 + $0x540] sm:$0xff]
  %v2815 = vld [vmem:[%s5 + $0x548] sm:$0xff]
  %v2816 = vld [vmem:[%s5 + $0x550] sm:$0xff]
  %v2817 = vld [vmem:[%s5 + $0x558] sm:$0xff]
  %v2818 = vld [vmem:[%s5 + $0x560] sm:$0xff]
  %v2819 = vld [vmem:[%s5 + $0x568] sm:$0xff]
  %v2820 = vld [vmem:[%s5 + $0x570] sm:$0xff]
  %v2821 = vld [vmem:[%s5 + $0x578] sm:$0xff]
  %v2822 = vld [vmem:[%s5 + $0x580] sm:$0xff]
  %v2823 = vld [vmem:[%s5 + $0x588] sm:$0xff]
  %v2824 = vld [vmem:[%s5 + $0x590] sm:$0xff]
  %v2825 = vld [vmem:[%s5 + $0x598] sm:$0xff]
  %v2826 = vld [vmem:[%s5 + $0x5a0] sm:$0xff]
  %v2827 = vld [vmem:[%s5 + $0x5a8] sm:$0xff]
  %v2828 = vld [vmem:[%s5 + $0x5b0] sm:$0xff]
  %v2829 = vld [vmem:[%s5 + $0x5b8] sm:$0xff]
  %v2830 = vld [vmem:[%s5 + $0x5c0] sm:$0xff]
  %v2831 = vld [vmem:[%s5 + $0x5c8] sm:$0xff]
  %v2832 = vld [vmem:[%s5 + $0x5d0] sm:$0xff]
  %v2833 = vld [vmem:[%s5 + $0x5d8] sm:$0xff]
  %v2834 = vld [vmem:[%s5 + $0x5e0] sm:$0xff]
  %v2835 = vld [vmem:[%s5 + $0x5e8] sm:$0xff]
  %v2836 = vld [vmem:[%s5 + $0x5f0] sm:$0xff]
  %v2837 = vld [vmem:[%s5 + $0x5f8] sm:$0xff]
  %v2838 = vld [vmem:[%s5 + $0x600] sm:$0xff]
  %v2839 = vld [vmem:[%s5 + $0x608] sm:$0xff]
  %v2840 = vld [vmem:[%s5 + $0x610] sm:$0xff]
  %v2841 = vld [vmem:[%s5 + $0x618] sm:$0xff]
  %v2842 = vld [vmem:[%s5 + $0x620] sm:$0xff]
  %v2843 = vld [vmem:[%s5 + $0x628] sm:$0xff]
  %v2844 = vld [vmem:[%s5 + $0x630] sm:$0xff]
  %v2845 = vld [vmem:[%s5 + $0x638] sm:$0xff]
  %v2846 = vld [vmem:[%s5 + $0x640] sm:$0xff]
  %v2847 = vld [vmem:[%s5 + $0x648] sm:$0xff]
  %v2848 = vld [vmem:[%s5 + $0x650] sm:$0xff]
  %v2849 = vld [vmem:[%s5 + $0x658] sm:$0xff]
  %v2850 = vld [vmem:[%s5 + $0x660] sm:$0xff]
  %v2851 = vld [vmem:[%s5 + $0x668] sm:$0xff]
  %v2852 = vld [vmem:[%s5 + $0x670] sm:$0xff]
  %v2853 = vld [vmem:[%s5 + $0x678] sm:$0xff]
  %v2854 = vld [vmem:[%s5 + $0x680] sm:$0xff]
  %v2855 = vld [vmem:[%s5 + $0x688] sm:$0xff]
  %v2856 = vld [vmem:[%s5 + $0x690] sm:$0xff]
  %v2857 = vld [vmem:[%s5 + $0x698] sm:$0xff]
  %v2858 = vld [vmem:[%s5 + $0x6a0] sm:$0xff]
  %v2859 = vld [vmem:[%s5 + $0x6a8] sm:$0xff]
  %v2860 = vld [vmem:[%s5 + $0x6b0] sm:$0xff]
  %v2861 = vld [vmem:[%s5 + $0x6b8] sm:$0xff]
  %v2862 = vld [vmem:[%s5 + $0x6c0] sm:$0xff]
  %v2863 = vld [vmem:[%s5 + $0x6c8] sm:$0xff]
  %v2864 = vld [vmem:[%s5 + $0x6d0] sm:$0xff]
  %v2865 = vld [vmem:[%s5 + $0x6d8] sm:$0xff]
  %v2866 = vld [vmem:[%s5 + $0x6e0] sm:$0xff]
  %v2867 = vld [vmem:[%s5 + $0x6e8] sm:$0xff]
  %v2868 = vld [vmem:[%s5 + $0x6f0] sm:$0xff]
  %v2869 = vld [vmem:[%s5 + $0x6f8] sm:$0xff]
  %v2870 = vld [vmem:[%s5 + $0x700] sm:$0xff]
  %v2871 = vld [vmem:[%s5 + $0x708] sm:$0xff]
  %v2872 = vld [vmem:[%s5 + $0x710] sm:$0xff]
  %v2873 = vld [vmem:[%s5 + $0x718] sm:$0xff]
  %v2874 = vld [vmem:[%s5 + $0x720] sm:$0xff]
  %v2875 = vld [vmem:[%s5 + $0x728] sm:$0xff]
  %v2876 = vld [vmem:[%s5 + $0x730] sm:$0xff]
  %v2877 = vld [vmem:[%s5 + $0x738] sm:$0xff]
  %v2878 = vld [vmem:[%s5 + $0x740] sm:$0xff]
  %v2879 = vld [vmem:[%s5 + $0x748] sm:$0xff]
  %v2880 = vld [vmem:[%s5 + $0x750] sm:$0xff]
  %v2881 = vld [vmem:[%s5 + $0x758] sm:$0xff]
  %v2882 = vld [vmem:[%s5 + $0x760] sm:$0xff]
  %v2883 = vld [vmem:[%s5 + $0x768] sm:$0xff]
  %v2884 = vld [vmem:[%s5 + $0x770] sm:$0xff]
  %v2885 = vld [vmem:[%s5 + $0x778] sm:$0xff]
  %v2886 = vld [vmem:[%s5 + $0x780] sm:$0xff]
  %v2887 = vld [vmem:[%s5 + $0x788] sm:$0xff]
  %v2888 = vld [vmem:[%s5 + $0x790] sm:$0xff]
  %v2889 = vld [vmem:[%s5 + $0x798] sm:$0xff]
  %v2890 = vld [vmem:[%s5 + $0x7a0] sm:$0xff]
  %v2891 = vld [vmem:[%s5 + $0x7a8] sm:$0xff]
  %v2892 = vld [vmem:[%s5 + $0x7b0] sm:$0xff]
  %v2893 = vld [vmem:[%s5 + $0x7b8] sm:$0xff]
  %v2894 = vld [vmem:[%s5 + $0x7c0] sm:$0xff]
  %v2895 = vld [vmem:[%s5 + $0x7c8] sm:$0xff]
  %v2896 = vld [vmem:[%s5 + $0x7d0] sm:$0xff]
  %v2897 = vld [vmem:[%s5 + $0x7d8] sm:$0xff]
  %v2898 = vld [vmem:[%s5 + $0x7e0] sm:$0xff]
  %v2899 = vld [vmem:[%s5 + $0x7e8] sm:$0xff]
  %v2900 = vld [vmem:[%s5 + $0x7f0] sm:$0xff]
  %v2901 = vld [vmem:[%s5 + $0x7f8] sm:$0xff]
  %v2902 = vld [vmem:[%s5 + $0x800] sm:$0xff]
  %v2903 = vld [vmem:[%s5 + $0x808] sm:$0xff]
  %v2904 = vld [vmem:[%s5 + $0x810] sm:$0xff]
  %v2905 = vld [vmem:[%s5 + $0x818] sm:$0xff]
  %v2906 = vld [vmem:[%s5 + $0x820] sm:$0xff]
  %v2907 = vld [vmem:[%s5 + $0x828] sm:$0xff]
  %v2908 = vld [vmem:[%s5 + $0x830] sm:$0xff]
  %v2909 = vld [vmem:[%s5 + $0x838] sm:$0xff]
  %v2910 = vld [vmem:[%s5 + $0x840] sm:$0xff]
  %v2911 = vld [vmem:[%s5 + $0x848] sm:$0xff]
  %v2912 = vld [vmem:[%s5 + $0x850] sm:$0xff]
  %v2913 = vld [vmem:[%s5 + $0x858] sm:$0xff]
  %v2914 = vld [vmem:[%s5 + $0x860] sm:$0xff]
  %v2915 = vld [vmem:[%s5 + $0x868] sm:$0xff]
  %v2916 = vld [vmem:[%s5 + $0x870] sm:$0xff]
  %v2917 = vld [vmem:[%s5 + $0x878] sm:$0xff]
  %v2918 = vld [vmem:[%s5 + $0x880] sm:$0xff]
  %v2919 = vld [vmem:[%s5 + $0x888] sm:$0xff]
  %v2920 = vld [vmem:[%s5 + $0x890] sm:$0xff]
  %v2921 = vld [vmem:[%s5 + $0x898] sm:$0xff]
  %v2922 = vld [vmem:[%s5 + $0x8a0] sm:$0xff]
  %v2923 = vld [vmem:[%s5 + $0x8a8] sm:$0xff]
  %v2924 = vld [vmem:[%s5 + $0x8b0] sm:$0xff]
  %v2925 = vld [vmem:[%s5 + $0x8b8] sm:$0xff]
  %v2926 = vld [vmem:[%s5 + $0x8c0] sm:$0xff]
  %v2927 = vld [vmem:[%s5 + $0x8c8] sm:$0xff]
  %v2928 = vld [vmem:[%s5 + $0x8d0] sm:$0xff]
  %v2929 = vld [vmem:[%s5 + $0x8d8] sm:$0xff]
  %v2930 = vld [vmem:[%s5 + $0x8e0] sm:$0xff]
  %v2931 = vld [vmem:[%s5 + $0x8e8] sm:$0xff]
  %v2932 = vld [vmem:[%s5 + $0x8f0] sm:$0xff]
  %v2933 = vld [vmem:[%s5 + $0x8f8] sm:$0xff]
  %v2934 = vld [vmem:[%s5 + $0x900] sm:$0xff]
  %v2935 = vld [vmem:[%s5 + $0x908] sm:$0xff]
  %v2936 = vld [vmem:[%s5 + $0x910] sm:$0xff]
  %v2937 = vld [vmem:[%s5 + $0x918] sm:$0xff]
  %v2938 = vld [vmem:[%s5 + $0x920] sm:$0xff]
  %v2939 = vld [vmem:[%s5 + $0x928] sm:$0xff]
  %v2940 = vld [vmem:[%s5 + $0x930] sm:$0xff]
  %v2941 = vld [vmem:[%s5 + $0x938] sm:$0xff]
  %v2942 = vld [vmem:[%s5 + $0x940] sm:$0xff]
  %v2943 = vld [vmem:[%s5 + $0x948] sm:$0xff]
  %v2944 = vld [vmem:[%s5 + $0x950] sm:$0xff]
  %v2945 = vld [vmem:[%s5 + $0x958] sm:$0xff]
  %v2946 = vld [vmem:[%s5 + $0x960] sm:$0xff]
  %v2947 = vld [vmem:[%s5 + $0x968] sm:$0xff]
  %v2948 = vld [vmem:[%s5 + $0x970] sm:$0xff]
  %v2949 = vld [vmem:[%s5 + $0x978] sm:$0xff]
  %v2950 = vld [vmem:[%s5 + $0x980] sm:$0xff]
  %v2951 = vld [vmem:[%s5 + $0x988] sm:$0xff]
  %v2952 = vld [vmem:[%s5 + $0x990] sm:$0xff]
  %v2953 = vld [vmem:[%s5 + $0x998] sm:$0xff]
  %v2954 = vld [vmem:[%s5 + $0x9a0] sm:$0xff]
  %v2955 = vld [vmem:[%s5 + $0x9a8] sm:$0xff]
  %v2956 = vld [vmem:[%s5 + $0x9b0] sm:$0xff]
  %v2957 = vld [vmem:[%s5 + $0x9b8] sm:$0xff]
  %v2958 = vld [vmem:[%s5 + $0x9c0] sm:$0xff]
  %v2959 = vld [vmem:[%s5 + $0x9c8] sm:$0xff]
  %v2960 = vld [vmem:[%s5 + $0x9d0] sm:$0xff]
  %v2961 = vld [vmem:[%s5 + $0x9d8] sm:$0xff]
  %v2962 = vld [vmem:[%s5 + $0x9e0] sm:$0xff]
  %v2963 = vld [vmem:[%s5 + $0x9e8] sm:$0xff]
  %v2964 = vld [vmem:[%s5 + $0x9f0] sm:$0xff]
  %v2965 = vld [vmem:[%s5 + $0x9f8] sm:$0xff]
  %v2966 = vld [vmem:[%s5 + $0xa00] sm:$0xff]
  %v2967 = vld [vmem:[%s5 + $0xa08] sm:$0x7]
  %v2968 = vld [vmem:[%s5 + $0xa10] sm:$0x7]
  %v2969 = vld [vmem:[%s5 + $0xa18] sm:$0x7]
  %vm2970 = vcmask 744448
  %v2972 = vsel %vm2970, %v2638, 0
  %v2975 = vsel %vm2970, %v2645, 0
  %vm2977 = vcmask 1042432
  %v2979 = vsel %vm2977, %v2967, 0
  %v2982 = vsel %vm2977, %v2968, 0
  %v2985 = vsel %vm2977, %v2969, 0
  %2987 = vmatprep.subr.mxu0 %v2647
  %2988 = vmatpush1.msra.mxu0 %v2646
  %2989 = vmatprep.subr.mxu0 %v2650
  %2990 = vmatpush1.msra.mxu0 %v2649
  %2991 = vmatprep.subr.mxu0 %v2653
  %2992 = vmatpush1.msra.mxu0 %v2652
  %2993 = vmatprep.subr.mxu0 %v2656
  %2994 = vmatpush1.msra.mxu0 %v2655
  %2995 = vmatprep.subr.mxu0 %v2659
  %2996 = vmatpush1.msra.mxu0 %v2658
  %2997 = vmatprep.subr.mxu0 %v2662
  %2998 = vmatpush1.msra.mxu0 %v2661
  %2999 = vmatprep.subr.mxu0 %v2665
  %3000 = vmatpush1.msra.mxu0 %v2664
  %3001 = vmatprep.subr.mxu0 %v2668
  %3002 = vmatpush1.msra.mxu0 %v2667
  %3003 = vmatprep.subr.mxu0 %v2671
  %3004 = vmatpush1.msra.mxu0 %v2670
  %3005 = vmatprep.subr.mxu0 %v2674
  %3006 = vmatpush1.msra.mxu0 %v2673
  %3007 = vmatprep.subr.mxu0 %v2677
  %3008 = vmatpush1.msra.mxu0 %v2676
  %3009 = vmatprep.subr.mxu0 %v2680
  %3010 = vmatpush1.msra.mxu0 %v2679
  %3011 = vmatprep.subr.mxu0 %v2683
  %3012 = vmatpush1.msra.mxu0 %v2682
  %3013 = vmatprep.subr.mxu0 %v2686
  %3014 = vmatpush1.msra.mxu0 %v2685
  %3015 = vmatprep.subr.mxu0 %v2689
  %3016 = vmatpush1.msra.mxu0 %v2688
  %3017 = vmatprep.subr.mxu0 %v2692
  %3018 = vmatpush1.msra.mxu0 %v2691
  %3019 = vmatprep.subr.mxu0 %v2695
  %3020 = vmatpush1.msra.mxu0 %v2694
  %3021 = vmatprep.subr.mxu0 %v2698
  %3022 = vmatpush1.msra.mxu0 %v2697
  %3023 = vmatprep.subr.mxu0 %v2701
  %3024 = vmatpush1.msra.mxu0 %v2700
  %3025 = vmatprep.subr.mxu0 %v2704
  %3026 = vmatpush1.msra.mxu0 %v2703
  %3027 = vmatprep.subr.mxu0 %v2707
  %3028 = vmatpush1.msra.mxu0 %v2706
  %3029 = vmatprep.subr.mxu0 %v2710
  %3030 = vmatpush1.msra.mxu0 %v2709
  %3031 = vmatprep.subr.mxu0 %v2713
  %3032 = vmatpush1.msra.mxu0 %v2712
  %3033 = vmatprep.subr.mxu0 %v2716
  %3034 = vmatpush1.msra.mxu0 %v2715
  %3035 = vmatprep.subr.mxu0 %v2719
  %3036 = vmatpush1.msra.mxu0 %v2718
  %3037 = vmatprep.subr.mxu0 %v2722
  %3038 = vmatpush1.msra.mxu0 %v2721
  %3039 = vmatprep.subr.mxu0 %v2725
  %3040 = vmatpush1.msra.mxu0 %v2724
  %3041 = vmatprep.subr.mxu0 %v2728
  %3042 = vmatpush1.msra.mxu0 %v2727
  %3043 = vmatprep.subr.mxu0 %v2731
  %3044 = vmatpush1.msra.mxu0 %v2730
  %3045 = vmatprep.subr.mxu0 %v2734
  %3046 = vmatpush1.msra.mxu0 %v2733
  %3047 = vmatprep.subr.mxu0 %v2737
  %3048 = vmatpush1.msra.mxu0 %v2736
  %3049 = vmatprep.subr.mxu0 %v2740
  %3050 = vmatpush1.msra.mxu0 %v2739
  %3051 = vmatprep.mubr.f32.mxu0 %v2633
  %3052 = vmatmul.mubr.f32.gmra.mrb[0].mxu0 %v2632
  %v3053 = vpop.f32.mrb[0].mxu0
  %v3054 = vadd.f32 0.0, %v3053
  %v3055 = vpop.f32.mrb[0].mxu0
  %v3056 = vadd.f32 0.0, %v3055
  %3057 = vmatprep.mubr.f32.mxu0 %v2640
  %3058 = vmatmul.mubr.f32.gmra.mrb[0].mxu0 %v2639
  %v3059 = vpop.f32.mrb[0].mxu0
  %v3060 = vadd.f32 0.0, %v3059
  %v3061 = vpop.f32.mrb[0].mxu0
  %v3062 = vadd.f32 0.0, %v3061
  %3063 = vdwg.mxu0
  %3064 = vmatprep.subr.mxu0 %v2743
  %3065 = vmatpush1.msra.mxu0 %v2742
  %3066 = vmatprep.subr.mxu0 %v2746
  %3067 = vmatpush1.msra.mxu0 %v2745
  %3068 = vmatprep.subr.mxu0 %v2749
  %3069 = vmatpush1.msra.mxu0 %v2748
  %3070 = vmatprep.subr.mxu0 %v2752
  %3071 = vmatpush1.msra.mxu0 %v2751
  %3072 = vmatprep.subr.mxu0 %v2755
  %3073 = vmatpush1.msra.mxu0 %v2754
  %3074 = vmatprep.subr.mxu0 %v2758
  %3075 = vmatpush1.msra.mxu0 %v2757
  %3076 = vmatprep.subr.mxu0 %v2761
  %3077 = vmatpush1.msra.mxu0 %v2760
  %3078 = vmatprep.subr.mxu0 %v2764
  %3079 = vmatpush1.msra.mxu0 %v2763
  %3080 = vmatprep.subr.mxu0 %v2767
  %3081 = vmatpush1.msra.mxu0 %v2766
  %3082 = vmatprep.subr.mxu0 %v2770
  %3083 = vmatpush1.msra.mxu0 %v2769
  %3084 = vmatprep.subr.mxu0 %v2773
  %3085 = vmatpush1.msra.mxu0 %v2772
  %3086 = vmatprep.subr.mxu0 %v2776
  %3087 = vmatpush1.msra.mxu0 %v2775
  %3088 = vmatprep.subr.mxu0 %v2779
  %3089 = vmatpush1.msra.mxu0 %v2778
  %3090 = vmatprep.subr.mxu0 %v2782
  %3091 = vmatpush1.msra.mxu0 %v2781
  %3092 = vmatprep.subr.mxu0 %v2785
  %3093 = vmatpush1.msra.mxu0 %v2784
  %3094 = vmatprep.subr.mxu0 %v2788
  %3095 = vmatpush1.msra.mxu0 %v2787
  %3096 = vmatprep.subr.mxu0 %v2791
  %3097 = vmatpush1.msra.mxu0 %v2790
  %3098 = vmatprep.subr.mxu0 %v2794
  %3099 = vmatpush1.msra.mxu0 %v2793
  %3100 = vmatprep.subr.mxu0 %v2797
  %3101 = vmatpush1.msra.mxu0 %v2796
  %3102 = vmatprep.subr.mxu0 %v2800
  %3103 = vmatpush1.msra.mxu0 %v2799
  %3104 = vmatprep.subr.mxu0 %v2803
  %3105 = vmatpush1.msra.mxu0 %v2802
  %3106 = vmatprep.subr.mxu0 %v2806
  %3107 = vmatpush1.msra.mxu0 %v2805
  %3108 = vmatprep.subr.mxu0 %v2809
  %3109 = vmatpush1.msra.mxu0 %v2808
  %3110 = vmatprep.subr.mxu0 %v2812
  %3111 = vmatpush1.msra.mxu0 %v2811
  %3112 = vmatprep.subr.mxu0 %v2815
  %3113 = vmatpush1.msra.mxu0 %v2814
  %3114 = vmatprep.subr.mxu0 %v2818
  %3115 = vmatpush1.msra.mxu0 %v2817
  %3116 = vmatprep.subr.mxu0 %v2821
  %3117 = vmatpush1.msra.mxu0 %v2820
  %3118 = vmatprep.subr.mxu0 %v2824
  %3119 = vmatpush1.msra.mxu0 %v2823
  %3120 = vmatprep.subr.mxu0 %v2827
  %3121 = vmatpush1.msra.mxu0 %v2826
  %3122 = vmatprep.subr.mxu0 %v2830
  %3123 = vmatpush1.msra.mxu0 %v2829
  %3124 = vmatprep.subr.mxu0 %v2833
  %3125 = vmatpush1.msra.mxu0 %v2832
  %3126 = vmatprep.subr.mxu0 %v2836
  %3127 = vmatpush1.msra.mxu0 %v2835
  %3128 = vmatprep.mubr.f32.mxu0 %v2635
  %3129 = vmatmul.mubr.f32.gmra.mrb[0].mxu0 %v2634
  %v3130 = vpop.f32.mrb[0].mxu0
  %v3131 = vadd.f32 %v3054, %v3130
  %v3132 = vpop.f32.mrb[0].mxu0
  %v3133 = vadd.f32 %v3056, %v3132
  %3134 = vmatprep.mubr.f32.mxu0 %v2642
  %3135 = vmatmul.mubr.f32.gmra.mrb[0].mxu0 %v2641
  %v3136 = vpop.f32.mrb[0].mxu0
  %v3137 = vadd.f32 %v3060, %v3136
  %v3138 = vpop.f32.mrb[0].mxu0
  %v3139 = vadd.f32 %v3062, %v3138
  %3140 = vdwg.mxu0
  %3141 = vmatprep.subr.mxu0 %v2839
  %3142 = vmatpush1.msra.mxu0 %v2838
  %3143 = vmatprep.subr.mxu0 %v2842
  %3144 = vmatpush1.msra.mxu0 %v2841
  %3145 = vmatprep.subr.mxu0 %v2845
  %3146 = vmatpush1.msra.mxu0 %v2844
  %3147 = vmatprep.subr.mxu0 %v2848
  %3148 = vmatpush1.msra.mxu0 %v2847
  %3149 = vmatprep.subr.mxu0 %v2851
  %3150 = vmatpush1.msra.mxu0 %v2850
  %3151 = vmatprep.subr.mxu0 %v2854
  %3152 = vmatpush1.msra.mxu0 %v2853
  %3153 = vmatprep.subr.mxu0 %v2857
  %3154 = vmatpush1.msra.mxu0 %v2856
  %3155 = vmatprep.subr.mxu0 %v2860
  %3156 = vmatpush1.msra.mxu0 %v2859
  %3157 = vmatprep.subr.mxu0 %v2863
  %3158 = vmatpush1.msra.mxu0 %v2862
  %3159 = vmatprep.subr.mxu0 %v2866
  %3160 = vmatpush1.msra.mxu0 %v2865
  %3161 = vmatprep.subr.mxu0 %v2869
  %3162 = vmatpush1.msra.mxu0 %v2868
  %3163 = vmatprep.subr.mxu0 %v2872
  %3164 = vmatpush1.msra.mxu0 %v2871
  %3165 = vmatprep.subr.mxu0 %v2875
  %3166 = vmatpush1.msra.mxu0 %v2874
  %3167 = vmatprep.subr.mxu0 %v2878
  %3168 = vmatpush1.msra.mxu0 %v2877
  %3169 = vmatprep.subr.mxu0 %v2881
  %3170 = vmatpush1.msra.mxu0 %v2880
  %3171 = vmatprep.subr.mxu0 %v2884
  %3172 = vmatpush1.msra.mxu0 %v2883
  %3173 = vmatprep.subr.mxu0 %v2887
  %3174 = vmatpush1.msra.mxu0 %v2886
  %3175 = vmatprep.subr.mxu0 %v2890
  %3176 = vmatpush1.msra.mxu0 %v2889
  %3177 = vmatprep.subr.mxu0 %v2893
  %3178 = vmatpush1.msra.mxu0 %v2892
  %3179 = vmatprep.subr.mxu0 %v2896
  %3180 = vmatpush1.msra.mxu0 %v2895
  %3181 = vmatprep.subr.mxu0 %v2899
  %3182 = vmatpush1.msra.mxu0 %v2898
  %3183 = vmatprep.subr.mxu0 %v2902
  %3184 = vmatpush1.msra.mxu0 %v2901
  %3185 = vmatprep.subr.mxu0 %v2905
  %3186 = vmatpush1.msra.mxu0 %v2904
  %3187 = vmatprep.subr.mxu0 %v2908
  %3188 = vmatpush1.msra.mxu0 %v2907
  %3189 = vmatprep.subr.mxu0 %v2911
  %3190 = vmatpush1.msra.mxu0 %v2910
  %3191 = vmatprep.subr.mxu0 %v2914
  %3192 = vmatpush1.msra.mxu0 %v2913
  %3193 = vmatprep.subr.mxu0 %v2917
  %3194 = vmatpush1.msra.mxu0 %v2916
  %3195 = vmatprep.subr.mxu0 %v2920
  %3196 = vmatpush1.msra.mxu0 %v2919
  %3197 = vmatprep.subr.mxu0 %v2923
  %3198 = vmatpush1.msra.mxu0 %v2922
  %3199 = vmatprep.subr.mxu0 %v2926
  %3200 = vmatpush1.msra.mxu0 %v2925
  %3201 = vmatprep.subr.mxu0 %v2929
  %3202 = vmatpush1.msra.mxu0 %v2928
  %3203 = vmatprep.subr.mxu0 %v2932
  %3204 = vmatpush1.msra.mxu0 %v2931
  %3205 = vmatprep.mubr.f32.mxu0 %v2637
  %3206 = vmatmul.mubr.f32.gmra.mrb[0].mxu0 %v2636
  %v3207 = vpop.f32.mrb[0].mxu0
  %v3208 = vadd.f32 %v3131, %v3207
  %v3209 = vpop.f32.mrb[0].mxu0
  %v3210 = vadd.f32 %v3133, %v3209
  %3211 = vmatprep.mubr.f32.mxu0 %v2644
  %3212 = vmatmul.mubr.f32.gmra.mrb[0].mxu0 %v2643
  %v3213 = vpop.f32.mrb[0].mxu0
  %v3214 = vadd.f32 %v3137, %v3213
  %v3215 = vpop.f32.mrb[0].mxu0
  %v3216 = vadd.f32 %v3139, %v3215
  %3217 = vdwg.mxu0
  %3218 = vmatprep.subr.mxu0 %v2935
  %3219 = vmatpush1.msra.mxu0 %v2934
  %3220 = vmatprep.subr.mxu0 %v2938
  %3221 = vmatpush1.msra.mxu0 %v2937
  %3222 = vmatprep.subr.mxu0 %v2941
  %3223 = vmatpush1.msra.mxu0 %v2940
  %3224 = vmatprep.subr.mxu0 %v2944
  %3225 = vmatpush1.msra.mxu0 %v2943
  %3226 = vmatprep.subr.mxu0 %v2947
  %3227 = vmatpush1.msra.mxu0 %v2946
  %3228 = vmatprep.subr.mxu0 %v2950
  %3229 = vmatpush1.msra.mxu0 %v2949
  %3230 = vmatprep.subr.mxu0 %v2953
  %3231 = vmatpush1.msra.mxu0 %v2952
  %3232 = vmatprep.subr.mxu0 %v2956
  %3233 = vmatpush1.msra.mxu0 %v2955
  %3234 = vmatprep.subr.mxu0 %v2959
  %3235 = vmatpush1.msra.mxu0 %v2958
  %3236 = vmatprep.subr.mxu0 %v2962
  %3237 = vmatpush1.msra.mxu0 %v2961
  %3238 = vmatprep.subr.mxu0 %v2965
  %3239 = vmatpush1.msra.mxu0 %v2964
  %3240 = vmatprep.subr.mxu0 %v2982
  %3241 = vmatpush1.msra.mxu0 %v2979
  %3242 = vmatprep.subr.mxu0 0.0
  %3243 = vmatpush1.msra.mxu0 0.0
  %3244 = vmatprep.subr.mxu0 0.0
  %3245 = vmatpush1.msra.mxu0 0.0
  %3246 = vmatprep.subr.mxu0 0.0
  %3247 = vmatpush1.msra.mxu0 0.0
  %3248 = vmatprep.subr.mxu0 0.0
  %3249 = vmatpush1.msra.mxu0 0.0
  %3250 = vmatprep.subr.mxu0 0.0
  %3251 = vmatpush1.msra.mxu0 0.0
  %3252 = vmatprep.subr.mxu0 0.0
  %3253 = vmatpush1.msra.mxu0 0.0
  %3254 = vmatprep.subr.mxu0 0.0
  %3255 = vmatpush1.msra.mxu0 0.0
  %3256 = vmatprep.subr.mxu0 0.0
  %3257 = vmatpush1.msra.mxu0 0.0
  %3258 = vmatprep.subr.mxu0 0.0
  %3259 = vmatpush1.msra.mxu0 0.0
  %3260 = vmatprep.subr.mxu0 0.0
  %3261 = vmatpush1.msra.mxu0 0.0
  %3262 = vmatprep.subr.mxu0 0.0
  %3263 = vmatpush1.msra.mxu0 0.0
  %3264 = vmatprep.subr.mxu0 0.0
  %3265 = vmatpush1.msra.mxu0 0.0
  %3266 = vmatprep.subr.mxu0 0.0
  %3267 = vmatpush1.msra.mxu0 0.0
  %3268 = vmatprep.subr.mxu0 0.0
  %3269 = vmatpush1.msra.mxu0 0.0
  %3270 = vmatprep.subr.mxu0 0.0
  %3271 = vmatpush1.msra.mxu0 0.0
  %3272 = vmatprep.subr.mxu0 0.0
  %3273 = vmatpush1.msra.mxu0 0.0
  %3274 = vmatprep.subr.mxu0 0.0
  %3275 = vmatpush1.msra.mxu0 0.0
  %3276 = vmatprep.subr.mxu0 0.0
  %3277 = vmatpush1.msra.mxu0 0.0
  %3278 = vmatprep.subr.mxu0 0.0
  %3279 = vmatpush1.msra.mxu0 0.0
  %3280 = vmatprep.subr.mxu0 0.0
  %3281 = vmatpush1.msra.mxu0 0.0
  %3282 = vmatprep.mubr.f32.mxu0 0.0
  %3283 = vmatmul.mubr.f32.gmra.mrb[0].mxu0 %v2972
  %v3284 = vpop.f32.mrb[0].mxu0
  %v3285 = vadd.f32 %v3208, %v3284
  %v3286 = vpop.f32.mrb[0].mxu0
  %v3287 = vadd.f32 %v3210, %v3286
  %3288 = vmatprep.mubr.f32.mxu0 0.0
  %3289 = vmatmul.mubr.f32.gmra.mrb[0].mxu0 %v2975
  %v3290 = vpop.f32.mrb[0].mxu0
  %v3291 = vadd.f32 %v3214, %v3290
  %v3292 = vpop.f32.mrb[0].mxu0
  %v3293 = vadd.f32 %v3216, %v3292
  %3294 = vdwg.mxu0
  %3295 = vmatprep.subr.mxu0 0.0
  %3296 = vmatpush1.msra.mxu0 %v2648
  %3297 = vmatprep.subr.mxu0 0.0
  %3298 = vmatpush1.msra.mxu0 %v2651
  %3299 = vmatprep.subr.mxu0 0.0
  %3300 = vmatpush1.msra.mxu0 %v2654
  %3301 = vmatprep.subr.mxu0 0.0
  %3302 = vmatpush1.msra.mxu0 %v2657
  %3303 = vmatprep.subr.mxu0 0.0
  %3304 = vmatpush1.msra.mxu0 %v2660
  %3305 = vmatprep.subr.mxu0 0.0
  %3306 = vmatpush1.msra.mxu0 %v2663
  %3307 = vmatprep.subr.mxu0 0.0
  %3308 = vmatpush1.msra.mxu0 %v2666
  %3309 = vmatprep.subr.mxu0 0.0
  %3310 = vmatpush1.msra.mxu0 %v2669
  %3311 = vmatprep.subr.mxu0 0.0
  %3312 = vmatpush1.msra.mxu0 %v2672
  %3313 = vmatprep.subr.mxu0 0.0
  %3314 = vmatpush1.msra.mxu0 %v2675
  %3315 = vmatprep.subr.mxu0 0.0
  %3316 = vmatpush1.msra.mxu0 %v2678
  %3317 = vmatprep.subr.mxu0 0.0
  %3318 = vmatpush1.msra.mxu0 %v2681
  %3319 = vmatprep.subr.mxu0 0.0
  %3320 = vmatpush1.msra.mxu0 %v2684
  %3321 = vmatprep.subr.mxu0 0.0
  %3322 = vmatpush1.msra.mxu0 %v2687
  %3323 = vmatprep.subr.mxu0 0.0
  %3324 = vmatpush1.msra.mxu0 %v2690
  %3325 = vmatprep.subr.mxu0 0.0
  %3326 = vmatpush1.msra.mxu0 %v2693
  %3327 = vmatprep.subr.mxu0 0.0
  %3328 = vmatpush1.msra.mxu0 %v2696
  %3329 = vmatprep.subr.mxu0 0.0
  %3330 = vmatpush1.msra.mxu0 %v2699
  %3331 = vmatprep.subr.mxu0 0.0
  %3332 = vmatpush1.msra.mxu0 %v2702
  %3333 = vmatprep.subr.mxu0 0.0
  %3334 = vmatpush1.msra.mxu0 %v2705
  %3335 = vmatprep.subr.mxu0 0.0
  %3336 = vmatpush1.msra.mxu0 %v2708
  %3337 = vmatprep.subr.mxu0 0.0
  %3338 = vmatpush1.msra.mxu0 %v2711
  %3339 = vmatprep.subr.mxu0 0.0
  %3340 = vmatpush1.msra.mxu0 %v2714
  %3341 = vmatprep.subr.mxu0 0.0
  %3342 = vmatpush1.msra.mxu0 %v2717
  %3343 = vmatprep.subr.mxu0 0.0
  %3344 = vmatpush1.msra.mxu0 %v2720
  %3345 = vmatprep.subr.mxu0 0.0
  %3346 = vmatpush1.msra.mxu0 %v2723
  %3347 = vmatprep.subr.mxu0 0.0
  %3348 = vmatpush1.msra.mxu0 %v2726
  %3349 = vmatprep.subr.mxu0 0.0
  %3350 = vmatpush1.msra.mxu0 %v2729
  %3351 = vmatprep.subr.mxu0 0.0
  %3352 = vmatpush1.msra.mxu0 %v2732
  %3353 = vmatprep.subr.mxu0 0.0
  %3354 = vmatpush1.msra.mxu0 %v2735
  %3355 = vmatprep.subr.mxu0 0.0
  %3356 = vmatpush1.msra.mxu0 %v2738
  %3357 = vmatprep.subr.mxu0 0.0
  %3358 = vmatpush1.msra.mxu0 %v2741
  %3359 = vmatprep.mubr.f32.mxu0 %v2633
  %3360 = vmatmul.mubr.f32.gmra.mrb[0].mxu0 %v2632
  %v3361 = vpop.f32.mrb[0].mxu0
  %v3362 = vadd.f32 0.0, %v3361
  %v3363 = vpop.f32.mrb[0].mxu0
  %3364 = vmatprep.mubr.f32.mxu0 %v2640
  %3365 = vmatmul.mubr.f32.gmra.mrb[0].mxu0 %v2639
  %v3366 = vpop.f32.mrb[0].mxu0
  %v3367 = vadd.f32 0.0, %v3366
  %v3368 = vpop.f32.mrb[0].mxu0
  %3369 = vdwg.mxu0
  %3370 = vmatprep.subr.mxu0 0.0
  %3371 = vmatpush1.msra.mxu0 %v2744
  %3372 = vmatprep.subr.mxu0 0.0
  %3373 = vmatpush1.msra.mxu0 %v2747
  %3374 = vmatprep.subr.mxu0 0.0
  %3375 = vmatpush1.msra.mxu0 %v2750
  %3376 = vmatprep.subr.mxu0 0.0
  %3377 = vmatpush1.msra.mxu0 %v2753
  %3378 = vmatprep.subr.mxu0 0.0
  %3379 = vmatpush1.msra.mxu0 %v2756
  %3380 = vmatprep.subr.mxu0 0.0
  %3381 = vmatpush1.msra.mxu0 %v2759
  %3382 = vmatprep.subr.mxu0 0.0
  %3383 = vmatpush1.msra.mxu0 %v2762
  %3384 = vmatprep.subr.mxu0 0.0
  %3385 = vmatpush1.msra.mxu0 %v2765
  %3386 = vmatprep.subr.mxu0 0.0
  %3387 = vmatpush1.msra.mxu0 %v2768
  %3388 = vmatprep.subr.mxu0 0.0
  %3389 = vmatpush1.msra.mxu0 %v2771
  %3390 = vmatprep.subr.mxu0 0.0
  %3391 = vmatpush1.msra.mxu0 %v2774
  %3392 = vmatprep.subr.mxu0 0.0
  %3393 = vmatpush1.msra.mxu0 %v2777
  %3394 = vmatprep.subr.mxu0 0.0
  %3395 = vmatpush1.msra.mxu0 %v2780
  %3396 = vmatprep.subr.mxu0 0.0
  %3397 = vmatpush1.msra.mxu0 %v2783
  %3398 = vmatprep.subr.mxu0 0.0
  %3399 = vmatpush1.msra.mxu0 %v2786
  %3400 = vmatprep.subr.mxu0 0.0
  %3401 = vmatpush1.msra.mxu0 %v2789
  %3402 = vmatprep.subr.mxu0 0.0
  %3403 = vmatpush1.msra.mxu0 %v2792
  %3404 = vmatprep.subr.mxu0 0.0
  %3405 = vmatpush1.msra.mxu0 %v2795
  %3406 = vmatprep.subr.mxu0 0.0
  %3407 = vmatpush1.msra.mxu0 %v2798
  %3408 = vmatprep.subr.mxu0 0.0
  %3409 = vmatpush1.msra.mxu0 %v2801
  %3410 = vmatprep.subr.mxu0 0.0
  %3411 = vmatpush1.msra.mxu0 %v2804
  %3412 = vmatprep.subr.mxu0 0.0
  %3413 = vmatpush1.msra.mxu0 %v2807
  %3414 = vmatprep.subr.mxu0 0.0
  %3415 = vmatpush1.msra.mxu0 %v2810
  %3416 = vmatprep.subr.mxu0 0.0
  %3417 = vmatpush1.msra.mxu0 %v2813
  %3418 = vmatprep.subr.mxu0 0.0
  %3419 = vmatpush1.msra.mxu0 %v2816
  %3420 = vmatprep.subr.mxu0 0.0
  %3421 = vmatpush1.msra.mxu0 %v2819
  %3422 = vmatprep.subr.mxu0 0.0
  %3423 = vmatpush1.msra.mxu0 %v2822
  %3424 = vmatprep.subr.mxu0 0.0
  %3425 = vmatpush1.msra.mxu0 %v2825
  %3426 = vmatprep.subr.mxu0 0.0
  %3427 = vmatpush1.msra.mxu0 %v2828
  %3428 = vmatprep.subr.mxu0 0.0
  %3429 = vmatpush1.msra.mxu0 %v2831
  %3430 = vmatprep.subr.mxu0 0.0
  %3431 = vmatpush1.msra.mxu0 %v2834
  %3432 = vmatprep.subr.mxu0 0.0
  %3433 = vmatpush1.msra.mxu0 %v2837
  %3434 = vmatprep.mubr.f32.mxu0 %v2635
  %3435 = vmatmul.mubr.f32.gmra.mrb[0].mxu0 %v2634
  %v3436 = vpop.f32.mrb[0].mxu0
  %v3437 = vadd.f32 %v3362, %v3436
  %v3438 = vpop.f32.mrb[0].mxu0
  %3439 = vmatprep.mubr.f32.mxu0 %v2642
  %3440 = vmatmul.mubr.f32.gmra.mrb[0].mxu0 %v2641
  %v3441 = vpop.f32.mrb[0].mxu0
  %v3442 = vadd.f32 %v3367, %v3441
  %v3443 = vpop.f32.mrb[0].mxu0
  %3444 = vdwg.mxu0
  %3445 = vmatprep.subr.mxu0 0.0
  %3446 = vmatpush1.msra.mxu0 %v2840
  %3447 = vmatprep.subr.mxu0 0.0
  %3448 = vmatpush1.msra.mxu0 %v2843
  %3449 = vmatprep.subr.mxu0 0.0
  %3450 = vmatpush1.msra.mxu0 %v2846
  %3451 = vmatprep.subr.mxu0 0.0
  %3452 = vmatpush1.msra.mxu0 %v2849
  %3453 = vmatprep.subr.mxu0 0.0
  %3454 = vmatpush1.msra.mxu0 %v2852
  %3455 = vmatprep.subr.mxu0 0.0
  %3456 = vmatpush1.msra.mxu0 %v2855
  %3457 = vmatprep.subr.mxu0 0.0
  %3458 = vmatpush1.msra.mxu0 %v2858
  %3459 = vmatprep.subr.mxu0 0.0
  %3460 = vmatpush1.msra.mxu0 %v2861
  %3461 = vmatprep.subr.mxu0 0.0
  %3462 = vmatpush1.msra.mxu0 %v2864
  %3463 = vmatprep.subr.mxu0 0.0
  %3464 = vmatpush1.msra.mxu0 %v2867
  %3465 = vmatprep.subr.mxu0 0.0
  %3466 = vmatpush1.msra.mxu0 %v2870
  %3467 = vmatprep.subr.mxu0 0.0
  %3468 = vmatpush1.msra.mxu0 %v2873
  %3469 = vmatprep.subr.mxu0 0.0
  %3470 = vmatpush1.msra.mxu0 %v2876
  %3471 = vmatprep.subr.mxu0 0.0
  %3472 = vmatpush1.msra.mxu0 %v2879
  %3473 = vmatprep.subr.mxu0 0.0
  %3474 = vmatpush1.msra.mxu0 %v2882
  %3475 = vmatprep.subr.mxu0 0.0
  %3476 = vmatpush1.msra.mxu0 %v2885
  %3477 = vmatprep.subr.mxu0 0.0
  %3478 = vmatpush1.msra.mxu0 %v2888
  %3479 = vmatprep.subr.mxu0 0.0
  %3480 = vmatpush1.msra.mxu0 %v2891
  %3481 = vmatprep.subr.mxu0 0.0
  %3482 = vmatpush1.msra.mxu0 %v2894
  %3483 = vmatprep.subr.mxu0 0.0
  %3484 = vmatpush1.msra.mxu0 %v2897
  %3485 = vmatprep.subr.mxu0 0.0
  %3486 = vmatpush1.msra.mxu0 %v2900
  %3487 = vmatprep.subr.mxu0 0.0
  %3488 = vmatpush1.msra.mxu0 %v2903
  %3489 = vmatprep.subr.mxu0 0.0
  %3490 = vmatpush1.msra.mxu0 %v2906
  %3491 = vmatprep.subr.mxu0 0.0
  %3492 = vmatpush1.msra.mxu0 %v2909
  %3493 = vmatprep.subr.mxu0 0.0
  %3494 = vmatpush1.msra.mxu0 %v2912
  %3495 = vmatprep.subr.mxu0 0.0
  %3496 = vmatpush1.msra.mxu0 %v2915
  %3497 = vmatprep.subr.mxu0 0.0
  %3498 = vmatpush1.msra.mxu0 %v2918
  %3499 = vmatprep.subr.mxu0 0.0
  %3500 = vmatpush1.msra.mxu0 %v2921
  %3501 = vmatprep.subr.mxu0 0.0
  %3502 = vmatpush1.msra.mxu0 %v2924
  %3503 = vmatprep.subr.mxu0 0.0
  %3504 = vmatpush1.msra.mxu0 %v2927
  %3505 = vmatprep.subr.mxu0 0.0
  %3506 = vmatpush1.msra.mxu0 %v2930
  %3507 = vmatprep.subr.mxu0 0.0
  %3508 = vmatpush1.msra.mxu0 %v2933
  %3509 = vmatprep.mubr.f32.mxu0 %v2637
  %3510 = vmatmul.mubr.f32.gmra.mrb[0].mxu0 %v2636
  %v3511 = vpop.f32.mrb[0].mxu0
  %v3512 = vadd.f32 %v3437, %v3511
  %v3513 = vpop.f32.mrb[0].mxu0
  %3514 = vmatprep.mubr.f32.mxu0 %v2644
  %3515 = vmatmul.mubr.f32.gmra.mrb[0].mxu0 %v2643
  %v3516 = vpop.f32.mrb[0].mxu0
  %v3517 = vadd.f32 %v3442, %v3516
  %v3518 = vpop.f32.mrb[0].mxu0
  %3519 = vdwg.mxu0
  %3520 = vmatprep.subr.mxu0 0.0
  %3521 = vmatpush1.msra.mxu0 %v2936
  %3522 = vmatprep.subr.mxu0 0.0
  %3523 = vmatpush1.msra.mxu0 %v2939
  %3524 = vmatprep.subr.mxu0 0.0
  %3525 = vmatpush1.msra.mxu0 %v2942
  %3526 = vmatprep.subr.mxu0 0.0
  %3527 = vmatpush1.msra.mxu0 %v2945
  %3528 = vmatprep.subr.mxu0 0.0
  %3529 = vmatpush1.msra.mxu0 %v2948
  %3530 = vmatprep.subr.mxu0 0.0
  %3531 = vmatpush1.msra.mxu0 %v2951
  %3532 = vmatprep.subr.mxu0 0.0
  %3533 = vmatpush1.msra.mxu0 %v2954
  %3534 = vmatprep.subr.mxu0 0.0
  %3535 = vmatpush1.msra.mxu0 %v2957
  %3536 = vmatprep.subr.mxu0 0.0
  %3537 = vmatpush1.msra.mxu0 %v2960
  %3538 = vmatprep.subr.mxu0 0.0
  %3539 = vmatpush1.msra.mxu0 %v2963
  %3540 = vmatprep.subr.mxu0 0.0
  %3541 = vmatpush1.msra.mxu0 %v2966
  %3542 = vmatprep.subr.mxu0 0.0
  %3543 = vmatpush1.msra.mxu0 %v2985
  %3544 = vmatprep.subr.mxu0 0.0
  %3545 = vmatpush1.msra.mxu0 0.0
  %3546 = vmatprep.subr.mxu0 0.0
  %3547 = vmatpush1.msra.mxu0 0.0
  %3548 = vmatprep.subr.mxu0 0.0
  %3549 = vmatpush1.msra.mxu0 0.0
  %3550 = vmatprep.subr.mxu0 0.0
  %3551 = vmatpush1.msra.mxu0 0.0
  %3552 = vmatprep.subr.mxu0 0.0
  %3553 = vmatpush1.msra.mxu0 0.0
  %3554 = vmatprep.subr.mxu0 0.0
  %3555 = vmatpush1.msra.mxu0 0.0
  %3556 = vmatprep.subr.mxu0 0.0
  %3557 = vmatpush1.msra.mxu0 0.0
  %3558 = vmatprep.subr.mxu0 0.0
  %3559 = vmatpush1.msra.mxu0 0.0
  %3560 = vmatprep.subr.mxu0 0.0
  %3561 = vmatpush1.msra.mxu0 0.0
  %3562 = vmatprep.subr.mxu0 0.0
  %3563 = vmatpush1.msra.mxu0 0.0
  %3564 = vmatprep.subr.mxu0 0.0
  %3565 = vmatpush1.msra.mxu0 0.0
  %3566 = vmatprep.subr.mxu0 0.0
  %3567 = vmatpush1.msra.mxu0 0.0
  %3568 = vmatprep.subr.mxu0 0.0
  %3569 = vmatpush1.msra.mxu0 0.0
  %3570 = vmatprep.subr.mxu0 0.0
  %3571 = vmatpush1.msra.mxu0 0.0
  %3572 = vmatprep.subr.mxu0 0.0
  %3573 = vmatpush1.msra.mxu0 0.0
  %3574 = vmatprep.subr.mxu0 0.0
  %3575 = vmatpush1.msra.mxu0 0.0
  %3576 = vmatprep.subr.mxu0 0.0
  %3577 = vmatpush1.msra.mxu0 0.0
  %3578 = vmatprep.subr.mxu0 0.0
  %3579 = vmatpush1.msra.mxu0 0.0
  %3580 = vmatprep.subr.mxu0 0.0
  %3581 = vmatpush1.msra.mxu0 0.0
  %3582 = vmatprep.subr.mxu0 0.0
  %3583 = vmatpush1.msra.mxu0 0.0
  %3584 = vmatprep.mubr.f32.mxu0 0.0
  %3585 = vmatmul.mubr.f32.gmra.mrb[0].mxu0 %v2972
  %v3586 = vpop.f32.mrb[0].mxu0
  %v3587 = vadd.f32 %v3512, %v3586
  %v3588 = vpop.f32.mrb[0].mxu0
  %3589 = vmatprep.mubr.f32.mxu0 0.0
  %3590 = vmatmul.mubr.f32.gmra.mrb[0].mxu0 %v2975
  %v3591 = vpop.f32.mrb[0].mxu0
  %v3592 = vadd.f32 %v3517, %v3591
  %v3593 = vpop.f32.mrb[0].mxu0
  %3594 = vdwg.mxu0
  %3595 = vst [vmem:[#allocation5] sm:$0xff] %v3285
  %3596 = vst [vmem:[#allocation5 + $0x8] sm:$0xff] %v3287
  %vm3597 = vcmask 556032
  %3598 = vst.msk [vmem:[#allocation5 + $0x10] sm:$0xff] %vm3597, %v3587
  %3599 = vst [vmem:[#allocation5 + $0x18] sm:$0xff] %v3291
  %3600 = vst [vmem:[#allocation5 + $0x20] sm:$0xff] %v3293
  %3601 = vst.msk [vmem:[#allocation5 + $0x28] sm:$0xff] %vm3597, %v3592
  %v3602 = vld [vmem:[%s2453] sm:$0xff]
  %v3603 = vld [vmem:[%s2453 + $0x8] sm:$0xff]
  %v3604 = vld [vmem:[%s2453 + $0x10] sm:$0xff]
  %v3605 = vld [vmem:[%s2453 + $0x18] sm:$0xff]
  %v3606 = vld [vmem:[%s2453 + $0x20] sm:$0xff]
  %v3607 = vld [vmem:[%s2453 + $0x28] sm:$0xff]
  %v3608 = vld [vmem:[%s2453 + $0x30] sm:$0xff]
  %v3609 = vld [vmem:[%s2453 + $0x38] sm:$0xff]
  %v3610 = vld [vmem:[%s2453 + $0x40] sm:$0xff]
  %v3611 = vld [vmem:[%s2453 + $0x48] sm:$0xff]
  %v3612 = vld [vmem:[%s2453 + $0x50] sm:$0xff]
  %v3613 = vld [vmem:[%s2453 + $0x58] sm:$0xff]
  %v3614 = vld [vmem:[%s2453 + $0x60] sm:$0xff]
  %v3615 = vld [vmem:[%s2453 + $0x68] sm:$0xff]
  %3630 = vrot.lane.b32.xlu0 %v3602, 127
  %v3631 = vpop.permute.xlu0 %3630
  %3632 = vrot.lane.b32.xlu0 %v3603, 127
  %v3633 = vpop.permute.xlu0 %3632
  %3634 = vrot.lane.b32.xlu0 %v3604, 127
  %v3635 = vpop.permute.xlu0 %3634
  %3636 = vrot.lane.b32.xlu0 %v3605, 127
  %v3637 = vpop.permute.xlu0 %3636
  %3638 = vrot.lane.b32.xlu0 %v3606, 127
  %v3639 = vpop.permute.xlu0 %3638
  %3640 = vrot.lane.b32.xlu0 %v3607, 127
  %v3641 = vpop.permute.xlu0 %3640
  %3642 = vrot.lane.b32.xlu0 %v3608, 127
  %v3643 = vpop.permute.xlu0 %3642
  %3644 = vrot.lane.b32.xlu0 %v3609, 127
  %v3645 = vpop.permute.xlu0 %3644
  %3646 = vrot.lane.b32.xlu0 %v3610, 127
  %v3647 = vpop.permute.xlu0 %3646
  %3648 = vrot.lane.b32.xlu0 %v3611, 127
  %v3649 = vpop.permute.xlu0 %3648
  %3650 = vrot.lane.b32.xlu0 %v3612, 127
  %v3651 = vpop.permute.xlu0 %3650
  %3652 = vrot.lane.b32.xlu0 %v3613, 127
  %v3653 = vpop.permute.xlu0 %3652
  %3654 = vrot.lane.b32.xlu0 %v3614, 127
  %v3655 = vpop.permute.xlu0 %3654
  %3656 = vrot.lane.b32.xlu0 %v3615, 127
  %v3657 = vpop.permute.xlu0 %3656
  %v3658 = vsel %vm1181, %v3631, %v3633
  %v3659 = vsel %vm1181, %v3633, %v3635
  %v3660 = vsel %vm1181, %v3635, %v3637
  %v3661 = vsel %vm1181, %v3637, %v3639
  %v3662 = vsel %vm1181, %v3639, %v3641
  %v3663 = vsel %vm1181, %v3641, %v3643
  %v3664 = vsel %vm1181, %v3645, %v3647
  %v3665 = vsel %vm1181, %v3647, %v3649
  %v3666 = vsel %vm1181, %v3649, %v3651
  %v3667 = vsel %vm1181, %v3651, %v3653
  %v3668 = vsel %vm1181, %v3653, %v3655
  %v3669 = vsel %vm1181, %v3655, %v3657
  %v3684 = vmax.f32 %v3602, %v3658
  %v3685 = vmax.f32 %v3603, %v3659
  %v3686 = vmax.f32 %v3604, %v3660
  %v3687 = vmax.f32 %v3605, %v3661
  %v3688 = vmax.f32 %v3606, %v3662
  %v3689 = vmax.f32 %v3607, %v3663
  %v3690 = vmax.f32 %v3608, %v3643
  %v3691 = vmax.f32 %v3609, %v3664
  %v3692 = vmax.f32 %v3610, %v3665
  %v3693 = vmax.f32 %v3611, %v3666
  %v3694 = vmax.f32 %v3612, %v3667
  %v3695 = vmax.f32 %v3613, %v3668
  %v3696 = vmax.f32 %v3614, %v3669
  %v3697 = vmax.f32 %v3615, %v3657
  %3712 = vrot.lane.b32.xlu0 %v3684, 96
  %v3713 = vpop.permute.xlu0 %3712
  %3714 = vrot.lane.b32.xlu0 %v3685, 96
  %v3715 = vpop.permute.xlu0 %3714
  %3716 = vrot.lane.b32.xlu0 %v3686, 96
  %v3717 = vpop.permute.xlu0 %3716
  %3718 = vrot.lane.b32.xlu0 %v3687, 96
  %v3719 = vpop.permute.xlu0 %3718
  %3720 = vrot.lane.b32.xlu0 %v3688, 96
  %v3721 = vpop.permute.xlu0 %3720
  %3722 = vrot.lane.b32.xlu0 %v3689, 96
  %v3723 = vpop.permute.xlu0 %3722
  %3724 = vrot.lane.b32.xlu0 %v3690, 96
  %v3725 = vpop.permute.xlu0 %3724
  %3726 = vrot.lane.b32.xlu0 %v3691, 96
  %v3727 = vpop.permute.xlu0 %3726
  %3728 = vrot.lane.b32.xlu0 %v3692, 96
  %v3729 = vpop.permute.xlu0 %3728
  %3730 = vrot.lane.b32.xlu0 %v3693, 96
  %v3731 = vpop.permute.xlu0 %3730
  %3732 = vrot.lane.b32.xlu0 %v3694, 96
  %v3733 = vpop.permute.xlu0 %3732
  %3734 = vrot.lane.b32.xlu0 %v3695, 96
  %v3735 = vpop.permute.xlu0 %3734
  %3736 = vrot.lane.b32.xlu0 %v3696, 96
  %v3737 = vpop.permute.xlu0 %3736
  %3738 = vrot.lane.b32.xlu0 %v3697, 96
  %v3739 = vpop.permute.xlu0 %3738
  %v3740 = vsel %vm1265, %v3713, %v3715
  %v3741 = vsel %vm1265, %v3715, %v3717
  %v3742 = vsel %vm1265, %v3717, %v3719
  %v3743 = vsel %vm1265, %v3719, %v3721
  %v3744 = vsel %vm1265, %v3721, %v3723
  %v3745 = vsel %vm1265, %v3723, %v3725
  %v3746 = vsel %vm1265, %v3727, %v3729
  %v3747 = vsel %vm1265, %v3729, %v3731
  %v3748 = vsel %vm1265, %v3731, %v3733
  %v3749 = vsel %vm1265, %v3733, %v3735
  %v3750 = vsel %vm1265, %v3735, %v3737
  %v3751 = vsel %vm1265, %v3737, %v3739
  %v3766 = vmax.f32 %v3684, %v3740
  %v3767 = vmax.f32 %v3685, %v3741
  %v3768 = vmax.f32 %v3686, %v3742
  %v3769 = vmax.f32 %v3687, %v3743
  %v3770 = vmax.f32 %v3688, %v3744
  %v3771 = vmax.f32 %v3689, %v3745
  %v3772 = vmax.f32 %v3690, %v3725
  %v3773 = vmax.f32 %v3691, %v3746
  %v3774 = vmax.f32 %v3692, %v3747
  %v3775 = vmax.f32 %v3693, %v3748
  %v3776 = vmax.f32 %v3694, %v3749
  %v3777 = vmax.f32 %v3695, %v3750
  %v3778 = vmax.f32 %v3696, %v3751
  %v3779 = vmax.f32 %v3697, %v3739
  %v3780 = vld [vmem:[%s5] sm:$0xff]
  %v3781 = vld [vmem:[%s5 + $0x8] sm:$0xff]
  %v3782 = vld [vmem:[%s5 + $0x10] sm:$0xff]
  %v3783 = vld [vmem:[%s5 + $0x18] sm:$0xff]
  %v3784 = vld [vmem:[%s5 + $0x20] sm:$0xff]
  %v3785 = vld [vmem:[%s5 + $0x28] sm:$0xff]
  %v3786 = vld [vmem:[%s5 + $0x30] sm:$0xff]
  %v3787 = vld [vmem:[%s5 + $0x38] sm:$0xff]
  %v3788 = vld [vmem:[%s5 + $0x40] sm:$0xff]
  %v3789 = vld [vmem:[%s5 + $0x48] sm:$0xff]
  %v3790 = vld [vmem:[%s5 + $0x50] sm:$0xff]
  %v3791 = vld [vmem:[%s5 + $0x58] sm:$0xff]
  %v3792 = vld [vmem:[%s5 + $0x60] sm:$0xff]
  %v3793 = vld [vmem:[%s5 + $0x68] sm:$0xff]
  %v3794 = vld [vmem:[%s5 + $0x70] sm:$0xff]
  %v3795 = vld [vmem:[%s5 + $0x78] sm:$0xff]
  %v3796 = vld [vmem:[%s5 + $0x80] sm:$0xff]
  %v3797 = vld [vmem:[%s5 + $0x88] sm:$0xff]
  %v3798 = vld [vmem:[%s5 + $0x90] sm:$0xff]
  %v3799 = vld [vmem:[%s5 + $0x98] sm:$0xff]
  %v3800 = vld [vmem:[%s5 + $0xa0] sm:$0xff]
  %v3801 = vld [vmem:[%s5 + $0xa8] sm:$0xff]
  %v3802 = vld [vmem:[%s5 + $0xb0] sm:$0xff]
  %v3803 = vld [vmem:[%s5 + $0xb8] sm:$0xff]
  %v3804 = vld [vmem:[%s5 + $0xc0] sm:$0xff]
  %v3805 = vld [vmem:[%s5 + $0xc8] sm:$0xff]
  %v3806 = vld [vmem:[%s5 + $0xd0] sm:$0xff]
  %v3807 = vld [vmem:[%s5 + $0xd8] sm:$0xff]
  %v3808 = vld [vmem:[%s5 + $0xe0] sm:$0xff]
  %v3809 = vld [vmem:[%s5 + $0xe8] sm:$0xff]
  %v3810 = vld [vmem:[%s5 + $0xf0] sm:$0xff]
  %v3811 = vld [vmem:[%s5 + $0xf8] sm:$0xff]
  %v3812 = vld [vmem:[%s5 + $0x100] sm:$0xff]
  %v3813 = vld [vmem:[%s5 + $0x108] sm:$0xff]
  %v3814 = vld [vmem:[%s5 + $0x110] sm:$0xff]
  %v3815 = vld [vmem:[%s5 + $0x118] sm:$0xff]
  %v3816 = vld [vmem:[%s5 + $0x120] sm:$0xff]
  %v3817 = vld [vmem:[%s5 + $0x128] sm:$0xff]
  %v3818 = vld [vmem:[%s5 + $0x130] sm:$0xff]
  %v3819 = vld [vmem:[%s5 + $0x138] sm:$0xff]
  %v3820 = vld [vmem:[%s5 + $0x140] sm:$0xff]
  %v3821 = vld [vmem:[%s5 + $0x148] sm:$0xff]
  %v3822 = vld [vmem:[%s5 + $0x150] sm:$0xff]
  %v3823 = vld [vmem:[%s5 + $0x158] sm:$0xff]
  %v3824 = vld [vmem:[%s5 + $0x160] sm:$0xff]
  %v3825 = vld [vmem:[%s5 + $0x168] sm:$0xff]
  %v3826 = vld [vmem:[%s5 + $0x170] sm:$0xff]
  %v3827 = vld [vmem:[%s5 + $0x178] sm:$0xff]
  %v3828 = vld [vmem:[%s5 + $0x180] sm:$0xff]
  %v3829 = vld [vmem:[%s5 + $0x188] sm:$0xff]
  %v3830 = vld [vmem:[%s5 + $0x190] sm:$0xff]
  %v3831 = vld [vmem:[%s5 + $0x198] sm:$0xff]
  %v3832 = vld [vmem:[%s5 + $0x1a0] sm:$0xff]
  %v3833 = vld [vmem:[%s5 + $0x1a8] sm:$0xff]
  %v3834 = vld [vmem:[%s5 + $0x1b0] sm:$0xff]
  %v3835 = vld [vmem:[%s5 + $0x1b8] sm:$0xff]
  %v3836 = vld [vmem:[%s5 + $0x1c0] sm:$0xff]
  %v3837 = vld [vmem:[%s5 + $0x1c8] sm:$0xff]
  %v3838 = vld [vmem:[%s5 + $0x1d0] sm:$0xff]
  %v3839 = vld [vmem:[%s5 + $0x1d8] sm:$0xff]
  %v3840 = vld [vmem:[%s5 + $0x1e0] sm:$0xff]
  %v3841 = vld [vmem:[%s5 + $0x1e8] sm:$0xff]
  %v3842 = vld [vmem:[%s5 + $0x1f0] sm:$0xff]
  %v3843 = vld [vmem:[%s5 + $0x1f8] sm:$0xff]
  %v3844 = vld [vmem:[%s5 + $0x200] sm:$0xff]
  %v3845 = vld [vmem:[%s5 + $0x208] sm:$0xff]
  %v3846 = vld [vmem:[%s5 + $0x210] sm:$0xff]
  %v3847 = vld [vmem:[%s5 + $0x218] sm:$0xff]
  %v3848 = vld [vmem:[%s5 + $0x220] sm:$0xff]
  %v3849 = vld [vmem:[%s5 + $0x228] sm:$0xff]
  %v3850 = vld [vmem:[%s5 + $0x230] sm:$0xff]
  %v3851 = vld [vmem:[%s5 + $0x238] sm:$0xff]
  %v3852 = vld [vmem:[%s5 + $0x240] sm:$0xff]
  %v3853 = vld [vmem:[%s5 + $0x248] sm:$0xff]
  %v3854 = vld [vmem:[%s5 + $0x250] sm:$0xff]
  %v3855 = vld [vmem:[%s5 + $0x258] sm:$0xff]
  %v3856 = vld [vmem:[%s5 + $0x260] sm:$0xff]
  %v3857 = vld [vmem:[%s5 + $0x268] sm:$0xff]
  %v3858 = vld [vmem:[%s5 + $0x270] sm:$0xff]
  %v3859 = vld [vmem:[%s5 + $0x278] sm:$0xff]
  %v3860 = vld [vmem:[%s5 + $0x280] sm:$0xff]
  %v3861 = vld [vmem:[%s5 + $0x288] sm:$0xff]
  %v3862 = vld [vmem:[%s5 + $0x290] sm:$0xff]
  %v3863 = vld [vmem:[%s5 + $0x298] sm:$0xff]
  %v3864 = vld [vmem:[%s5 + $0x2a0] sm:$0xff]
  %v3865 = vld [vmem:[%s5 + $0x2a8] sm:$0xff]
  %v3866 = vld [vmem:[%s5 + $0x2b0] sm:$0xff]
  %v3867 = vld [vmem:[%s5 + $0x2b8] sm:$0xff]
  %v3868 = vld [vmem:[%s5 + $0x2c0] sm:$0xff]
  %v3869 = vld [vmem:[%s5 + $0x2c8] sm:$0xff]
  %v3870 = vld [vmem:[%s5 + $0x2d0] sm:$0xff]
  %v3871 = vld [vmem:[%s5 + $0x2d8] sm:$0xff]
  %v3872 = vld [vmem:[%s5 + $0x2e0] sm:$0xff]
  %v3873 = vld [vmem:[%s5 + $0x2e8] sm:$0xff]
  %v3874 = vld [vmem:[%s5 + $0x2f0] sm:$0xff]
  %v3875 = vld [vmem:[%s5 + $0x2f8] sm:$0xff]
  %v3876 = vld [vmem:[%s5 + $0x300] sm:$0xff]
  %v3877 = vld [vmem:[%s5 + $0x308] sm:$0xff]
  %v3878 = vld [vmem:[%s5 + $0x310] sm:$0xff]
  %v3879 = vld [vmem:[%s5 + $0x318] sm:$0xff]
  %v3880 = vld [vmem:[%s5 + $0x320] sm:$0xff]
  %v3881 = vld [vmem:[%s5 + $0x328] sm:$0xff]
  %v3882 = vld [vmem:[%s5 + $0x330] sm:$0xff]
  %v3883 = vld [vmem:[%s5 + $0x338] sm:$0xff]
  %v3884 = vld [vmem:[%s5 + $0x340] sm:$0xff]
  %v3885 = vld [vmem:[%s5 + $0x348] sm:$0xff]
  %v3886 = vld [vmem:[%s5 + $0x350] sm:$0xff]
  %v3887 = vld [vmem:[%s5 + $0x358] sm:$0xff]
  %v3888 = vld [vmem:[%s5 + $0x360] sm:$0xff]
  %v3889 = vld [vmem:[%s5 + $0x368] sm:$0xff]
  %v3890 = vld [vmem:[%s5 + $0x370] sm:$0xff]
  %v3891 = vld [vmem:[%s5 + $0x378] sm:$0xff]
  %v3892 = vld [vmem:[%s5 + $0x380] sm:$0xff]
  %v3893 = vld [vmem:[%s5 + $0x388] sm:$0xff]
  %v3894 = vld [vmem:[%s5 + $0x390] sm:$0xff]
  %v3895 = vld [vmem:[%s5 + $0x398] sm:$0xff]
  %v3896 = vld [vmem:[%s5 + $0x3a0] sm:$0xff]
  %v3897 = vld [vmem:[%s5 + $0x3a8] sm:$0xff]
  %v3898 = vld [vmem:[%s5 + $0x3b0] sm:$0xff]
  %v3899 = vld [vmem:[%s5 + $0x3b8] sm:$0xff]
  %v3900 = vld [vmem:[%s5 + $0x3c0] sm:$0xff]
  %v3901 = vld [vmem:[%s5 + $0x3c8] sm:$0xff]
  %v3902 = vld [vmem:[%s5 + $0x3d0] sm:$0xff]
  %v3903 = vld [vmem:[%s5 + $0x3d8] sm:$0xff]
  %v3904 = vld [vmem:[%s5 + $0x3e0] sm:$0xff]
  %v3905 = vld [vmem:[%s5 + $0x3e8] sm:$0xff]
  %v3906 = vld [vmem:[%s5 + $0x3f0] sm:$0xff]
  %v3907 = vld [vmem:[%s5 + $0x3f8] sm:$0xff]
  %v3908 = vld [vmem:[%s5 + $0x400] sm:$0xff]
  %v3909 = vld [vmem:[%s5 + $0x408] sm:$0xff]
  %v3910 = vld [vmem:[%s5 + $0x410] sm:$0xff]
  %v3911 = vld [vmem:[%s5 + $0x418] sm:$0xff]
  %v3912 = vld [vmem:[%s5 + $0x420] sm:$0xff]
  %v3913 = vld [vmem:[%s5 + $0x428] sm:$0xff]
  %v3914 = vld [vmem:[%s5 + $0x430] sm:$0xff]
  %v3915 = vld [vmem:[%s5 + $0x438] sm:$0xff]
  %v3916 = vld [vmem:[%s5 + $0x440] sm:$0xff]
  %v3917 = vld [vmem:[%s5 + $0x448] sm:$0xff]
  %v3918 = vld [vmem:[%s5 + $0x450] sm:$0xff]
  %v3919 = vld [vmem:[%s5 + $0x458] sm:$0xff]
  %v3920 = vld [vmem:[%s5 + $0x460] sm:$0xff]
  %v3921 = vld [vmem:[%s5 + $0x468] sm:$0xff]
  %v3922 = vld [vmem:[%s5 + $0x470] sm:$0xff]
  %v3923 = vld [vmem:[%s5 + $0x478] sm:$0xff]
  %v3924 = vld [vmem:[%s5 + $0x480] sm:$0xff]
  %v3925 = vld [vmem:[%s5 + $0x488] sm:$0xff]
  %v3926 = vld [vmem:[%s5 + $0x490] sm:$0xff]
  %v3927 = vld [vmem:[%s5 + $0x498] sm:$0xff]
  %v3928 = vld [vmem:[%s5 + $0x4a0] sm:$0xff]
  %v3929 = vld [vmem:[%s5 + $0x4a8] sm:$0xff]
  %v3930 = vld [vmem:[%s5 + $0x4b0] sm:$0xff]
  %v3931 = vld [vmem:[%s5 + $0x4b8] sm:$0xff]
  %v3932 = vld [vmem:[%s5 + $0x4c0] sm:$0xff]
  %v3933 = vld [vmem:[%s5 + $0x4c8] sm:$0xff]
  %v3934 = vld [vmem:[%s5 + $0x4d0] sm:$0xff]
  %v3935 = vld [vmem:[%s5 + $0x4d8] sm:$0xff]
  %v3936 = vld [vmem:[%s5 + $0x4e0] sm:$0xff]
  %v3937 = vld [vmem:[%s5 + $0x4e8] sm:$0xff]
  %v3938 = vld [vmem:[%s5 + $0x4f0] sm:$0xff]
  %v3939 = vld [vmem:[%s5 + $0x4f8] sm:$0xff]
  %v3940 = vld [vmem:[%s5 + $0x500] sm:$0xff]
  %v3941 = vld [vmem:[%s5 + $0x508] sm:$0xff]
  %v3942 = vld [vmem:[%s5 + $0x510] sm:$0xff]
  %v3943 = vld [vmem:[%s5 + $0x518] sm:$0xff]
  %v3944 = vld [vmem:[%s5 + $0x520] sm:$0xff]
  %v3945 = vld [vmem:[%s5 + $0x528] sm:$0xff]
  %v3946 = vld [vmem:[%s5 + $0x530] sm:$0xff]
  %v3947 = vld [vmem:[%s5 + $0x538] sm:$0xff]
  %v3948 = vld [vmem:[%s5 + $0x540] sm:$0xff]
  %v3949 = vld [vmem:[%s5 + $0x548] sm:$0xff]
  %v3950 = vld [vmem:[%s5 + $0x550] sm:$0xff]
  %v3951 = vld [vmem:[%s5 + $0x558] sm:$0xff]
  %v3952 = vld [vmem:[%s5 + $0x560] sm:$0xff]
  %v3953 = vld [vmem:[%s5 + $0x568] sm:$0xff]
  %v3954 = vld [vmem:[%s5 + $0x570] sm:$0xff]
  %v3955 = vld [vmem:[%s5 + $0x578] sm:$0xff]
  %v3956 = vld [vmem:[%s5 + $0x580] sm:$0xff]
  %v3957 = vld [vmem:[%s5 + $0x588] sm:$0xff]
  %v3958 = vld [vmem:[%s5 + $0x590] sm:$0xff]
  %v3959 = vld [vmem:[%s5 + $0x598] sm:$0xff]
  %v3960 = vld [vmem:[%s5 + $0x5a0] sm:$0xff]
  %v3961 = vld [vmem:[%s5 + $0x5a8] sm:$0xff]
  %v3962 = vld [vmem:[%s5 + $0x5b0] sm:$0xff]
  %v3963 = vld [vmem:[%s5 + $0x5b8] sm:$0xff]
  %v3964 = vld [vmem:[%s5 + $0x5c0] sm:$0xff]
  %v3965 = vld [vmem:[%s5 + $0x5c8] sm:$0xff]
  %v3966 = vld [vmem:[%s5 + $0x5d0] sm:$0xff]
  %v3967 = vld [vmem:[%s5 + $0x5d8] sm:$0xff]
  %v3968 = vld [vmem:[%s5 + $0x5e0] sm:$0xff]
  %v3969 = vld [vmem:[%s5 + $0x5e8] sm:$0xff]
  %v3970 = vld [vmem:[%s5 + $0x5f0] sm:$0xff]
  %v3971 = vld [vmem:[%s5 + $0x5f8] sm:$0xff]
  %v3972 = vld [vmem:[%s5 + $0x600] sm:$0xff]
  %v3973 = vld [vmem:[%s5 + $0x608] sm:$0xff]
  %v3974 = vld [vmem:[%s5 + $0x610] sm:$0xff]
  %v3975 = vld [vmem:[%s5 + $0x618] sm:$0xff]
  %v3976 = vld [vmem:[%s5 + $0x620] sm:$0xff]
  %v3977 = vld [vmem:[%s5 + $0x628] sm:$0xff]
  %v3978 = vld [vmem:[%s5 + $0x630] sm:$0xff]
  %v3979 = vld [vmem:[%s5 + $0x638] sm:$0xff]
  %v3980 = vld [vmem:[%s5 + $0x640] sm:$0xff]
  %v3981 = vld [vmem:[%s5 + $0x648] sm:$0xff]
  %v3982 = vld [vmem:[%s5 + $0x650] sm:$0xff]
  %v3983 = vld [vmem:[%s5 + $0x658] sm:$0xff]
  %v3984 = vld [vmem:[%s5 + $0x660] sm:$0xff]
  %v3985 = vld [vmem:[%s5 + $0x668] sm:$0xff]
  %v3986 = vld [vmem:[%s5 + $0x670] sm:$0xff]
  %v3987 = vld [vmem:[%s5 + $0x678] sm:$0xff]
  %v3988 = vld [vmem:[%s5 + $0x680] sm:$0xff]
  %v3989 = vld [vmem:[%s5 + $0x688] sm:$0xff]
  %v3990 = vld [vmem:[%s5 + $0x690] sm:$0xff]
  %v3991 = vld [vmem:[%s5 + $0x698] sm:$0xff]
  %v3992 = vld [vmem:[%s5 + $0x6a0] sm:$0xff]
  %v3993 = vld [vmem:[%s5 + $0x6a8] sm:$0xff]
  %v3994 = vld [vmem:[%s5 + $0x6b0] sm:$0xff]
  %v3995 = vld [vmem:[%s5 + $0x6b8] sm:$0xff]
  %v3996 = vld [vmem:[%s5 + $0x6c0] sm:$0xff]
  %v3997 = vld [vmem:[%s5 + $0x6c8] sm:$0xff]
  %v3998 = vld [vmem:[%s5 + $0x6d0] sm:$0xff]
  %v3999 = vld [vmem:[%s5 + $0x6d8] sm:$0xff]
  %v4000 = vld [vmem:[%s5 + $0x6e0] sm:$0xff]
  %v4001 = vld [vmem:[%s5 + $0x6e8] sm:$0xff]
  %v4002 = vld [vmem:[%s5 + $0x6f0] sm:$0xff]
  %v4003 = vld [vmem:[%s5 + $0x6f8] sm:$0xff]
  %v4004 = vld [vmem:[%s5 + $0x700] sm:$0xff]
  %v4005 = vld [vmem:[%s5 + $0x708] sm:$0xff]
  %v4006 = vld [vmem:[%s5 + $0x710] sm:$0xff]
  %v4007 = vld [vmem:[%s5 + $0x718] sm:$0xff]
  %v4008 = vld [vmem:[%s5 + $0x720] sm:$0xff]
  %v4009 = vld [vmem:[%s5 + $0x728] sm:$0xff]
  %v4010 = vld [vmem:[%s5 + $0x730] sm:$0xff]
  %v4011 = vld [vmem:[%s5 + $0x738] sm:$0xff]
  %v4012 = vld [vmem:[%s5 + $0x740] sm:$0xff]
  %v4013 = vld [vmem:[%s5 + $0x748] sm:$0xff]
  %v4014 = vld [vmem:[%s5 + $0x750] sm:$0xff]
  %v4015 = vld [vmem:[%s5 + $0x758] sm:$0xff]
  %v4016 = vld [vmem:[%s5 + $0x760] sm:$0xff]
  %v4017 = vld [vmem:[%s5 + $0x768] sm:$0xff]
  %v4018 = vld [vmem:[%s5 + $0x770] sm:$0xff]
  %v4019 = vld [vmem:[%s5 + $0x778] sm:$0xff]
  %v4020 = vld [vmem:[%s5 + $0x780] sm:$0xff]
  %v4021 = vld [vmem:[%s5 + $0x788] sm:$0xff]
  %v4022 = vld [vmem:[%s5 + $0x790] sm:$0xff]
  %v4023 = vld [vmem:[%s5 + $0x798] sm:$0xff]
  %v4024 = vld [vmem:[%s5 + $0x7a0] sm:$0xff]
  %v4025 = vld [vmem:[%s5 + $0x7a8] sm:$0xff]
  %v4026 = vld [vmem:[%s5 + $0x7b0] sm:$0xff]
  %v4027 = vld [vmem:[%s5 + $0x7b8] sm:$0xff]
  %v4028 = vld [vmem:[%s5 + $0x7c0] sm:$0xff]
  %v4029 = vld [vmem:[%s5 + $0x7c8] sm:$0xff]
  %v4030 = vld [vmem:[%s5 + $0x7d0] sm:$0xff]
  %v4031 = vld [vmem:[%s5 + $0x7d8] sm:$0xff]
  %v4032 = vld [vmem:[%s5 + $0x7e0] sm:$0xff]
  %v4033 = vld [vmem:[%s5 + $0x7e8] sm:$0xff]
  %v4034 = vld [vmem:[%s5 + $0x7f0] sm:$0xff]
  %v4035 = vld [vmem:[%s5 + $0x7f8] sm:$0xff]
  %v4036 = vld [vmem:[%s5 + $0x800] sm:$0xff]
  %v4037 = vld [vmem:[%s5 + $0x808] sm:$0xff]
  %v4038 = vld [vmem:[%s5 + $0x810] sm:$0xff]
  %v4039 = vld [vmem:[%s5 + $0x818] sm:$0xff]
  %v4040 = vld [vmem:[%s5 + $0x820] sm:$0xff]
  %v4041 = vld [vmem:[%s5 + $0x828] sm:$0xff]
  %v4042 = vld [vmem:[%s5 + $0x830] sm:$0xff]
  %v4043 = vld [vmem:[%s5 + $0x838] sm:$0xff]
  %v4044 = vld [vmem:[%s5 + $0x840] sm:$0xff]
  %v4045 = vld [vmem:[%s5 + $0x848] sm:$0xff]
  %v4046 = vld [vmem:[%s5 + $0x850] sm:$0xff]
  %v4047 = vld [vmem:[%s5 + $0x858] sm:$0xff]
  %v4048 = vld [vmem:[%s5 + $0x860] sm:$0xff]
  %v4049 = vld [vmem:[%s5 + $0x868] sm:$0xff]
  %v4050 = vld [vmem:[%s5 + $0x870] sm:$0xff]
  %v4051 = vld [vmem:[%s5 + $0x878] sm:$0xff]
  %v4052 = vld [vmem:[%s5 + $0x880] sm:$0xff]
  %v4053 = vld [vmem:[%s5 + $0x888] sm:$0xff]
  %v4054 = vld [vmem:[%s5 + $0x890] sm:$0xff]
  %v4055 = vld [vmem:[%s5 + $0x898] sm:$0xff]
  %v4056 = vld [vmem:[%s5 + $0x8a0] sm:$0xff]
  %v4057 = vld [vmem:[%s5 + $0x8a8] sm:$0xff]
  %v4058 = vld [vmem:[%s5 + $0x8b0] sm:$0xff]
  %v4059 = vld [vmem:[%s5 + $0x8b8] sm:$0xff]
  %v4060 = vld [vmem:[%s5 + $0x8c0] sm:$0xff]
  %v4061 = vld [vmem:[%s5 + $0x8c8] sm:$0xff]
  %v4062 = vld [vmem:[%s5 + $0x8d0] sm:$0xff]
  %v4063 = vld [vmem:[%s5 + $0x8d8] sm:$0xff]
  %v4064 = vld [vmem:[%s5 + $0x8e0] sm:$0xff]
  %v4065 = vld [vmem:[%s5 + $0x8e8] sm:$0xff]
  %v4066 = vld [vmem:[%s5 + $0x8f0] sm:$0xff]
  %v4067 = vld [vmem:[%s5 + $0x8f8] sm:$0xff]
  %v4068 = vld [vmem:[%s5 + $0x900] sm:$0xff]
  %v4069 = vld [vmem:[%s5 + $0x908] sm:$0xff]
  %v4070 = vld [vmem:[%s5 + $0x910] sm:$0xff]
  %v4071 = vld [vmem:[%s5 + $0x918] sm:$0xff]
  %v4072 = vld [vmem:[%s5 + $0x920] sm:$0xff]
  %v4073 = vld [vmem:[%s5 + $0x928] sm:$0xff]
  %v4074 = vld [vmem:[%s5 + $0x930] sm:$0xff]
  %v4075 = vld [vmem:[%s5 + $0x938] sm:$0xff]
  %v4076 = vld [vmem:[%s5 + $0x940] sm:$0xff]
  %v4077 = vld [vmem:[%s5 + $0x948] sm:$0xff]
  %v4078 = vld [vmem:[%s5 + $0x950] sm:$0xff]
  %v4079 = vld [vmem:[%s5 + $0x958] sm:$0xff]
  %v4080 = vld [vmem:[%s5 + $0x960] sm:$0xff]
  %v4081 = vld [vmem:[%s5 + $0x968] sm:$0xff]
  %v4082 = vld [vmem:[%s5 + $0x970] sm:$0xff]
  %v4083 = vld [vmem:[%s5 + $0x978] sm:$0xff]
  %v4084 = vld [vmem:[%s5 + $0x980] sm:$0xff]
  %v4085 = vld [vmem:[%s5 + $0x988] sm:$0xff]
  %v4086 = vld [vmem:[%s5 + $0x990] sm:$0xff]
  %v4087 = vld [vmem:[%s5 + $0x998] sm:$0xff]
  %v4088 = vld [vmem:[%s5 + $0x9a0] sm:$0xff]
  %v4089 = vld [vmem:[%s5 + $0x9a8] sm:$0xff]
  %v4090 = vld [vmem:[%s5 + $0x9b0] sm:$0xff]
  %v4091 = vld [vmem:[%s5 + $0x9b8] sm:$0xff]
  %v4092 = vld [vmem:[%s5 + $0x9c0] sm:$0xff]
  %v4093 = vld [vmem:[%s5 + $0x9c8] sm:$0xff]
  %v4094 = vld [vmem:[%s5 + $0x9d0] sm:$0xff]
  %v4095 = vld [vmem:[%s5 + $0x9d8] sm:$0xff]
  %v4096 = vld [vmem:[%s5 + $0x9e0] sm:$0xff]
  %v4097 = vld [vmem:[%s5 + $0x9e8] sm:$0xff]
  %v4098 = vld [vmem:[%s5 + $0x9f0] sm:$0xff]
  %v4099 = vld [vmem:[%s5 + $0x9f8] sm:$0xff]
  %v4100 = vld [vmem:[%s5 + $0xa00] sm:$0xff]
  %v4101 = vld [vmem:[%s5 + $0xa08] sm:$0x7]
  %v4102 = vld [vmem:[%s5 + $0xa10] sm:$0x7]
  %v4103 = vld [vmem:[%s5 + $0xa18] sm:$0x7]
  %v4105 = vsel %vm2970, %v3772, 0
  %v4108 = vsel %vm2970, %v3779, 0
  %v4111 = vsel %vm2977, %v4101, 0
  %v4114 = vsel %vm2977, %v4102, 0
  %v4117 = vsel %vm2977, %v4103, 0
  %4119 = vmatprep.subr.mxu0 %v3781
  %4120 = vmatpush1.msra.mxu0 %v3780
  %4121 = vmatprep.subr.mxu0 %v3784
  %4122 = vmatpush1.msra.mxu0 %v3783
  %4123 = vmatprep.subr.mxu0 %v3787
  %4124 = vmatpush1.msra.mxu0 %v3786
  %4125 = vmatprep.subr.mxu0 %v3790
  %4126 = vmatpush1.msra.mxu0 %v3789
  %4127 = vmatprep.subr.mxu0 %v3793
  %4128 = vmatpush1.msra.mxu0 %v3792
  %4129 = vmatprep.subr.mxu0 %v3796
  %4130 = vmatpush1.msra.mxu0 %v3795
  %4131 = vmatprep.subr.mxu0 %v3799
  %4132 = vmatpush1.msra.mxu0 %v3798
  %4133 = vmatprep.subr.mxu0 %v3802
  %4134 = vmatpush1.msra.mxu0 %v3801
  %4135 = vmatprep.subr.mxu0 %v3805
  %4136 = vmatpush1.msra.mxu0 %v3804
  %4137 = vmatprep.subr.mxu0 %v3808
  %4138 = vmatpush1.msra.mxu0 %v3807
  %4139 = vmatprep.subr.mxu0 %v3811
  %4140 = vmatpush1.msra.mxu0 %v3810
  %4141 = vmatprep.subr.mxu0 %v3814
  %4142 = vmatpush1.msra.mxu0 %v3813
  %4143 = vmatprep.subr.mxu0 %v3817
  %4144 = vmatpush1.msra.mxu0 %v3816
  %4145 = vmatprep.subr.mxu0 %v3820
  %4146 = vmatpush1.msra.mxu0 %v3819
  %4147 = vmatprep.subr.mxu0 %v3823
  %4148 = vmatpush1.msra.mxu0 %v3822
  %4149 = vmatprep.subr.mxu0 %v3826
  %4150 = vmatpush1.msra.mxu0 %v3825
  %4151 = vmatprep.subr.mxu0 %v3829
  %4152 = vmatpush1.msra.mxu0 %v3828
  %4153 = vmatprep.subr.mxu0 %v3832
  %4154 = vmatpush1.msra.mxu0 %v3831
  %4155 = vmatprep.subr.mxu0 %v3835
  %4156 = vmatpush1.msra.mxu0 %v3834
  %4157 = vmatprep.subr.mxu0 %v3838
  %4158 = vmatpush1.msra.mxu0 %v3837
  %4159 = vmatprep.subr.mxu0 %v3841
  %4160 = vmatpush1.msra.mxu0 %v3840
  %4161 = vmatprep.subr.mxu0 %v3844
  %4162 = vmatpush1.msra.mxu0 %v3843
  %4163 = vmatprep.subr.mxu0 %v3847
  %4164 = vmatpush1.msra.mxu0 %v3846
  %4165 = vmatprep.subr.mxu0 %v3850
  %4166 = vmatpush1.msra.mxu0 %v3849
  %4167 = vmatprep.subr.mxu0 %v3853
  %4168 = vmatpush1.msra.mxu0 %v3852
  %4169 = vmatprep.subr.mxu0 %v3856
  %4170 = vmatpush1.msra.mxu0 %v3855
  %4171 = vmatprep.subr.mxu0 %v3859
  %4172 = vmatpush1.msra.mxu0 %v3858
  %4173 = vmatprep.subr.mxu0 %v3862
  %4174 = vmatpush1.msra.mxu0 %v3861
  %4175 = vmatprep.subr.mxu0 %v3865
  %4176 = vmatpush1.msra.mxu0 %v3864
  %4177 = vmatprep.subr.mxu0 %v3868
  %4178 = vmatpush1.msra.mxu0 %v3867
  %4179 = vmatprep.subr.mxu0 %v3871
  %4180 = vmatpush1.msra.mxu0 %v3870
  %4181 = vmatprep.subr.mxu0 %v3874
  %4182 = vmatpush1.msra.mxu0 %v3873
  %4183 = vmatprep.mubr.f32.mxu0 %v3767
  %4184 = vmatmul.mubr.f32.gmra.mrb[0].mxu0 %v3766
  %v4185 = vpop.f32.mrb[0].mxu0
  %v4186 = vadd.f32 0.0, %v4185
  %v4187 = vpop.f32.mrb[0].mxu0
  %v4188 = vadd.f32 0.0, %v4187
  %4189 = vmatprep.mubr.f32.mxu0 %v3774
  %4190 = vmatmul.mubr.f32.gmra.mrb[0].mxu0 %v3773
  %v4191 = vpop.f32.mrb[0].mxu0
  %v4192 = vadd.f32 0.0, %v4191
  %v4193 = vpop.f32.mrb[0].mxu0
  %v4194 = vadd.f32 0.0, %v4193
  %4195 = vdwg.mxu0
  %4196 = vmatprep.subr.mxu0 %v3877
  %4197 = vmatpush1.msra.mxu0 %v3876
  %4198 = vmatprep.subr.mxu0 %v3880
  %4199 = vmatpush1.msra.mxu0 %v3879
  %4200 = vmatprep.subr.mxu0 %v3883
  %4201 = vmatpush1.msra.mxu0 %v3882
  %4202 = vmatprep.subr.mxu0 %v3886
  %4203 = vmatpush1.msra.mxu0 %v3885
  %4204 = vmatprep.subr.mxu0 %v3889
  %4205 = vmatpush1.msra.mxu0 %v3888
  %4206 = vmatprep.subr.mxu0 %v3892
  %4207 = vmatpush1.msra.mxu0 %v3891
  %4208 = vmatprep.subr.mxu0 %v3895
  %4209 = vmatpush1.msra.mxu0 %v3894
  %4210 = vmatprep.subr.mxu0 %v3898
  %4211 = vmatpush1.msra.mxu0 %v3897
  %4212 = vmatprep.subr.mxu0 %v3901
  %4213 = vmatpush1.msra.mxu0 %v3900
  %4214 = vmatprep.subr.mxu0 %v3904
  %4215 = vmatpush1.msra.mxu0 %v3903
  %4216 = vmatprep.subr.mxu0 %v3907
  %4217 = vmatpush1.msra.mxu0 %v3906
  %4218 = vmatprep.subr.mxu0 %v3910
  %4219 = vmatpush1.msra.mxu0 %v3909
  %4220 = vmatprep.subr.mxu0 %v3913
  %4221 = vmatpush1.msra.mxu0 %v3912
  %4222 = vmatprep.subr.mxu0 %v3916
  %4223 = vmatpush1.msra.mxu0 %v3915
  %4224 = vmatprep.subr.mxu0 %v3919
  %4225 = vmatpush1.msra.mxu0 %v3918
  %4226 = vmatprep.subr.mxu0 %v3922
  %4227 = vmatpush1.msra.mxu0 %v3921
  %4228 = vmatprep.subr.mxu0 %v3925
  %4229 = vmatpush1.msra.mxu0 %v3924
  %4230 = vmatprep.subr.mxu0 %v3928
  %4231 = vmatpush1.msra.mxu0 %v3927
  %4232 = vmatprep.subr.mxu0 %v3931
  %4233 = vmatpush1.msra.mxu0 %v3930
  %4234 = vmatprep.subr.mxu0 %v3934
  %4235 = vmatpush1.msra.mxu0 %v3933
  %4236 = vmatprep.subr.mxu0 %v3937
  %4237 = vmatpush1.msra.mxu0 %v3936
  %4238 = vmatprep.subr.mxu0 %v3940
  %4239 = vmatpush1.msra.mxu0 %v3939
  %4240 = vmatprep.subr.mxu0 %v3943
  %4241 = vmatpush1.msra.mxu0 %v3942
  %4242 = vmatprep.subr.mxu0 %v3946
  %4243 = vmatpush1.msra.mxu0 %v3945
  %4244 = vmatprep.subr.mxu0 %v3949
  %4245 = vmatpush1.msra.mxu0 %v3948
  %4246 = vmatprep.subr.mxu0 %v3952
  %4247 = vmatpush1.msra.mxu0 %v3951
  %4248 = vmatprep.subr.mxu0 %v3955
  %4249 = vmatpush1.msra.mxu0 %v3954
  %4250 = vmatprep.subr.mxu0 %v3958
  %4251 = vmatpush1.msra.mxu0 %v3957
  %4252 = vmatprep.subr.mxu0 %v3961
  %4253 = vmatpush1.msra.mxu0 %v3960
  %4254 = vmatprep.subr.mxu0 %v3964
  %4255 = vmatpush1.msra.mxu0 %v3963
  %4256 = vmatprep.subr.mxu0 %v3967
  %4257 = vmatpush1.msra.mxu0 %v3966
  %4258 = vmatprep.subr.mxu0 %v3970
  %4259 = vmatpush1.msra.mxu0 %v3969
  %4260 = vmatprep.mubr.f32.mxu0 %v3769
  %4261 = vmatmul.mubr.f32.gmra.mrb[0].mxu0 %v3768
  %v4262 = vpop.f32.mrb[0].mxu0
  %v4263 = vadd.f32 %v4186, %v4262
  %v4264 = vpop.f32.mrb[0].mxu0
  %v4265 = vadd.f32 %v4188, %v4264
  %4266 = vmatprep.mubr.f32.mxu0 %v3776
  %4267 = vmatmul.mubr.f32.gmra.mrb[0].mxu0 %v3775
  %v4268 = vpop.f32.mrb[0].mxu0
  %v4269 = vadd.f32 %v4192, %v4268
  %v4270 = vpop.f32.mrb[0].mxu0
  %v4271 = vadd.f32 %v4194, %v4270
  %4272 = vdwg.mxu0
  %4273 = vmatprep.subr.mxu0 %v3973
  %4274 = vmatpush1.msra.mxu0 %v3972
  %4275 = vmatprep.subr.mxu0 %v3976
  %4276 = vmatpush1.msra.mxu0 %v3975
  %4277 = vmatprep.subr.mxu0 %v3979
  %4278 = vmatpush1.msra.mxu0 %v3978
  %4279 = vmatprep.subr.mxu0 %v3982
  %4280 = vmatpush1.msra.mxu0 %v3981
  %4281 = vmatprep.subr.mxu0 %v3985
  %4282 = vmatpush1.msra.mxu0 %v3984
  %4283 = vmatprep.subr.mxu0 %v3988
  %4284 = vmatpush1.msra.mxu0 %v3987
  %4285 = vmatprep.subr.mxu0 %v3991
  %4286 = vmatpush1.msra.mxu0 %v3990
  %4287 = vmatprep.subr.mxu0 %v3994
  %4288 = vmatpush1.msra.mxu0 %v3993
  %4289 = vmatprep.subr.mxu0 %v3997
  %4290 = vmatpush1.msra.mxu0 %v3996
  %4291 = vmatprep.subr.mxu0 %v4000
  %4292 = vmatpush1.msra.mxu0 %v3999
  %4293 = vmatprep.subr.mxu0 %v4003
  %4294 = vmatpush1.msra.mxu0 %v4002
  %4295 = vmatprep.subr.mxu0 %v4006
  %4296 = vmatpush1.msra.mxu0 %v4005
  %4297 = vmatprep.subr.mxu0 %v4009
  %4298 = vmatpush1.msra.mxu0 %v4008
  %4299 = vmatprep.subr.mxu0 %v4012
  %4300 = vmatpush1.msra.mxu0 %v4011
  %4301 = vmatprep.subr.mxu0 %v4015
  %4302 = vmatpush1.msra.mxu0 %v4014
  %4303 = vmatprep.subr.mxu0 %v4018
  %4304 = vmatpush1.msra.mxu0 %v4017
  %4305 = vmatprep.subr.mxu0 %v4021
  %4306 = vmatpush1.msra.mxu0 %v4020
  %4307 = vmatprep.subr.mxu0 %v4024
  %4308 = vmatpush1.msra.mxu0 %v4023
  %4309 = vmatprep.subr.mxu0 %v4027
  %4310 = vmatpush1.msra.mxu0 %v4026
  %4311 = vmatprep.subr.mxu0 %v4030
  %4312 = vmatpush1.msra.mxu0 %v4029
  %4313 = vmatprep.subr.mxu0 %v4033
  %4314 = vmatpush1.msra.mxu0 %v4032
  %4315 = vmatprep.subr.mxu0 %v4036
  %4316 = vmatpush1.msra.mxu0 %v4035
  %4317 = vmatprep.subr.mxu0 %v4039
  %4318 = vmatpush1.msra.mxu0 %v4038
  %4319 = vmatprep.subr.mxu0 %v4042
  %4320 = vmatpush1.msra.mxu0 %v4041
  %4321 = vmatprep.subr.mxu0 %v4045
  %4322 = vmatpush1.msra.mxu0 %v4044
  %4323 = vmatprep.subr.mxu0 %v4048
  %4324 = vmatpush1.msra.mxu0 %v4047
  %4325 = vmatprep.subr.mxu0 %v4051
  %4326 = vmatpush1.msra.mxu0 %v4050
  %4327 = vmatprep.subr.mxu0 %v4054
  %4328 = vmatpush1.msra.mxu0 %v4053
  %4329 = vmatprep.subr.mxu0 %v4057
  %4330 = vmatpush1.msra.mxu0 %v4056
  %4331 = vmatprep.subr.mxu0 %v4060
  %4332 = vmatpush1.msra.mxu0 %v4059
  %4333 = vmatprep.subr.mxu0 %v4063
  %4334 = vmatpush1.msra.mxu0 %v4062
  %4335 = vmatprep.subr.mxu0 %v4066
  %4336 = vmatpush1.msra.mxu0 %v4065
  %4337 = vmatprep.mubr.f32.mxu0 %v3771
  %4338 = vmatmul.mubr.f32.gmra.mrb[0].mxu0 %v3770
  %v4339 = vpop.f32.mrb[0].mxu0
  %v4340 = vadd.f32 %v4263, %v4339
  %v4341 = vpop.f32.mrb[0].mxu0
  %v4342 = vadd.f32 %v4265, %v4341
  %4343 = vmatprep.mubr.f32.mxu0 %v3778
  %4344 = vmatmul.mubr.f32.gmra.mrb[0].mxu0 %v3777
  %v4345 = vpop.f32.mrb[0].mxu0
  %v4346 = vadd.f32 %v4269, %v4345
  %v4347 = vpop.f32.mrb[0].mxu0
  %v4348 = vadd.f32 %v4271, %v4347
  %4349 = vdwg.mxu0
  %4350 = vmatprep.subr.mxu0 %v4069
  %4351 = vmatpush1.msra.mxu0 %v4068
  %4352 = vmatprep.subr.mxu0 %v4072
  %4353 = vmatpush1.msra.mxu0 %v4071
  %4354 = vmatprep.subr.mxu0 %v4075
  %4355 = vmatpush1.msra.mxu0 %v4074
  %4356 = vmatprep.subr.mxu0 %v4078
  %4357 = vmatpush1.msra.mxu0 %v4077
  %4358 = vmatprep.subr.mxu0 %v4081
  %4359 = vmatpush1.msra.mxu0 %v4080
  %4360 = vmatprep.subr.mxu0 %v4084
  %4361 = vmatpush1.msra.mxu0 %v4083
  %4362 = vmatprep.subr.mxu0 %v4087
  %4363 = vmatpush1.msra.mxu0 %v4086
  %4364 = vmatprep.subr.mxu0 %v4090
  %4365 = vmatpush1.msra.mxu0 %v4089
  %4366 = vmatprep.subr.mxu0 %v4093
  %4367 = vmatpush1.msra.mxu0 %v4092
  %4368 = vmatprep.subr.mxu0 %v4096
  %4369 = vmatpush1.msra.mxu0 %v4095
  %4370 = vmatprep.subr.mxu0 %v4099
  %4371 = vmatpush1.msra.mxu0 %v4098
  %4372 = vmatprep.subr.mxu0 %v4114
  %4373 = vmatpush1.msra.mxu0 %v4111
  %4374 = vmatprep.subr.mxu0 0.0
  %4375 = vmatpush1.msra.mxu0 0.0
  %4376 = vmatprep.subr.mxu0 0.0
  %4377 = vmatpush1.msra.mxu0 0.0
  %4378 = vmatprep.subr.mxu0 0.0
  %4379 = vmatpush1.msra.mxu0 0.0
  %4380 = vmatprep.subr.mxu0 0.0
  %4381 = vmatpush1.msra.mxu0 0.0
  %4382 = vmatprep.subr.mxu0 0.0
  %4383 = vmatpush1.msra.mxu0 0.0
  %4384 = vmatprep.subr.mxu0 0.0
  %4385 = vmatpush1.msra.mxu0 0.0
  %4386 = vmatprep.subr.mxu0 0.0
  %4387 = vmatpush1.msra.mxu0 0.0
  %4388 = vmatprep.subr.mxu0 0.0
  %4389 = vmatpush1.msra.mxu0 0.0
  %4390 = vmatprep.subr.mxu0 0.0
  %4391 = vmatpush1.msra.mxu0 0.0
  %4392 = vmatprep.subr.mxu0 0.0
  %4393 = vmatpush1.msra.mxu0 0.0
  %4394 = vmatprep.subr.mxu0 0.0
  %4395 = vmatpush1.msra.mxu0 0.0
  %4396 = vmatprep.subr.mxu0 0.0
  %4397 = vmatpush1.msra.mxu0 0.0
  %4398 = vmatprep.subr.mxu0 0.0
  %4399 = vmatpush1.msra.mxu0 0.0
  %4400 = vmatprep.subr.mxu0 0.0
  %4401 = vmatpush1.msra.mxu0 0.0
  %4402 = vmatprep.subr.mxu0 0.0
  %4403 = vmatpush1.msra.mxu0 0.0
  %4404 = vmatprep.subr.mxu0 0.0
  %4405 = vmatpush1.msra.mxu0 0.0
  %4406 = vmatprep.subr.mxu0 0.0
  %4407 = vmatpush1.msra.mxu0 0.0
  %4408 = vmatprep.subr.mxu0 0.0
  %4409 = vmatpush1.msra.mxu0 0.0
  %4410 = vmatprep.subr.mxu0 0.0
  %4411 = vmatpush1.msra.mxu0 0.0
  %4412 = vmatprep.subr.mxu0 0.0
  %4413 = vmatpush1.msra.mxu0 0.0
  %4414 = vmatprep.mubr.f32.mxu0 0.0
  %4415 = vmatmul.mubr.f32.gmra.mrb[0].mxu0 %v4105
  %v4416 = vpop.f32.mrb[0].mxu0
  %v4417 = vadd.f32 %v4340, %v4416
  %v4418 = vpop.f32.mrb[0].mxu0
  %v4419 = vadd.f32 %v4342, %v4418
  %4420 = vmatprep.mubr.f32.mxu0 0.0
  %4421 = vmatmul.mubr.f32.gmra.mrb[0].mxu0 %v4108
  %v4422 = vpop.f32.mrb[0].mxu0
  %v4423 = vadd.f32 %v4346, %v4422
  %v4424 = vpop.f32.mrb[0].mxu0
  %v4425 = vadd.f32 %v4348, %v4424
  %4426 = vdwg.mxu0
  %4427 = vmatprep.subr.mxu0 0.0
  %4428 = vmatpush1.msra.mxu0 %v3782
  %4429 = vmatprep.subr.mxu0 0.0
  %4430 = vmatpush1.msra.mxu0 %v3785
  %4431 = vmatprep.subr.mxu0 0.0
  %4432 = vmatpush1.msra.mxu0 %v3788
  %4433 = vmatprep.subr.mxu0 0.0
  %4434 = vmatpush1.msra.mxu0 %v3791
  %4435 = vmatprep.subr.mxu0 0.0
  %4436 = vmatpush1.msra.mxu0 %v3794
  %4437 = vmatprep.subr.mxu0 0.0
  %4438 = vmatpush1.msra.mxu0 %v3797
  %4439 = vmatprep.subr.mxu0 0.0
  %4440 = vmatpush1.msra.mxu0 %v3800
  %4441 = vmatprep.subr.mxu0 0.0
  %4442 = vmatpush1.msra.mxu0 %v3803
  %4443 = vmatprep.subr.mxu0 0.0
  %4444 = vmatpush1.msra.mxu0 %v3806
  %4445 = vmatprep.subr.mxu0 0.0
  %4446 = vmatpush1.msra.mxu0 %v3809
  %4447 = vmatprep.subr.mxu0 0.0
  %4448 = vmatpush1.msra.mxu0 %v3812
  %4449 = vmatprep.subr.mxu0 0.0
  %4450 = vmatpush1.msra.mxu0 %v3815
  %4451 = vmatprep.subr.mxu0 0.0
  %4452 = vmatpush1.msra.mxu0 %v3818
  %4453 = vmatprep.subr.mxu0 0.0
  %4454 = vmatpush1.msra.mxu0 %v3821
  %4455 = vmatprep.subr.mxu0 0.0
  %4456 = vmatpush1.msra.mxu0 %v3824
  %4457 = vmatprep.subr.mxu0 0.0
  %4458 = vmatpush1.msra.mxu0 %v3827
  %4459 = vmatprep.subr.mxu0 0.0
  %4460 = vmatpush1.msra.mxu0 %v3830
  %4461 = vmatprep.subr.mxu0 0.0
  %4462 = vmatpush1.msra.mxu0 %v3833
  %4463 = vmatprep.subr.mxu0 0.0
  %4464 = vmatpush1.msra.mxu0 %v3836
  %4465 = vmatprep.subr.mxu0 0.0
  %4466 = vmatpush1.msra.mxu0 %v3839
  %4467 = vmatprep.subr.mxu0 0.0
  %4468 = vmatpush1.msra.mxu0 %v3842
  %4469 = vmatprep.subr.mxu0 0.0
  %4470 = vmatpush1.msra.mxu0 %v3845
  %4471 = vmatprep.subr.mxu0 0.0
  %4472 = vmatpush1.msra.mxu0 %v3848
  %4473 = vmatprep.subr.mxu0 0.0
  %4474 = vmatpush1.msra.mxu0 %v3851
  %4475 = vmatprep.subr.mxu0 0.0
  %4476 = vmatpush1.msra.mxu0 %v3854
  %4477 = vmatprep.subr.mxu0 0.0
  %4478 = vmatpush1.msra.mxu0 %v3857
  %4479 = vmatprep.subr.mxu0 0.0
  %4480 = vmatpush1.msra.mxu0 %v3860
  %4481 = vmatprep.subr.mxu0 0.0
  %4482 = vmatpush1.msra.mxu0 %v3863
  %4483 = vmatprep.subr.mxu0 0.0
  %4484 = vmatpush1.msra.mxu0 %v3866
  %4485 = vmatprep.subr.mxu0 0.0
  %4486 = vmatpush1.msra.mxu0 %v3869
  %4487 = vmatprep.subr.mxu0 0.0
  %4488 = vmatpush1.msra.mxu0 %v3872
  %4489 = vmatprep.subr.mxu0 0.0
  %4490 = vmatpush1.msra.mxu0 %v3875
  %4491 = vmatprep.mubr.f32.mxu0 %v3767
  %4492 = vmatmul.mubr.f32.gmra.mrb[0].mxu0 %v3766
  %v4493 = vpop.f32.mrb[0].mxu0
  %v4494 = vadd.f32 0.0, %v4493
  %v4495 = vpop.f32.mrb[0].mxu0
  %4496 = vmatprep.mubr.f32.mxu0 %v3774
  %4497 = vmatmul.mubr.f32.gmra.mrb[0].mxu0 %v3773
  %v4498 = vpop.f32.mrb[0].mxu0
  %v4499 = vadd.f32 0.0, %v4498
  %v4500 = vpop.f32.mrb[0].mxu0
  %4501 = vdwg.mxu0
  %4502 = vmatprep.subr.mxu0 0.0
  %4503 = vmatpush1.msra.mxu0 %v3878
  %4504 = vmatprep.subr.mxu0 0.0
  %4505 = vmatpush1.msra.mxu0 %v3881
  %4506 = vmatprep.subr.mxu0 0.0
  %4507 = vmatpush1.msra.mxu0 %v3884
  %4508 = vmatprep.subr.mxu0 0.0
  %4509 = vmatpush1.msra.mxu0 %v3887
  %4510 = vmatprep.subr.mxu0 0.0
  %4511 = vmatpush1.msra.mxu0 %v3890
  %4512 = vmatprep.subr.mxu0 0.0
  %4513 = vmatpush1.msra.mxu0 %v3893
  %4514 = vmatprep.subr.mxu0 0.0
  %4515 = vmatpush1.msra.mxu0 %v3896
  %4516 = vmatprep.subr.mxu0 0.0
  %4517 = vmatpush1.msra.mxu0 %v3899
  %4518 = vmatprep.subr.mxu0 0.0
  %4519 = vmatpush1.msra.mxu0 %v3902
  %4520 = vmatprep.subr.mxu0 0.0
  %4521 = vmatpush1.msra.mxu0 %v3905
  %4522 = vmatprep.subr.mxu0 0.0
  %4523 = vmatpush1.msra.mxu0 %v3908
  %4524 = vmatprep.subr.mxu0 0.0
  %4525 = vmatpush1.msra.mxu0 %v3911
  %4526 = vmatprep.subr.mxu0 0.0
  %4527 = vmatpush1.msra.mxu0 %v3914
  %4528 = vmatprep.subr.mxu0 0.0
  %4529 = vmatpush1.msra.mxu0 %v3917
  %4530 = vmatprep.subr.mxu0 0.0
  %4531 = vmatpush1.msra.mxu0 %v3920
  %4532 = vmatprep.subr.mxu0 0.0
  %4533 = vmatpush1.msra.mxu0 %v3923
  %4534 = vmatprep.subr.mxu0 0.0
  %4535 = vmatpush1.msra.mxu0 %v3926
  %4536 = vmatprep.subr.mxu0 0.0
  %4537 = vmatpush1.msra.mxu0 %v3929
  %4538 = vmatprep.subr.mxu0 0.0
  %4539 = vmatpush1.msra.mxu0 %v3932
  %4540 = vmatprep.subr.mxu0 0.0
  %4541 = vmatpush1.msra.mxu0 %v3935
  %4542 = vmatprep.subr.mxu0 0.0
  %4543 = vmatpush1.msra.mxu0 %v3938
  %4544 = vmatprep.subr.mxu0 0.0
  %4545 = vmatpush1.msra.mxu0 %v3941
  %4546 = vmatprep.subr.mxu0 0.0
  %4547 = vmatpush1.msra.mxu0 %v3944
  %4548 = vmatprep.subr.mxu0 0.0
  %4549 = vmatpush1.msra.mxu0 %v3947
  %4550 = vmatprep.subr.mxu0 0.0
  %4551 = vmatpush1.msra.mxu0 %v3950
  %4552 = vmatprep.subr.mxu0 0.0
  %4553 = vmatpush1.msra.mxu0 %v3953
  %4554 = vmatprep.subr.mxu0 0.0
  %4555 = vmatpush1.msra.mxu0 %v3956
  %4556 = vmatprep.subr.mxu0 0.0
  %4557 = vmatpush1.msra.mxu0 %v3959
  %4558 = vmatprep.subr.mxu0 0.0
  %4559 = vmatpush1.msra.mxu0 %v3962
  %4560 = vmatprep.subr.mxu0 0.0
  %4561 = vmatpush1.msra.mxu0 %v3965
  %4562 = vmatprep.subr.mxu0 0.0
  %4563 = vmatpush1.msra.mxu0 %v3968
  %4564 = vmatprep.subr.mxu0 0.0
  %4565 = vmatpush1.msra.mxu0 %v3971
  %4566 = vmatprep.mubr.f32.mxu0 %v3769
  %4567 = vmatmul.mubr.f32.gmra.mrb[0].mxu0 %v3768
  %v4568 = vpop.f32.mrb[0].mxu0
  %v4569 = vadd.f32 %v4494, %v4568
  %v4570 = vpop.f32.mrb[0].mxu0
  %4571 = vmatprep.mubr.f32.mxu0 %v3776
  %4572 = vmatmul.mubr.f32.gmra.mrb[0].mxu0 %v3775
  %v4573 = vpop.f32.mrb[0].mxu0
  %v4574 = vadd.f32 %v4499, %v4573
  %v4575 = vpop.f32.mrb[0].mxu0
  %4576 = vdwg.mxu0
  %4577 = vmatprep.subr.mxu0 0.0
  %4578 = vmatpush1.msra.mxu0 %v3974
  %4579 = vmatprep.subr.mxu0 0.0
  %4580 = vmatpush1.msra.mxu0 %v3977
  %4581 = vmatprep.subr.mxu0 0.0
  %4582 = vmatpush1.msra.mxu0 %v3980
  %4583 = vmatprep.subr.mxu0 0.0
  %4584 = vmatpush1.msra.mxu0 %v3983
  %4585 = vmatprep.subr.mxu0 0.0
  %4586 = vmatpush1.msra.mxu0 %v3986
  %4587 = vmatprep.subr.mxu0 0.0
  %4588 = vmatpush1.msra.mxu0 %v3989
  %4589 = vmatprep.subr.mxu0 0.0
  %4590 = vmatpush1.msra.mxu0 %v3992
  %4591 = vmatprep.subr.mxu0 0.0
  %4592 = vmatpush1.msra.mxu0 %v3995
  %4593 = vmatprep.subr.mxu0 0.0
  %4594 = vmatpush1.msra.mxu0 %v3998
  %4595 = vmatprep.subr.mxu0 0.0
  %4596 = vmatpush1.msra.mxu0 %v4001
  %4597 = vmatprep.subr.mxu0 0.0
  %4598 = vmatpush1.msra.mxu0 %v4004
  %4599 = vmatprep.subr.mxu0 0.0
  %4600 = vmatpush1.msra.mxu0 %v4007
  %4601 = vmatprep.subr.mxu0 0.0
  %4602 = vmatpush1.msra.mxu0 %v4010
  %4603 = vmatprep.subr.mxu0 0.0
  %4604 = vmatpush1.msra.mxu0 %v4013
  %4605 = vmatprep.subr.mxu0 0.0
  %4606 = vmatpush1.msra.mxu0 %v4016
  %4607 = vmatprep.subr.mxu0 0.0
  %4608 = vmatpush1.msra.mxu0 %v4019
  %4609 = vmatprep.subr.mxu0 0.0
  %4610 = vmatpush1.msra.mxu0 %v4022
  %4611 = vmatprep.subr.mxu0 0.0
  %4612 = vmatpush1.msra.mxu0 %v4025
  %4613 = vmatprep.subr.mxu0 0.0
  %4614 = vmatpush1.msra.mxu0 %v4028
  %4615 = vmatprep.subr.mxu0 0.0
  %4616 = vmatpush1.msra.mxu0 %v4031
  %4617 = vmatprep.subr.mxu0 0.0
  %4618 = vmatpush1.msra.mxu0 %v4034
  %4619 = vmatprep.subr.mxu0 0.0
  %4620 = vmatpush1.msra.mxu0 %v4037
  %4621 = vmatprep.subr.mxu0 0.0
  %4622 = vmatpush1.msra.mxu0 %v4040
  %4623 = vmatprep.subr.mxu0 0.0
  %4624 = vmatpush1.msra.mxu0 %v4043
  %4625 = vmatprep.subr.mxu0 0.0
  %4626 = vmatpush1.msra.mxu0 %v4046
  %4627 = vmatprep.subr.mxu0 0.0
  %4628 = vmatpush1.msra.mxu0 %v4049
  %4629 = vmatprep.subr.mxu0 0.0
  %4630 = vmatpush1.msra.mxu0 %v4052
  %4631 = vmatprep.subr.mxu0 0.0
  %4632 = vmatpush1.msra.mxu0 %v4055
  %4633 = vmatprep.subr.mxu0 0.0
  %4634 = vmatpush1.msra.mxu0 %v4058
  %4635 = vmatprep.subr.mxu0 0.0
  %4636 = vmatpush1.msra.mxu0 %v4061
  %4637 = vmatprep.subr.mxu0 0.0
  %4638 = vmatpush1.msra.mxu0 %v4064
  %4639 = vmatprep.subr.mxu0 0.0
  %4640 = vmatpush1.msra.mxu0 %v4067
  %4641 = vmatprep.mubr.f32.mxu0 %v3771
  %4642 = vmatmul.mubr.f32.gmra.mrb[0].mxu0 %v3770
  %v4643 = vpop.f32.mrb[0].mxu0
  %v4644 = vadd.f32 %v4569, %v4643
  %v4645 = vpop.f32.mrb[0].mxu0
  %4646 = vmatprep.mubr.f32.mxu0 %v3778
  %4647 = vmatmul.mubr.f32.gmra.mrb[0].mxu0 %v3777
  %v4648 = vpop.f32.mrb[0].mxu0
  %v4649 = vadd.f32 %v4574, %v4648
  %v4650 = vpop.f32.mrb[0].mxu0
  %4651 = vdwg.mxu0
  %4652 = vmatprep.subr.mxu0 0.0
  %4653 = vmatpush1.msra.mxu0 %v4070
  %4654 = vmatprep.subr.mxu0 0.0
  %4655 = vmatpush1.msra.mxu0 %v4073
  %4656 = vmatprep.subr.mxu0 0.0
  %4657 = vmatpush1.msra.mxu0 %v4076
  %4658 = vmatprep.subr.mxu0 0.0
  %4659 = vmatpush1.msra.mxu0 %v4079
  %4660 = vmatprep.subr.mxu0 0.0
  %4661 = vmatpush1.msra.mxu0 %v4082
  %4662 = vmatprep.subr.mxu0 0.0
  %4663 = vmatpush1.msra.mxu0 %v4085
  %4664 = vmatprep.subr.mxu0 0.0
  %4665 = vmatpush1.msra.mxu0 %v4088
  %4666 = vmatprep.subr.mxu0 0.0
  %4667 = vmatpush1.msra.mxu0 %v4091
  %4668 = vmatprep.subr.mxu0 0.0
  %4669 = vmatpush1.msra.mxu0 %v4094
  %4670 = vmatprep.subr.mxu0 0.0
  %4671 = vmatpush1.msra.mxu0 %v4097
  %4672 = vmatprep.subr.mxu0 0.0
  %4673 = vmatpush1.msra.mxu0 %v4100
  %4674 = vmatprep.subr.mxu0 0.0
  %4675 = vmatpush1.msra.mxu0 %v4117
  %4676 = vmatprep.subr.mxu0 0.0
  %4677 = vmatpush1.msra.mxu0 0.0
  %4678 = vmatprep.subr.mxu0 0.0
  %4679 = vmatpush1.msra.mxu0 0.0
  %4680 = vmatprep.subr.mxu0 0.0
  %4681 = vmatpush1.msra.mxu0 0.0
  %4682 = vmatprep.subr.mxu0 0.0
  %4683 = vmatpush1.msra.mxu0 0.0
  %4684 = vmatprep.subr.mxu0 0.0
  %4685 = vmatpush1.msra.mxu0 0.0
  %4686 = vmatprep.subr.mxu0 0.0
  %4687 = vmatpush1.msra.mxu0 0.0
  %4688 = vmatprep.subr.mxu0 0.0
  %4689 = vmatpush1.msra.mxu0 0.0
  %4690 = vmatprep.subr.mxu0 0.0
  %4691 = vmatpush1.msra.mxu0 0.0
  %4692 = vmatprep.subr.mxu0 0.0
  %4693 = vmatpush1.msra.mxu0 0.0
  %4694 = vmatprep.subr.mxu0 0.0
  %4695 = vmatpush1.msra.mxu0 0.0
  %4696 = vmatprep.subr.mxu0 0.0
  %4697 = vmatpush1.msra.mxu0 0.0
  %4698 = vmatprep.subr.mxu0 0.0
  %4699 = vmatpush1.msra.mxu0 0.0
  %4700 = vmatprep.subr.mxu0 0.0
  %4701 = vmatpush1.msra.mxu0 0.0
  %4702 = vmatprep.subr.mxu0 0.0
  %4703 = vmatpush1.msra.mxu0 0.0
  %4704 = vmatprep.subr.mxu0 0.0
  %4705 = vmatpush1.msra.mxu0 0.0
  %4706 = vmatprep.subr.mxu0 0.0
  %4707 = vmatpush1.msra.mxu0 0.0
  %4708 = vmatprep.subr.mxu0 0.0
  %4709 = vmatpush1.msra.mxu0 0.0
  %4710 = vmatprep.subr.mxu0 0.0
  %4711 = vmatpush1.msra.mxu0 0.0
  %4712 = vmatprep.subr.mxu0 0.0
  %4713 = vmatpush1.msra.mxu0 0.0
  %4714 = vmatprep.subr.mxu0 0.0
  %4715 = vmatpush1.msra.mxu0 0.0
  %4716 = vmatprep.mubr.f32.mxu0 0.0
  %4717 = vmatmul.mubr.f32.gmra.mrb[0].mxu0 %v4105
  %v4718 = vpop.f32.mrb[0].mxu0
  %v4719 = vadd.f32 %v4644, %v4718
  %v4720 = vpop.f32.mrb[0].mxu0
  %4721 = vmatprep.mubr.f32.mxu0 0.0
  %4722 = vmatmul.mubr.f32.gmra.mrb[0].mxu0 %v4108
  %v4723 = vpop.f32.mrb[0].mxu0
  %v4724 = vadd.f32 %v4649, %v4723
  %v4725 = vpop.f32.mrb[0].mxu0
  %4726 = vdwg.mxu0
  %s4727 = scalar_lea.vmem [#allocation5], 48
  %4728 = vst [vmem:[%s4727] sm:$0xff] %v4417
  %4729 = vst [vmem:[%s4727 + $0x8] sm:$0xff] %v4419
  %4730 = vst.msk [vmem:[%s4727 + $0x10] sm:$0xff] %vm3597, %v4719
  %4731 = vst [vmem:[%s4727 + $0x18] sm:$0xff] %v4423
  %4732 = vst [vmem:[%s4727 + $0x20] sm:$0xff] %v4425
  %4733 = vst.msk [vmem:[%s4727 + $0x28] sm:$0xff] %vm3597, %v4724
  %v4734 = vld [vmem:[#allocation5] sm:$0xff]
  %v4735 = vld [vmem:[#allocation5 + $0x8] sm:$0xff]
  %v4736 = vld [vmem:[#allocation5 + $0x18] sm:$0xff]
  %v4737 = vld [vmem:[#allocation5 + $0x20] sm:$0xff]
  %v4738 = vld [vmem:[#allocation5 + $0x30] sm:$0xff]
  %v4739 = vld [vmem:[#allocation5 + $0x38] sm:$0xff]
  %v4740 = vld [vmem:[#allocation5 + $0x48] sm:$0xff]
  %v4741 = vld [vmem:[#allocation5 + $0x50] sm:$0xff]
  %4742 = vst [vmem:[#allocation6] sm:$0xff] %v4734
  %vm4743 = vcmask 982016
  %4744 = vst.msk [vmem:[#allocation6 + $0x8] sm:$0xff] %vm4743, %v4735
  %4745 = vst [vmem:[#allocation6 + $0x10] sm:$0xff] %v4736
  %4746 = vst.msk [vmem:[#allocation6 + $0x18] sm:$0xff] %vm4743, %v4737
  %4747 = vst [vmem:[#allocation6 + $0x320] sm:$0xff] %v4738
  %4748 = vst.msk [vmem:[#allocation6 + $0x328] sm:$0xff] %vm4743, %v4739
  %4749 = vst [vmem:[#allocation6 + $0x330] sm:$0xff] %v4740
  %4750 = vst.msk [vmem:[#allocation6 + $0x338] sm:$0xff] %vm4743, %v4741
  %v4751 = vld [vmem:[#allocation5] sm:$0xff]
  %v4752 = vld [vmem:[#allocation5 + $0x8] sm:$0xff]
  %v4753 = vld [vmem:[#allocation5 + $0x18] sm:$0xff]
  %v4754 = vld [vmem:[#allocation5 + $0x20] sm:$0xff]
  %v4755 = vld [vmem:[#allocation5 + $0x30] sm:$0xff]
  %v4756 = vld [vmem:[#allocation5 + $0x38] sm:$0xff]
  %v4757 = vld [vmem:[#allocation5 + $0x48] sm:$0xff]
  %v4758 = vld [vmem:[#allocation5 + $0x50] sm:$0xff]
  %4767 = vrot.lane.b32.xlu0 %v4751, 127
  %v4768 = vpop.permute.xlu0 %4767
  %4769 = vrot.lane.b32.xlu0 %v4752, 127
  %v4770 = vpop.permute.xlu0 %4769
  %4771 = vrot.lane.b32.xlu0 %v4753, 127
  %v4772 = vpop.permute.xlu0 %4771
  %4773 = vrot.lane.b32.xlu0 %v4754, 127
  %v4774 = vpop.permute.xlu0 %4773
  %4775 = vrot.lane.b32.xlu0 %v4755, 127
  %v4776 = vpop.permute.xlu0 %4775
  %4777 = vrot.lane.b32.xlu0 %v4756, 127
  %v4778 = vpop.permute.xlu0 %4777
  %4779 = vrot.lane.b32.xlu0 %v4757, 127
  %v4780 = vpop.permute.xlu0 %4779
  %4781 = vrot.lane.b32.xlu0 %v4758, 127
  %v4782 = vpop.permute.xlu0 %4781
  %v4783 = vsel %vm1181, %v4768, %v4770
  %v4784 = vsel %vm1181, %v4772, %v4774
  %v4785 = vsel %vm1181, %v4776, %v4778
  %v4786 = vsel %vm1181, %v4780, %v4782
  %4795 = vst [vmem:[#allocation6 + $0x20] sm:$0xff] %v4783
  %4796 = vst.msk [vmem:[#allocation6 + $0x28] sm:$0xff] %vm4743, %v4770
  %4797 = vst [vmem:[#allocation6 + $0x30] sm:$0xff] %v4784
  %4798 = vst.msk [vmem:[#allocation6 + $0x38] sm:$0xff] %vm4743, %v4774
  %4799 = vst [vmem:[#allocation6 + $0x340] sm:$0xff] %v4785
  %4800 = vst.msk [vmem:[#allocation6 + $0x348] sm:$0xff] %vm4743, %v4778
  %4801 = vst [vmem:[#allocation6 + $0x350] sm:$0xff] %v4786
  %4802 = vst.msk [vmem:[#allocation6 + $0x358] sm:$0xff] %vm4743, %v4782
  %v4803 = vld [vmem:[#allocation5] sm:$0xff]
  %v4804 = vld [vmem:[#allocation5 + $0x8] sm:$0xff]
  %v4805 = vld [vmem:[#allocation5 + $0x18] sm:$0xff]
  %v4806 = vld [vmem:[#allocation5 + $0x20] sm:$0xff]
  %v4807 = vld [vmem:[#allocation5 + $0x30] sm:$0xff]
  %v4808 = vld [vmem:[#allocation5 + $0x38] sm:$0xff]
  %v4809 = vld [vmem:[#allocation5 + $0x48] sm:$0xff]
  %v4810 = vld [vmem:[#allocation5 + $0x50] sm:$0xff]
  %4819 = vrot.lane.b32.xlu0 %v4803, 126
  %v4820 = vpop.permute.xlu0 %4819
  %4821 = vrot.lane.b32.xlu0 %v4804, 126
  %v4822 = vpop.permute.xlu0 %4821
  %4823 = vrot.lane.b32.xlu0 %v4805, 126
  %v4824 = vpop.permute.xlu0 %4823
  %4825 = vrot.lane.b32.xlu0 %v4806, 126
  %v4826 = vpop.permute.xlu0 %4825
  %4827 = vrot.lane.b32.xlu0 %v4807, 126
  %v4828 = vpop.permute.xlu0 %4827
  %4829 = vrot.lane.b32.xlu0 %v4808, 126
  %v4830 = vpop.permute.xlu0 %4829
  %4831 = vrot.lane.b32.xlu0 %v4809, 126
  %v4832 = vpop.permute.xlu0 %4831
  %4833 = vrot.lane.b32.xlu0 %v4810, 126
  %v4834 = vpop.permute.xlu0 %4833
  %v4835 = vsel %vm1202, %v4820, %v4822
  %v4836 = vsel %vm1202, %v4824, %v4826
  %v4837 = vsel %vm1202, %v4828, %v4830
  %v4838 = vsel %vm1202, %v4832, %v4834
  %4847 = vst [vmem:[#allocation6 + $0x40] sm:$0xff] %v4835
  %4848 = vst.msk [vmem:[#allocation6 + $0x48] sm:$0xff] %vm4743, %v4822
  %4849 = vst [vmem:[#allocation6 + $0x50] sm:$0xff] %v4836
  %4850 = vst.msk [vmem:[#allocation6 + $0x58] sm:$0xff] %vm4743, %v4826
  %4851 = vst [vmem:[#allocation6 + $0x360] sm:$0xff] %v4837
  %4852 = vst.msk [vmem:[#allocation6 + $0x368] sm:$0xff] %vm4743, %v4830
  %4853 = vst [vmem:[#allocation6 + $0x370] sm:$0xff] %v4838
  %4854 = vst.msk [vmem:[#allocation6 + $0x378] sm:$0xff] %vm4743, %v4834
  %v4855 = vld [vmem:[#allocation5] sm:$0xff]
  %v4856 = vld [vmem:[#allocation5 + $0x8] sm:$0xff]
  %v4857 = vld [vmem:[#allocation5 + $0x18] sm:$0xff]
  %v4858 = vld [vmem:[#allocation5 + $0x20] sm:$0xff]
  %v4859 = vld [vmem:[#allocation5 + $0x30] sm:$0xff]
  %v4860 = vld [vmem:[#allocation5 + $0x38] sm:$0xff]
  %v4861 = vld [vmem:[#allocation5 + $0x48] sm:$0xff]
  %v4862 = vld [vmem:[#allocation5 + $0x50] sm:$0xff]
  %4871 = vrot.lane.b32.xlu0 %v4855, 125
  %v4872 = vpop.permute.xlu0 %4871
  %4873 = vrot.lane.b32.xlu0 %v4856, 125
  %v4874 = vpop.permute.xlu0 %4873
  %4875 = vrot.lane.b32.xlu0 %v4857, 125
  %v4876 = vpop.permute.xlu0 %4875
  %4877 = vrot.lane.b32.xlu0 %v4858, 125
  %v4878 = vpop.permute.xlu0 %4877
  %4879 = vrot.lane.b32.xlu0 %v4859, 125
  %v4880 = vpop.permute.xlu0 %4879
  %4881 = vrot.lane.b32.xlu0 %v4860, 125
  %v4882 = vpop.permute.xlu0 %4881
  %4883 = vrot.lane.b32.xlu0 %v4861, 125
  %v4884 = vpop.permute.xlu0 %4883
  %4885 = vrot.lane.b32.xlu0 %v4862, 125
  %v4886 = vpop.permute.xlu0 %4885
  %v4887 = vsel %vm1223, %v4872, %v4874
  %v4888 = vsel %vm1223, %v4876, %v4878
  %v4889 = vsel %vm1223, %v4880, %v4882
  %v4890 = vsel %vm1223, %v4884, %v4886
  %4899 = vst [vmem:[#allocation6 + $0x60] sm:$0xff] %v4887
  %4900 = vst.msk [vmem:[#allocation6 + $0x68] sm:$0xff] %vm4743, %v4874
  %4901 = vst [vmem:[#allocation6 + $0x70] sm:$0xff] %v4888
  %4902 = vst.msk [vmem:[#allocation6 + $0x78] sm:$0xff] %vm4743, %v4878
  %4903 = vst [vmem:[#allocation6 + $0x380] sm:$0xff] %v4889
  %4904 = vst.msk [vmem:[#allocation6 + $0x388] sm:$0xff] %vm4743, %v4882
  %4905 = vst [vmem:[#allocation6 + $0x390] sm:$0xff] %v4890
  %4906 = vst.msk [vmem:[#allocation6 + $0x398] sm:$0xff] %vm4743, %v4886
  %v4907 = vld [vmem:[#allocation5] sm:$0xff]
  %v4908 = vld [vmem:[#allocation5 + $0x8] sm:$0xff]
  %v4909 = vld [vmem:[#allocation5 + $0x18] sm:$0xff]
  %v4910 = vld [vmem:[#allocation5 + $0x20] sm:$0xff]
  %v4911 = vld [vmem:[#allocation5 + $0x30] sm:$0xff]
  %v4912 = vld [vmem:[#allocation5 + $0x38] sm:$0xff]
  %v4913 = vld [vmem:[#allocation5 + $0x48] sm:$0xff]
  %v4914 = vld [vmem:[#allocation5 + $0x50] sm:$0xff]
  %4923 = vrot.lane.b32.xlu0 %v4907, 124
  %v4924 = vpop.permute.xlu0 %4923
  %4925 = vrot.lane.b32.xlu0 %v4908, 124
  %v4926 = vpop.permute.xlu0 %4925
  %4927 = vrot.lane.b32.xlu0 %v4909, 124
  %v4928 = vpop.permute.xlu0 %4927
  %4929 = vrot.lane.b32.xlu0 %v4910, 124
  %v4930 = vpop.permute.xlu0 %4929
  %4931 = vrot.lane.b32.xlu0 %v4911, 124
  %v4932 = vpop.permute.xlu0 %4931
  %4933 = vrot.lane.b32.xlu0 %v4912, 124
  %v4934 = vpop.permute.xlu0 %4933
  %4935 = vrot.lane.b32.xlu0 %v4913, 124
  %v4936 = vpop.permute.xlu0 %4935
  %4937 = vrot.lane.b32.xlu0 %v4914, 124
  %v4938 = vpop.permute.xlu0 %4937
  %v4939 = vsel %vm1244, %v4924, %v4926
  %v4940 = vsel %vm1244, %v4928, %v4930
  %v4941 = vsel %vm1244, %v4932, %v4934
  %v4942 = vsel %vm1244, %v4936, %v4938
  %4951 = vst [vmem:[#allocation6 + $0x80] sm:$0xff] %v4939
  %4952 = vst.msk [vmem:[#allocation6 + $0x88] sm:$0xff] %vm4743, %v4926
  %4953 = vst [vmem:[#allocation6 + $0x90] sm:$0xff] %v4940
  %4954 = vst.msk [vmem:[#allocation6 + $0x98] sm:$0xff] %vm4743, %v4930
  %4955 = vst [vmem:[#allocation6 + $0x3a0] sm:$0xff] %v4941
  %4956 = vst.msk [vmem:[#allocation6 + $0x3a8] sm:$0xff] %vm4743, %v4934
  %4957 = vst [vmem:[#allocation6 + $0x3b0] sm:$0xff] %v4942
  %4958 = vst.msk [vmem:[#allocation6 + $0x3b8] sm:$0xff] %vm4743, %v4938
  %v4959 = vld [vmem:[#allocation5] sm:$0xff]
  %v4960 = vld [vmem:[#allocation5 + $0x8] sm:$0xff]
  %v4961 = vld [vmem:[#allocation5 + $0x10] sm:$0xff]
  %v4962 = vld [vmem:[#allocation5 + $0x18] sm:$0xff]
  %v4963 = vld [vmem:[#allocation5 + $0x20] sm:$0xff]
  %v4964 = vld [vmem:[#allocation5 + $0x28] sm:$0xff]
  %v4965 = vld [vmem:[#allocation5 + $0x30] sm:$0xff]
  %v4966 = vld [vmem:[#allocation5 + $0x38] sm:$0xff]
  %v4967 = vld [vmem:[#allocation5 + $0x40] sm:$0xff]
  %v4968 = vld [vmem:[#allocation5 + $0x48] sm:$0xff]
  %v4969 = vld [vmem:[#allocation5 + $0x50] sm:$0xff]
  %v4970 = vld [vmem:[#allocation5 + $0x58] sm:$0xff]
  %4983 = vrot.lane.b32.xlu0 %v4959, 110
  %v4984 = vpop.permute.xlu0 %4983
  %4985 = vrot.lane.b32.xlu0 %v4960, 110
  %v4986 = vpop.permute.xlu0 %4985
  %4987 = vrot.lane.b32.xlu0 %v4961, 110
  %v4988 = vpop.permute.xlu0 %4987
  %4989 = vrot.lane.b32.xlu0 %v4962, 110
  %v4990 = vpop.permute.xlu0 %4989
  %4991 = vrot.lane.b32.xlu0 %v4963, 110
  %v4992 = vpop.permute.xlu0 %4991
  %4993 = vrot.lane.b32.xlu0 %v4964, 110
  %v4994 = vpop.permute.xlu0 %4993
  %4995 = vrot.lane.b32.xlu0 %v4965, 110
  %v4996 = vpop.permute.xlu0 %4995
  %4997 = vrot.lane.b32.xlu0 %v4966, 110
  %v4998 = vpop.permute.xlu0 %4997
  %4999 = vrot.lane.b32.xlu0 %v4967, 110
  %v5000 = vpop.permute.xlu0 %4999
  %5001 = vrot.lane.b32.xlu0 %v4968, 110
  %v5002 = vpop.permute.xlu0 %5001
  %5003 = vrot.lane.b32.xlu0 %v4969, 110
  %v5004 = vpop.permute.xlu0 %5003
  %5005 = vrot.lane.b32.xlu0 %v4970, 110
  %v5006 = vpop.permute.xlu0 %5005
  %vm5007 = vcmask 900096
  %v5008 = vsel %vm5007, %v4984, %v4986
  %v5009 = vsel %vm5007, %v4986, %v4988
  %v5010 = vsel %vm5007, %v4990, %v4992
  %v5011 = vsel %vm5007, %v4992, %v4994
  %v5012 = vsel %vm5007, %v4996, %v4998
  %v5013 = vsel %vm5007, %v4998, %v5000
  %v5014 = vsel %vm5007, %v5002, %v5004
  %v5015 = vsel %vm5007, %v5004, %v5006
  %5024 = vst [vmem:[#allocation6 + $0xa0] sm:$0xff] %v5008
  %5025 = vst.msk [vmem:[#allocation6 + $0xa8] sm:$0xff] %vm4743, %v5009
  %5026 = vst [vmem:[#allocation6 + $0xb0] sm:$0xff] %v5010
  %5027 = vst.msk [vmem:[#allocation6 + $0xb8] sm:$0xff] %vm4743, %v5011
  %5028 = vst [vmem:[#allocation6 + $0x3c0] sm:$0xff] %v5012
  %5029 = vst.msk [vmem:[#allocation6 + $0x3c8] sm:$0xff] %vm4743, %v5013
  %5030 = vst [vmem:[#allocation6 + $0x3d0] sm:$0xff] %v5014
  %5031 = vst.msk [vmem:[#allocation6 + $0x3d8] sm:$0xff] %vm4743, %v5015
  %v5032 = vld [vmem:[#allocation5] sm:$0xff]
  %v5033 = vld [vmem:[#allocation5 + $0x8] sm:$0xff]
  %v5034 = vld [vmem:[#allocation5 + $0x10] sm:$0xff]
  %v5035 = vld [vmem:[#allocation5 + $0x18] sm:$0xff]
  %v5036 = vld [vmem:[#allocation5 + $0x20] sm:$0xff]
  %v5037 = vld [vmem:[#allocation5 + $0x28] sm:$0xff]
  %v5038 = vld [vmem:[#allocation5 + $0x30] sm:$0xff]
  %v5039 = vld [vmem:[#allocation5 + $0x38] sm:$0xff]
  %v5040 = vld [vmem:[#allocation5 + $0x40] sm:$0xff]
  %v5041 = vld [vmem:[#allocation5 + $0x48] sm:$0xff]
  %v5042 = vld [vmem:[#allocation5 + $0x50] sm:$0xff]
  %v5043 = vld [vmem:[#allocation5 + $0x58] sm:$0xff]
  %5056 = vrot.lane.b32.xlu0 %v5032, 109
  %v5057 = vpop.permute.xlu0 %5056
  %5058 = vrot.lane.b32.xlu0 %v5033, 109
  %v5059 = vpop.permute.xlu0 %5058
  %5060 = vrot.lane.b32.xlu0 %v5034, 109
  %v5061 = vpop.permute.xlu0 %5060
  %5062 = vrot.lane.b32.xlu0 %v5035, 109
  %v5063 = vpop.permute.xlu0 %5062
  %5064 = vrot.lane.b32.xlu0 %v5036, 109
  %v5065 = vpop.permute.xlu0 %5064
  %5066 = vrot.lane.b32.xlu0 %v5037, 109
  %v5067 = vpop.permute.xlu0 %5066
  %5068 = vrot.lane.b32.xlu0 %v5038, 109
  %v5069 = vpop.permute.xlu0 %5068
  %5070 = vrot.lane.b32.xlu0 %v5039, 109
  %v5071 = vpop.permute.xlu0 %5070
  %5072 = vrot.lane.b32.xlu0 %v5040, 109
  %v5073 = vpop.permute.xlu0 %5072
  %5074 = vrot.lane.b32.xlu0 %v5041, 109
  %v5075 = vpop.permute.xlu0 %5074
  %5076 = vrot.lane.b32.xlu0 %v5042, 109
  %v5077 = vpop.permute.xlu0 %5076
  %5078 = vrot.lane.b32.xlu0 %v5043, 109
  %v5079 = vpop.permute.xlu0 %5078
  %vm5080 = vcmask 891904
  %v5081 = vsel %vm5080, %v5057, %v5059
  %v5082 = vsel %vm5080, %v5059, %v5061
  %v5083 = vsel %vm5080, %v5063, %v5065
  %v5084 = vsel %vm5080, %v5065, %v5067
  %v5085 = vsel %vm5080, %v5069, %v5071
  %v5086 = vsel %vm5080, %v5071, %v5073
  %v5087 = vsel %vm5080, %v5075, %v5077
  %v5088 = vsel %vm5080, %v5077, %v5079
  %5097 = vst [vmem:[#allocation6 + $0xc0] sm:$0xff] %v5081
  %5098 = vst.msk [vmem:[#allocation6 + $0xc8] sm:$0xff] %vm4743, %v5082
  %5099 = vst [vmem:[#allocation6 + $0xd0] sm:$0xff] %v5083
  %5100 = vst.msk [vmem:[#allocation6 + $0xd8] sm:$0xff] %vm4743, %v5084
  %5101 = vst [vmem:[#allocation6 + $0x3e0] sm:$0xff] %v5085
  %5102 = vst.msk [vmem:[#allocation6 + $0x3e8] sm:$0xff] %vm4743, %v5086
  %5103 = vst [vmem:[#allocation6 + $0x3f0] sm:$0xff] %v5087
  %5104 = vst.msk [vmem:[#allocation6 + $0x3f8] sm:$0xff] %vm4743, %v5088
  %v5105 = vld [vmem:[#allocation5] sm:$0xff]
  %v5106 = vld [vmem:[#allocation5 + $0x8] sm:$0xff]
  %v5107 = vld [vmem:[#allocation5 + $0x10] sm:$0xff]
  %v5108 = vld [vmem:[#allocation5 + $0x18] sm:$0xff]
  %v5109 = vld [vmem:[#allocation5 + $0x20] sm:$0xff]
  %v5110 = vld [vmem:[#allocation5 + $0x28] sm:$0xff]
  %v5111 = vld [vmem:[#allocation5 + $0x30] sm:$0xff]
  %v5112 = vld [vmem:[#allocation5 + $0x38] sm:$0xff]
  %v5113 = vld [vmem:[#allocation5 + $0x40] sm:$0xff]
  %v5114 = vld [vmem:[#allocation5 + $0x48] sm:$0xff]
  %v5115 = vld [vmem:[#allocation5 + $0x50] sm:$0xff]
  %v5116 = vld [vmem:[#allocation5 + $0x58] sm:$0xff]
  %5129 = vrot.lane.b32.xlu0 %v5105, 108
  %v5130 = vpop.permute.xlu0 %5129
  %5131 = vrot.lane.b32.xlu0 %v5106, 108
  %v5132 = vpop.permute.xlu0 %5131
  %5133 = vrot.lane.b32.xlu0 %v5107, 108
  %v5134 = vpop.permute.xlu0 %5133
  %5135 = vrot.lane.b32.xlu0 %v5108, 108
  %v5136 = vpop.permute.xlu0 %5135
  %5137 = vrot.lane.b32.xlu0 %v5109, 108
  %v5138 = vpop.permute.xlu0 %5137
  %5139 = vrot.lane.b32.xlu0 %v5110, 108
  %v5140 = vpop.permute.xlu0 %5139
  %5141 = vrot.lane.b32.xlu0 %v5111, 108
  %v5142 = vpop.permute.xlu0 %5141
  %5143 = vrot.lane.b32.xlu0 %v5112, 108
  %v5144 = vpop.permute.xlu0 %5143
  %5145 = vrot.lane.b32.xlu0 %v5113, 108
  %v5146 = vpop.permute.xlu0 %5145
  %5147 = vrot.lane.b32.xlu0 %v5114, 108
  %v5148 = vpop.permute.xlu0 %5147
  %5149 = vrot.lane.b32.xlu0 %v5115, 108
  %v5150 = vpop.permute.xlu0 %5149
  %5151 = vrot.lane.b32.xlu0 %v5116, 108
  %v5152 = vpop.permute.xlu0 %5151
  %vm5153 = vcmask 883712
  %v5154 = vsel %vm5153, %v5130, %v5132
  %v5155 = vsel %vm5153, %v5132, %v5134
  %v5156 = vsel %vm5153, %v5136, %v5138
  %v5157 = vsel %vm5153, %v5138, %v5140
  %v5158 = vsel %vm5153, %v5142, %v5144
  %v5159 = vsel %vm5153, %v5144, %v5146
  %v5160 = vsel %vm5153, %v5148, %v5150
  %v5161 = vsel %vm5153, %v5150, %v5152
  %5170 = vst [vmem:[#allocation6 + $0xe0] sm:$0xff] %v5154
  %5171 = vst.msk [vmem:[#allocation6 + $0xe8] sm:$0xff] %vm4743, %v5155
  %5172 = vst [vmem:[#allocation6 + $0xf0] sm:$0xff] %v5156
  %5173 = vst.msk [vmem:[#allocation6 + $0xf8] sm:$0xff] %vm4743, %v5157
  %5174 = vst [vmem:[#allocation6 + $0x400] sm:$0xff] %v5158
  %5175 = vst.msk [vmem:[#allocation6 + $0x408] sm:$0xff] %vm4743, %v5159
  %5176 = vst [vmem:[#allocation6 + $0x410] sm:$0xff] %v5160
  %5177 = vst.msk [vmem:[#allocation6 + $0x418] sm:$0xff] %vm4743, %v5161
  %v5178 = vld [vmem:[#allocation5] sm:$0xff]
  %v5179 = vld [vmem:[#allocation5 + $0x8] sm:$0xff]
  %v5180 = vld [vmem:[#allocation5 + $0x10] sm:$0xff]
  %v5181 = vld [vmem:[#allocation5 + $0x18] sm:$0xff]
  %v5182 = vld [vmem:[#allocation5 + $0x20] sm:$0xff]
  %v5183 = vld [vmem:[#allocation5 + $0x28] sm:$0xff]
  %v5184 = vld [vmem:[#allocation5 + $0x30] sm:$0xff]
  %v5185 = vld [vmem:[#allocation5 + $0x38] sm:$0xff]
  %v5186 = vld [vmem:[#allocation5 + $0x40] sm:$0xff]
  %v5187 = vld [vmem:[#allocation5 + $0x48] sm:$0xff]
  %v5188 = vld [vmem:[#allocation5 + $0x50] sm:$0xff]
  %v5189 = vld [vmem:[#allocation5 + $0x58] sm:$0xff]
  %5202 = vrot.lane.b32.xlu0 %v5178, 107
  %v5203 = vpop.permute.xlu0 %5202
  %5204 = vrot.lane.b32.xlu0 %v5179, 107
  %v5205 = vpop.permute.xlu0 %5204
  %5206 = vrot.lane.b32.xlu0 %v5180, 107
  %v5207 = vpop.permute.xlu0 %5206
  %5208 = vrot.lane.b32.xlu0 %v5181, 107
  %v5209 = vpop.permute.xlu0 %5208
  %5210 = vrot.lane.b32.xlu0 %v5182, 107
  %v5211 = vpop.permute.xlu0 %5210
  %5212 = vrot.lane.b32.xlu0 %v5183, 107
  %v5213 = vpop.permute.xlu0 %5212
  %5214 = vrot.lane.b32.xlu0 %v5184, 107
  %v5215 = vpop.permute.xlu0 %5214
  %5216 = vrot.lane.b32.xlu0 %v5185, 107
  %v5217 = vpop.permute.xlu0 %5216
  %5218 = vrot.lane.b32.xlu0 %v5186, 107
  %v5219 = vpop.permute.xlu0 %5218
  %5220 = vrot.lane.b32.xlu0 %v5187, 107
  %v5221 = vpop.permute.xlu0 %5220
  %5222 = vrot.lane.b32.xlu0 %v5188, 107
  %v5223 = vpop.permute.xlu0 %5222
  %5224 = vrot.lane.b32.xlu0 %v5189, 107
  %v5225 = vpop.permute.xlu0 %5224
  %vm5226 = vcmask 875520
  %v5227 = vsel %vm5226, %v5203, %v5205
  %v5228 = vsel %vm5226, %v5205, %v5207
  %v5229 = vsel %vm5226, %v5209, %v5211
  %v5230 = vsel %vm5226, %v5211, %v5213
  %v5231 = vsel %vm5226, %v5215, %v5217
  %v5232 = vsel %vm5226, %v5217, %v5219
  %v5233 = vsel %vm5226, %v5221, %v5223
  %v5234 = vsel %vm5226, %v5223, %v5225
  %5243 = vst [vmem:[#allocation6 + $0x100] sm:$0xff] %v5227
  %5244 = vst.msk [vmem:[#allocation6 + $0x108] sm:$0xff] %vm4743, %v5228
  %5245 = vst [vmem:[#allocation6 + $0x110] sm:$0xff] %v5229
  %5246 = vst.msk [vmem:[#allocation6 + $0x118] sm:$0xff] %vm4743, %v5230
  %5247 = vst [vmem:[#allocation6 + $0x420] sm:$0xff] %v5231
  %5248 = vst.msk [vmem:[#allocation6 + $0x428] sm:$0xff] %vm4743, %v5232
  %5249 = vst [vmem:[#allocation6 + $0x430] sm:$0xff] %v5233
  %5250 = vst.msk [vmem:[#allocation6 + $0x438] sm:$0xff] %vm4743, %v5234
  %v5251 = vld [vmem:[#allocation5] sm:$0xff]
  %v5252 = vld [vmem:[#allocation5 + $0x8] sm:$0xff]
  %v5253 = vld [vmem:[#allocation5 + $0x10] sm:$0xff]
  %v5254 = vld [vmem:[#allocation5 + $0x18] sm:$0xff]
  %v5255 = vld [vmem:[#allocation5 + $0x20] sm:$0xff]
  %v5256 = vld [vmem:[#allocation5 + $0x28] sm:$0xff]
  %v5257 = vld [vmem:[#allocation5 + $0x30] sm:$0xff]
  %v5258 = vld [vmem:[#allocation5 + $0x38] sm:$0xff]
  %v5259 = vld [vmem:[#allocation5 + $0x40] sm:$0xff]
  %v5260 = vld [vmem:[#allocation5 + $0x48] sm:$0xff]
  %v5261 = vld [vmem:[#allocation5 + $0x50] sm:$0xff]
  %v5262 = vld [vmem:[#allocation5 + $0x58] sm:$0xff]
  %5275 = vrot.lane.b32.xlu0 %v5251, 106
  %v5276 = vpop.permute.xlu0 %5275
  %5277 = vrot.lane.b32.xlu0 %v5252, 106
  %v5278 = vpop.permute.xlu0 %5277
  %5279 = vrot.lane.b32.xlu0 %v5253, 106
  %v5280 = vpop.permute.xlu0 %5279
  %5281 = vrot.lane.b32.xlu0 %v5254, 106
  %v5282 = vpop.permute.xlu0 %5281
  %5283 = vrot.lane.b32.xlu0 %v5255, 106
  %v5284 = vpop.permute.xlu0 %5283
  %5285 = vrot.lane.b32.xlu0 %v5256, 106
  %v5286 = vpop.permute.xlu0 %5285
  %5287 = vrot.lane.b32.xlu0 %v5257, 106
  %v5288 = vpop.permute.xlu0 %5287
  %5289 = vrot.lane.b32.xlu0 %v5258, 106
  %v5290 = vpop.permute.xlu0 %5289
  %5291 = vrot.lane.b32.xlu0 %v5259, 106
  %v5292 = vpop.permute.xlu0 %5291
  %5293 = vrot.lane.b32.xlu0 %v5260, 106
  %v5294 = vpop.permute.xlu0 %5293
  %5295 = vrot.lane.b32.xlu0 %v5261, 106
  %v5296 = vpop.permute.xlu0 %5295
  %5297 = vrot.lane.b32.xlu0 %v5262, 106
  %v5298 = vpop.permute.xlu0 %5297
  %vm5299 = vcmask 867328
  %v5300 = vsel %vm5299, %v5276, %v5278
  %v5301 = vsel %vm5299, %v5278, %v5280
  %v5302 = vsel %vm5299, %v5282, %v5284
  %v5303 = vsel %vm5299, %v5284, %v5286
  %v5304 = vsel %vm5299, %v5288, %v5290
  %v5305 = vsel %vm5299, %v5290, %v5292
  %v5306 = vsel %vm5299, %v5294, %v5296
  %v5307 = vsel %vm5299, %v5296, %v5298
  %5316 = vst [vmem:[#allocation6 + $0x120] sm:$0xff] %v5300
  %5317 = vst.msk [vmem:[#allocation6 + $0x128] sm:$0xff] %vm4743, %v5301
  %5318 = vst [vmem:[#allocation6 + $0x130] sm:$0xff] %v5302
  %5319 = vst.msk [vmem:[#allocation6 + $0x138] sm:$0xff] %vm4743, %v5303
  %5320 = vst [vmem:[#allocation6 + $0x440] sm:$0xff] %v5304
  %5321 = vst.msk [vmem:[#allocation6 + $0x448] sm:$0xff] %vm4743, %v5305
  %5322 = vst [vmem:[#allocation6 + $0x450] sm:$0xff] %v5306
  %5323 = vst.msk [vmem:[#allocation6 + $0x458] sm:$0xff] %vm4743, %v5307
  %v5324 = vld [vmem:[#allocation5] sm:$0xff]
  %v5325 = vld [vmem:[#allocation5 + $0x8] sm:$0xff]
  %v5326 = vld [vmem:[#allocation5 + $0x10] sm:$0xff]
  %v5327 = vld [vmem:[#allocation5 + $0x18] sm:$0xff]
  %v5328 = vld [vmem:[#allocation5 + $0x20] sm:$0xff]
  %v5329 = vld [vmem:[#allocation5 + $0x28] sm:$0xff]
  %v5330 = vld [vmem:[#allocation5 + $0x30] sm:$0xff]
  %v5331 = vld [vmem:[#allocation5 + $0x38] sm:$0xff]
  %v5332 = vld [vmem:[#allocation5 + $0x40] sm:$0xff]
  %v5333 = vld [vmem:[#allocation5 + $0x48] sm:$0xff]
  %v5334 = vld [vmem:[#allocation5 + $0x50] sm:$0xff]
  %v5335 = vld [vmem:[#allocation5 + $0x58] sm:$0xff]
  %5348 = vrot.lane.b32.xlu0 %v5324, 92
  %v5349 = vpop.permute.xlu0 %5348
  %5350 = vrot.lane.b32.xlu0 %v5325, 92
  %v5351 = vpop.permute.xlu0 %5350
  %5352 = vrot.lane.b32.xlu0 %v5326, 92
  %v5353 = vpop.permute.xlu0 %5352
  %5354 = vrot.lane.b32.xlu0 %v5327, 92
  %v5355 = vpop.permute.xlu0 %5354
  %5356 = vrot.lane.b32.xlu0 %v5328, 92
  %v5357 = vpop.permute.xlu0 %5356
  %5358 = vrot.lane.b32.xlu0 %v5329, 92
  %v5359 = vpop.permute.xlu0 %5358
  %5360 = vrot.lane.b32.xlu0 %v5330, 92
  %v5361 = vpop.permute.xlu0 %5360
  %5362 = vrot.lane.b32.xlu0 %v5331, 92
  %v5363 = vpop.permute.xlu0 %5362
  %5364 = vrot.lane.b32.xlu0 %v5332, 92
  %v5365 = vpop.permute.xlu0 %5364
  %5366 = vrot.lane.b32.xlu0 %v5333, 92
  %v5367 = vpop.permute.xlu0 %5366
  %5368 = vrot.lane.b32.xlu0 %v5334, 92
  %v5369 = vpop.permute.xlu0 %5368
  %5370 = vrot.lane.b32.xlu0 %v5335, 92
  %v5371 = vpop.permute.xlu0 %5370
  %v5372 = vsel %vm1349, %v5349, %v5351
  %v5373 = vsel %vm1349, %v5351, %v5353
  %v5374 = vsel %vm1349, %v5355, %v5357
  %v5375 = vsel %vm1349, %v5357, %v5359
  %v5376 = vsel %vm1349, %v5361, %v5363
  %v5377 = vsel %vm1349, %v5363, %v5365
  %v5378 = vsel %vm1349, %v5367, %v5369
  %v5379 = vsel %vm1349, %v5369, %v5371
  %5388 = vst [vmem:[#allocation6 + $0x140] sm:$0xff] %v5372
  %5389 = vst.msk [vmem:[#allocation6 + $0x148] sm:$0xff] %vm4743, %v5373
  %5390 = vst [vmem:[#allocation6 + $0x150] sm:$0xff] %v5374
  %5391 = vst.msk [vmem:[#allocation6 + $0x158] sm:$0xff] %vm4743, %v5375
  %5392 = vst [vmem:[#allocation6 + $0x460] sm:$0xff] %v5376
  %5393 = vst.msk [vmem:[#allocation6 + $0x468] sm:$0xff] %vm4743, %v5377
  %5394 = vst [vmem:[#allocation6 + $0x470] sm:$0xff] %v5378
  %5395 = vst.msk [vmem:[#allocation6 + $0x478] sm:$0xff] %vm4743, %v5379
  %v5396 = vld [vmem:[#allocation5] sm:$0xff]
  %v5397 = vld [vmem:[#allocation5 + $0x8] sm:$0xff]
  %v5398 = vld [vmem:[#allocation5 + $0x10] sm:$0xff]
  %v5399 = vld [vmem:[#allocation5 + $0x18] sm:$0xff]
  %v5400 = vld [vmem:[#allocation5 + $0x20] sm:$0xff]
  %v5401 = vld [vmem:[#allocation5 + $0x28] sm:$0xff]
  %v5402 = vld [vmem:[#allocation5 + $0x30] sm:$0xff]
  %v5403 = vld [vmem:[#allocation5 + $0x38] sm:$0xff]
  %v5404 = vld [vmem:[#allocation5 + $0x40] sm:$0xff]
  %v5405 = vld [vmem:[#allocation5 + $0x48] sm:$0xff]
  %v5406 = vld [vmem:[#allocation5 + $0x50] sm:$0xff]
  %v5407 = vld [vmem:[#allocation5 + $0x58] sm:$0xff]
  %5420 = vrot.lane.b32.xlu0 %v5396, 91
  %v5421 = vpop.permute.xlu0 %5420
  %5422 = vrot.lane.b32.xlu0 %v5397, 91
  %v5423 = vpop.permute.xlu0 %5422
  %5424 = vrot.lane.b32.xlu0 %v5398, 91
  %v5425 = vpop.permute.xlu0 %5424
  %5426 = vrot.lane.b32.xlu0 %v5399, 91
  %v5427 = vpop.permute.xlu0 %5426
  %5428 = vrot.lane.b32.xlu0 %v5400, 91
  %v5429 = vpop.permute.xlu0 %5428
  %5430 = vrot.lane.b32.xlu0 %v5401, 91
  %v5431 = vpop.permute.xlu0 %5430
  %5432 = vrot.lane.b32.xlu0 %v5402, 91
  %v5433 = vpop.permute.xlu0 %5432
  %5434 = vrot.lane.b32.xlu0 %v5403, 91
  %v5435 = vpop.permute.xlu0 %5434
  %5436 = vrot.lane.b32.xlu0 %v5404, 91
  %v5437 = vpop.permute.xlu0 %5436
  %5438 = vrot.lane.b32.xlu0 %v5405, 91
  %v5439 = vpop.permute.xlu0 %5438
  %5440 = vrot.lane.b32.xlu0 %v5406, 91
  %v5441 = vpop.permute.xlu0 %5440
  %5442 = vrot.lane.b32.xlu0 %v5407, 91
  %v5443 = vpop.permute.xlu0 %5442
  %v5444 = vsel %vm2970, %v5421, %v5423
  %v5445 = vsel %vm2970, %v5423, %v5425
  %v5446 = vsel %vm2970, %v5427, %v5429
  %v5447 = vsel %vm2970, %v5429, %v5431
  %v5448 = vsel %vm2970, %v5433, %v5435
  %v5449 = vsel %vm2970, %v5435, %v5437
  %v5450 = vsel %vm2970, %v5439, %v5441
  %v5451 = vsel %vm2970, %v5441, %v5443
  %5460 = vst [vmem:[#allocation6 + $0x160] sm:$0xff] %v5444
  %5461 = vst.msk [vmem:[#allocation6 + $0x168] sm:$0xff] %vm4743, %v5445
  %5462 = vst [vmem:[#allocation6 + $0x170] sm:$0xff] %v5446
  %5463 = vst.msk [vmem:[#allocation6 + $0x178] sm:$0xff] %vm4743, %v5447
  %5464 = vst [vmem:[#allocation6 + $0x480] sm:$0xff] %v5448
  %5465 = vst.msk [vmem:[#allocation6 + $0x488] sm:$0xff] %vm4743, %v5449
  %5466 = vst [vmem:[#allocation6 + $0x490] sm:$0xff] %v5450
  %5467 = vst.msk [vmem:[#allocation6 + $0x498] sm:$0xff] %vm4743, %v5451
  %v5468 = vld [vmem:[#allocation5] sm:$0xff]
  %v5469 = vld [vmem:[#allocation5 + $0x8] sm:$0xff]
  %v5470 = vld [vmem:[#allocation5 + $0x10] sm:$0xff]
  %v5471 = vld [vmem:[#allocation5 + $0x18] sm:$0xff]
  %v5472 = vld [vmem:[#allocation5 + $0x20] sm:$0xff]
  %v5473 = vld [vmem:[#allocation5 + $0x28] sm:$0xff]
  %v5474 = vld [vmem:[#allocation5 + $0x30] sm:$0xff]
  %v5475 = vld [vmem:[#allocation5 + $0x38] sm:$0xff]
  %v5476 = vld [vmem:[#allocation5 + $0x40] sm:$0xff]
  %v5477 = vld [vmem:[#allocation5 + $0x48] sm:$0xff]
  %v5478 = vld [vmem:[#allocation5 + $0x50] sm:$0xff]
  %v5479 = vld [vmem:[#allocation5 + $0x58] sm:$0xff]
  %5492 = vrot.lane.b32.xlu0 %v5468, 90
  %v5493 = vpop.permute.xlu0 %5492
  %5494 = vrot.lane.b32.xlu0 %v5469, 90
  %v5495 = vpop.permute.xlu0 %5494
  %5496 = vrot.lane.b32.xlu0 %v5470, 90
  %v5497 = vpop.permute.xlu0 %5496
  %5498 = vrot.lane.b32.xlu0 %v5471, 90
  %v5499 = vpop.permute.xlu0 %5498
  %5500 = vrot.lane.b32.xlu0 %v5472, 90
  %v5501 = vpop.permute.xlu0 %5500
  %5502 = vrot.lane.b32.xlu0 %v5473, 90
  %v5503 = vpop.permute.xlu0 %5502
  %5504 = vrot.lane.b32.xlu0 %v5474, 90
  %v5505 = vpop.permute.xlu0 %5504
  %5506 = vrot.lane.b32.xlu0 %v5475, 90
  %v5507 = vpop.permute.xlu0 %5506
  %5508 = vrot.lane.b32.xlu0 %v5476, 90
  %v5509 = vpop.permute.xlu0 %5508
  %5510 = vrot.lane.b32.xlu0 %v5477, 90
  %v5511 = vpop.permute.xlu0 %5510
  %5512 = vrot.lane.b32.xlu0 %v5478, 90
  %v5513 = vpop.permute.xlu0 %5512
  %5514 = vrot.lane.b32.xlu0 %v5479, 90
  %v5515 = vpop.permute.xlu0 %5514
  %vm5516 = vcmask 736256
  %v5517 = vsel %vm5516, %v5493, %v5495
  %v5518 = vsel %vm5516, %v5495, %v5497
  %v5519 = vsel %vm5516, %v5499, %v5501
  %v5520 = vsel %vm5516, %v5501, %v5503
  %v5521 = vsel %vm5516, %v5505, %v5507
  %v5522 = vsel %vm5516, %v5507, %v5509
  %v5523 = vsel %vm5516, %v5511, %v5513
  %v5524 = vsel %vm5516, %v5513, %v5515
  %5533 = vst [vmem:[#allocation6 + $0x180] sm:$0xff] %v5517
  %5534 = vst.msk [vmem:[#allocation6 + $0x188] sm:$0xff] %vm4743, %v5518
  %5535 = vst [vmem:[#allocation6 + $0x190] sm:$0xff] %v5519
  %5536 = vst.msk [vmem:[#allocation6 + $0x198] sm:$0xff] %vm4743, %v5520
  %5537 = vst [vmem:[#allocation6 + $0x4a0] sm:$0xff] %v5521
  %5538 = vst.msk [vmem:[#allocation6 + $0x4a8] sm:$0xff] %vm4743, %v5522
  %5539 = vst [vmem:[#allocation6 + $0x4b0] sm:$0xff] %v5523
  %5540 = vst.msk [vmem:[#allocation6 + $0x4b8] sm:$0xff] %vm4743, %v5524
  %v5541 = vld [vmem:[#allocation5] sm:$0xff]
  %v5542 = vld [vmem:[#allocation5 + $0x8] sm:$0xff]
  %v5543 = vld [vmem:[#allocation5 + $0x10] sm:$0xff]
  %v5544 = vld [vmem:[#allocation5 + $0x18] sm:$0xff]
  %v5545 = vld [vmem:[#allocation5 + $0x20] sm:$0xff]
  %v5546 = vld [vmem:[#allocation5 + $0x28] sm:$0xff]
  %v5547 = vld [vmem:[#allocation5 + $0x30] sm:$0xff]
  %v5548 = vld [vmem:[#allocation5 + $0x38] sm:$0xff]
  %v5549 = vld [vmem:[#allocation5 + $0x40] sm:$0xff]
  %v5550 = vld [vmem:[#allocation5 + $0x48] sm:$0xff]
  %v5551 = vld [vmem:[#allocation5 + $0x50] sm:$0xff]
  %v5552 = vld [vmem:[#allocation5 + $0x58] sm:$0xff]
  %5565 = vrot.lane.b32.xlu0 %v5541, 89
  %v5566 = vpop.permute.xlu0 %5565
  %5567 = vrot.lane.b32.xlu0 %v5542, 89
  %v5568 = vpop.permute.xlu0 %5567
  %5569 = vrot.lane.b32.xlu0 %v5543, 89
  %v5570 = vpop.permute.xlu0 %5569
  %5571 = vrot.lane.b32.xlu0 %v5544, 89
  %v5572 = vpop.permute.xlu0 %5571
  %5573 = vrot.lane.b32.xlu0 %v5545, 89
  %v5574 = vpop.permute.xlu0 %5573
  %5575 = vrot.lane.b32.xlu0 %v5546, 89
  %v5576 = vpop.permute.xlu0 %5575
  %5577 = vrot.lane.b32.xlu0 %v5547, 89
  %v5578 = vpop.permute.xlu0 %5577
  %5579 = vrot.lane.b32.xlu0 %v5548, 89
  %v5580 = vpop.permute.xlu0 %5579
  %5581 = vrot.lane.b32.xlu0 %v5549, 89
  %v5582 = vpop.permute.xlu0 %5581
  %5583 = vrot.lane.b32.xlu0 %v5550, 89
  %v5584 = vpop.permute.xlu0 %5583
  %5585 = vrot.lane.b32.xlu0 %v5551, 89
  %v5586 = vpop.permute.xlu0 %5585
  %5587 = vrot.lane.b32.xlu0 %v5552, 89
  %v5588 = vpop.permute.xlu0 %5587
  %vm5589 = vcmask 728064
  %v5590 = vsel %vm5589, %v5566, %v5568
  %v5591 = vsel %vm5589, %v5568, %v5570
  %v5592 = vsel %vm5589, %v5572, %v5574
  %v5593 = vsel %vm5589, %v5574, %v5576
  %v5594 = vsel %vm5589, %v5578, %v5580
  %v5595 = vsel %vm5589, %v5580, %v5582
  %v5596 = vsel %vm5589, %v5584, %v5586
  %v5597 = vsel %vm5589, %v5586, %v5588
  %5606 = vst [vmem:[#allocation6 + $0x1a0] sm:$0xff] %v5590
  %5607 = vst.msk [vmem:[#allocation6 + $0x1a8] sm:$0xff] %vm4743, %v5591
  %5608 = vst [vmem:[#allocation6 + $0x1b0] sm:$0xff] %v5592
  %5609 = vst.msk [vmem:[#allocation6 + $0x1b8] sm:$0xff] %vm4743, %v5593
  %5610 = vst [vmem:[#allocation6 + $0x4c0] sm:$0xff] %v5594
  %5611 = vst.msk [vmem:[#allocation6 + $0x4c8] sm:$0xff] %vm4743, %v5595
  %5612 = vst [vmem:[#allocation6 + $0x4d0] sm:$0xff] %v5596
  %5613 = vst.msk [vmem:[#allocation6 + $0x4d8] sm:$0xff] %vm4743, %v5597
  %v5614 = vld [vmem:[#allocation5] sm:$0xff]
  %v5615 = vld [vmem:[#allocation5 + $0x8] sm:$0xff]
  %v5616 = vld [vmem:[#allocation5 + $0x10] sm:$0xff]
  %v5617 = vld [vmem:[#allocation5 + $0x18] sm:$0xff]
  %v5618 = vld [vmem:[#allocation5 + $0x20] sm:$0xff]
  %v5619 = vld [vmem:[#allocation5 + $0x28] sm:$0xff]
  %v5620 = vld [vmem:[#allocation5 + $0x30] sm:$0xff]
  %v5621 = vld [vmem:[#allocation5 + $0x38] sm:$0xff]
  %v5622 = vld [vmem:[#allocation5 + $0x40] sm:$0xff]
  %v5623 = vld [vmem:[#allocation5 + $0x48] sm:$0xff]
  %v5624 = vld [vmem:[#allocation5 + $0x50] sm:$0xff]
  %v5625 = vld [vmem:[#allocation5 + $0x58] sm:$0xff]
  %5638 = vrot.lane.b32.xlu0 %v5614, 88
  %v5639 = vpop.permute.xlu0 %5638
  %5640 = vrot.lane.b32.xlu0 %v5615, 88
  %v5641 = vpop.permute.xlu0 %5640
  %5642 = vrot.lane.b32.xlu0 %v5616, 88
  %v5643 = vpop.permute.xlu0 %5642
  %5644 = vrot.lane.b32.xlu0 %v5617, 88
  %v5645 = vpop.permute.xlu0 %5644
  %5646 = vrot.lane.b32.xlu0 %v5618, 88
  %v5647 = vpop.permute.xlu0 %5646
  %5648 = vrot.lane.b32.xlu0 %v5619, 88
  %v5649 = vpop.permute.xlu0 %5648
  %5650 = vrot.lane.b32.xlu0 %v5620, 88
  %v5651 = vpop.permute.xlu0 %5650
  %5652 = vrot.lane.b32.xlu0 %v5621, 88
  %v5653 = vpop.permute.xlu0 %5652
  %5654 = vrot.lane.b32.xlu0 %v5622, 88
  %v5655 = vpop.permute.xlu0 %5654
  %5656 = vrot.lane.b32.xlu0 %v5623, 88
  %v5657 = vpop.permute.xlu0 %5656
  %5658 = vrot.lane.b32.xlu0 %v5624, 88
  %v5659 = vpop.permute.xlu0 %5658
  %5660 = vrot.lane.b32.xlu0 %v5625, 88
  %v5661 = vpop.permute.xlu0 %5660
  %vm5662 = vcmask 719872
  %v5663 = vsel %vm5662, %v5639, %v5641
  %v5664 = vsel %vm5662, %v5641, %v5643
  %v5665 = vsel %vm5662, %v5645, %v5647
  %v5666 = vsel %vm5662, %v5647, %v5649
  %v5667 = vsel %vm5662, %v5651, %v5653
  %v5668 = vsel %vm5662, %v5653, %v5655
  %v5669 = vsel %vm5662, %v5657, %v5659
  %v5670 = vsel %vm5662, %v5659, %v5661
  %5679 = vst [vmem:[#allocation6 + $0x1c0] sm:$0xff] %v5663
  %5680 = vst.msk [vmem:[#allocation6 + $0x1c8] sm:$0xff] %vm4743, %v5664
  %5681 = vst [vmem:[#allocation6 + $0x1d0] sm:$0xff] %v5665
  %5682 = vst.msk [vmem:[#allocation6 + $0x1d8] sm:$0xff] %vm4743, %v5666
  %5683 = vst [vmem:[#allocation6 + $0x4e0] sm:$0xff] %v5667
  %5684 = vst.msk [vmem:[#allocation6 + $0x4e8] sm:$0xff] %vm4743, %v5668
  %5685 = vst [vmem:[#allocation6 + $0x4f0] sm:$0xff] %v5669
  %5686 = vst.msk [vmem:[#allocation6 + $0x4f8] sm:$0xff] %vm4743, %v5670
  %v5687 = vld [vmem:[#allocation5] sm:$0xff]
  %v5688 = vld [vmem:[#allocation5 + $0x8] sm:$0xff]
  %v5689 = vld [vmem:[#allocation5 + $0x10] sm:$0xff]
  %v5690 = vld [vmem:[#allocation5 + $0x18] sm:$0xff]
  %v5691 = vld [vmem:[#allocation5 + $0x20] sm:$0xff]
  %v5692 = vld [vmem:[#allocation5 + $0x28] sm:$0xff]
  %v5693 = vld [vmem:[#allocation5 + $0x30] sm:$0xff]
  %v5694 = vld [vmem:[#allocation5 + $0x38] sm:$0xff]
  %v5695 = vld [vmem:[#allocation5 + $0x40] sm:$0xff]
  %v5696 = vld [vmem:[#allocation5 + $0x48] sm:$0xff]
  %v5697 = vld [vmem:[#allocation5 + $0x50] sm:$0xff]
  %v5698 = vld [vmem:[#allocation5 + $0x58] sm:$0xff]
  %5711 = vrot.lane.b32.xlu0 %v5687, 74
  %v5712 = vpop.permute.xlu0 %5711
  %5713 = vrot.lane.b32.xlu0 %v5688, 74
  %v5714 = vpop.permute.xlu0 %5713
  %5715 = vrot.lane.b32.xlu0 %v5689, 74
  %v5716 = vpop.permute.xlu0 %5715
  %5717 = vrot.lane.b32.xlu0 %v5690, 74
  %v5718 = vpop.permute.xlu0 %5717
  %5719 = vrot.lane.b32.xlu0 %v5691, 74
  %v5720 = vpop.permute.xlu0 %5719
  %5721 = vrot.lane.b32.xlu0 %v5692, 74
  %v5722 = vpop.permute.xlu0 %5721
  %5723 = vrot.lane.b32.xlu0 %v5693, 74
  %v5724 = vpop.permute.xlu0 %5723
  %5725 = vrot.lane.b32.xlu0 %v5694, 74
  %v5726 = vpop.permute.xlu0 %5725
  %5727 = vrot.lane.b32.xlu0 %v5695, 74
  %v5728 = vpop.permute.xlu0 %5727
  %5729 = vrot.lane.b32.xlu0 %v5696, 74
  %v5730 = vpop.permute.xlu0 %5729
  %5731 = vrot.lane.b32.xlu0 %v5697, 74
  %v5732 = vpop.permute.xlu0 %5731
  %5733 = vrot.lane.b32.xlu0 %v5698, 74
  %v5734 = vpop.permute.xlu0 %5733
  %vm5735 = vcmask 605184
  %v5736 = vsel %vm5735, %v5712, %v5714
  %v5737 = vsel %vm5735, %v5714, %v5716
  %v5738 = vsel %vm5735, %v5718, %v5720
  %v5739 = vsel %vm5735, %v5720, %v5722
  %v5740 = vsel %vm5735, %v5724, %v5726
  %v5741 = vsel %vm5735, %v5726, %v5728
  %v5742 = vsel %vm5735, %v5730, %v5732
  %v5743 = vsel %vm5735, %v5732, %v5734
  %5752 = vst [vmem:[#allocation6 + $0x1e0] sm:$0xff] %v5736
  %5753 = vst.msk [vmem:[#allocation6 + $0x1e8] sm:$0xff] %vm4743, %v5737
  %5754 = vst [vmem:[#allocation6 + $0x1f0] sm:$0xff] %v5738
  %5755 = vst.msk [vmem:[#allocation6 + $0x1f8] sm:$0xff] %vm4743, %v5739
  %5756 = vst [vmem:[#allocation6 + $0x500] sm:$0xff] %v5740
  %5757 = vst.msk [vmem:[#allocation6 + $0x508] sm:$0xff] %vm4743, %v5741
  %5758 = vst [vmem:[#allocation6 + $0x510] sm:$0xff] %v5742
  %5759 = vst.msk [vmem:[#allocation6 + $0x518] sm:$0xff] %vm4743, %v5743
  %v5760 = vld [vmem:[#allocation5] sm:$0xff]
  %v5761 = vld [vmem:[#allocation5 + $0x8] sm:$0xff]
  %v5762 = vld [vmem:[#allocation5 + $0x10] sm:$0xff]
  %v5763 = vld [vmem:[#allocation5 + $0x18] sm:$0xff]
  %v5764 = vld [vmem:[#allocation5 + $0x20] sm:$0xff]
  %v5765 = vld [vmem:[#allocation5 + $0x28] sm:$0xff]
  %v5766 = vld [vmem:[#allocation5 + $0x30] sm:$0xff]
  %v5767 = vld [vmem:[#allocation5 + $0x38] sm:$0xff]
  %v5768 = vld [vmem:[#allocation5 + $0x40] sm:$0xff]
  %v5769 = vld [vmem:[#allocation5 + $0x48] sm:$0xff]
  %v5770 = vld [vmem:[#allocation5 + $0x50] sm:$0xff]
  %v5771 = vld [vmem:[#allocation5 + $0x58] sm:$0xff]
  %5784 = vrot.lane.b32.xlu0 %v5760, 73
  %v5785 = vpop.permute.xlu0 %5784
  %5786 = vrot.lane.b32.xlu0 %v5761, 73
  %v5787 = vpop.permute.xlu0 %5786
  %5788 = vrot.lane.b32.xlu0 %v5762, 73
  %v5789 = vpop.permute.xlu0 %5788
  %5790 = vrot.lane.b32.xlu0 %v5763, 73
  %v5791 = vpop.permute.xlu0 %5790
  %5792 = vrot.lane.b32.xlu0 %v5764, 73
  %v5793 = vpop.permute.xlu0 %5792
  %5794 = vrot.lane.b32.xlu0 %v5765, 73
  %v5795 = vpop.permute.xlu0 %5794
  %5796 = vrot.lane.b32.xlu0 %v5766, 73
  %v5797 = vpop.permute.xlu0 %5796
  %5798 = vrot.lane.b32.xlu0 %v5767, 73
  %v5799 = vpop.permute.xlu0 %5798
  %5800 = vrot.lane.b32.xlu0 %v5768, 73
  %v5801 = vpop.permute.xlu0 %5800
  %5802 = vrot.lane.b32.xlu0 %v5769, 73
  %v5803 = vpop.permute.xlu0 %5802
  %5804 = vrot.lane.b32.xlu0 %v5770, 73
  %v5805 = vpop.permute.xlu0 %5804
  %5806 = vrot.lane.b32.xlu0 %v5771, 73
  %v5807 = vpop.permute.xlu0 %5806
  %vm5808 = vcmask 596992
  %v5809 = vsel %vm5808, %v5785, %v5787
  %v5810 = vsel %vm5808, %v5787, %v5789
  %v5811 = vsel %vm5808, %v5791, %v5793
  %v5812 = vsel %vm5808, %v5793, %v5795
  %v5813 = vsel %vm5808, %v5797, %v5799
  %v5814 = vsel %vm5808, %v5799, %v5801
  %v5815 = vsel %vm5808, %v5803, %v5805
  %v5816 = vsel %vm5808, %v5805, %v5807
  %5825 = vst [vmem:[#allocation6 + $0x200] sm:$0xff] %v5809
  %5826 = vst.msk [vmem:[#allocation6 + $0x208] sm:$0xff] %vm4743, %v5810
  %5827 = vst [vmem:[#allocation6 + $0x210] sm:$0xff] %v5811
  %5828 = vst.msk [vmem:[#allocation6 + $0x218] sm:$0xff] %vm4743, %v5812
  %5829 = vst [vmem:[#allocation6 + $0x520] sm:$0xff] %v5813
  %5830 = vst.msk [vmem:[#allocation6 + $0x528] sm:$0xff] %vm4743, %v5814
  %5831 = vst [vmem:[#allocation6 + $0x530] sm:$0xff] %v5815
  %5832 = vst.msk [vmem:[#allocation6 + $0x538] sm:$0xff] %vm4743, %v5816
  %v5833 = vld [vmem:[#allocation5] sm:$0xff]
  %v5834 = vld [vmem:[#allocation5 + $0x8] sm:$0xff]
  %v5835 = vld [vmem:[#allocation5 + $0x10] sm:$0xff]
  %v5836 = vld [vmem:[#allocation5 + $0x18] sm:$0xff]
  %v5837 = vld [vmem:[#allocation5 + $0x20] sm:$0xff]
  %v5838 = vld [vmem:[#allocation5 + $0x28] sm:$0xff]
  %v5839 = vld [vmem:[#allocation5 + $0x30] sm:$0xff]
  %v5840 = vld [vmem:[#allocation5 + $0x38] sm:$0xff]
  %v5841 = vld [vmem:[#allocation5 + $0x40] sm:$0xff]
  %v5842 = vld [vmem:[#allocation5 + $0x48] sm:$0xff]
  %v5843 = vld [vmem:[#allocation5 + $0x50] sm:$0xff]
  %v5844 = vld [vmem:[#allocation5 + $0x58] sm:$0xff]
  %5857 = vrot.lane.b32.xlu0 %v5833, 72
  %v5858 = vpop.permute.xlu0 %5857
  %5859 = vrot.lane.b32.xlu0 %v5834, 72
  %v5860 = vpop.permute.xlu0 %5859
  %5861 = vrot.lane.b32.xlu0 %v5835, 72
  %v5862 = vpop.permute.xlu0 %5861
  %5863 = vrot.lane.b32.xlu0 %v5836, 72
  %v5864 = vpop.permute.xlu0 %5863
  %5865 = vrot.lane.b32.xlu0 %v5837, 72
  %v5866 = vpop.permute.xlu0 %5865
  %5867 = vrot.lane.b32.xlu0 %v5838, 72
  %v5868 = vpop.permute.xlu0 %5867
  %5869 = vrot.lane.b32.xlu0 %v5839, 72
  %v5870 = vpop.permute.xlu0 %5869
  %5871 = vrot.lane.b32.xlu0 %v5840, 72
  %v5872 = vpop.permute.xlu0 %5871
  %5873 = vrot.lane.b32.xlu0 %v5841, 72
  %v5874 = vpop.permute.xlu0 %5873
  %5875 = vrot.lane.b32.xlu0 %v5842, 72
  %v5876 = vpop.permute.xlu0 %5875
  %5877 = vrot.lane.b32.xlu0 %v5843, 72
  %v5878 = vpop.permute.xlu0 %5877
  %5879 = vrot.lane.b32.xlu0 %v5844, 72
  %v5880 = vpop.permute.xlu0 %5879
  %vm5881 = vcmask 588800
  %v5882 = vsel %vm5881, %v5858, %v5860
  %v5883 = vsel %vm5881, %v5860, %v5862
  %v5884 = vsel %vm5881, %v5864, %v5866
  %v5885 = vsel %vm5881, %v5866, %v5868
  %v5886 = vsel %vm5881, %v5870, %v5872
  %v5887 = vsel %vm5881, %v5872, %v5874
  %v5888 = vsel %vm5881, %v5876, %v5878
  %v5889 = vsel %vm5881, %v5878, %v5880
  %5898 = vst [vmem:[#allocation6 + $0x220] sm:$0xff] %v5882
  %5899 = vst.msk [vmem:[#allocation6 + $0x228] sm:$0xff] %vm4743, %v5883
  %5900 = vst [vmem:[#allocation6 + $0x230] sm:$0xff] %v5884
  %5901 = vst.msk [vmem:[#allocation6 + $0x238] sm:$0xff] %vm4743, %v5885
  %5902 = vst [vmem:[#allocation6 + $0x540] sm:$0xff] %v5886
  %5903 = vst.msk [vmem:[#allocation6 + $0x548] sm:$0xff] %vm4743, %v5887
  %5904 = vst [vmem:[#allocation6 + $0x550] sm:$0xff] %v5888
  %5905 = vst.msk [vmem:[#allocation6 + $0x558] sm:$0xff] %vm4743, %v5889
  %v5906 = vld [vmem:[#allocation5] sm:$0xff]
  %v5907 = vld [vmem:[#allocation5 + $0x8] sm:$0xff]
  %v5908 = vld [vmem:[#allocation5 + $0x10] sm:$0xff]
  %v5909 = vld [vmem:[#allocation5 + $0x18] sm:$0xff]
  %v5910 = vld [vmem:[#allocation5 + $0x20] sm:$0xff]
  %v5911 = vld [vmem:[#allocation5 + $0x28] sm:$0xff]
  %v5912 = vld [vmem:[#allocation5 + $0x30] sm:$0xff]
  %v5913 = vld [vmem:[#allocation5 + $0x38] sm:$0xff]
  %v5914 = vld [vmem:[#allocation5 + $0x40] sm:$0xff]
  %v5915 = vld [vmem:[#allocation5 + $0x48] sm:$0xff]
  %v5916 = vld [vmem:[#allocation5 + $0x50] sm:$0xff]
  %v5917 = vld [vmem:[#allocation5 + $0x58] sm:$0xff]
  %5930 = vrot.lane.b32.xlu0 %v5906, 71
  %v5931 = vpop.permute.xlu0 %5930
  %5932 = vrot.lane.b32.xlu0 %v5907, 71
  %v5933 = vpop.permute.xlu0 %5932
  %5934 = vrot.lane.b32.xlu0 %v5908, 71
  %v5935 = vpop.permute.xlu0 %5934
  %5936 = vrot.lane.b32.xlu0 %v5909, 71
  %v5937 = vpop.permute.xlu0 %5936
  %5938 = vrot.lane.b32.xlu0 %v5910, 71
  %v5939 = vpop.permute.xlu0 %5938
  %5940 = vrot.lane.b32.xlu0 %v5911, 71
  %v5941 = vpop.permute.xlu0 %5940
  %5942 = vrot.lane.b32.xlu0 %v5912, 71
  %v5943 = vpop.permute.xlu0 %5942
  %5944 = vrot.lane.b32.xlu0 %v5913, 71
  %v5945 = vpop.permute.xlu0 %5944
  %5946 = vrot.lane.b32.xlu0 %v5914, 71
  %v5947 = vpop.permute.xlu0 %5946
  %5948 = vrot.lane.b32.xlu0 %v5915, 71
  %v5949 = vpop.permute.xlu0 %5948
  %5950 = vrot.lane.b32.xlu0 %v5916, 71
  %v5951 = vpop.permute.xlu0 %5950
  %5952 = vrot.lane.b32.xlu0 %v5917, 71
  %v5953 = vpop.permute.xlu0 %5952
  %vm5954 = vcmask 580608
  %v5955 = vsel %vm5954, %v5931, %v5933
  %v5956 = vsel %vm5954, %v5933, %v5935
  %v5957 = vsel %vm5954, %v5937, %v5939
  %v5958 = vsel %vm5954, %v5939, %v5941
  %v5959 = vsel %vm5954, %v5943, %v5945
  %v5960 = vsel %vm5954, %v5945, %v5947
  %v5961 = vsel %vm5954, %v5949, %v5951
  %v5962 = vsel %vm5954, %v5951, %v5953
  %5971 = vst [vmem:[#allocation6 + $0x240] sm:$0xff] %v5955
  %5972 = vst.msk [vmem:[#allocation6 + $0x248] sm:$0xff] %vm4743, %v5956
  %5973 = vst [vmem:[#allocation6 + $0x250] sm:$0xff] %v5957
  %5974 = vst.msk [vmem:[#allocation6 + $0x258] sm:$0xff] %vm4743, %v5958
  %5975 = vst [vmem:[#allocation6 + $0x560] sm:$0xff] %v5959
  %5976 = vst.msk [vmem:[#allocation6 + $0x568] sm:$0xff] %vm4743, %v5960
  %5977 = vst [vmem:[#allocation6 + $0x570] sm:$0xff] %v5961
  %5978 = vst.msk [vmem:[#allocation6 + $0x578] sm:$0xff] %vm4743, %v5962
  %v5979 = vld [vmem:[#allocation5] sm:$0xff]
  %v5980 = vld [vmem:[#allocation5 + $0x8] sm:$0xff]
  %v5981 = vld [vmem:[#allocation5 + $0x10] sm:$0xff]
  %v5982 = vld [vmem:[#allocation5 + $0x18] sm:$0xff]
  %v5983 = vld [vmem:[#allocation5 + $0x20] sm:$0xff]
  %v5984 = vld [vmem:[#allocation5 + $0x28] sm:$0xff]
  %v5985 = vld [vmem:[#allocation5 + $0x30] sm:$0xff]
  %v5986 = vld [vmem:[#allocation5 + $0x38] sm:$0xff]
  %v5987 = vld [vmem:[#allocation5 + $0x40] sm:$0xff]
  %v5988 = vld [vmem:[#allocation5 + $0x48] sm:$0xff]
  %v5989 = vld [vmem:[#allocation5 + $0x50] sm:$0xff]
  %v5990 = vld [vmem:[#allocation5 + $0x58] sm:$0xff]
  %6003 = vrot.lane.b32.xlu0 %v5979, 70
  %v6004 = vpop.permute.xlu0 %6003
  %6005 = vrot.lane.b32.xlu0 %v5980, 70
  %v6006 = vpop.permute.xlu0 %6005
  %6007 = vrot.lane.b32.xlu0 %v5981, 70
  %v6008 = vpop.permute.xlu0 %6007
  %6009 = vrot.lane.b32.xlu0 %v5982, 70
  %v6010 = vpop.permute.xlu0 %6009
  %6011 = vrot.lane.b32.xlu0 %v5983, 70
  %v6012 = vpop.permute.xlu0 %6011
  %6013 = vrot.lane.b32.xlu0 %v5984, 70
  %v6014 = vpop.permute.xlu0 %6013
  %6015 = vrot.lane.b32.xlu0 %v5985, 70
  %v6016 = vpop.permute.xlu0 %6015
  %6017 = vrot.lane.b32.xlu0 %v5986, 70
  %v6018 = vpop.permute.xlu0 %6017
  %6019 = vrot.lane.b32.xlu0 %v5987, 70
  %v6020 = vpop.permute.xlu0 %6019
  %6021 = vrot.lane.b32.xlu0 %v5988, 70
  %v6022 = vpop.permute.xlu0 %6021
  %6023 = vrot.lane.b32.xlu0 %v5989, 70
  %v6024 = vpop.permute.xlu0 %6023
  %6025 = vrot.lane.b32.xlu0 %v5990, 70
  %v6026 = vpop.permute.xlu0 %6025
  %vm6027 = vcmask 572416
  %v6028 = vsel %vm6027, %v6004, %v6006
  %v6029 = vsel %vm6027, %v6006, %v6008
  %v6030 = vsel %vm6027, %v6010, %v6012
  %v6031 = vsel %vm6027, %v6012, %v6014
  %v6032 = vsel %vm6027, %v6016, %v6018
  %v6033 = vsel %vm6027, %v6018, %v6020
  %v6034 = vsel %vm6027, %v6022, %v6024
  %v6035 = vsel %vm6027, %v6024, %v6026
  %6044 = vst [vmem:[#allocation6 + $0x260] sm:$0xff] %v6028
  %6045 = vst.msk [vmem:[#allocation6 + $0x268] sm:$0xff] %vm4743, %v6029
  %6046 = vst [vmem:[#allocation6 + $0x270] sm:$0xff] %v6030
  %6047 = vst.msk [vmem:[#allocation6 + $0x278] sm:$0xff] %vm4743, %v6031
  %6048 = vst [vmem:[#allocation6 + $0x580] sm:$0xff] %v6032
  %6049 = vst.msk [vmem:[#allocation6 + $0x588] sm:$0xff] %vm4743, %v6033
  %6050 = vst [vmem:[#allocation6 + $0x590] sm:$0xff] %v6034
  %6051 = vst.msk [vmem:[#allocation6 + $0x598] sm:$0xff] %vm4743, %v6035
  %v6052 = vld [vmem:[#allocation5] sm:$0xff]
  %v6053 = vld [vmem:[#allocation5 + $0x8] sm:$0xff]
  %v6054 = vld [vmem:[#allocation5 + $0x10] sm:$0xff]
  %v6055 = vld [vmem:[#allocation5 + $0x18] sm:$0xff]
  %v6056 = vld [vmem:[#allocation5 + $0x20] sm:$0xff]
  %v6057 = vld [vmem:[#allocation5 + $0x28] sm:$0xff]
  %v6058 = vld [vmem:[#allocation5 + $0x30] sm:$0xff]
  %v6059 = vld [vmem:[#allocation5 + $0x38] sm:$0xff]
  %v6060 = vld [vmem:[#allocation5 + $0x40] sm:$0xff]
  %v6061 = vld [vmem:[#allocation5 + $0x48] sm:$0xff]
  %v6062 = vld [vmem:[#allocation5 + $0x50] sm:$0xff]
  %v6063 = vld [vmem:[#allocation5 + $0x58] sm:$0xff]
  %6076 = vrot.lane.b32.xlu0 %v6052, 56
  %v6077 = vpop.permute.xlu0 %6076
  %6078 = vrot.lane.b32.xlu0 %v6053, 56
  %v6079 = vpop.permute.xlu0 %6078
  %6080 = vrot.lane.b32.xlu0 %v6054, 56
  %v6081 = vpop.permute.xlu0 %6080
  %6082 = vrot.lane.b32.xlu0 %v6055, 56
  %v6083 = vpop.permute.xlu0 %6082
  %6084 = vrot.lane.b32.xlu0 %v6056, 56
  %v6085 = vpop.permute.xlu0 %6084
  %6086 = vrot.lane.b32.xlu0 %v6057, 56
  %v6087 = vpop.permute.xlu0 %6086
  %6088 = vrot.lane.b32.xlu0 %v6058, 56
  %v6089 = vpop.permute.xlu0 %6088
  %6090 = vrot.lane.b32.xlu0 %v6059, 56
  %v6091 = vpop.permute.xlu0 %6090
  %6092 = vrot.lane.b32.xlu0 %v6060, 56
  %v6093 = vpop.permute.xlu0 %6092
  %6094 = vrot.lane.b32.xlu0 %v6061, 56
  %v6095 = vpop.permute.xlu0 %6094
  %6096 = vrot.lane.b32.xlu0 %v6062, 56
  %v6097 = vpop.permute.xlu0 %6096
  %6098 = vrot.lane.b32.xlu0 %v6063, 56
  %v6099 = vpop.permute.xlu0 %6098
  %vm6100 = vcmask 457728
  %v6101 = vsel %vm6100, %v6077, %v6079
  %v6102 = vsel %vm6100, %v6079, %v6081
  %v6103 = vsel %vm6100, %v6083, %v6085
  %v6104 = vsel %vm6100, %v6085, %v6087
  %v6105 = vsel %vm6100, %v6089, %v6091
  %v6106 = vsel %vm6100, %v6091, %v6093
  %v6107 = vsel %vm6100, %v6095, %v6097
  %v6108 = vsel %vm6100, %v6097, %v6099
  %6117 = vst [vmem:[#allocation6 + $0x280] sm:$0xff] %v6101
  %6118 = vst.msk [vmem:[#allocation6 + $0x288] sm:$0xff] %vm4743, %v6102
  %6119 = vst [vmem:[#allocation6 + $0x290] sm:$0xff] %v6103
  %6120 = vst.msk [vmem:[#allocation6 + $0x298] sm:$0xff] %vm4743, %v6104
  %6121 = vst [vmem:[#allocation6 + $0x5a0] sm:$0xff] %v6105
  %6122 = vst.msk [vmem:[#allocation6 + $0x5a8] sm:$0xff] %vm4743, %v6106
  %6123 = vst [vmem:[#allocation6 + $0x5b0] sm:$0xff] %v6107
  %6124 = vst.msk [vmem:[#allocation6 + $0x5b8] sm:$0xff] %vm4743, %v6108
  %v6125 = vld [vmem:[#allocation5] sm:$0xff]
  %v6126 = vld [vmem:[#allocation5 + $0x8] sm:$0xff]
  %v6127 = vld [vmem:[#allocation5 + $0x10] sm:$0xff]
  %v6128 = vld [vmem:[#allocation5 + $0x18] sm:$0xff]
  %v6129 = vld [vmem:[#allocation5 + $0x20] sm:$0xff]
  %v6130 = vld [vmem:[#allocation5 + $0x28] sm:$0xff]
  %v6131 = vld [vmem:[#allocation5 + $0x30] sm:$0xff]
  %v6132 = vld [vmem:[#allocation5 + $0x38] sm:$0xff]
  %v6133 = vld [vmem:[#allocation5 + $0x40] sm:$0xff]
  %v6134 = vld [vmem:[#allocation5 + $0x48] sm:$0xff]
  %v6135 = vld [vmem:[#allocation5 + $0x50] sm:$0xff]
  %v6136 = vld [vmem:[#allocation5 + $0x58] sm:$0xff]
  %6149 = vrot.lane.b32.xlu0 %v6125, 55
  %v6150 = vpop.permute.xlu0 %6149
  %6151 = vrot.lane.b32.xlu0 %v6126, 55
  %v6152 = vpop.permute.xlu0 %6151
  %6153 = vrot.lane.b32.xlu0 %v6127, 55
  %v6154 = vpop.permute.xlu0 %6153
  %6155 = vrot.lane.b32.xlu0 %v6128, 55
  %v6156 = vpop.permute.xlu0 %6155
  %6157 = vrot.lane.b32.xlu0 %v6129, 55
  %v6158 = vpop.permute.xlu0 %6157
  %6159 = vrot.lane.b32.xlu0 %v6130, 55
  %v6160 = vpop.permute.xlu0 %6159
  %6161 = vrot.lane.b32.xlu0 %v6131, 55
  %v6162 = vpop.permute.xlu0 %6161
  %6163 = vrot.lane.b32.xlu0 %v6132, 55
  %v6164 = vpop.permute.xlu0 %6163
  %6165 = vrot.lane.b32.xlu0 %v6133, 55
  %v6166 = vpop.permute.xlu0 %6165
  %6167 = vrot.lane.b32.xlu0 %v6134, 55
  %v6168 = vpop.permute.xlu0 %6167
  %6169 = vrot.lane.b32.xlu0 %v6135, 55
  %v6170 = vpop.permute.xlu0 %6169
  %6171 = vrot.lane.b32.xlu0 %v6136, 55
  %v6172 = vpop.permute.xlu0 %6171
  %vm6173 = vcmask 449536
  %v6174 = vsel %vm6173, %v6150, %v6152
  %v6175 = vsel %vm6173, %v6152, %v6154
  %v6176 = vsel %vm6173, %v6156, %v6158
  %v6177 = vsel %vm6173, %v6158, %v6160
  %v6178 = vsel %vm6173, %v6162, %v6164
  %v6179 = vsel %vm6173, %v6164, %v6166
  %v6180 = vsel %vm6173, %v6168, %v6170
  %v6181 = vsel %vm6173, %v6170, %v6172
  %6190 = vst [vmem:[#allocation6 + $0x2a0] sm:$0xff] %v6174
  %6191 = vst.msk [vmem:[#allocation6 + $0x2a8] sm:$0xff] %vm4743, %v6175
  %6192 = vst [vmem:[#allocation6 + $0x2b0] sm:$0xff] %v6176
  %6193 = vst.msk [vmem:[#allocation6 + $0x2b8] sm:$0xff] %vm4743, %v6177
  %6194 = vst [vmem:[#allocation6 + $0x5c0] sm:$0xff] %v6178
  %6195 = vst.msk [vmem:[#allocation6 + $0x5c8] sm:$0xff] %vm4743, %v6179
  %6196 = vst [vmem:[#allocation6 + $0x5d0] sm:$0xff] %v6180
  %6197 = vst.msk [vmem:[#allocation6 + $0x5d8] sm:$0xff] %vm4743, %v6181
  %v6198 = vld [vmem:[#allocation5] sm:$0xff]
  %v6199 = vld [vmem:[#allocation5 + $0x8] sm:$0xff]
  %v6200 = vld [vmem:[#allocation5 + $0x10] sm:$0xff]
  %v6201 = vld [vmem:[#allocation5 + $0x18] sm:$0xff]
  %v6202 = vld [vmem:[#allocation5 + $0x20] sm:$0xff]
  %v6203 = vld [vmem:[#allocation5 + $0x28] sm:$0xff]
  %v6204 = vld [vmem:[#allocation5 + $0x30] sm:$0xff]
  %v6205 = vld [vmem:[#allocation5 + $0x38] sm:$0xff]
  %v6206 = vld [vmem:[#allocation5 + $0x40] sm:$0xff]
  %v6207 = vld [vmem:[#allocation5 + $0x48] sm:$0xff]
  %v6208 = vld [vmem:[#allocation5 + $0x50] sm:$0xff]
  %v6209 = vld [vmem:[#allocation5 + $0x58] sm:$0xff]
  %6222 = vrot.lane.b32.xlu0 %v6198, 54
  %v6223 = vpop.permute.xlu0 %6222
  %6224 = vrot.lane.b32.xlu0 %v6199, 54
  %v6225 = vpop.permute.xlu0 %6224
  %6226 = vrot.lane.b32.xlu0 %v6200, 54
  %v6227 = vpop.permute.xlu0 %6226
  %6228 = vrot.lane.b32.xlu0 %v6201, 54
  %v6229 = vpop.permute.xlu0 %6228
  %6230 = vrot.lane.b32.xlu0 %v6202, 54
  %v6231 = vpop.permute.xlu0 %6230
  %6232 = vrot.lane.b32.xlu0 %v6203, 54
  %v6233 = vpop.permute.xlu0 %6232
  %6234 = vrot.lane.b32.xlu0 %v6204, 54
  %v6235 = vpop.permute.xlu0 %6234
  %6236 = vrot.lane.b32.xlu0 %v6205, 54
  %v6237 = vpop.permute.xlu0 %6236
  %6238 = vrot.lane.b32.xlu0 %v6206, 54
  %v6239 = vpop.permute.xlu0 %6238
  %6240 = vrot.lane.b32.xlu0 %v6207, 54
  %v6241 = vpop.permute.xlu0 %6240
  %6242 = vrot.lane.b32.xlu0 %v6208, 54
  %v6243 = vpop.permute.xlu0 %6242
  %6244 = vrot.lane.b32.xlu0 %v6209, 54
  %v6245 = vpop.permute.xlu0 %6244
  %vm6246 = vcmask 441344
  %v6247 = vsel %vm6246, %v6223, %v6225
  %v6248 = vsel %vm6246, %v6225, %v6227
  %v6249 = vsel %vm6246, %v6229, %v6231
  %v6250 = vsel %vm6246, %v6231, %v6233
  %v6251 = vsel %vm6246, %v6235, %v6237
  %v6252 = vsel %vm6246, %v6237, %v6239
  %v6253 = vsel %vm6246, %v6241, %v6243
  %v6254 = vsel %vm6246, %v6243, %v6245
  %6263 = vst [vmem:[#allocation6 + $0x2c0] sm:$0xff] %v6247
  %6264 = vst.msk [vmem:[#allocation6 + $0x2c8] sm:$0xff] %vm4743, %v6248
  %6265 = vst [vmem:[#allocation6 + $0x2d0] sm:$0xff] %v6249
  %6266 = vst.msk [vmem:[#allocation6 + $0x2d8] sm:$0xff] %vm4743, %v6250
  %6267 = vst [vmem:[#allocation6 + $0x5e0] sm:$0xff] %v6251
  %6268 = vst.msk [vmem:[#allocation6 + $0x5e8] sm:$0xff] %vm4743, %v6252
  %6269 = vst [vmem:[#allocation6 + $0x5f0] sm:$0xff] %v6253
  %6270 = vst.msk [vmem:[#allocation6 + $0x5f8] sm:$0xff] %vm4743, %v6254
  %v6271 = vld [vmem:[#allocation5] sm:$0xff]
  %v6272 = vld [vmem:[#allocation5 + $0x8] sm:$0xff]
  %v6273 = vld [vmem:[#allocation5 + $0x10] sm:$0xff]
  %v6274 = vld [vmem:[#allocation5 + $0x18] sm:$0xff]
  %v6275 = vld [vmem:[#allocation5 + $0x20] sm:$0xff]
  %v6276 = vld [vmem:[#allocation5 + $0x28] sm:$0xff]
  %v6277 = vld [vmem:[#allocation5 + $0x30] sm:$0xff]
  %v6278 = vld [vmem:[#allocation5 + $0x38] sm:$0xff]
  %v6279 = vld [vmem:[#allocation5 + $0x40] sm:$0xff]
  %v6280 = vld [vmem:[#allocation5 + $0x48] sm:$0xff]
  %v6281 = vld [vmem:[#allocation5 + $0x50] sm:$0xff]
  %v6282 = vld [vmem:[#allocation5 + $0x58] sm:$0xff]
  %6295 = vrot.lane.b32.xlu0 %v6271, 53
  %v6296 = vpop.permute.xlu0 %6295
  %6297 = vrot.lane.b32.xlu0 %v6272, 53
  %v6298 = vpop.permute.xlu0 %6297
  %6299 = vrot.lane.b32.xlu0 %v6273, 53
  %v6300 = vpop.permute.xlu0 %6299
  %6301 = vrot.lane.b32.xlu0 %v6274, 53
  %v6302 = vpop.permute.xlu0 %6301
  %6303 = vrot.lane.b32.xlu0 %v6275, 53
  %v6304 = vpop.permute.xlu0 %6303
  %6305 = vrot.lane.b32.xlu0 %v6276, 53
  %v6306 = vpop.permute.xlu0 %6305
  %6307 = vrot.lane.b32.xlu0 %v6277, 53
  %v6308 = vpop.permute.xlu0 %6307
  %6309 = vrot.lane.b32.xlu0 %v6278, 53
  %v6310 = vpop.permute.xlu0 %6309
  %6311 = vrot.lane.b32.xlu0 %v6279, 53
  %v6312 = vpop.permute.xlu0 %6311
  %6313 = vrot.lane.b32.xlu0 %v6280, 53
  %v6314 = vpop.permute.xlu0 %6313
  %6315 = vrot.lane.b32.xlu0 %v6281, 53
  %v6316 = vpop.permute.xlu0 %6315
  %6317 = vrot.lane.b32.xlu0 %v6282, 53
  %v6318 = vpop.permute.xlu0 %6317
  %vm6319 = vcmask 433152
  %v6320 = vsel %vm6319, %v6296, %v6298
  %v6321 = vsel %vm6319, %v6298, %v6300
  %v6322 = vsel %vm6319, %v6302, %v6304
  %v6323 = vsel %vm6319, %v6304, %v6306
  %v6324 = vsel %vm6319, %v6308, %v6310
  %v6325 = vsel %vm6319, %v6310, %v6312
  %v6326 = vsel %vm6319, %v6314, %v6316
  %v6327 = vsel %vm6319, %v6316, %v6318
  %6336 = vst [vmem:[#allocation6 + $0x2e0] sm:$0xff] %v6320
  %6337 = vst.msk [vmem:[#allocation6 + $0x2e8] sm:$0xff] %vm4743, %v6321
  %6338 = vst [vmem:[#allocation6 + $0x2f0] sm:$0xff] %v6322
  %6339 = vst.msk [vmem:[#allocation6 + $0x2f8] sm:$0xff] %vm4743, %v6323
  %6340 = vst [vmem:[#allocation6 + $0x600] sm:$0xff] %v6324
  %6341 = vst.msk [vmem:[#allocation6 + $0x608] sm:$0xff] %vm4743, %v6325
  %6342 = vst [vmem:[#allocation6 + $0x610] sm:$0xff] %v6326
  %6343 = vst.msk [vmem:[#allocation6 + $0x618] sm:$0xff] %vm4743, %v6327
  %v6344 = vld [vmem:[#allocation5] sm:$0xff]
  %v6345 = vld [vmem:[#allocation5 + $0x8] sm:$0xff]
  %v6346 = vld [vmem:[#allocation5 + $0x10] sm:$0xff]
  %v6347 = vld [vmem:[#allocation5 + $0x18] sm:$0xff]
  %v6348 = vld [vmem:[#allocation5 + $0x20] sm:$0xff]
  %v6349 = vld [vmem:[#allocation5 + $0x28] sm:$0xff]
  %v6350 = vld [vmem:[#allocation5 + $0x30] sm:$0xff]
  %v6351 = vld [vmem:[#allocation5 + $0x38] sm:$0xff]
  %v6352 = vld [vmem:[#allocation5 + $0x40] sm:$0xff]
  %v6353 = vld [vmem:[#allocation5 + $0x48] sm:$0xff]
  %v6354 = vld [vmem:[#allocation5 + $0x50] sm:$0xff]
  %v6355 = vld [vmem:[#allocation5 + $0x58] sm:$0xff]
  %6368 = vrot.lane.b32.xlu0 %v6344, 52
  %v6369 = vpop.permute.xlu0 %6368
  %6370 = vrot.lane.b32.xlu0 %v6345, 52
  %v6371 = vpop.permute.xlu0 %6370
  %6372 = vrot.lane.b32.xlu0 %v6346, 52
  %v6373 = vpop.permute.xlu0 %6372
  %6374 = vrot.lane.b32.xlu0 %v6347, 52
  %v6375 = vpop.permute.xlu0 %6374
  %6376 = vrot.lane.b32.xlu0 %v6348, 52
  %v6377 = vpop.permute.xlu0 %6376
  %6378 = vrot.lane.b32.xlu0 %v6349, 52
  %v6379 = vpop.permute.xlu0 %6378
  %6380 = vrot.lane.b32.xlu0 %v6350, 52
  %v6381 = vpop.permute.xlu0 %6380
  %6382 = vrot.lane.b32.xlu0 %v6351, 52
  %v6383 = vpop.permute.xlu0 %6382
  %6384 = vrot.lane.b32.xlu0 %v6352, 52
  %v6385 = vpop.permute.xlu0 %6384
  %6386 = vrot.lane.b32.xlu0 %v6353, 52
  %v6387 = vpop.permute.xlu0 %6386
  %6388 = vrot.lane.b32.xlu0 %v6354, 52
  %v6389 = vpop.permute.xlu0 %6388
  %6390 = vrot.lane.b32.xlu0 %v6355, 52
  %v6391 = vpop.permute.xlu0 %6390
  %vm6392 = vcmask 424960
  %v6393 = vsel %vm6392, %v6369, %v6371
  %v6394 = vsel %vm6392, %v6371, %v6373
  %v6395 = vsel %vm6392, %v6375, %v6377
  %v6396 = vsel %vm6392, %v6377, %v6379
  %v6397 = vsel %vm6392, %v6381, %v6383
  %v6398 = vsel %vm6392, %v6383, %v6385
  %v6399 = vsel %vm6392, %v6387, %v6389
  %v6400 = vsel %vm6392, %v6389, %v6391
  %6409 = vst [vmem:[#allocation6 + $0x300] sm:$0xff] %v6393
  %6410 = vst.msk [vmem:[#allocation6 + $0x308] sm:$0xff] %vm4743, %v6394
  %6411 = vst [vmem:[#allocation6 + $0x310] sm:$0xff] %v6395
  %6412 = vst.msk [vmem:[#allocation6 + $0x318] sm:$0xff] %vm4743, %v6396
  %6413 = vst [vmem:[#allocation6 + $0x620] sm:$0xff] %v6397
  %6414 = vst.msk [vmem:[#allocation6 + $0x628] sm:$0xff] %vm4743, %v6398
  %6415 = vst [vmem:[#allocation6 + $0x630] sm:$0xff] %v6399
  %6416 = vst.msk [vmem:[#allocation6 + $0x638] sm:$0xff] %vm4743, %v6400
  %v6417 = vld [vmem:[%s3] sm:$0xff]
  %v6418 = vld [vmem:[%s3 + $0x8] sm:$0xff]
  %v6419 = vld [vmem:[%s3 + $0x10] sm:$0xff]
  %v6420 = vld [vmem:[%s3 + $0x18] sm:$0xff]
  %v6421 = vld [vmem:[%s3 + $0x20] sm:$0xff]
  %v6422 = vld [vmem:[%s3 + $0x28] sm:$0xff]
  %v6423 = vld [vmem:[%s3 + $0x30] sm:$0xff]
  %v6424 = vld [vmem:[%s3 + $0x38] sm:$0xff]
  %v6425 = vld [vmem:[%s3 + $0x40] sm:$0xff]
  %v6426 = vld [vmem:[%s3 + $0x48] sm:$0xff]
  %v6427 = vld [vmem:[%s3 + $0x50] sm:$0xff]
  %v6428 = vld [vmem:[%s3 + $0x58] sm:$0xff]
  %v6429 = vld [vmem:[%s3 + $0x60] sm:$0xff]
  %v6430 = vld [vmem:[%s3 + $0x68] sm:$0xff]
  %v6431 = vld [vmem:[%s3 + $0x70] sm:$0xff]
  %v6432 = vld [vmem:[%s3 + $0x78] sm:$0xff]
  %v6433 = vld [vmem:[#allocation6] sm:$0xff]
  %v6434 = vld [vmem:[#allocation6 + $0x8] sm:$0xff]
  %v6435 = vld [vmem:[#allocation6 + $0x10] sm:$0xff]
  %v6436 = vld [vmem:[#allocation6 + $0x18] sm:$0xff]
  %v6437 = vld [vmem:[#allocation6 + $0x20] sm:$0xff]
  %v6438 = vld [vmem:[#allocation6 + $0x28] sm:$0xff]
  %v6439 = vld [vmem:[#allocation6 + $0x30] sm:$0xff]
  %v6440 = vld [vmem:[#allocation6 + $0x38] sm:$0xff]
  %v6441 = vld [vmem:[#allocation6 + $0x40] sm:$0xff]
  %v6442 = vld [vmem:[#allocation6 + $0x48] sm:$0xff]
  %v6443 = vld [vmem:[#allocation6 + $0x50] sm:$0xff]
  %v6444 = vld [vmem:[#allocation6 + $0x58] sm:$0xff]
  %v6445 = vld [vmem:[#allocation6 + $0x60] sm:$0xff]
  %v6446 = vld [vmem:[#allocation6 + $0x68] sm:$0xff]
  %v6447 = vld [vmem:[#allocation6 + $0x70] sm:$0xff]
  %v6448 = vld [vmem:[#allocation6 + $0x78] sm:$0xff]
  %v6449 = vld [vmem:[#allocation6 + $0x80] sm:$0xff]
  %v6450 = vld [vmem:[#allocation6 + $0x88] sm:$0xff]
  %v6451 = vld [vmem:[#allocation6 + $0x90] sm:$0xff]
  %v6452 = vld [vmem:[#allocation6 + $0x98] sm:$0xff]
  %v6453 = vld [vmem:[#allocation6 + $0xa0] sm:$0xff]
  %v6454 = vld [vmem:[#allocation6 + $0xa8] sm:$0xff]
  %v6455 = vld [vmem:[#allocation6 + $0xb0] sm:$0xff]
  %v6456 = vld [vmem:[#allocation6 + $0xb8] sm:$0xff]
  %v6457 = vld [vmem:[#allocation6 + $0xc0] sm:$0xff]
  %v6458 = vld [vmem:[#allocation6 + $0xc8] sm:$0xff]
  %v6459 = vld [vmem:[#allocation6 + $0xd0] sm:$0xff]
  %v6460 = vld [vmem:[#allocation6 + $0xd8] sm:$0xff]
  %v6461 = vld [vmem:[#allocation6 + $0xe0] sm:$0xff]
  %v6462 = vld [vmem:[#allocation6 + $0xe8] sm:$0xff]
  %v6463 = vld [vmem:[#allocation6 + $0xf0] sm:$0xff]
  %v6464 = vld [vmem:[#allocation6 + $0xf8] sm:$0xff]
  %v6465 = vld [vmem:[#allocation6 + $0x100] sm:$0xff]
  %v6466 = vld [vmem:[#allocation6 + $0x108] sm:$0xff]
  %v6467 = vld [vmem:[#allocation6 + $0x110] sm:$0xff]
  %v6468 = vld [vmem:[#allocation6 + $0x118] sm:$0xff]
  %v6469 = vld [vmem:[#allocation6 + $0x120] sm:$0xff]
  %v6470 = vld [vmem:[#allocation6 + $0x128] sm:$0xff]
  %v6471 = vld [vmem:[#allocation6 + $0x130] sm:$0xff]
  %v6472 = vld [vmem:[#allocation6 + $0x138] sm:$0xff]
  %v6473 = vld [vmem:[#allocation6 + $0x140] sm:$0xff]
  %v6474 = vld [vmem:[#allocation6 + $0x148] sm:$0xff]
  %v6475 = vld [vmem:[#allocation6 + $0x150] sm:$0xff]
  %v6476 = vld [vmem:[#allocation6 + $0x158] sm:$0xff]
  %v6477 = vld [vmem:[#allocation6 + $0x160] sm:$0xff]
  %v6478 = vld [vmem:[#allocation6 + $0x168] sm:$0xff]
  %v6479 = vld [vmem:[#allocation6 + $0x170] sm:$0xff]
  %v6480 = vld [vmem:[#allocation6 + $0x178] sm:$0xff]
  %v6481 = vld [vmem:[#allocation6 + $0x180] sm:$0xff]
  %v6482 = vld [vmem:[#allocation6 + $0x188] sm:$0xff]
  %v6483 = vld [vmem:[#allocation6 + $0x190] sm:$0xff]
  %v6484 = vld [vmem:[#allocation6 + $0x198] sm:$0xff]
  %v6485 = vld [vmem:[#allocation6 + $0x1a0] sm:$0xff]
  %v6486 = vld [vmem:[#allocation6 + $0x1a8] sm:$0xff]
  %v6487 = vld [vmem:[#allocation6 + $0x1b0] sm:$0xff]
  %v6488 = vld [vmem:[#allocation6 + $0x1b8] sm:$0xff]
  %v6489 = vld [vmem:[#allocation6 + $0x1c0] sm:$0xff]
  %v6490 = vld [vmem:[#allocation6 + $0x1c8] sm:$0xff]
  %v6491 = vld [vmem:[#allocation6 + $0x1d0] sm:$0xff]
  %v6492 = vld [vmem:[#allocation6 + $0x1d8] sm:$0xff]
  %v6493 = vld [vmem:[#allocation6 + $0x1e0] sm:$0xff]
  %v6494 = vld [vmem:[#allocation6 + $0x1e8] sm:$0xff]
  %v6495 = vld [vmem:[#allocation6 + $0x1f0] sm:$0xff]
  %v6496 = vld [vmem:[#allocation6 + $0x1f8] sm:$0xff]
  %v6497 = vld [vmem:[#allocation6 + $0x200] sm:$0xff]
  %v6498 = vld [vmem:[#allocation6 + $0x208] sm:$0xff]
  %v6499 = vld [vmem:[#allocation6 + $0x210] sm:$0xff]
  %v6500 = vld [vmem:[#allocation6 + $0x218] sm:$0xff]
  %v6501 = vld [vmem:[#allocation6 + $0x220] sm:$0xff]
  %v6502 = vld [vmem:[#allocation6 + $0x228] sm:$0xff]
  %v6503 = vld [vmem:[#allocation6 + $0x230] sm:$0xff]
  %v6504 = vld [vmem:[#allocation6 + $0x238] sm:$0xff]
  %v6505 = vld [vmem:[#allocation6 + $0x240] sm:$0xff]
  %v6506 = vld [vmem:[#allocation6 + $0x248] sm:$0xff]
  %v6507 = vld [vmem:[#allocation6 + $0x250] sm:$0xff]
  %v6508 = vld [vmem:[#allocation6 + $0x258] sm:$0xff]
  %v6509 = vld [vmem:[#allocation6 + $0x260] sm:$0xff]
  %v6510 = vld [vmem:[#allocation6 + $0x268] sm:$0xff]
  %v6511 = vld [vmem:[#allocation6 + $0x270] sm:$0xff]
  %v6512 = vld [vmem:[#allocation6 + $0x278] sm:$0xff]
  %v6513 = vld [vmem:[#allocation6 + $0x280] sm:$0xff]
  %v6514 = vld [vmem:[#allocation6 + $0x288] sm:$0xff]
  %v6515 = vld [vmem:[#allocation6 + $0x290] sm:$0xff]
  %v6516 = vld [vmem:[#allocation6 + $0x298] sm:$0xff]
  %v6517 = vld [vmem:[#allocation6 + $0x2a0] sm:$0xff]
  %v6518 = vld [vmem:[#allocation6 + $0x2a8] sm:$0xff]
  %v6519 = vld [vmem:[#allocation6 + $0x2b0] sm:$0xff]
  %v6520 = vld [vmem:[#allocation6 + $0x2b8] sm:$0xff]
  %v6521 = vld [vmem:[#allocation6 + $0x2c0] sm:$0xff]
  %v6522 = vld [vmem:[#allocation6 + $0x2c8] sm:$0xff]
  %v6523 = vld [vmem:[#allocation6 + $0x2d0] sm:$0xff]
  %v6524 = vld [vmem:[#allocation6 + $0x2d8] sm:$0xff]
  %v6525 = vld [vmem:[#allocation6 + $0x2e0] sm:$0xff]
  %v6526 = vld [vmem:[#allocation6 + $0x2e8] sm:$0xff]
  %v6527 = vld [vmem:[#allocation6 + $0x2f0] sm:$0xff]
  %v6528 = vld [vmem:[#allocation6 + $0x2f8] sm:$0xff]
  %v6529 = vld [vmem:[#allocation6 + $0x300] sm:$0xff]
  %v6530 = vld [vmem:[#allocation6 + $0x308] sm:$0xff]
  %v6531 = vld [vmem:[#allocation6 + $0x310] sm:$0xff]
  %v6532 = vld [vmem:[#allocation6 + $0x318] sm:$0xff]
  %v6533 = vld [vmem:[%s4] sm:$0xff]
  %v6534 = vld [vmem:[%s4 + $0x8] sm:$0xff]
  %v6535 = vld [vmem:[%s4 + $0x10] sm:$0xff]
  %v6536 = vld [vmem:[%s4 + $0x18] sm:$0xff]
  %6538 = vset.pattern.permute.xlu0 0
  %6539 = vperm.xlu0 %6538, %v6533
  %v6540 = vpop.permute.xlu0 %6539
  %6543 = vset.pattern.permute.xlu0 0
  %6544 = vperm.xlu0 %6543, %v6534
  %v6545 = vpop.permute.xlu0 %6544
  %6548 = vset.pattern.permute.xlu0 0
  %6549 = vperm.xlu0 %6548, %v6535
  %v6550 = vpop.permute.xlu0 %6549
  %6553 = vset.pattern.permute.xlu0 0
  %6554 = vperm.xlu0 %6553, %v6536
  %v6555 = vpop.permute.xlu0 %6554
  %vm6557 = vcmask 130048
  %v6559 = vsel %vm6557, %v6420, 0
  %v6562 = vsel %vm6557, %v6424, 0
  %v6565 = vsel %vm6557, %v6428, 0
  %v6568 = vsel %vm6557, %v6432, 0
  %6570 = vmatprep.subr.mxu0 %v6434
  %6571 = vmatpush1.msra.mxu0 %v6433
  %6572 = vmatprep.subr.mxu0 %v6436
  %6573 = vmatpush1.msra.mxu0 %v6435
  %6574 = vmatprep.subr.mxu0 %v6438
  %6575 = vmatpush1.msra.mxu0 %v6437
  %6576 = vmatprep.subr.mxu0 %v6440
  %6577 = vmatpush1.msra.mxu0 %v6439
  %6578 = vmatprep.subr.mxu0 %v6442
  %6579 = vmatpush1.msra.mxu0 %v6441
  %6580 = vmatprep.subr.mxu0 %v6444
  %6581 = vmatpush1.msra.mxu0 %v6443
  %6582 = vmatprep.subr.mxu0 %v6446
  %6583 = vmatpush1.msra.mxu0 %v6445
  %6584 = vmatprep.subr.mxu0 %v6448
  %6585 = vmatpush1.msra.mxu0 %v6447
  %6586 = vmatprep.subr.mxu0 %v6450
  %6587 = vmatpush1.msra.mxu0 %v6449
  %6588 = vmatprep.subr.mxu0 %v6452
  %6589 = vmatpush1.msra.mxu0 %v6451
  %6590 = vmatprep.subr.mxu0 %v6454
  %6591 = vmatpush1.msra.mxu0 %v6453
  %6592 = vmatprep.subr.mxu0 %v6456
  %6593 = vmatpush1.msra.mxu0 %v6455
  %6594 = vmatprep.subr.mxu0 %v6458
  %6595 = vmatpush1.msra.mxu0 %v6457
  %6596 = vmatprep.subr.mxu0 %v6460
  %6597 = vmatpush1.msra.mxu0 %v6459
  %6598 = vmatprep.subr.mxu0 %v6462
  %6599 = vmatpush1.msra.mxu0 %v6461
  %6600 = vmatprep.subr.mxu0 %v6464
  %6601 = vmatpush1.msra.mxu0 %v6463
  %6602 = vmatprep.subr.mxu0 %v6466
  %6603 = vmatpush1.msra.mxu0 %v6465
  %6604 = vmatprep.subr.mxu0 %v6468
  %6605 = vmatpush1.msra.mxu0 %v6467
  %6606 = vmatprep.subr.mxu0 %v6470
  %6607 = vmatpush1.msra.mxu0 %v6469
  %6608 = vmatprep.subr.mxu0 %v6472
  %6609 = vmatpush1.msra.mxu0 %v6471
  %6610 = vmatprep.subr.mxu0 %v6474
  %6611 = vmatpush1.msra.mxu0 %v6473
  %6612 = vmatprep.subr.mxu0 %v6476
  %6613 = vmatpush1.msra.mxu0 %v6475
  %6614 = vmatprep.subr.mxu0 %v6478
  %6615 = vmatpush1.msra.mxu0 %v6477
  %6616 = vmatprep.subr.mxu0 %v6480
  %6617 = vmatpush1.msra.mxu0 %v6479
  %6618 = vmatprep.subr.mxu0 %v6482
  %6619 = vmatpush1.msra.mxu0 %v6481
  %6620 = vmatprep.subr.mxu0 %v6484
  %6621 = vmatpush1.msra.mxu0 %v6483
  %6622 = vmatprep.subr.mxu0 %v6486
  %6623 = vmatpush1.msra.mxu0 %v6485
  %6624 = vmatprep.subr.mxu0 %v6488
  %6625 = vmatpush1.msra.mxu0 %v6487
  %6626 = vmatprep.subr.mxu0 %v6490
  %6627 = vmatpush1.msra.mxu0 %v6489
  %6628 = vmatprep.subr.mxu0 %v6492
  %6629 = vmatpush1.msra.mxu0 %v6491
  %6630 = vmatprep.subr.mxu0 %v6494
  %6631 = vmatpush1.msra.mxu0 %v6493
  %6632 = vmatprep.subr.mxu0 %v6496
  %6633 = vmatpush1.msra.mxu0 %v6495
  %6634 = vmatprep.mubr.f32.mxu0 %v6418
  %6635 = vmatmul.mubr.f32.gmra.mrb[0].mxu0 %v6417
  %v6636 = vpop.f32.mrb[0].mxu0
  %v6637 = vadd.f32 %v6540, %v6636
  %v6638 = vpop.f32.mrb[0].mxu0
  %v6639 = vadd.f32 %v6540, %v6638
  %6640 = vmatprep.mubr.f32.mxu0 %v6422
  %6641 = vmatmul.mubr.f32.gmra.mrb[0].mxu0 %v6421
  %v6642 = vpop.f32.mrb[0].mxu0
  %v6643 = vadd.f32 %v6545, %v6642
  %v6644 = vpop.f32.mrb[0].mxu0
  %v6645 = vadd.f32 %v6545, %v6644
  %6646 = vmatprep.mubr.f32.mxu0 %v6426
  %6647 = vmatmul.mubr.f32.gmra.mrb[0].mxu0 %v6425
  %v6648 = vpop.f32.mrb[0].mxu0
  %v6649 = vadd.f32 %v6550, %v6648
  %v6650 = vpop.f32.mrb[0].mxu0
  %v6651 = vadd.f32 %v6550, %v6650
  %6652 = vmatprep.mubr.f32.mxu0 %v6430
  %6653 = vmatmul.mubr.f32.gmra.mrb[0].mxu0 %v6429
  %v6654 = vpop.f32.mrb[0].mxu0
  %v6655 = vadd.f32 %v6555, %v6654
  %v6656 = vpop.f32.mrb[0].mxu0
  %v6657 = vadd.f32 %v6555, %v6656
  %6658 = vdwg.mxu0
  %6659 = vmatprep.subr.mxu0 %v6498
  %6660 = vmatpush1.msra.mxu0 %v6497
  %6661 = vmatprep.subr.mxu0 %v6500
  %6662 = vmatpush1.msra.mxu0 %v6499
  %6663 = vmatprep.subr.mxu0 %v6502
  %6664 = vmatpush1.msra.mxu0 %v6501
  %6665 = vmatprep.subr.mxu0 %v6504
  %6666 = vmatpush1.msra.mxu0 %v6503
  %6667 = vmatprep.subr.mxu0 %v6506
  %6668 = vmatpush1.msra.mxu0 %v6505
  %6669 = vmatprep.subr.mxu0 %v6508
  %6670 = vmatpush1.msra.mxu0 %v6507
  %6671 = vmatprep.subr.mxu0 %v6510
  %6672 = vmatpush1.msra.mxu0 %v6509
  %6673 = vmatprep.subr.mxu0 %v6512
  %6674 = vmatpush1.msra.mxu0 %v6511
  %6675 = vmatprep.subr.mxu0 %v6514
  %6676 = vmatpush1.msra.mxu0 %v6513
  %6677 = vmatprep.subr.mxu0 %v6516
  %6678 = vmatpush1.msra.mxu0 %v6515
  %6679 = vmatprep.subr.mxu0 %v6518
  %6680 = vmatpush1.msra.mxu0 %v6517
  %6681 = vmatprep.subr.mxu0 %v6520
  %6682 = vmatpush1.msra.mxu0 %v6519
  %6683 = vmatprep.subr.mxu0 %v6522
  %6684 = vmatpush1.msra.mxu0 %v6521
  %6685 = vmatprep.subr.mxu0 %v6524
  %6686 = vmatpush1.msra.mxu0 %v6523
  %6687 = vmatprep.subr.mxu0 %v6526
  %6688 = vmatpush1.msra.mxu0 %v6525
  %6689 = vmatprep.subr.mxu0 %v6528
  %6690 = vmatpush1.msra.mxu0 %v6527
  %6691 = vmatprep.subr.mxu0 %v6530
  %6692 = vmatpush1.msra.mxu0 %v6529
  %6693 = vmatprep.subr.mxu0 %v6532
  %6694 = vmatpush1.msra.mxu0 %v6531
  %6695 = vmatprep.subr.mxu0 0.0
  %6696 = vmatpush1.msra.mxu0 0.0
  %6697 = vmatprep.subr.mxu0 0.0
  %6698 = vmatpush1.msra.mxu0 0.0
  %6699 = vmatprep.subr.mxu0 0.0
  %6700 = vmatpush1.msra.mxu0 0.0
  %6701 = vmatprep.subr.mxu0 0.0
  %6702 = vmatpush1.msra.mxu0 0.0
  %6703 = vmatprep.subr.mxu0 0.0
  %6704 = vmatpush1.msra.mxu0 0.0
  %6705 = vmatprep.subr.mxu0 0.0
  %6706 = vmatpush1.msra.mxu0 0.0
  %6707 = vmatprep.subr.mxu0 0.0
  %6708 = vmatpush1.msra.mxu0 0.0
  %6709 = vmatprep.subr.mxu0 0.0
  %6710 = vmatpush1.msra.mxu0 0.0
  %6711 = vmatprep.subr.mxu0 0.0
  %6712 = vmatpush1.msra.mxu0 0.0
  %6713 = vmatprep.subr.mxu0 0.0
  %6714 = vmatpush1.msra.mxu0 0.0
  %6715 = vmatprep.subr.mxu0 0.0
  %6716 = vmatpush1.msra.mxu0 0.0
  %6717 = vmatprep.subr.mxu0 0.0
  %6718 = vmatpush1.msra.mxu0 0.0
  %6719 = vmatprep.subr.mxu0 0.0
  %6720 = vmatpush1.msra.mxu0 0.0
  %6721 = vmatprep.subr.mxu0 0.0
  %6722 = vmatpush1.msra.mxu0 0.0
  %6723 = vmatprep.mubr.f32.mxu0 %v6559
  %6724 = vmatmul.mubr.f32.gmra.mrb[0].mxu0 %v6419
  %v6725 = vpop.f32.mrb[0].mxu0
  %v6726 = vadd.f32 %v6637, %v6725
  %v6727 = vpop.f32.mrb[0].mxu0
  %v6728 = vadd.f32 %v6639, %v6727
  %6729 = vmatprep.mubr.f32.mxu0 %v6562
  %6730 = vmatmul.mubr.f32.gmra.mrb[0].mxu0 %v6423
  %v6731 = vpop.f32.mrb[0].mxu0
  %v6732 = vadd.f32 %v6643, %v6731
  %v6733 = vpop.f32.mrb[0].mxu0
  %v6734 = vadd.f32 %v6645, %v6733
  %6735 = vmatprep.mubr.f32.mxu0 %v6565
  %6736 = vmatmul.mubr.f32.gmra.mrb[0].mxu0 %v6427
  %v6737 = vpop.f32.mrb[0].mxu0
  %v6738 = vadd.f32 %v6649, %v6737
  %v6739 = vpop.f32.mrb[0].mxu0
  %v6740 = vadd.f32 %v6651, %v6739
  %6741 = vmatprep.mubr.f32.mxu0 %v6568
  %6742 = vmatmul.mubr.f32.gmra.mrb[0].mxu0 %v6431
  %v6743 = vpop.f32.mrb[0].mxu0
  %v6744 = vadd.f32 %v6655, %v6743
  %v6745 = vpop.f32.mrb[0].mxu0
  %v6746 = vadd.f32 %v6657, %v6745
  %6747 = vdwg.mxu0
  %v6748 = vmax.f32 %v6726, 0.0
  %v6749 = vmax.f32 %v6728, 0.0
  %v6750 = vmax.f32 %v6732, 0.0
  %v6751 = vmax.f32 %v6734, 0.0
  %v6752 = vmax.f32 %v6738, 0.0
  %v6753 = vmax.f32 %v6740, 0.0
  %v6754 = vmax.f32 %v6744, 0.0
  %v6755 = vmax.f32 %v6746, 0.0
  %6756 = vst [vmem:[#allocation7] sm:$0xff] %v6748
  %6757 = vst.msk [vmem:[#allocation7 + $0x8] sm:$0xff] %vm4743, %v6749
  %6758 = vst [vmem:[#allocation7 + $0x10] sm:$0xff] %v6750
  %6759 = vst.msk [vmem:[#allocation7 + $0x18] sm:$0xff] %vm4743, %v6751
  %6760 = vst [vmem:[#allocation7 + $0x20] sm:$0xff] %v6752
  %6761 = vst.msk [vmem:[#allocation7 + $0x28] sm:$0xff] %vm4743, %v6753
  %6762 = vst [vmem:[#allocation7 + $0x30] sm:$0xff] %v6754
  %6763 = vst.msk [vmem:[#allocation7 + $0x38] sm:$0xff] %vm4743, %v6755
  %v6764 = vld [vmem:[%s3] sm:$0xff]
  %v6765 = vld [vmem:[%s3 + $0x8] sm:$0xff]
  %v6766 = vld [vmem:[%s3 + $0x10] sm:$0xff]
  %v6767 = vld [vmem:[%s3 + $0x18] sm:$0xff]
  %v6768 = vld [vmem:[%s3 + $0x20] sm:$0xff]
  %v6769 = vld [vmem:[%s3 + $0x28] sm:$0xff]
  %v6770 = vld [vmem:[%s3 + $0x30] sm:$0xff]
  %v6771 = vld [vmem:[%s3 + $0x38] sm:$0xff]
  %v6772 = vld [vmem:[%s3 + $0x40] sm:$0xff]
  %v6773 = vld [vmem:[%s3 + $0x48] sm:$0xff]
  %v6774 = vld [vmem:[%s3 + $0x50] sm:$0xff]
  %v6775 = vld [vmem:[%s3 + $0x58] sm:$0xff]
  %v6776 = vld [vmem:[%s3 + $0x60] sm:$0xff]
  %v6777 = vld [vmem:[%s3 + $0x68] sm:$0xff]
  %v6778 = vld [vmem:[%s3 + $0x70] sm:$0xff]
  %v6779 = vld [vmem:[%s3 + $0x78] sm:$0xff]
  %s6780 = scalar_lea.vmem [#allocation6], 800
  %v6781 = vld [vmem:[%s6780] sm:$0xff]
  %v6782 = vld [vmem:[%s6780 + $0x8] sm:$0xff]
  %v6783 = vld [vmem:[%s6780 + $0x10] sm:$0xff]
  %v6784 = vld [vmem:[%s6780 + $0x18] sm:$0xff]
  %v6785 = vld [vmem:[%s6780 + $0x20] sm:$0xff]
  %v6786 = vld [vmem:[%s6780 + $0x28] sm:$0xff]
  %v6787 = vld [vmem:[%s6780 + $0x30] sm:$0xff]
  %v6788 = vld [vmem:[%s6780 + $0x38] sm:$0xff]
  %v6789 = vld [vmem:[%s6780 + $0x40] sm:$0xff]
  %v6790 = vld [vmem:[%s6780 + $0x48] sm:$0xff]
  %v6791 = vld [vmem:[%s6780 + $0x50] sm:$0xff]
  %v6792 = vld [vmem:[%s6780 + $0x58] sm:$0xff]
  %v6793 = vld [vmem:[%s6780 + $0x60] sm:$0xff]
  %v6794 = vld [vmem:[%s6780 + $0x68] sm:$0xff]
  %v6795 = vld [vmem:[%s6780 + $0x70] sm:$0xff]
  %v6796 = vld [vmem:[%s6780 + $0x78] sm:$0xff]
  %v6797 = vld [vmem:[%s6780 + $0x80] sm:$0xff]
  %v6798 = vld [vmem:[%s6780 + $0x88] sm:$0xff]
  %v6799 = vld [vmem:[%s6780 + $0x90] sm:$0xff]
  %v6800 = vld [vmem:[%s6780 + $0x98] sm:$0xff]
  %v6801 = vld [vmem:[%s6780 + $0xa0] sm:$0xff]
  %v6802 = vld [vmem:[%s6780 + $0xa8] sm:$0xff]
  %v6803 = vld [vmem:[%s6780 + $0xb0] sm:$0xff]
  %v6804 = vld [vmem:[%s6780 + $0xb8] sm:$0xff]
  %v6805 = vld [vmem:[%s6780 + $0xc0] sm:$0xff]
  %v6806 = vld [vmem:[%s6780 + $0xc8] sm:$0xff]
  %v6807 = vld [vmem:[%s6780 + $0xd0] sm:$0xff]
  %v6808 = vld [vmem:[%s6780 + $0xd8] sm:$0xff]
  %v6809 = vld [vmem:[%s6780 + $0xe0] sm:$0xff]
  %v6810 = vld [vmem:[%s6780 + $0xe8] sm:$0xff]
  %v6811 = vld [vmem:[%s6780 + $0xf0] sm:$0xff]
  %v6812 = vld [vmem:[%s6780 + $0xf8] sm:$0xff]
  %v6813 = vld [vmem:[%s6780 + $0x100] sm:$0xff]
  %v6814 = vld [vmem:[%s6780 + $0x108] sm:$0xff]
  %v6815 = vld [vmem:[%s6780 + $0x110] sm:$0xff]
  %v6816 = vld [vmem:[%s6780 + $0x118] sm:$0xff]
  %v6817 = vld [vmem:[%s6780 + $0x120] sm:$0xff]
  %v6818 = vld [vmem:[%s6780 + $0x128] sm:$0xff]
  %v6819 = vld [vmem:[%s6780 + $0x130] sm:$0xff]
  %v6820 = vld [vmem:[%s6780 + $0x138] sm:$0xff]
  %v6821 = vld [vmem:[%s6780 + $0x140] sm:$0xff]
  %v6822 = vld [vmem:[%s6780 + $0x148] sm:$0xff]
  %v6823 = vld [vmem:[%s6780 + $0x150] sm:$0xff]
  %v6824 = vld [vmem:[%s6780 + $0x158] sm:$0xff]
  %v6825 = vld [vmem:[%s6780 + $0x160] sm:$0xff]
  %v6826 = vld [vmem:[%s6780 + $0x168] sm:$0xff]
  %v6827 = vld [vmem:[%s6780 + $0x170] sm:$0xff]
  %v6828 = vld [vmem:[%s6780 + $0x178] sm:$0xff]
  %v6829 = vld [vmem:[%s6780 + $0x180] sm:$0xff]
  %v6830 = vld [vmem:[%s6780 + $0x188] sm:$0xff]
  %v6831 = vld [vmem:[%s6780 + $0x190] sm:$0xff]
  %v6832 = vld [vmem:[%s6780 + $0x198] sm:$0xff]
  %v6833 = vld [vmem:[%s6780 + $0x1a0] sm:$0xff]
  %v6834 = vld [vmem:[%s6780 + $0x1a8] sm:$0xff]
  %v6835 = vld [vmem:[%s6780 + $0x1b0] sm:$0xff]
  %v6836 = vld [vmem:[%s6780 + $0x1b8] sm:$0xff]
  %v6837 = vld [vmem:[%s6780 + $0x1c0] sm:$0xff]
  %v6838 = vld [vmem:[%s6780 + $0x1c8] sm:$0xff]
  %v6839 = vld [vmem:[%s6780 + $0x1d0] sm:$0xff]
  %v6840 = vld [vmem:[%s6780 + $0x1d8] sm:$0xff]
  %v6841 = vld [vmem:[%s6780 + $0x1e0] sm:$0xff]
  %v6842 = vld [vmem:[%s6780 + $0x1e8] sm:$0xff]
  %v6843 = vld [vmem:[%s6780 + $0x1f0] sm:$0xff]
  %v6844 = vld [vmem:[%s6780 + $0x1f8] sm:$0xff]
  %v6845 = vld [vmem:[%s6780 + $0x200] sm:$0xff]
  %v6846 = vld [vmem:[%s6780 + $0x208] sm:$0xff]
  %v6847 = vld [vmem:[%s6780 + $0x210] sm:$0xff]
  %v6848 = vld [vmem:[%s6780 + $0x218] sm:$0xff]
  %v6849 = vld [vmem:[%s6780 + $0x220] sm:$0xff]
  %v6850 = vld [vmem:[%s6780 + $0x228] sm:$0xff]
  %v6851 = vld [vmem:[%s6780 + $0x230] sm:$0xff]
  %v6852 = vld [vmem:[%s6780 + $0x238] sm:$0xff]
  %v6853 = vld [vmem:[%s6780 + $0x240] sm:$0xff]
  %v6854 = vld [vmem:[%s6780 + $0x248] sm:$0xff]
  %v6855 = vld [vmem:[%s6780 + $0x250] sm:$0xff]
  %v6856 = vld [vmem:[%s6780 + $0x258] sm:$0xff]
  %v6857 = vld [vmem:[%s6780 + $0x260] sm:$0xff]
  %v6858 = vld [vmem:[%s6780 + $0x268] sm:$0xff]
  %v6859 = vld [vmem:[%s6780 + $0x270] sm:$0xff]
  %v6860 = vld [vmem:[%s6780 + $0x278] sm:$0xff]
  %v6861 = vld [vmem:[%s6780 + $0x280] sm:$0xff]
  %v6862 = vld [vmem:[%s6780 + $0x288] sm:$0xff]
  %v6863 = vld [vmem:[%s6780 + $0x290] sm:$0xff]
  %v6864 = vld [vmem:[%s6780 + $0x298] sm:$0xff]
  %v6865 = vld [vmem:[%s6780 + $0x2a0] sm:$0xff]
  %v6866 = vld [vmem:[%s6780 + $0x2a8] sm:$0xff]
  %v6867 = vld [vmem:[%s6780 + $0x2b0] sm:$0xff]
  %v6868 = vld [vmem:[%s6780 + $0x2b8] sm:$0xff]
  %v6869 = vld [vmem:[%s6780 + $0x2c0] sm:$0xff]
  %v6870 = vld [vmem:[%s6780 + $0x2c8] sm:$0xff]
  %v6871 = vld [vmem:[%s6780 + $0x2d0] sm:$0xff]
  %v6872 = vld [vmem:[%s6780 + $0x2d8] sm:$0xff]
  %v6873 = vld [vmem:[%s6780 + $0x2e0] sm:$0xff]
  %v6874 = vld [vmem:[%s6780 + $0x2e8] sm:$0xff]
  %v6875 = vld [vmem:[%s6780 + $0x2f0] sm:$0xff]
  %v6876 = vld [vmem:[%s6780 + $0x2f8] sm:$0xff]
  %v6877 = vld [vmem:[%s6780 + $0x300] sm:$0xff]
  %v6878 = vld [vmem:[%s6780 + $0x308] sm:$0xff]
  %v6879 = vld [vmem:[%s6780 + $0x310] sm:$0xff]
  %v6880 = vld [vmem:[%s6780 + $0x318] sm:$0xff]
  %v6881 = vld [vmem:[%s4] sm:$0xff]
  %v6882 = vld [vmem:[%s4 + $0x8] sm:$0xff]
  %v6883 = vld [vmem:[%s4 + $0x10] sm:$0xff]
  %v6884 = vld [vmem:[%s4 + $0x18] sm:$0xff]
  %6886 = vset.pattern.permute.xlu0 0
  %6887 = vperm.xlu0 %6886, %v6881
  %v6888 = vpop.permute.xlu0 %6887
  %6891 = vset.pattern.permute.xlu0 0
  %6892 = vperm.xlu0 %6891, %v6882
  %v6893 = vpop.permute.xlu0 %6892
  %6896 = vset.pattern.permute.xlu0 0
  %6897 = vperm.xlu0 %6896, %v6883
  %v6898 = vpop.permute.xlu0 %6897
  %6901 = vset.pattern.permute.xlu0 0
  %6902 = vperm.xlu0 %6901, %v6884
  %v6903 = vpop.permute.xlu0 %6902
  %v6906 = vsel %vm6557, %v6767, 0
  %v6909 = vsel %vm6557, %v6771, 0
  %v6912 = vsel %vm6557, %v6775, 0
  %v6915 = vsel %vm6557, %v6779, 0
  %6917 = vmatprep.subr.mxu0 %v6782
  %6918 = vmatpush1.msra.mxu0 %v6781
  %6919 = vmatprep.subr.mxu0 %v6784
  %6920 = vmatpush1.msra.mxu0 %v6783
  %6921 = vmatprep.subr.mxu0 %v6786
  %6922 = vmatpush1.msra.mxu0 %v6785
  %6923 = vmatprep.subr.mxu0 %v6788
  %6924 = vmatpush1.msra.mxu0 %v6787
  %6925 = vmatprep.subr.mxu0 %v6790
  %6926 = vmatpush1.msra.mxu0 %v6789
  %6927 = vmatprep.subr.mxu0 %v6792
  %6928 = vmatpush1.msra.mxu0 %v6791
  %6929 = vmatprep.subr.mxu0 %v6794
  %6930 = vmatpush1.msra.mxu0 %v6793
  %6931 = vmatprep.subr.mxu0 %v6796
  %6932 = vmatpush1.msra.mxu0 %v6795
  %6933 = vmatprep.subr.mxu0 %v6798
  %6934 = vmatpush1.msra.mxu0 %v6797
  %6935 = vmatprep.subr.mxu0 %v6800
  %6936 = vmatpush1.msra.mxu0 %v6799
  %6937 = vmatprep.subr.mxu0 %v6802
  %6938 = vmatpush1.msra.mxu0 %v6801
  %6939 = vmatprep.subr.mxu0 %v6804
  %6940 = vmatpush1.msra.mxu0 %v6803
  %6941 = vmatprep.subr.mxu0 %v6806
  %6942 = vmatpush1.msra.mxu0 %v6805
  %6943 = vmatprep.subr.mxu0 %v6808
  %6944 = vmatpush1.msra.mxu0 %v6807
  %6945 = vmatprep.subr.mxu0 %v6810
  %6946 = vmatpush1.msra.mxu0 %v6809
  %6947 = vmatprep.subr.mxu0 %v6812
  %6948 = vmatpush1.msra.mxu0 %v6811
  %6949 = vmatprep.subr.mxu0 %v6814
  %6950 = vmatpush1.msra.mxu0 %v6813
  %6951 = vmatprep.subr.mxu0 %v6816
  %6952 = vmatpush1.msra.mxu0 %v6815
  %6953 = vmatprep.subr.mxu0 %v6818
  %6954 = vmatpush1.msra.mxu0 %v6817
  %6955 = vmatprep.subr.mxu0 %v6820
  %6956 = vmatpush1.msra.mxu0 %v6819
  %6957 = vmatprep.subr.mxu0 %v6822
  %6958 = vmatpush1.msra.mxu0 %v6821
  %6959 = vmatprep.subr.mxu0 %v6824
  %6960 = vmatpush1.msra.mxu0 %v6823
  %6961 = vmatprep.subr.mxu0 %v6826
  %6962 = vmatpush1.msra.mxu0 %v6825
  %6963 = vmatprep.subr.mxu0 %v6828
  %6964 = vmatpush1.msra.mxu0 %v6827
  %6965 = vmatprep.subr.mxu0 %v6830
  %6966 = vmatpush1.msra.mxu0 %v6829
  %6967 = vmatprep.subr.mxu0 %v6832
  %6968 = vmatpush1.msra.mxu0 %v6831
  %6969 = vmatprep.subr.mxu0 %v6834
  %6970 = vmatpush1.msra.mxu0 %v6833
  %6971 = vmatprep.subr.mxu0 %v6836
  %6972 = vmatpush1.msra.mxu0 %v6835
  %6973 = vmatprep.subr.mxu0 %v6838
  %6974 = vmatpush1.msra.mxu0 %v6837
  %6975 = vmatprep.subr.mxu0 %v6840
  %6976 = vmatpush1.msra.mxu0 %v6839
  %6977 = vmatprep.subr.mxu0 %v6842
  %6978 = vmatpush1.msra.mxu0 %v6841
  %6979 = vmatprep.subr.mxu0 %v6844
  %6980 = vmatpush1.msra.mxu0 %v6843
  %6981 = vmatprep.mubr.f32.mxu0 %v6765
  %6982 = vmatmul.mubr.f32.gmra.mrb[0].mxu0 %v6764
  %v6983 = vpop.f32.mrb[0].mxu0
  %v6984 = vadd.f32 %v6888, %v6983
  %v6985 = vpop.f32.mrb[0].mxu0
  %v6986 = vadd.f32 %v6888, %v6985
  %6987 = vmatprep.mubr.f32.mxu0 %v6769
  %6988 = vmatmul.mubr.f32.gmra.mrb[0].mxu0 %v6768
  %v6989 = vpop.f32.mrb[0].mxu0
  %v6990 = vadd.f32 %v6893, %v6989
  %v6991 = vpop.f32.mrb[0].mxu0
  %v6992 = vadd.f32 %v6893, %v6991
  %6993 = vmatprep.mubr.f32.mxu0 %v6773
  %6994 = vmatmul.mubr.f32.gmra.mrb[0].mxu0 %v6772
  %v6995 = vpop.f32.mrb[0].mxu0
  %v6996 = vadd.f32 %v6898, %v6995
  %v6997 = vpop.f32.mrb[0].mxu0
  %v6998 = vadd.f32 %v6898, %v6997
  %6999 = vmatprep.mubr.f32.mxu0 %v6777
  %7000 = vmatmul.mubr.f32.gmra.mrb[0].mxu0 %v6776
  %v7001 = vpop.f32.mrb[0].mxu0
  %v7002 = vadd.f32 %v6903, %v7001
  %v7003 = vpop.f32.mrb[0].mxu0
  %v7004 = vadd.f32 %v6903, %v7003
  %7005 = vdwg.mxu0
  %7006 = vmatprep.subr.mxu0 %v6846
  %7007 = vmatpush1.msra.mxu0 %v6845
  %7008 = vmatprep.subr.mxu0 %v6848
  %7009 = vmatpush1.msra.mxu0 %v6847
  %7010 = vmatprep.subr.mxu0 %v6850
  %7011 = vmatpush1.msra.mxu0 %v6849
  %7012 = vmatprep.subr.mxu0 %v6852
  %7013 = vmatpush1.msra.mxu0 %v6851
  %7014 = vmatprep.subr.mxu0 %v6854
  %7015 = vmatpush1.msra.mxu0 %v6853
  %7016 = vmatprep.subr.mxu0 %v6856
  %7017 = vmatpush1.msra.mxu0 %v6855
  %7018 = vmatprep.subr.mxu0 %v6858
  %7019 = vmatpush1.msra.mxu0 %v6857
  %7020 = vmatprep.subr.mxu0 %v6860
  %7021 = vmatpush1.msra.mxu0 %v6859
  %7022 = vmatprep.subr.mxu0 %v6862
  %7023 = vmatpush1.msra.mxu0 %v6861
  %7024 = vmatprep.subr.mxu0 %v6864
  %7025 = vmatpush1.msra.mxu0 %v6863
  %7026 = vmatprep.subr.mxu0 %v6866
  %7027 = vmatpush1.msra.mxu0 %v6865
  %7028 = vmatprep.subr.mxu0 %v6868
  %7029 = vmatpush1.msra.mxu0 %v6867
  %7030 = vmatprep.subr.mxu0 %v6870
  %7031 = vmatpush1.msra.mxu0 %v6869
  %7032 = vmatprep.subr.mxu0 %v6872
  %7033 = vmatpush1.msra.mxu0 %v6871
  %7034 = vmatprep.subr.mxu0 %v6874
  %7035 = vmatpush1.msra.mxu0 %v6873
  %7036 = vmatprep.subr.mxu0 %v6876
  %7037 = vmatpush1.msra.mxu0 %v6875
  %7038 = vmatprep.subr.mxu0 %v6878
  %7039 = vmatpush1.msra.mxu0 %v6877
  %7040 = vmatprep.subr.mxu0 %v6880
  %7041 = vmatpush1.msra.mxu0 %v6879
  %7042 = vmatprep.subr.mxu0 0.0
  %7043 = vmatpush1.msra.mxu0 0.0
  %7044 = vmatprep.subr.mxu0 0.0
  %7045 = vmatpush1.msra.mxu0 0.0
  %7046 = vmatprep.subr.mxu0 0.0
  %7047 = vmatpush1.msra.mxu0 0.0
  %7048 = vmatprep.subr.mxu0 0.0
  %7049 = vmatpush1.msra.mxu0 0.0
  %7050 = vmatprep.subr.mxu0 0.0
  %7051 = vmatpush1.msra.mxu0 0.0
  %7052 = vmatprep.subr.mxu0 0.0
  %7053 = vmatpush1.msra.mxu0 0.0
  %7054 = vmatprep.subr.mxu0 0.0
  %7055 = vmatpush1.msra.mxu0 0.0
  %7056 = vmatprep.subr.mxu0 0.0
  %7057 = vmatpush1.msra.mxu0 0.0
  %7058 = vmatprep.subr.mxu0 0.0
  %7059 = vmatpush1.msra.mxu0 0.0
  %7060 = vmatprep.subr.mxu0 0.0
  %7061 = vmatpush1.msra.mxu0 0.0
  %7062 = vmatprep.subr.mxu0 0.0
  %7063 = vmatpush1.msra.mxu0 0.0
  %7064 = vmatprep.subr.mxu0 0.0
  %7065 = vmatpush1.msra.mxu0 0.0
  %7066 = vmatprep.subr.mxu0 0.0
  %7067 = vmatpush1.msra.mxu0 0.0
  %7068 = vmatprep.subr.mxu0 0.0
  %7069 = vmatpush1.msra.mxu0 0.0
  %7070 = vmatprep.mubr.f32.mxu0 %v6906
  %7071 = vmatmul.mubr.f32.gmra.mrb[0].mxu0 %v6766
  %v7072 = vpop.f32.mrb[0].mxu0
  %v7073 = vadd.f32 %v6984, %v7072
  %v7074 = vpop.f32.mrb[0].mxu0
  %v7075 = vadd.f32 %v6986, %v7074
  %7076 = vmatprep.mubr.f32.mxu0 %v6909
  %7077 = vmatmul.mubr.f32.gmra.mrb[0].mxu0 %v6770
  %v7078 = vpop.f32.mrb[0].mxu0
  %v7079 = vadd.f32 %v6990, %v7078
  %v7080 = vpop.f32.mrb[0].mxu0
  %v7081 = vadd.f32 %v6992, %v7080
  %7082 = vmatprep.mubr.f32.mxu0 %v6912
  %7083 = vmatmul.mubr.f32.gmra.mrb[0].mxu0 %v6774
  %v7084 = vpop.f32.mrb[0].mxu0
  %v7085 = vadd.f32 %v6996, %v7084
  %v7086 = vpop.f32.mrb[0].mxu0
  %v7087 = vadd.f32 %v6998, %v7086
  %7088 = vmatprep.mubr.f32.mxu0 %v6915
  %7089 = vmatmul.mubr.f32.gmra.mrb[0].mxu0 %v6778
  %v7090 = vpop.f32.mrb[0].mxu0
  %v7091 = vadd.f32 %v7002, %v7090
  %v7092 = vpop.f32.mrb[0].mxu0
  %v7093 = vadd.f32 %v7004, %v7092
  %7094 = vdwg.mxu0
  %v7095 = vmax.f32 %v7073, 0.0
  %v7096 = vmax.f32 %v7075, 0.0
  %v7097 = vmax.f32 %v7079, 0.0
  %v7098 = vmax.f32 %v7081, 0.0
  %v7099 = vmax.f32 %v7085, 0.0
  %v7100 = vmax.f32 %v7087, 0.0
  %v7101 = vmax.f32 %v7091, 0.0
  %v7102 = vmax.f32 %v7093, 0.0
  %s7103 = scalar_lea.vmem [#allocation7], 64
  %7104 = vst [vmem:[%s7103] sm:$0xff] %v7095
  %7105 = vst.msk [vmem:[%s7103 + $0x8] sm:$0xff] %vm4743, %v7096
  %7106 = vst [vmem:[%s7103 + $0x10] sm:$0xff] %v7097
  %7107 = vst.msk [vmem:[%s7103 + $0x18] sm:$0xff] %vm4743, %v7098
  %7108 = vst [vmem:[%s7103 + $0x20] sm:$0xff] %v7099
  %7109 = vst.msk [vmem:[%s7103 + $0x28] sm:$0xff] %vm4743, %v7100
  %7110 = vst [vmem:[%s7103 + $0x30] sm:$0xff] %v7101
  %7111 = vst.msk [vmem:[%s7103 + $0x38] sm:$0xff] %vm4743, %v7102
  %v7112 = vld [vmem:[#allocation7] sm:$0xff]
  %v7113 = vld [vmem:[#allocation7 + $0x8] sm:$0xff]
  %v7114 = vld [vmem:[#allocation7 + $0x10] sm:$0xff]
  %v7115 = vld [vmem:[#allocation7 + $0x18] sm:$0xff]
  %v7116 = vld [vmem:[#allocation7 + $0x20] sm:$0xff]
  %v7117 = vld [vmem:[#allocation7 + $0x28] sm:$0xff]
  %v7118 = vld [vmem:[#allocation7 + $0x30] sm:$0xff]
  %v7119 = vld [vmem:[#allocation7 + $0x38] sm:$0xff]
  %7128 = vrot.lane.b32.xlu0 %v7112, 127
  %v7129 = vpop.permute.xlu0 %7128
  %7130 = vrot.lane.b32.xlu0 %v7113, 127
  %v7131 = vpop.permute.xlu0 %7130
  %7132 = vrot.lane.b32.xlu0 %v7114, 127
  %v7133 = vpop.permute.xlu0 %7132
  %7134 = vrot.lane.b32.xlu0 %v7115, 127
  %v7135 = vpop.permute.xlu0 %7134
  %7136 = vrot.lane.b32.xlu0 %v7116, 127
  %v7137 = vpop.permute.xlu0 %7136
  %7138 = vrot.lane.b32.xlu0 %v7117, 127
  %v7139 = vpop.permute.xlu0 %7138
  %7140 = vrot.lane.b32.xlu0 %v7118, 127
  %v7141 = vpop.permute.xlu0 %7140
  %7142 = vrot.lane.b32.xlu0 %v7119, 127
  %v7143 = vpop.permute.xlu0 %7142
  %v7144 = vsel %vm1181, %v7129, %v7131
  %v7145 = vsel %vm1181, %v7133, %v7135
  %v7146 = vsel %vm1181, %v7137, %v7139
  %v7147 = vsel %vm1181, %v7141, %v7143
  %v7156 = vmax.f32 %v7112, %v7144
  %v7157 = vmax.f32 %v7113, %v7131
  %v7158 = vmax.f32 %v7114, %v7145
  %v7159 = vmax.f32 %v7115, %v7135
  %v7160 = vmax.f32 %v7116, %v7146
  %v7161 = vmax.f32 %v7117, %v7139
  %v7162 = vmax.f32 %v7118, %v7147
  %v7163 = vmax.f32 %v7119, %v7143
  %7172 = vrot.lane.b32.xlu0 %v7156, 110
  %v7173 = vpop.permute.xlu0 %7172
  %7174 = vrot.lane.b32.xlu0 %v7157, 110
  %v7175 = vpop.permute.xlu0 %7174
  %7176 = vrot.lane.b32.xlu0 %v7158, 110
  %v7177 = vpop.permute.xlu0 %7176
  %7178 = vrot.lane.b32.xlu0 %v7159, 110
  %v7179 = vpop.permute.xlu0 %7178
  %7180 = vrot.lane.b32.xlu0 %v7160, 110
  %v7181 = vpop.permute.xlu0 %7180
  %7182 = vrot.lane.b32.xlu0 %v7161, 110
  %v7183 = vpop.permute.xlu0 %7182
  %7184 = vrot.lane.b32.xlu0 %v7162, 110
  %v7185 = vpop.permute.xlu0 %7184
  %7186 = vrot.lane.b32.xlu0 %v7163, 110
  %v7187 = vpop.permute.xlu0 %7186
  %v7188 = vsel %vm5007, %v7173, %v7175
  %v7189 = vsel %vm5007, %v7177, %v7179
  %v7190 = vsel %vm5007, %v7181, %v7183
  %v7191 = vsel %vm5007, %v7185, %v7187
  %v7200 = vmax.f32 %v7156, %v7188
  %v7201 = vmax.f32 %v7157, %v7175
  %v7202 = vmax.f32 %v7158, %v7189
  %v7203 = vmax.f32 %v7159, %v7179
  %v7204 = vmax.f32 %v7160, %v7190
  %v7205 = vmax.f32 %v7161, %v7183
  %v7206 = vmax.f32 %v7162, %v7191
  %v7207 = vmax.f32 %v7163, %v7187
  %v7208 = vld [vmem:[%s6] sm:$0xff]
  %v7209 = vld [vmem:[%s6 + $0x8] sm:$0xff]
  %v7210 = vld [vmem:[%s6 + $0x10] sm:$0xff]
  %v7211 = vld [vmem:[%s6 + $0x18] sm:$0xff]
  %v7212 = vld [vmem:[%s6 + $0x20] sm:$0xff]
  %v7213 = vld [vmem:[%s6 + $0x28] sm:$0xff]
  %v7214 = vld [vmem:[%s6 + $0x30] sm:$0xff]
  %v7215 = vld [vmem:[%s6 + $0x38] sm:$0xff]
  %v7216 = vld [vmem:[%s6 + $0x40] sm:$0xff]
  %v7217 = vld [vmem:[%s6 + $0x48] sm:$0xff]
  %v7218 = vld [vmem:[%s6 + $0x50] sm:$0xff]
  %v7219 = vld [vmem:[%s6 + $0x58] sm:$0xff]
  %v7220 = vld [vmem:[%s6 + $0x60] sm:$0xff]
  %v7221 = vld [vmem:[%s6 + $0x68] sm:$0xff]
  %v7222 = vld [vmem:[%s6 + $0x70] sm:$0xff]
  %v7223 = vld [vmem:[%s6 + $0x78] sm:$0xff]
  %v7224 = vld [vmem:[%s6 + $0x80] sm:$0xff]
  %v7225 = vld [vmem:[%s6 + $0x88] sm:$0xff]
  %v7226 = vld [vmem:[%s6 + $0x90] sm:$0xff]
  %v7227 = vld [vmem:[%s6 + $0x98] sm:$0xff]
  %v7228 = vld [vmem:[%s6 + $0xa0] sm:$0xff]
  %v7229 = vld [vmem:[%s6 + $0xa8] sm:$0xff]
  %v7230 = vld [vmem:[%s6 + $0xb0] sm:$0xff]
  %v7231 = vld [vmem:[%s6 + $0xb8] sm:$0xff]
  %v7232 = vld [vmem:[%s6 + $0xc0] sm:$0xff]
  %v7233 = vld [vmem:[%s6 + $0xc8] sm:$0xff]
  %v7234 = vld [vmem:[%s6 + $0xd0] sm:$0xff]
  %v7235 = vld [vmem:[%s6 + $0xd8] sm:$0xff]
  %v7236 = vld [vmem:[%s6 + $0xe0] sm:$0x1f]
  %vm7237 = vcmask 826368
  %v7239 = vsel %vm7237, %v7201, 0
  %v7242 = vsel %vm7237, %v7203, 0
  %v7245 = vsel %vm7237, %v7205, 0
  %v7248 = vsel %vm7237, %v7207, 0
  %vm7250 = vcmask 1044480
  %v7252 = vsel %vm7250, %v7236, 0
  %7254 = vmatprep.subr.mxu0 0.0
  %7255 = vmatpush1.msra.mxu0 %v7208
  %7256 = vmatprep.subr.mxu0 0.0
  %7257 = vmatpush1.msra.mxu0 %v7209
  %7258 = vmatprep.subr.mxu0 0.0
  %7259 = vmatpush1.msra.mxu0 %v7210
  %7260 = vmatprep.subr.mxu0 0.0
  %7261 = vmatpush1.msra.mxu0 %v7211
  %7262 = vmatprep.subr.mxu0 0.0
  %7263 = vmatpush1.msra.mxu0 %v7212
  %7264 = vmatprep.subr.mxu0 0.0
  %7265 = vmatpush1.msra.mxu0 %v7213
  %7266 = vmatprep.subr.mxu0 0.0
  %7267 = vmatpush1.msra.mxu0 %v7214
  %7268 = vmatprep.subr.mxu0 0.0
  %7269 = vmatpush1.msra.mxu0 %v7215
  %7270 = vmatprep.subr.mxu0 0.0
  %7271 = vmatpush1.msra.mxu0 %v7216
  %7272 = vmatprep.subr.mxu0 0.0
  %7273 = vmatpush1.msra.mxu0 %v7217
  %7274 = vmatprep.subr.mxu0 0.0
  %7275 = vmatpush1.msra.mxu0 %v7218
  %7276 = vmatprep.subr.mxu0 0.0
  %7277 = vmatpush1.msra.mxu0 %v7219
  %7278 = vmatprep.subr.mxu0 0.0
  %7279 = vmatpush1.msra.mxu0 %v7220
  %7280 = vmatprep.subr.mxu0 0.0
  %7281 = vmatpush1.msra.mxu0 %v7221
  %7282 = vmatprep.subr.mxu0 0.0
  %7283 = vmatpush1.msra.mxu0 %v7222
  %7284 = vmatprep.subr.mxu0 0.0
  %7285 = vmatpush1.msra.mxu0 %v7223
  %7286 = vmatprep.subr.mxu0 0.0
  %7287 = vmatpush1.msra.mxu0 %v7224
  %7288 = vmatprep.subr.mxu0 0.0
  %7289 = vmatpush1.msra.mxu0 %v7225
  %7290 = vmatprep.subr.mxu0 0.0
  %7291 = vmatpush1.msra.mxu0 %v7226
  %7292 = vmatprep.subr.mxu0 0.0
  %7293 = vmatpush1.msra.mxu0 %v7227
  %7294 = vmatprep.subr.mxu0 0.0
  %7295 = vmatpush1.msra.mxu0 %v7228
  %7296 = vmatprep.subr.mxu0 0.0
  %7297 = vmatpush1.msra.mxu0 %v7229
  %7298 = vmatprep.subr.mxu0 0.0
  %7299 = vmatpush1.msra.mxu0 %v7230
  %7300 = vmatprep.subr.mxu0 0.0
  %7301 = vmatpush1.msra.mxu0 %v7231
  %7302 = vmatprep.subr.mxu0 0.0
  %7303 = vmatpush1.msra.mxu0 %v7232
  %7304 = vmatprep.subr.mxu0 0.0
  %7305 = vmatpush1.msra.mxu0 %v7233
  %7306 = vmatprep.subr.mxu0 0.0
  %7307 = vmatpush1.msra.mxu0 %v7234
  %7308 = vmatprep.subr.mxu0 0.0
  %7309 = vmatpush1.msra.mxu0 %v7235
  %7310 = vmatprep.subr.mxu0 0.0
  %7311 = vmatpush1.msra.mxu0 %v7252
  %7312 = vmatprep.subr.mxu0 0.0
  %7313 = vmatpush1.msra.mxu0 0.0
  %7314 = vmatprep.subr.mxu0 0.0
  %7315 = vmatpush1.msra.mxu0 0.0
  %7316 = vmatprep.subr.mxu0 0.0
  %7317 = vmatpush1.msra.mxu0 0.0
  %7318 = vmatprep.mubr.f32.mxu0 %v7239
  %7319 = vmatmul.mubr.f32.gmra.mrb[0].mxu0 %v7200
  %v7320 = vpop.f32.mrb[0].mxu0
  %v7321 = vadd.f32 0.0, %v7320
  %v7322 = vpop.f32.mrb[0].mxu0
  %7323 = vmatprep.mubr.f32.mxu0 %v7242
  %7324 = vmatmul.mubr.f32.gmra.mrb[0].mxu0 %v7202
  %v7325 = vpop.f32.mrb[0].mxu0
  %v7326 = vadd.f32 0.0, %v7325
  %v7327 = vpop.f32.mrb[0].mxu0
  %7328 = vmatprep.mubr.f32.mxu0 %v7245
  %7329 = vmatmul.mubr.f32.gmra.mrb[0].mxu0 %v7204
  %v7330 = vpop.f32.mrb[0].mxu0
  %v7331 = vadd.f32 0.0, %v7330
  %v7332 = vpop.f32.mrb[0].mxu0
  %7333 = vmatprep.mubr.f32.mxu0 %v7248
  %7334 = vmatmul.mubr.f32.gmra.mrb[0].mxu0 %v7206
  %v7335 = vpop.f32.mrb[0].mxu0
  %v7336 = vadd.f32 0.0, %v7335
  %v7337 = vpop.f32.mrb[0].mxu0
  %7338 = vdwg.mxu0
  %vm7339 = vcmask 400384
  %7340 = vst.msk [vmem:[%s7] sm:$0xff] %vm7339, %v7321
  %7341 = vst.msk [vmem:[%s7 + $0x8] sm:$0xff] %vm7339, %v7326
  %7342 = vst.msk [vmem:[%s7 + $0x10] sm:$0xff] %vm7339, %v7331
  %7343 = vst.msk [vmem:[%s7 + $0x18] sm:$0xff] %vm7339, %v7336
  %v7344 = vld [vmem:[%s7103] sm:$0xff]
  %v7345 = vld [vmem:[%s7103 + $0x8] sm:$0xff]
  %v7346 = vld [vmem:[%s7103 + $0x10] sm:$0xff]
  %v7347 = vld [vmem:[%s7103 + $0x18] sm:$0xff]
  %v7348 = vld [vmem:[%s7103 + $0x20] sm:$0xff]
  %v7349 = vld [vmem:[%s7103 + $0x28] sm:$0xff]
  %v7350 = vld [vmem:[%s7103 + $0x30] sm:$0xff]
  %v7351 = vld [vmem:[%s7103 + $0x38] sm:$0xff]
  %7360 = vrot.lane.b32.xlu0 %v7344, 127
  %v7361 = vpop.permute.xlu0 %7360
  %7362 = vrot.lane.b32.xlu0 %v7345, 127
  %v7363 = vpop.permute.xlu0 %7362
  %7364 = vrot.lane.b32.xlu0 %v7346, 127
  %v7365 = vpop.permute.xlu0 %7364
  %7366 = vrot.lane.b32.xlu0 %v7347, 127
  %v7367 = vpop.permute.xlu0 %7366
  %7368 = vrot.lane.b32.xlu0 %v7348, 127
  %v7369 = vpop.permute.xlu0 %7368
  %7370 = vrot.lane.b32.xlu0 %v7349, 127
  %v7371 = vpop.permute.xlu0 %7370
  %7372 = vrot.lane.b32.xlu0 %v7350, 127
  %v7373 = vpop.permute.xlu0 %7372
  %7374 = vrot.lane.b32.xlu0 %v7351, 127
  %v7375 = vpop.permute.xlu0 %7374
  %v7376 = vsel %vm1181, %v7361, %v7363
  %v7377 = vsel %vm1181, %v7365, %v7367
  %v7378 = vsel %vm1181, %v7369, %v7371
  %v7379 = vsel %vm1181, %v7373, %v7375
  %v7388 = vmax.f32 %v7344, %v7376
  %v7389 = vmax.f32 %v7345, %v7363
  %v7390 = vmax.f32 %v7346, %v7377
  %v7391 = vmax.f32 %v7347, %v7367
  %v7392 = vmax.f32 %v7348, %v7378
  %v7393 = vmax.f32 %v7349, %v7371
  %v7394 = vmax.f32 %v7350, %v7379
  %v7395 = vmax.f32 %v7351, %v7375
  %7404 = vrot.lane.b32.xlu0 %v7388, 110
  %v7405 = vpop.permute.xlu0 %7404
  %7406 = vrot.lane.b32.xlu0 %v7389, 110
  %v7407 = vpop.permute.xlu0 %7406
  %7408 = vrot.lane.b32.xlu0 %v7390, 110
  %v7409 = vpop.permute.xlu0 %7408
  %7410 = vrot.lane.b32.xlu0 %v7391, 110
  %v7411 = vpop.permute.xlu0 %7410
  %7412 = vrot.lane.b32.xlu0 %v7392, 110
  %v7413 = vpop.permute.xlu0 %7412
  %7414 = vrot.lane.b32.xlu0 %v7393, 110
  %v7415 = vpop.permute.xlu0 %7414
  %7416 = vrot.lane.b32.xlu0 %v7394, 110
  %v7417 = vpop.permute.xlu0 %7416
  %7418 = vrot.lane.b32.xlu0 %v7395, 110
  %v7419 = vpop.permute.xlu0 %7418
  %v7420 = vsel %vm5007, %v7405, %v7407
  %v7421 = vsel %vm5007, %v7409, %v7411
  %v7422 = vsel %vm5007, %v7413, %v7415
  %v7423 = vsel %vm5007, %v7417, %v7419
  %v7432 = vmax.f32 %v7388, %v7420
  %v7433 = vmax.f32 %v7389, %v7407
  %v7434 = vmax.f32 %v7390, %v7421
  %v7435 = vmax.f32 %v7391, %v7411
  %v7436 = vmax.f32 %v7392, %v7422
  %v7437 = vmax.f32 %v7393, %v7415
  %v7438 = vmax.f32 %v7394, %v7423
  %v7439 = vmax.f32 %v7395, %v7419
  %v7440 = vld [vmem:[%s6] sm:$0xff]
  %v7441 = vld [vmem:[%s6 + $0x8] sm:$0xff]
  %v7442 = vld [vmem:[%s6 + $0x10] sm:$0xff]
  %v7443 = vld [vmem:[%s6 + $0x18] sm:$0xff]
  %v7444 = vld [vmem:[%s6 + $0x20] sm:$0xff]
  %v7445 = vld [vmem:[%s6 + $0x28] sm:$0xff]
  %v7446 = vld [vmem:[%s6 + $0x30] sm:$0xff]
  %v7447 = vld [vmem:[%s6 + $0x38] sm:$0xff]
  %v7448 = vld [vmem:[%s6 + $0x40] sm:$0xff]
  %v7449 = vld [vmem:[%s6 + $0x48] sm:$0xff]
  %v7450 = vld [vmem:[%s6 + $0x50] sm:$0xff]
  %v7451 = vld [vmem:[%s6 + $0x58] sm:$0xff]
  %v7452 = vld [vmem:[%s6 + $0x60] sm:$0xff]
  %v7453 = vld [vmem:[%s6 + $0x68] sm:$0xff]
  %v7454 = vld [vmem:[%s6 + $0x70] sm:$0xff]
  %v7455 = vld [vmem:[%s6 + $0x78] sm:$0xff]
  %v7456 = vld [vmem:[%s6 + $0x80] sm:$0xff]
  %v7457 = vld [vmem:[%s6 + $0x88] sm:$0xff]
  %v7458 = vld [vmem:[%s6 + $0x90] sm:$0xff]
  %v7459 = vld [vmem:[%s6 + $0x98] sm:$0xff]
  %v7460 = vld [vmem:[%s6 + $0xa0] sm:$0xff]
  %v7461 = vld [vmem:[%s6 + $0xa8] sm:$0xff]
  %v7462 = vld [vmem:[%s6 + $0xb0] sm:$0xff]
  %v7463 = vld [vmem:[%s6 + $0xb8] sm:$0xff]
  %v7464 = vld [vmem:[%s6 + $0xc0] sm:$0xff]
  %v7465 = vld [vmem:[%s6 + $0xc8] sm:$0xff]
  %v7466 = vld [vmem:[%s6 + $0xd0] sm:$0xff]
  %v7467 = vld [vmem:[%s6 + $0xd8] sm:$0xff]
  %v7468 = vld [vmem:[%s6 + $0xe0] sm:$0x1f]
  %v7470 = vsel %vm7237, %v7433, 0
  %v7473 = vsel %vm7237, %v7435, 0
  %v7476 = vsel %vm7237, %v7437, 0
  %v7479 = vsel %vm7237, %v7439, 0
  %v7482 = vsel %vm7250, %v7468, 0
  %7484 = vmatprep.subr.mxu0 0.0
  %7485 = vmatpush1.msra.mxu0 %v7440
  %7486 = vmatprep.subr.mxu0 0.0
  %7487 = vmatpush1.msra.mxu0 %v7441
  %7488 = vmatprep.subr.mxu0 0.0
  %7489 = vmatpush1.msra.mxu0 %v7442
  %7490 = vmatprep.subr.mxu0 0.0
  %7491 = vmatpush1.msra.mxu0 %v7443
  %7492 = vmatprep.subr.mxu0 0.0
  %7493 = vmatpush1.msra.mxu0 %v7444
  %7494 = vmatprep.subr.mxu0 0.0
  %7495 = vmatpush1.msra.mxu0 %v7445
  %7496 = vmatprep.subr.mxu0 0.0
  %7497 = vmatpush1.msra.mxu0 %v7446
  %7498 = vmatprep.subr.mxu0 0.0
  %7499 = vmatpush1.msra.mxu0 %v7447
  %7500 = vmatprep.subr.mxu0 0.0
  %7501 = vmatpush1.msra.mxu0 %v7448
  %7502 = vmatprep.subr.mxu0 0.0
  %7503 = vmatpush1.msra.mxu0 %v7449
  %7504 = vmatprep.subr.mxu0 0.0
  %7505 = vmatpush1.msra.mxu0 %v7450
  %7506 = vmatprep.subr.mxu0 0.0
  %7507 = vmatpush1.msra.mxu0 %v7451
  %7508 = vmatprep.subr.mxu0 0.0
  %7509 = vmatpush1.msra.mxu0 %v7452
  %7510 = vmatprep.subr.mxu0 0.0
  %7511 = vmatpush1.msra.mxu0 %v7453
  %7512 = vmatprep.subr.mxu0 0.0
  %7513 = vmatpush1.msra.mxu0 %v7454
  %7514 = vmatprep.subr.mxu0 0.0
  %7515 = vmatpush1.msra.mxu0 %v7455
  %7516 = vmatprep.subr.mxu0 0.0
  %7517 = vmatpush1.msra.mxu0 %v7456
  %7518 = vmatprep.subr.mxu0 0.0
  %7519 = vmatpush1.msra.mxu0 %v7457
  %7520 = vmatprep.subr.mxu0 0.0
  %7521 = vmatpush1.msra.mxu0 %v7458
  %7522 = vmatprep.subr.mxu0 0.0
  %7523 = vmatpush1.msra.mxu0 %v7459
  %7524 = vmatprep.subr.mxu0 0.0
  %7525 = vmatpush1.msra.mxu0 %v7460
  %7526 = vmatprep.subr.mxu0 0.0
  %7527 = vmatpush1.msra.mxu0 %v7461
  %7528 = vmatprep.subr.mxu0 0.0
  %7529 = vmatpush1.msra.mxu0 %v7462
  %7530 = vmatprep.subr.mxu0 0.0
  %7531 = vmatpush1.msra.mxu0 %v7463
  %7532 = vmatprep.subr.mxu0 0.0
  %7533 = vmatpush1.msra.mxu0 %v7464
  %7534 = vmatprep.subr.mxu0 0.0
  %7535 = vmatpush1.msra.mxu0 %v7465
  %7536 = vmatprep.subr.mxu0 0.0
  %7537 = vmatpush1.msra.mxu0 %v7466
  %7538 = vmatprep.subr.mxu0 0.0
  %7539 = vmatpush1.msra.mxu0 %v7467
  %7540 = vmatprep.subr.mxu0 0.0
  %7541 = vmatpush1.msra.mxu0 %v7482
  %7542 = vmatprep.subr.mxu0 0.0
  %7543 = vmatpush1.msra.mxu0 0.0
  %7544 = vmatprep.subr.mxu0 0.0
  %7545 = vmatpush1.msra.mxu0 0.0
  %7546 = vmatprep.subr.mxu0 0.0
  %7547 = vmatpush1.msra.mxu0 0.0
  %7548 = vmatprep.mubr.f32.mxu0 %v7470
  %7549 = vmatmul.mubr.f32.gmra.mrb[0].mxu0 %v7432
  %v7550 = vpop.f32.mrb[0].mxu0
  %v7551 = vadd.f32 0.0, %v7550
  %v7552 = vpop.f32.mrb[0].mxu0
  %7553 = vmatprep.mubr.f32.mxu0 %v7473
  %7554 = vmatmul.mubr.f32.gmra.mrb[0].mxu0 %v7434
  %v7555 = vpop.f32.mrb[0].mxu0
  %v7556 = vadd.f32 0.0, %v7555
  %v7557 = vpop.f32.mrb[0].mxu0
  %7558 = vmatprep.mubr.f32.mxu0 %v7476
  %7559 = vmatmul.mubr.f32.gmra.mrb[0].mxu0 %v7436
  %v7560 = vpop.f32.mrb[0].mxu0
  %v7561 = vadd.f32 0.0, %v7560
  %v7562 = vpop.f32.mrb[0].mxu0
  %7563 = vmatprep.mubr.f32.mxu0 %v7479
  %7564 = vmatmul.mubr.f32.gmra.mrb[0].mxu0 %v7438
  %v7565 = vpop.f32.mrb[0].mxu0
  %v7566 = vadd.f32 0.0, %v7565
  %v7567 = vpop.f32.mrb[0].mxu0
  %7568 = vdwg.mxu0
  %s7569 = scalar_lea.vmem %s7, 32
  %7570 = vst.msk [vmem:[%s7569] sm:$0xff] %vm7339, %v7551
  %7571 = vst.msk [vmem:[%s7569 + $0x8] sm:$0xff] %vm7339, %v7556
  %7572 = vst.msk [vmem:[%s7569 + $0x10] sm:$0xff] %vm7339, %v7561
  %7573 = vst.msk [vmem:[%s7569 + $0x18] sm:$0xff] %vm7339, %v7566
  // Predicated region
  $region30: #{cnn_forward.2} parent=0 // pred_check
    _
  $region31: #{cnn_forward.2} parent=0 // pred_check_branch
    %7575 = sbr.rel (0) target = $region33
  $region32: #{cnn_forward.2} parent=0 // pred_region
    _
  $region33: #{cnn_forward.2} parent=0 // pred_fallthru
    _
  // Predicated region
  $region34: #{cnn_forward.2} parent=0 // pred_check
    _
  $region35: #{cnn_forward.2} parent=0 // pred_check_branch
    %7577 = sbr.rel (0) target = $region37
  $region36: #{cnn_forward.2} parent=0 // pred_region
    _
  $region37: #{cnn_forward.2} parent=0 // pred_fallthru
    _

</llo_original>
